<compile_context>
chip_gen: v6e
topology: v6e:2x2x1
jax: 0.10.0
libtpu: 0.0.40
codegen_flags: <defaults>
</compile_context>

<pallas_src>
import functools

import jax
import jax.numpy as jnp
from jax.experimental import pallas as pl
from jax.experimental.pallas import tpu as pltpu


_WOFF = 8  # sublane-aligned W offset at which the un-padded interior is stored


def _affine_relu_pool(acc, scale, bias, n, h, w, c):
    """Folded-BN affine + ReLU on [n*h*w, c] (f32), then 2x2 maxpool.

    Returns [n, h//2, w//2, c] (f32)."""
    y = jnp.maximum(acc * scale + bias, 0.0)
    # 2x2 max-pool via the (proven) 5-D reshape: rows are (n, y, x) row-major.
    y = y.reshape(n * (h // 2), 2, w // 2, 2, c)
    y = jnp.max(jnp.max(y, axis=3), axis=1)          # [n*(h//2), w//2, c]
    return y.reshape(n, h // 2, w // 2, c)


def _convnet4_kernel(x1_ref, w1_ref, w234_ref, s_ref, b_ref, o_ref,
                     pad2_ref, pad3_ref, pad4_ref, *, N, H, W, C):
    """Whole Conv-4 encoder + global average pool, fully VMEM-resident.

    x1_ref:   [N*H*W, 9*Cin]  bf16  (block-1 im2col patches, packed on host)
    w1_ref:   [9*Cin, C]      bf16
    w234_ref: [27, C, C]      bf16  (blocks 2-4, tap index = blk*9 + dy*3 + dx)
    s_ref:    [4, C] f32  folded BN scale per block
    b_ref:    [4, C] f32  folded BN bias  per block
    o_ref:    [N, C] f32  embeddings
    padK_ref: f32 scratch [N, h+2, w+9, C] used for in-kernel pad=1
    """
    # ---- Block 1: single im2col matmul on the MXU (K = 9*Cin). ----
    acc = jnp.dot(x1_ref[...], w1_ref[...], preferred_element_type=jnp.float32)
    p = _affine_relu_pool(acc, s_ref[0], b_ref[0], N, H, W, C)   # [N,H/2,W/2,C]

    # ---- Blocks 2..4: activations stay in VMEM. ----
    h, w = H // 2, W // 2
    for blk, pad_ref in enumerate((pad2_ref, pad3_ref, pad4_ref)):
        # pad=1: zero the scratch, store the interior at W offset _WOFF (aligned).
        # The zero border columns _WOFF-1 and _WOFF+w provide the spatial padding.
        pad_ref[...] = jnp.zeros_like(pad_ref)
        pad_ref[:, 1:h + 1, _WOFF:_WOFF + w, :] = p
        xp = pad_ref[...]                                        # [N, h+2, w+9, C] f32

        # 3x3 conv as 9 accumulated [N*h*w, C] @ [C, C] matmuls (bf16 in, f32 acc).
        acc = None
        for dy in range(3):
            for dx in range(3):
                x0 = _WOFF - 1 + dx
                patch = xp[:, dy:dy + h, x0:x0 + w, :]
                patch = patch.reshape(N * h * w, C).astype(jnp.bfloat16)
                part = jnp.dot(patch, w234_ref[blk * 9 + dy * 3 + dx],
                               preferred_element_type=jnp.float32)
                acc = part if acc is None else acc + part

        p = _affine_relu_pool(acc, s_ref[blk + 1], b_ref[blk + 1], N, h, w, C)
        h, w = h // 2, w // 2

    # ---- Global average pool -> embeddings [N, C]. ----
    if h * w == 1:
        emb = p.reshape(N, C)
    else:
        emb = jnp.sum(p, axis=(1, 2)) * (1.0 / (h * w))
    o_ref[...] = emb.astype(o_ref.dtype)


def convnet_forward(x_nhwc, params):
    """Conv-4 encoder as ONE fused pallas_call. x_nhwc: [N, H, W, Cin] f32."""
    N, H, W, Cin = x_nhwc.shape
    assert len(params) == 4, "fused kernel assumes the 4-block ConvNet backbone"
    C = params[0][0].shape[-1]
    assert H % 16 == 0 and W % 16 == 0, "need 4 rounds of 2x2 pooling"

    # Host-side im2col pre-pack for block 1 (Cin is tiny; feeds the MXU directly).
    xp = jnp.pad(x_nhwc, ((0, 0), (1, 1), (1, 1), (0, 0)))
    cols = [xp[:, dy:dy + H, dx:dx + W, :] for dy in range(3) for dx in range(3)]
    x1 = jnp.concatenate(cols, axis=-1).reshape(N * H * W, 9 * Cin)
    x1 = x1.astype(jnp.bfloat16)

    # Weights: block 1 as [9*Cin, C]; blocks 2-4 stacked per tap as [27, C, C].
    w1 = params[0][0].reshape(9 * Cin, C).astype(jnp.bfloat16)
    w234 = jnp.concatenate([p[0].reshape(9, C, C) for p in params[1:]],
                           axis=0).astype(jnp.bfloat16)
    scales = jnp.stack([p[1] for p in params], axis=0).astype(jnp.float32)  # [4, C]
    biases = jnp.stack([p[2] for p in params], axis=0).astype(jnp.float32)  # [4, C]

    H2, W2 = H // 2, W // 2
    H3, W3 = H // 4, W // 4
    H4, W4 = H // 8, W // 8

    kernel = functools.partial(_convnet4_kernel, N=N, H=H, W=W, C=C)

    emb = pl.pallas_call(
        kernel,
        out_shape=jax.ShapeDtypeStruct((N, C), jnp.float32),
        grid_spec=pltpu.PrefetchScalarGridSpec(
            num_scalar_prefetch=0,
            grid=(1,),
            in_specs=[
                pl.BlockSpec((N * H * W, 9 * Cin), lambda i: (0, 0)),
                pl.BlockSpec((9 * Cin, C), lambda i: (0, 0)),
                pl.BlockSpec((27, C, C), lambda i: (0, 0, 0)),
                pl.BlockSpec((4, C), lambda i: (0, 0)),
                pl.BlockSpec((4, C), lambda i: (0, 0)),
            ],
            out_specs=pl.BlockSpec((N, C), lambda i: (0, 0)),
            scratch_shapes=[
                pltpu.VMEM((N, H2 + 2, W2 + 9, C), jnp.float32),
                pltpu.VMEM((N, H3 + 2, W3 + 9, C), jnp.float32),
                pltpu.VMEM((N, H4 + 2, W4 + 9, C), jnp.float32),
            ],
        ),
        compiler_params=pltpu.CompilerParams(
            dimension_semantics=("arbitrary",),
        ),
    )(x1, w1, w234, scales, biases)
    return emb


def init_params(key, in_channels=3, hid=64, n_blocks=4):
    """Deterministic parameter init for the Conv-4 backbone (BN in eval mode)."""
    params = []
    cin = in_channels
    eps = 1e-5
    for _ in range(n_blocks):
        key, wk = jax.random.split(key)
        fan_in = 3 * 3 * cin
        w = jax.random.normal(wk, (3, 3, cin, hid), jnp.float32) * (2.0 / fan_in) ** 0.5
        gamma = jnp.ones((hid,), jnp.float32)
        beta = jnp.zeros((hid,), jnp.float32)
        running_mean = jnp.zeros((hid,), jnp.float32)
        running_var = jnp.ones((hid,), jnp.float32)
        scale = gamma / jnp.sqrt(running_var + eps)
        bias = beta - running_mean * scale
        params.append((w, scale, bias))
        cin = hid
    return params


def base_model_forward(x, params):
    """BaseModel.forward: squeeze(0) -> ConvNet encoder -> embeddings.

    x: [1, N, C, H, W] (PyTorch NCHW with an extra leading dim).
    Returns embeddings [N, 64].
    """
    x = jnp.squeeze(x, axis=0)              # [N, C, H, W]
    x = jnp.transpose(x, (0, 2, 3, 1))      # -> NHWC
    embeddings = convnet_forward(x, params)
    # TODO(synk): subclass-specific self._forward(embeddings) is not implemented
    #             in the reference base class (raises NotImplementedError).
    return embeddings


if __name__ == "__main__":
    key = jax.random.PRNGKey(0)
    key, xk = jax.random.split(key)
    # Small shapes: episode of N=2 images, 3 channels, 16x16 spatial.
    x = jax.random.normal(xk, (1, 2, 3, 16, 16), jnp.float32)
    params = init_params(key, in_channels=3, hid=64, n_blocks=4)

    fwd = jax.jit(base_model_forward)
    out = fwd(x, params)
    out = jax.block_until_ready(out)
    assert out.shape == (2, 64), out.shape
    assert jnp.all(jnp.isfinite(out))
    print("KERNEL_OK")
</pallas_src>

<mosaic_0001>
module attributes {stable_mosaic.version = 11 : i64} {
  func.func @_convnet4_kernel(%arg0: i32, %arg1: memref<512x27xbf16, #tpu.memory_space<vmem>>, %arg2: memref<27x64xbf16, #tpu.memory_space<vmem>>, %arg3: memref<27x64x64xbf16, #tpu.memory_space<vmem>>, %arg4: memref<4x64xf32, #tpu.memory_space<vmem>>, %arg5: memref<4x64xf32, #tpu.memory_space<vmem>>, %arg6: memref<2x64xf32, #tpu.memory_space<vmem>>, %arg7: memref<2x10x17x64xf32, #tpu.memory_space<vmem>>, %arg8: memref<2x6x13x64xf32, #tpu.memory_space<vmem>>, %arg9: memref<2x4x11x64xf32, #tpu.memory_space<vmem>>) attributes {dimension_semantics = [#tpu.dimension_semantics<arbitrary>], iteration_bounds = array<i64: 1>, scalar_prefetch = 0 : i64, scratch_operands = 3 : i64, tpu.core_type = #tpu.core_type<tc>, window_params = [{pipeline_mode = #tpu.pipeline_mode<synchronous>, transform_indices = @transform_0, window_bounds = array<i64: 512, 27>}, {pipeline_mode = #tpu.pipeline_mode<synchronous>, transform_indices = @transform_1, window_bounds = array<i64: 27, 64>}, {pipeline_mode = #tpu.pipeline_mode<synchronous>, transform_indices = @transform_2, window_bounds = array<i64: 27, 64, 64>}, {pipeline_mode = #tpu.pipeline_mode<synchronous>, transform_indices = @transform_3, window_bounds = array<i64: 4, 64>}, {pipeline_mode = #tpu.pipeline_mode<synchronous>, transform_indices = @transform_4, window_bounds = array<i64: 4, 64>}, {pipeline_mode = #tpu.pipeline_mode<synchronous>, transform_indices = @transform_5, window_bounds = array<i64: 2, 64>}]} {
    %c0 = arith.constant 0 : index
    %c0_0 = arith.constant 0 : index
    %0 = vector.load %arg1[%c0, %c0_0] : memref<512x27xbf16, #tpu.memory_space<vmem>>, vector<512x27xbf16>
    %c0_1 = arith.constant 0 : index
    %c0_2 = arith.constant 0 : index
    %1 = vector.load %arg2[%c0_1, %c0_2] : memref<27x64xbf16, #tpu.memory_space<vmem>>, vector<27x64xbf16>
    %cst = arith.constant dense<0.000000e+00> : vector<512x64xf32>
    %2 = tpu.matmul %0, %1, %cst {dimension_numbers = #tpu.dot_dimension_numbers<[1], [0], [0], [1], [0, 0, 1, 1], [], []>} : vector<512x27xbf16>, vector<27x64xbf16>, vector<512x64xf32> -> vector<512x64xf32>
    %c0_3 = arith.constant 0 : index
    %c0_4 = arith.constant 0 : index
    %3 = vector.load %arg4[%c0_3, %c0_4] : memref<4x64xf32, #tpu.memory_space<vmem>>, vector<1x64xf32>
    %4 = vector.shape_cast %3 : vector<1x64xf32> to vector<64xf32>
    %c0_5 = arith.constant 0 : index
    %c0_6 = arith.constant 0 : index
    %5 = vector.load %arg5[%c0_5, %c0_6] : memref<4x64xf32, #tpu.memory_space<vmem>>, vector<1x64xf32>
    %6 = vector.shape_cast %5 : vector<1x64xf32> to vector<64xf32>
    %7 = vector.shape_cast %4 : vector<64xf32> to vector<1x64xf32>
    %8 = vector.broadcast %7 : vector<1x64xf32> to vector<512x64xf32>
    %9 = arith.mulf %2, %8 : vector<512x64xf32>
    %10 = vector.shape_cast %6 : vector<64xf32> to vector<1x64xf32>
    %11 = vector.broadcast %10 : vector<1x64xf32> to vector<512x64xf32>
    %12 = arith.addf %9, %11 : vector<512x64xf32>
    %cst_7 = arith.constant 0.000000e+00 : f32
    %13 = vector.broadcast %cst_7 : f32 to vector<512x64xf32>
    %14 = arith.maximumf %12, %13 : vector<512x64xf32>
    %15 = vector.shape_cast %14 : vector<512x64xf32> to vector<16x2x8x2x64xf32>
    %cst_8 = arith.constant dense<0xFF800000> : vector<16x2x8x64xf32>
    %16 = vector.multi_reduction <maximumf>, %15, %cst_8 [3] : vector<16x2x8x2x64xf32> to vector<16x2x8x64xf32>
    %cst_9 = arith.constant dense<0xFF800000> : vector<16x8x64xf32>
    %17 = vector.multi_reduction <maximumf>, %16, %cst_9 [1] : vector<16x2x8x64xf32> to vector<16x8x64xf32>
    %18 = vector.shape_cast %17 : vector<16x8x64xf32> to vector<2x8x8x64xf32>
    %cst_10 = arith.constant 0.000000e+00 : f32
    %19 = vector.broadcast %cst_10 : f32 to vector<2x10x17x64xf32>
    %c0_11 = arith.constant 0 : index
    %c0_12 = arith.constant 0 : index
    %c0_13 = arith.constant 0 : index
    %c0_14 = arith.constant 0 : index
    %20 = vector.load %arg7[%c0_11, %c0_12, %c0_13, %c0_14] : memref<2x10x17x64xf32, #tpu.memory_space<vmem>>, vector<2x10x17x64xf32>
    tpu.vector_store %arg7[%c0_11, %c0_12, %c0_13, %c0_14], %19 {strides = array<i32>} : memref<2x10x17x64xf32, #tpu.memory_space<vmem>>, vector<2x10x17x64xf32>,
    %c0_15 = arith.constant 0 : index
    %c1 = arith.constant 1 : index
    %c8 = arith.constant 8 : index
    %c0_16 = arith.constant 0 : index
    %21 = vector.load %arg7[%c0_15, %c1, %c8, %c0_16] : memref<2x10x17x64xf32, #tpu.memory_space<vmem>>, vector<2x8x8x64xf32>
    tpu.vector_store %arg7[%c0_15, %c1, %c8, %c0_16], %18 {strides = array<i32>} : memref<2x10x17x64xf32, #tpu.memory_space<vmem>>, vector<2x8x8x64xf32>,
    %c0_17 = arith.constant 0 : index
    %c0_18 = arith.constant 0 : index
    %c0_19 = arith.constant 0 : index
    %c0_20 = arith.constant 0 : index
    %22 = vector.load %arg7[%c0_17, %c0_18, %c0_19, %c0_20] : memref<2x10x17x64xf32, #tpu.memory_space<vmem>>, vector<2x10x17x64xf32>
    %23 = vector.extract_strided_slice %22 {offsets = [0, 0, 7, 0], sizes = [2, 8, 8, 64], strides = [1, 1, 1, 1]} : vector<2x10x17x64xf32> to vector<2x8x8x64xf32>
    %24 = vector.shape_cast %23 : vector<2x8x8x64xf32> to vector<128x64xf32>
    %25 = arith.truncf %24 : vector<128x64xf32> to vector<128x64xbf16>
    %c0_21 = arith.constant 0 : index
    %c0_22 = arith.constant 0 : index
    %c0_23 = arith.constant 0 : index
    %26 = vector.load %arg3[%c0_21, %c0_22, %c0_23] : memref<27x64x64xbf16, #tpu.memory_space<vmem>>, vector<1x64x64xbf16>
    %27 = vector.shape_cast %26 : vector<1x64x64xbf16> to vector<64x64xbf16>
    %cst_24 = arith.constant dense<0.000000e+00> : vector<128x64xf32>
    %28 = tpu.matmul %25, %27, %cst_24 {dimension_numbers = #tpu.dot_dimension_numbers<[1], [0], [0], [1], [0, 0, 1, 1], [], []>} : vector<128x64xbf16>, vector<64x64xbf16>, vector<128x64xf32> -> vector<128x64xf32>
    %29 = vector.extract_strided_slice %22 {offsets = [0, 0, 8, 0], sizes = [2, 8, 8, 64], strides = [1, 1, 1, 1]} : vector<2x10x17x64xf32> to vector<2x8x8x64xf32>
    %30 = vector.shape_cast %29 : vector<2x8x8x64xf32> to vector<128x64xf32>
    %31 = arith.truncf %30 : vector<128x64xf32> to vector<128x64xbf16>
    %c1_25 = arith.constant 1 : index
    %c0_26 = arith.constant 0 : index
    %c0_27 = arith.constant 0 : index
    %32 = vector.load %arg3[%c1_25, %c0_26, %c0_27] : memref<27x64x64xbf16, #tpu.memory_space<vmem>>, vector<1x64x64xbf16>
    %33 = vector.shape_cast %32 : vector<1x64x64xbf16> to vector<64x64xbf16>
    %cst_28 = arith.constant dense<0.000000e+00> : vector<128x64xf32>
    %34 = tpu.matmul %31, %33, %cst_28 {dimension_numbers = #tpu.dot_dimension_numbers<[1], [0], [0], [1], [0, 0, 1, 1], [], []>} : vector<128x64xbf16>, vector<64x64xbf16>, vector<128x64xf32> -> vector<128x64xf32>
    %35 = arith.addf %28, %34 : vector<128x64xf32>
    %36 = vector.extract_strided_slice %22 {offsets = [0, 0, 9, 0], sizes = [2, 8, 8, 64], strides = [1, 1, 1, 1]} : vector<2x10x17x64xf32> to vector<2x8x8x64xf32>
    %37 = vector.shape_cast %36 : vector<2x8x8x64xf32> to vector<128x64xf32>
    %38 = arith.truncf %37 : vector<128x64xf32> to vector<128x64xbf16>
    %c2 = arith.constant 2 : index
    %c0_29 = arith.constant 0 : index
    %c0_30 = arith.constant 0 : index
    %39 = vector.load %arg3[%c2, %c0_29, %c0_30] : memref<27x64x64xbf16, #tpu.memory_space<vmem>>, vector<1x64x64xbf16>
    %40 = vector.shape_cast %39 : vector<1x64x64xbf16> to vector<64x64xbf16>
    %cst_31 = arith.constant dense<0.000000e+00> : vector<128x64xf32>
    %41 = tpu.matmul %38, %40, %cst_31 {dimension_numbers = #tpu.dot_dimension_numbers<[1], [0], [0], [1], [0, 0, 1, 1], [], []>} : vector<128x64xbf16>, vector<64x64xbf16>, vector<128x64xf32> -> vector<128x64xf32>
    %42 = arith.addf %35, %41 : vector<128x64xf32>
    %43 = vector.extract_strided_slice %22 {offsets = [0, 1, 7, 0], sizes = [2, 8, 8, 64], strides = [1, 1, 1, 1]} : vector<2x10x17x64xf32> to vector<2x8x8x64xf32>
    %44 = vector.shape_cast %43 : vector<2x8x8x64xf32> to vector<128x64xf32>
    %45 = arith.truncf %44 : vector<128x64xf32> to vector<128x64xbf16>
    %c3 = arith.constant 3 : index
    %c0_32 = arith.constant 0 : index
    %c0_33 = arith.constant 0 : index
    %46 = vector.load %arg3[%c3, %c0_32, %c0_33] : memref<27x64x64xbf16, #tpu.memory_space<vmem>>, vector<1x64x64xbf16>
    %47 = vector.shape_cast %46 : vector<1x64x64xbf16> to vector<64x64xbf16>
    %cst_34 = arith.constant dense<0.000000e+00> : vector<128x64xf32>
    %48 = tpu.matmul %45, %47, %cst_34 {dimension_numbers = #tpu.dot_dimension_numbers<[1], [0], [0], [1], [0, 0, 1, 1], [], []>} : vector<128x64xbf16>, vector<64x64xbf16>, vector<128x64xf32> -> vector<128x64xf32>
    %49 = arith.addf %42, %48 : vector<128x64xf32>
    %50 = vector.extract_strided_slice %22 {offsets = [0, 1, 8, 0], sizes = [2, 8, 8, 64], strides = [1, 1, 1, 1]} : vector<2x10x17x64xf32> to vector<2x8x8x64xf32>
    %51 = vector.shape_cast %50 : vector<2x8x8x64xf32> to vector<128x64xf32>
    %52 = arith.truncf %51 : vector<128x64xf32> to vector<128x64xbf16>
    %c4 = arith.constant 4 : index
    %c0_35 = arith.constant 0 : index
    %c0_36 = arith.constant 0 : index
    %53 = vector.load %arg3[%c4, %c0_35, %c0_36] : memref<27x64x64xbf16, #tpu.memory_space<vmem>>, vector<1x64x64xbf16>
    %54 = vector.shape_cast %53 : vector<1x64x64xbf16> to vector<64x64xbf16>
    %cst_37 = arith.constant dense<0.000000e+00> : vector<128x64xf32>
    %55 = tpu.matmul %52, %54, %cst_37 {dimension_numbers = #tpu.dot_dimension_numbers<[1], [0], [0], [1], [0, 0, 1, 1], [], []>} : vector<128x64xbf16>, vector<64x64xbf16>, vector<128x64xf32> -> vector<128x64xf32>
    %56 = arith.addf %49, %55 : vector<128x64xf32>
    %57 = vector.extract_strided_slice %22 {offsets = [0, 1, 9, 0], sizes = [2, 8, 8, 64], strides = [1, 1, 1, 1]} : vector<2x10x17x64xf32> to vector<2x8x8x64xf32>
    %58 = vector.shape_cast %57 : vector<2x8x8x64xf32> to vector<128x64xf32>
    %59 = arith.truncf %58 : vector<128x64xf32> to vector<128x64xbf16>
    %c5 = arith.constant 5 : index
    %c0_38 = arith.constant 0 : index
    %c0_39 = arith.constant 0 : index
    %60 = vector.load %arg3[%c5, %c0_38, %c0_39] : memref<27x64x64xbf16, #tpu.memory_space<vmem>>, vector<1x64x64xbf16>
    %61 = vector.shape_cast %60 : vector<1x64x64xbf16> to vector<64x64xbf16>
    %cst_40 = arith.constant dense<0.000000e+00> : vector<128x64xf32>
    %62 = tpu.matmul %59, %61, %cst_40 {dimension_numbers = #tpu.dot_dimension_numbers<[1], [0], [0], [1], [0, 0, 1, 1], [], []>} : vector<128x64xbf16>, vector<64x64xbf16>, vector<128x64xf32> -> vector<128x64xf32>
    %63 = arith.addf %56, %62 : vector<128x64xf32>
    %64 = vector.extract_strided_slice %22 {offsets = [0, 2, 7, 0], sizes = [2, 8, 8, 64], strides = [1, 1, 1, 1]} : vector<2x10x17x64xf32> to vector<2x8x8x64xf32>
    %65 = vector.shape_cast %64 : vector<2x8x8x64xf32> to vector<128x64xf32>
    %66 = arith.truncf %65 : vector<128x64xf32> to vector<128x64xbf16>
    %c6 = arith.constant 6 : index
    %c0_41 = arith.constant 0 : index
    %c0_42 = arith.constant 0 : index
    %67 = vector.load %arg3[%c6, %c0_41, %c0_42] : memref<27x64x64xbf16, #tpu.memory_space<vmem>>, vector<1x64x64xbf16>
    %68 = vector.shape_cast %67 : vector<1x64x64xbf16> to vector<64x64xbf16>
    %cst_43 = arith.constant dense<0.000000e+00> : vector<128x64xf32>
    %69 = tpu.matmul %66, %68, %cst_43 {dimension_numbers = #tpu.dot_dimension_numbers<[1], [0], [0], [1], [0, 0, 1, 1], [], []>} : vector<128x64xbf16>, vector<64x64xbf16>, vector<128x64xf32> -> vector<128x64xf32>
    %70 = arith.addf %63, %69 : vector<128x64xf32>
    %71 = vector.extract_strided_slice %22 {offsets = [0, 2, 8, 0], sizes = [2, 8, 8, 64], strides = [1, 1, 1, 1]} : vector<2x10x17x64xf32> to vector<2x8x8x64xf32>
    %72 = vector.shape_cast %71 : vector<2x8x8x64xf32> to vector<128x64xf32>
    %73 = arith.truncf %72 : vector<128x64xf32> to vector<128x64xbf16>
    %c7 = arith.constant 7 : index
    %c0_44 = arith.constant 0 : index
    %c0_45 = arith.constant 0 : index
    %74 = vector.load %arg3[%c7, %c0_44, %c0_45] : memref<27x64x64xbf16, #tpu.memory_space<vmem>>, vector<1x64x64xbf16>
    %75 = vector.shape_cast %74 : vector<1x64x64xbf16> to vector<64x64xbf16>
    %cst_46 = arith.constant dense<0.000000e+00> : vector<128x64xf32>
    %76 = tpu.matmul %73, %75, %cst_46 {dimension_numbers = #tpu.dot_dimension_numbers<[1], [0], [0], [1], [0, 0, 1, 1], [], []>} : vector<128x64xbf16>, vector<64x64xbf16>, vector<128x64xf32> -> vector<128x64xf32>
    %77 = arith.addf %70, %76 : vector<128x64xf32>
    %78 = vector.extract_strided_slice %22 {offsets = [0, 2, 9, 0], sizes = [2, 8, 8, 64], strides = [1, 1, 1, 1]} : vector<2x10x17x64xf32> to vector<2x8x8x64xf32>
    %79 = vector.shape_cast %78 : vector<2x8x8x64xf32> to vector<128x64xf32>
    %80 = arith.truncf %79 : vector<128x64xf32> to vector<128x64xbf16>
    %c8_47 = arith.constant 8 : index
    %c0_48 = arith.constant 0 : index
    %c0_49 = arith.constant 0 : index
    %81 = vector.load %arg3[%c8_47, %c0_48, %c0_49] : memref<27x64x64xbf16, #tpu.memory_space<vmem>>, vector<1x64x64xbf16>
    %82 = vector.shape_cast %81 : vector<1x64x64xbf16> to vector<64x64xbf16>
    %cst_50 = arith.constant dense<0.000000e+00> : vector<128x64xf32>
    %83 = tpu.matmul %80, %82, %cst_50 {dimension_numbers = #tpu.dot_dimension_numbers<[1], [0], [0], [1], [0, 0, 1, 1], [], []>} : vector<128x64xbf16>, vector<64x64xbf16>, vector<128x64xf32> -> vector<128x64xf32>
    %84 = arith.addf %77, %83 : vector<128x64xf32>
    %c1_51 = arith.constant 1 : index
    %c0_52 = arith.constant 0 : index
    %85 = vector.load %arg4[%c1_51, %c0_52] : memref<4x64xf32, #tpu.memory_space<vmem>>, vector<1x64xf32>
    %86 = vector.shape_cast %85 : vector<1x64xf32> to vector<64xf32>
    %c1_53 = arith.constant 1 : index
    %c0_54 = arith.constant 0 : index
    %87 = vector.load %arg5[%c1_53, %c0_54] : memref<4x64xf32, #tpu.memory_space<vmem>>, vector<1x64xf32>
    %88 = vector.shape_cast %87 : vector<1x64xf32> to vector<64xf32>
    %89 = vector.shape_cast %86 : vector<64xf32> to vector<1x64xf32>
    %90 = vector.broadcast %89 : vector<1x64xf32> to vector<128x64xf32>
    %91 = arith.mulf %84, %90 : vector<128x64xf32>
    %92 = vector.shape_cast %88 : vector<64xf32> to vector<1x64xf32>
    %93 = vector.broadcast %92 : vector<1x64xf32> to vector<128x64xf32>
    %94 = arith.addf %91, %93 : vector<128x64xf32>
    %cst_55 = arith.constant 0.000000e+00 : f32
    %95 = vector.broadcast %cst_55 : f32 to vector<128x64xf32>
    %96 = arith.maximumf %94, %95 : vector<128x64xf32>
    %97 = vector.shape_cast %96 : vector<128x64xf32> to vector<8x2x4x2x64xf32>
    %cst_56 = arith.constant dense<0xFF800000> : vector<8x2x4x64xf32>
    %98 = vector.multi_reduction <maximumf>, %97, %cst_56 [3] : vector<8x2x4x2x64xf32> to vector<8x2x4x64xf32>
    %cst_57 = arith.constant dense<0xFF800000> : vector<8x4x64xf32>
    %99 = vector.multi_reduction <maximumf>, %98, %cst_57 [1] : vector<8x2x4x64xf32> to vector<8x4x64xf32>
    %100 = vector.shape_cast %99 : vector<8x4x64xf32> to vector<2x4x4x64xf32>
    %cst_58 = arith.constant 0.000000e+00 : f32
    %101 = vector.broadcast %cst_58 : f32 to vector<2x6x13x64xf32>
    %c0_59 = arith.constant 0 : index
    %c0_60 = arith.constant 0 : index
    %c0_61 = arith.constant 0 : index
    %c0_62 = arith.constant 0 : index
    %102 = vector.load %arg8[%c0_59, %c0_60, %c0_61, %c0_62] : memref<2x6x13x64xf32, #tpu.memory_space<vmem>>, vector<2x6x13x64xf32>
    tpu.vector_store %arg8[%c0_59, %c0_60, %c0_61, %c0_62], %101 {strides = array<i32>} : memref<2x6x13x64xf32, #tpu.memory_space<vmem>>, vector<2x6x13x64xf32>,
    %c0_63 = arith.constant 0 : index
    %c1_64 = arith.constant 1 : index
    %c8_65 = arith.constant 8 : index
    %c0_66 = arith.constant 0 : index
    %103 = vector.load %arg8[%c0_63, %c1_64, %c8_65, %c0_66] : memref<2x6x13x64xf32, #tpu.memory_space<vmem>>, vector<2x4x4x64xf32>
    tpu.vector_store %arg8[%c0_63, %c1_64, %c8_65, %c0_66], %100 {strides = array<i32>} : memref<2x6x13x64xf32, #tpu.memory_space<vmem>>, vector<2x4x4x64xf32>,
    %c0_67 = arith.constant 0 : index
    %c0_68 = arith.constant 0 : index
    %c0_69 = arith.constant 0 : index
    %c0_70 = arith.constant 0 : index
    %104 = vector.load %arg8[%c0_67, %c0_68, %c0_69, %c0_70] : memref<2x6x13x64xf32, #tpu.memory_space<vmem>>, vector<2x6x13x64xf32>
    %105 = vector.extract_strided_slice %104 {offsets = [0, 0, 7, 0], sizes = [2, 4, 4, 64], strides = [1, 1, 1, 1]} : vector<2x6x13x64xf32> to vector<2x4x4x64xf32>
    %106 = vector.shape_cast %105 : vector<2x4x4x64xf32> to vector<32x64xf32>
    %107 = arith.truncf %106 : vector<32x64xf32> to vector<32x64xbf16>
    %c9 = arith.constant 9 : index
    %c0_71 = arith.constant 0 : index
    %c0_72 = arith.constant 0 : index
    %108 = vector.load %arg3[%c9, %c0_71, %c0_72] : memref<27x64x64xbf16, #tpu.memory_space<vmem>>, vector<1x64x64xbf16>
    %109 = vector.shape_cast %108 : vector<1x64x64xbf16> to vector<64x64xbf16>
    %cst_73 = arith.constant dense<0.000000e+00> : vector<32x64xf32>
    %110 = tpu.matmul %107, %109, %cst_73 {dimension_numbers = #tpu.dot_dimension_numbers<[1], [0], [0], [1], [0, 0, 1, 1], [], []>} : vector<32x64xbf16>, vector<64x64xbf16>, vector<32x64xf32> -> vector<32x64xf32>
    %111 = vector.extract_strided_slice %104 {offsets = [0, 0, 8, 0], sizes = [2, 4, 4, 64], strides = [1, 1, 1, 1]} : vector<2x6x13x64xf32> to vector<2x4x4x64xf32>
    %112 = vector.shape_cast %111 : vector<2x4x4x64xf32> to vector<32x64xf32>
    %113 = arith.truncf %112 : vector<32x64xf32> to vector<32x64xbf16>
    %c10 = arith.constant 10 : index
    %c0_74 = arith.constant 0 : index
    %c0_75 = arith.constant 0 : index
    %114 = vector.load %arg3[%c10, %c0_74, %c0_75] : memref<27x64x64xbf16, #tpu.memory_space<vmem>>, vector<1x64x64xbf16>
    %115 = vector.shape_cast %114 : vector<1x64x64xbf16> to vector<64x64xbf16>
    %cst_76 = arith.constant dense<0.000000e+00> : vector<32x64xf32>
    %116 = tpu.matmul %113, %115, %cst_76 {dimension_numbers = #tpu.dot_dimension_numbers<[1], [0], [0], [1], [0, 0, 1, 1], [], []>} : vector<32x64xbf16>, vector<64x64xbf16>, vector<32x64xf32> -> vector<32x64xf32>
    %117 = arith.addf %110, %116 : vector<32x64xf32>
    %118 = vector.extract_strided_slice %104 {offsets = [0, 0, 9, 0], sizes = [2, 4, 4, 64], strides = [1, 1, 1, 1]} : vector<2x6x13x64xf32> to vector<2x4x4x64xf32>
    %119 = vector.shape_cast %118 : vector<2x4x4x64xf32> to vector<32x64xf32>
    %120 = arith.truncf %119 : vector<32x64xf32> to vector<32x64xbf16>
    %c11 = arith.constant 11 : index
    %c0_77 = arith.constant 0 : index
    %c0_78 = arith.constant 0 : index
    %121 = vector.load %arg3[%c11, %c0_77, %c0_78] : memref<27x64x64xbf16, #tpu.memory_space<vmem>>, vector<1x64x64xbf16>
    %122 = vector.shape_cast %121 : vector<1x64x64xbf16> to vector<64x64xbf16>
    %cst_79 = arith.constant dense<0.000000e+00> : vector<32x64xf32>
    %123 = tpu.matmul %120, %122, %cst_79 {dimension_numbers = #tpu.dot_dimension_numbers<[1], [0], [0], [1], [0, 0, 1, 1], [], []>} : vector<32x64xbf16>, vector<64x64xbf16>, vector<32x64xf32> -> vector<32x64xf32>
    %124 = arith.addf %117, %123 : vector<32x64xf32>
    %125 = vector.extract_strided_slice %104 {offsets = [0, 1, 7, 0], sizes = [2, 4, 4, 64], strides = [1, 1, 1, 1]} : vector<2x6x13x64xf32> to vector<2x4x4x64xf32>
    %126 = vector.shape_cast %125 : vector<2x4x4x64xf32> to vector<32x64xf32>
    %127 = arith.truncf %126 : vector<32x64xf32> to vector<32x64xbf16>
    %c12 = arith.constant 12 : index
    %c0_80 = arith.constant 0 : index
    %c0_81 = arith.constant 0 : index
    %128 = vector.load %arg3[%c12, %c0_80, %c0_81] : memref<27x64x64xbf16, #tpu.memory_space<vmem>>, vector<1x64x64xbf16>
    %129 = vector.shape_cast %128 : vector<1x64x64xbf16> to vector<64x64xbf16>
    %cst_82 = arith.constant dense<0.000000e+00> : vector<32x64xf32>
    %130 = tpu.matmul %127, %129, %cst_82 {dimension_numbers = #tpu.dot_dimension_numbers<[1], [0], [0], [1], [0, 0, 1, 1], [], []>} : vector<32x64xbf16>, vector<64x64xbf16>, vector<32x64xf32> -> vector<32x64xf32>
    %131 = arith.addf %124, %130 : vector<32x64xf32>
    %132 = vector.extract_strided_slice %104 {offsets = [0, 1, 8, 0], sizes = [2, 4, 4, 64], strides = [1, 1, 1, 1]} : vector<2x6x13x64xf32> to vector<2x4x4x64xf32>
    %133 = vector.shape_cast %132 : vector<2x4x4x64xf32> to vector<32x64xf32>
    %134 = arith.truncf %133 : vector<32x64xf32> to vector<32x64xbf16>
    %c13 = arith.constant 13 : index
    %c0_83 = arith.constant 0 : index
    %c0_84 = arith.constant 0 : index
    %135 = vector.load %arg3[%c13, %c0_83, %c0_84] : memref<27x64x64xbf16, #tpu.memory_space<vmem>>, vector<1x64x64xbf16>
    %136 = vector.shape_cast %135 : vector<1x64x64xbf16> to vector<64x64xbf16>
    %cst_85 = arith.constant dense<0.000000e+00> : vector<32x64xf32>
    %137 = tpu.matmul %134, %136, %cst_85 {dimension_numbers = #tpu.dot_dimension_numbers<[1], [0], [0], [1], [0, 0, 1, 1], [], []>} : vector<32x64xbf16>, vector<64x64xbf16>, vector<32x64xf32> -> vector<32x64xf32>
    %138 = arith.addf %131, %137 : vector<32x64xf32>
    %139 = vector.extract_strided_slice %104 {offsets = [0, 1, 9, 0], sizes = [2, 4, 4, 64], strides = [1, 1, 1, 1]} : vector<2x6x13x64xf32> to vector<2x4x4x64xf32>
    %140 = vector.shape_cast %139 : vector<2x4x4x64xf32> to vector<32x64xf32>
    %141 = arith.truncf %140 : vector<32x64xf32> to vector<32x64xbf16>
    %c14 = arith.constant 14 : index
    %c0_86 = arith.constant 0 : index
    %c0_87 = arith.constant 0 : index
    %142 = vector.load %arg3[%c14, %c0_86, %c0_87] : memref<27x64x64xbf16, #tpu.memory_space<vmem>>, vector<1x64x64xbf16>
    %143 = vector.shape_cast %142 : vector<1x64x64xbf16> to vector<64x64xbf16>
    %cst_88 = arith.constant dense<0.000000e+00> : vector<32x64xf32>
    %144 = tpu.matmul %141, %143, %cst_88 {dimension_numbers = #tpu.dot_dimension_numbers<[1], [0], [0], [1], [0, 0, 1, 1], [], []>} : vector<32x64xbf16>, vector<64x64xbf16>, vector<32x64xf32> -> vector<32x64xf32>
    %145 = arith.addf %138, %144 : vector<32x64xf32>
    %146 = vector.extract_strided_slice %104 {offsets = [0, 2, 7, 0], sizes = [2, 4, 4, 64], strides = [1, 1, 1, 1]} : vector<2x6x13x64xf32> to vector<2x4x4x64xf32>
    %147 = vector.shape_cast %146 : vector<2x4x4x64xf32> to vector<32x64xf32>
    %148 = arith.truncf %147 : vector<32x64xf32> to vector<32x64xbf16>
    %c15 = arith.constant 15 : index
    %c0_89 = arith.constant 0 : index
    %c0_90 = arith.constant 0 : index
    %149 = vector.load %arg3[%c15, %c0_89, %c0_90] : memref<27x64x64xbf16, #tpu.memory_space<vmem>>, vector<1x64x64xbf16>
    %150 = vector.shape_cast %149 : vector<1x64x64xbf16> to vector<64x64xbf16>
    %cst_91 = arith.constant dense<0.000000e+00> : vector<32x64xf32>
    %151 = tpu.matmul %148, %150, %cst_91 {dimension_numbers = #tpu.dot_dimension_numbers<[1], [0], [0], [1], [0, 0, 1, 1], [], []>} : vector<32x64xbf16>, vector<64x64xbf16>, vector<32x64xf32> -> vector<32x64xf32>
    %152 = arith.addf %145, %151 : vector<32x64xf32>
    %153 = vector.extract_strided_slice %104 {offsets = [0, 2, 8, 0], sizes = [2, 4, 4, 64], strides = [1, 1, 1, 1]} : vector<2x6x13x64xf32> to vector<2x4x4x64xf32>
    %154 = vector.shape_cast %153 : vector<2x4x4x64xf32> to vector<32x64xf32>
    %155 = arith.truncf %154 : vector<32x64xf32> to vector<32x64xbf16>
    %c16 = arith.constant 16 : index
    %c0_92 = arith.constant 0 : index
    %c0_93 = arith.constant 0 : index
    %156 = vector.load %arg3[%c16, %c0_92, %c0_93] : memref<27x64x64xbf16, #tpu.memory_space<vmem>>, vector<1x64x64xbf16>
    %157 = vector.shape_cast %156 : vector<1x64x64xbf16> to vector<64x64xbf16>
    %cst_94 = arith.constant dense<0.000000e+00> : vector<32x64xf32>
    %158 = tpu.matmul %155, %157, %cst_94 {dimension_numbers = #tpu.dot_dimension_numbers<[1], [0], [0], [1], [0, 0, 1, 1], [], []>} : vector<32x64xbf16>, vector<64x64xbf16>, vector<32x64xf32> -> vector<32x64xf32>
    %159 = arith.addf %152, %158 : vector<32x64xf32>
    %160 = vector.extract_strided_slice %104 {offsets = [0, 2, 9, 0], sizes = [2, 4, 4, 64], strides = [1, 1, 1, 1]} : vector<2x6x13x64xf32> to vector<2x4x4x64xf32>
    %161 = vector.shape_cast %160 : vector<2x4x4x64xf32> to vector<32x64xf32>
    %162 = arith.truncf %161 : vector<32x64xf32> to vector<32x64xbf16>
    %c17 = arith.constant 17 : index
    %c0_95 = arith.constant 0 : index
    %c0_96 = arith.constant 0 : index
    %163 = vector.load %arg3[%c17, %c0_95, %c0_96] : memref<27x64x64xbf16, #tpu.memory_space<vmem>>, vector<1x64x64xbf16>
    %164 = vector.shape_cast %163 : vector<1x64x64xbf16> to vector<64x64xbf16>
    %cst_97 = arith.constant dense<0.000000e+00> : vector<32x64xf32>
    %165 = tpu.matmul %162, %164, %cst_97 {dimension_numbers = #tpu.dot_dimension_numbers<[1], [0], [0], [1], [0, 0, 1, 1], [], []>} : vector<32x64xbf16>, vector<64x64xbf16>, vector<32x64xf32> -> vector<32x64xf32>
    %166 = arith.addf %159, %165 : vector<32x64xf32>
    %c2_98 = arith.constant 2 : index
    %c0_99 = arith.constant 0 : index
    %167 = vector.load %arg4[%c2_98, %c0_99] : memref<4x64xf32, #tpu.memory_space<vmem>>, vector<1x64xf32>
    %168 = vector.shape_cast %167 : vector<1x64xf32> to vector<64xf32>
    %c2_100 = arith.constant 2 : index
    %c0_101 = arith.constant 0 : index
    %169 = vector.load %arg5[%c2_100, %c0_101] : memref<4x64xf32, #tpu.memory_space<vmem>>, vector<1x64xf32>
    %170 = vector.shape_cast %169 : vector<1x64xf32> to vector<64xf32>
    %171 = vector.shape_cast %168 : vector<64xf32> to vector<1x64xf32>
    %172 = vector.broadcast %171 : vector<1x64xf32> to vector<32x64xf32>
    %173 = arith.mulf %166, %172 : vector<32x64xf32>
    %174 = vector.shape_cast %170 : vector<64xf32> to vector<1x64xf32>
    %175 = vector.broadcast %174 : vector<1x64xf32> to vector<32x64xf32>
    %176 = arith.addf %173, %175 : vector<32x64xf32>
    %cst_102 = arith.constant 0.000000e+00 : f32
    %177 = vector.broadcast %cst_102 : f32 to vector<32x64xf32>
    %178 = arith.maximumf %176, %177 : vector<32x64xf32>
    %179 = vector.shape_cast %178 : vector<32x64xf32> to vector<4x2x2x2x64xf32>
    %cst_103 = arith.constant dense<0xFF800000> : vector<4x2x2x64xf32>
    %180 = vector.multi_reduction <maximumf>, %179, %cst_103 [3] : vector<4x2x2x2x64xf32> to vector<4x2x2x64xf32>
    %cst_104 = arith.constant dense<0xFF800000> : vector<4x2x64xf32>
    %181 = vector.multi_reduction <maximumf>, %180, %cst_104 [1] : vector<4x2x2x64xf32> to vector<4x2x64xf32>
    %182 = vector.shape_cast %181 : vector<4x2x64xf32> to vector<2x2x2x64xf32>
    %cst_105 = arith.constant 0.000000e+00 : f32
    %183 = vector.broadcast %cst_105 : f32 to vector<2x4x11x64xf32>
    %c0_106 = arith.constant 0 : index
    %c0_107 = arith.constant 0 : index
    %c0_108 = arith.constant 0 : index
    %c0_109 = arith.constant 0 : index
    %184 = vector.load %arg9[%c0_106, %c0_107, %c0_108, %c0_109] : memref<2x4x11x64xf32, #tpu.memory_space<vmem>>, vector<2x4x11x64xf32>
    tpu.vector_store %arg9[%c0_106, %c0_107, %c0_108, %c0_109], %183 {strides = array<i32>} : memref<2x4x11x64xf32, #tpu.memory_space<vmem>>, vector<2x4x11x64xf32>,
    %c0_110 = arith.constant 0 : index
    %c1_111 = arith.constant 1 : index
    %c8_112 = arith.constant 8 : index
    %c0_113 = arith.constant 0 : index
    %185 = vector.load %arg9[%c0_110, %c1_111, %c8_112, %c0_113] : memref<2x4x11x64xf32, #tpu.memory_space<vmem>>, vector<2x2x2x64xf32>
    tpu.vector_store %arg9[%c0_110, %c1_111, %c8_112, %c0_113], %182 {strides = array<i32>} : memref<2x4x11x64xf32, #tpu.memory_space<vmem>>, vector<2x2x2x64xf32>,
    %c0_114 = arith.constant 0 : index
    %c0_115 = arith.constant 0 : index
    %c0_116 = arith.constant 0 : index
    %c0_117 = arith.constant 0 : index
    %186 = vector.load %arg9[%c0_114, %c0_115, %c0_116, %c0_117] : memref<2x4x11x64xf32, #tpu.memory_space<vmem>>, vector<2x4x11x64xf32>
    %187 = vector.extract_strided_slice %186 {offsets = [0, 0, 7, 0], sizes = [2, 2, 2, 64], strides = [1, 1, 1, 1]} : vector<2x4x11x64xf32> to vector<2x2x2x64xf32>
    %188 = vector.shape_cast %187 : vector<2x2x2x64xf32> to vector<8x64xf32>
    %189 = arith.truncf %188 : vector<8x64xf32> to vector<8x64xbf16>
    %c18 = arith.constant 18 : index
    %c0_118 = arith.constant 0 : index
    %c0_119 = arith.constant 0 : index
    %190 = vector.load %arg3[%c18, %c0_118, %c0_119] : memref<27x64x64xbf16, #tpu.memory_space<vmem>>, vector<1x64x64xbf16>
    %191 = vector.shape_cast %190 : vector<1x64x64xbf16> to vector<64x64xbf16>
    %cst_120 = arith.constant dense<0.000000e+00> : vector<8x64xf32>
    %192 = tpu.matmul %189, %191, %cst_120 {dimension_numbers = #tpu.dot_dimension_numbers<[1], [0], [0], [1], [0, 0, 1, 1], [], []>} : vector<8x64xbf16>, vector<64x64xbf16>, vector<8x64xf32> -> vector<8x64xf32>
    %193 = vector.extract_strided_slice %186 {offsets = [0, 0, 8, 0], sizes = [2, 2, 2, 64], strides = [1, 1, 1, 1]} : vector<2x4x11x64xf32> to vector<2x2x2x64xf32>
    %194 = vector.shape_cast %193 : vector<2x2x2x64xf32> to vector<8x64xf32>
    %195 = arith.truncf %194 : vector<8x64xf32> to vector<8x64xbf16>
    %c19 = arith.constant 19 : index
    %c0_121 = arith.constant 0 : index
    %c0_122 = arith.constant 0 : index
    %196 = vector.load %arg3[%c19, %c0_121, %c0_122] : memref<27x64x64xbf16, #tpu.memory_space<vmem>>, vector<1x64x64xbf16>
    %197 = vector.shape_cast %196 : vector<1x64x64xbf16> to vector<64x64xbf16>
    %cst_123 = arith.constant dense<0.000000e+00> : vector<8x64xf32>
    %198 = tpu.matmul %195, %197, %cst_123 {dimension_numbers = #tpu.dot_dimension_numbers<[1], [0], [0], [1], [0, 0, 1, 1], [], []>} : vector<8x64xbf16>, vector<64x64xbf16>, vector<8x64xf32> -> vector<8x64xf32>
    %199 = arith.addf %192, %198 : vector<8x64xf32>
    %200 = vector.extract_strided_slice %186 {offsets = [0, 0, 9, 0], sizes = [2, 2, 2, 64], strides = [1, 1, 1, 1]} : vector<2x4x11x64xf32> to vector<2x2x2x64xf32>
    %201 = vector.shape_cast %200 : vector<2x2x2x64xf32> to vector<8x64xf32>
    %202 = arith.truncf %201 : vector<8x64xf32> to vector<8x64xbf16>
    %c20 = arith.constant 20 : index
    %c0_124 = arith.constant 0 : index
    %c0_125 = arith.constant 0 : index
    %203 = vector.load %arg3[%c20, %c0_124, %c0_125] : memref<27x64x64xbf16, #tpu.memory_space<vmem>>, vector<1x64x64xbf16>
    %204 = vector.shape_cast %203 : vector<1x64x64xbf16> to vector<64x64xbf16>
    %cst_126 = arith.constant dense<0.000000e+00> : vector<8x64xf32>
    %205 = tpu.matmul %202, %204, %cst_126 {dimension_numbers = #tpu.dot_dimension_numbers<[1], [0], [0], [1], [0, 0, 1, 1], [], []>} : vector<8x64xbf16>, vector<64x64xbf16>, vector<8x64xf32> -> vector<8x64xf32>
    %206 = arith.addf %199, %205 : vector<8x64xf32>
    %207 = vector.extract_strided_slice %186 {offsets = [0, 1, 7, 0], sizes = [2, 2, 2, 64], strides = [1, 1, 1, 1]} : vector<2x4x11x64xf32> to vector<2x2x2x64xf32>
    %208 = vector.shape_cast %207 : vector<2x2x2x64xf32> to vector<8x64xf32>
    %209 = arith.truncf %208 : vector<8x64xf32> to vector<8x64xbf16>
    %c21 = arith.constant 21 : index
    %c0_127 = arith.constant 0 : index
    %c0_128 = arith.constant 0 : index
    %210 = vector.load %arg3[%c21, %c0_127, %c0_128] : memref<27x64x64xbf16, #tpu.memory_space<vmem>>, vector<1x64x64xbf16>
    %211 = vector.shape_cast %210 : vector<1x64x64xbf16> to vector<64x64xbf16>
    %cst_129 = arith.constant dense<0.000000e+00> : vector<8x64xf32>
    %212 = tpu.matmul %209, %211, %cst_129 {dimension_numbers = #tpu.dot_dimension_numbers<[1], [0], [0], [1], [0, 0, 1, 1], [], []>} : vector<8x64xbf16>, vector<64x64xbf16>, vector<8x64xf32> -> vector<8x64xf32>
    %213 = arith.addf %206, %212 : vector<8x64xf32>
    %214 = vector.extract_strided_slice %186 {offsets = [0, 1, 8, 0], sizes = [2, 2, 2, 64], strides = [1, 1, 1, 1]} : vector<2x4x11x64xf32> to vector<2x2x2x64xf32>
    %215 = vector.shape_cast %214 : vector<2x2x2x64xf32> to vector<8x64xf32>
    %216 = arith.truncf %215 : vector<8x64xf32> to vector<8x64xbf16>
    %c22 = arith.constant 22 : index
    %c0_130 = arith.constant 0 : index
    %c0_131 = arith.constant 0 : index
    %217 = vector.load %arg3[%c22, %c0_130, %c0_131] : memref<27x64x64xbf16, #tpu.memory_space<vmem>>, vector<1x64x64xbf16>
    %218 = vector.shape_cast %217 : vector<1x64x64xbf16> to vector<64x64xbf16>
    %cst_132 = arith.constant dense<0.000000e+00> : vector<8x64xf32>
    %219 = tpu.matmul %216, %218, %cst_132 {dimension_numbers = #tpu.dot_dimension_numbers<[1], [0], [0], [1], [0, 0, 1, 1], [], []>} : vector<8x64xbf16>, vector<64x64xbf16>, vector<8x64xf32> -> vector<8x64xf32>
    %220 = arith.addf %213, %219 : vector<8x64xf32>
    %221 = vector.extract_strided_slice %186 {offsets = [0, 1, 9, 0], sizes = [2, 2, 2, 64], strides = [1, 1, 1, 1]} : vector<2x4x11x64xf32> to vector<2x2x2x64xf32>
    %222 = vector.shape_cast %221 : vector<2x2x2x64xf32> to vector<8x64xf32>
    %223 = arith.truncf %222 : vector<8x64xf32> to vector<8x64xbf16>
    %c23 = arith.constant 23 : index
    %c0_133 = arith.constant 0 : index
    %c0_134 = arith.constant 0 : index
    %224 = vector.load %arg3[%c23, %c0_133, %c0_134] : memref<27x64x64xbf16, #tpu.memory_space<vmem>>, vector<1x64x64xbf16>
    %225 = vector.shape_cast %224 : vector<1x64x64xbf16> to vector<64x64xbf16>
    %cst_135 = arith.constant dense<0.000000e+00> : vector<8x64xf32>
    %226 = tpu.matmul %223, %225, %cst_135 {dimension_numbers = #tpu.dot_dimension_numbers<[1], [0], [0], [1], [0, 0, 1, 1], [], []>} : vector<8x64xbf16>, vector<64x64xbf16>, vector<8x64xf32> -> vector<8x64xf32>
    %227 = arith.addf %220, %226 : vector<8x64xf32>
    %228 = vector.extract_strided_slice %186 {offsets = [0, 2, 7, 0], sizes = [2, 2, 2, 64], strides = [1, 1, 1, 1]} : vector<2x4x11x64xf32> to vector<2x2x2x64xf32>
    %229 = vector.shape_cast %228 : vector<2x2x2x64xf32> to vector<8x64xf32>
    %230 = arith.truncf %229 : vector<8x64xf32> to vector<8x64xbf16>
    %c24 = arith.constant 24 : index
    %c0_136 = arith.constant 0 : index
    %c0_137 = arith.constant 0 : index
    %231 = vector.load %arg3[%c24, %c0_136, %c0_137] : memref<27x64x64xbf16, #tpu.memory_space<vmem>>, vector<1x64x64xbf16>
    %232 = vector.shape_cast %231 : vector<1x64x64xbf16> to vector<64x64xbf16>
    %cst_138 = arith.constant dense<0.000000e+00> : vector<8x64xf32>
    %233 = tpu.matmul %230, %232, %cst_138 {dimension_numbers = #tpu.dot_dimension_numbers<[1], [0], [0], [1], [0, 0, 1, 1], [], []>} : vector<8x64xbf16>, vector<64x64xbf16>, vector<8x64xf32> -> vector<8x64xf32>
    %234 = arith.addf %227, %233 : vector<8x64xf32>
    %235 = vector.extract_strided_slice %186 {offsets = [0, 2, 8, 0], sizes = [2, 2, 2, 64], strides = [1, 1, 1, 1]} : vector<2x4x11x64xf32> to vector<2x2x2x64xf32>
    %236 = vector.shape_cast %235 : vector<2x2x2x64xf32> to vector<8x64xf32>
    %237 = arith.truncf %236 : vector<8x64xf32> to vector<8x64xbf16>
    %c25 = arith.constant 25 : index
    %c0_139 = arith.constant 0 : index
    %c0_140 = arith.constant 0 : index
    %238 = vector.load %arg3[%c25, %c0_139, %c0_140] : memref<27x64x64xbf16, #tpu.memory_space<vmem>>, vector<1x64x64xbf16>
    %239 = vector.shape_cast %238 : vector<1x64x64xbf16> to vector<64x64xbf16>
    %cst_141 = arith.constant dense<0.000000e+00> : vector<8x64xf32>
    %240 = tpu.matmul %237, %239, %cst_141 {dimension_numbers = #tpu.dot_dimension_numbers<[1], [0], [0], [1], [0, 0, 1, 1], [], []>} : vector<8x64xbf16>, vector<64x64xbf16>, vector<8x64xf32> -> vector<8x64xf32>
    %241 = arith.addf %234, %240 : vector<8x64xf32>
    %242 = vector.extract_strided_slice %186 {offsets = [0, 2, 9, 0], sizes = [2, 2, 2, 64], strides = [1, 1, 1, 1]} : vector<2x4x11x64xf32> to vector<2x2x2x64xf32>
    %243 = vector.shape_cast %242 : vector<2x2x2x64xf32> to vector<8x64xf32>
    %244 = arith.truncf %243 : vector<8x64xf32> to vector<8x64xbf16>
    %c26 = arith.constant 26 : index
    %c0_142 = arith.constant 0 : index
    %c0_143 = arith.constant 0 : index
    %245 = vector.load %arg3[%c26, %c0_142, %c0_143] : memref<27x64x64xbf16, #tpu.memory_space<vmem>>, vector<1x64x64xbf16>
    %246 = vector.shape_cast %245 : vector<1x64x64xbf16> to vector<64x64xbf16>
    %cst_144 = arith.constant dense<0.000000e+00> : vector<8x64xf32>
    %247 = tpu.matmul %244, %246, %cst_144 {dimension_numbers = #tpu.dot_dimension_numbers<[1], [0], [0], [1], [0, 0, 1, 1], [], []>} : vector<8x64xbf16>, vector<64x64xbf16>, vector<8x64xf32> -> vector<8x64xf32>
    %248 = arith.addf %241, %247 : vector<8x64xf32>
    %c3_145 = arith.constant 3 : index
    %c0_146 = arith.constant 0 : index
    %249 = vector.load %arg4[%c3_145, %c0_146] : memref<4x64xf32, #tpu.memory_space<vmem>>, vector<1x64xf32>
    %250 = vector.shape_cast %249 : vector<1x64xf32> to vector<64xf32>
    %c3_147 = arith.constant 3 : index
    %c0_148 = arith.constant 0 : index
    %251 = vector.load %arg5[%c3_147, %c0_148] : memref<4x64xf32, #tpu.memory_space<vmem>>, vector<1x64xf32>
    %252 = vector.shape_cast %251 : vector<1x64xf32> to vector<64xf32>
    %253 = vector.shape_cast %250 : vector<64xf32> to vector<1x64xf32>
    %254 = vector.broadcast %253 : vector<1x64xf32> to vector<8x64xf32>
    %255 = arith.mulf %248, %254 : vector<8x64xf32>
    %256 = vector.shape_cast %252 : vector<64xf32> to vector<1x64xf32>
    %257 = vector.broadcast %256 : vector<1x64xf32> to vector<8x64xf32>
    %258 = arith.addf %255, %257 : vector<8x64xf32>
    %cst_149 = arith.constant 0.000000e+00 : f32
    %259 = vector.broadcast %cst_149 : f32 to vector<8x64xf32>
    %260 = arith.maximumf %258, %259 : vector<8x64xf32>
    %261 = vector.shape_cast %260 : vector<8x64xf32> to vector<2x2x1x2x64xf32>
    %cst_150 = arith.constant dense<0xFF800000> : vector<2x2x1x64xf32>
    %262 = vector.multi_reduction <maximumf>, %261, %cst_150 [3] : vector<2x2x1x2x64xf32> to vector<2x2x1x64xf32>
    %cst_151 = arith.constant dense<0xFF800000> : vector<2x1x64xf32>
    %263 = vector.multi_reduction <maximumf>, %262, %cst_151 [1] : vector<2x2x1x64xf32> to vector<2x1x64xf32>
    %264 = vector.shape_cast %263 : vector<2x1x64xf32> to vector<2x1x1x64xf32>
    %265 = vector.shape_cast %264 : vector<2x1x1x64xf32> to vector<2x64xf32>
    %c0_152 = arith.constant 0 : index
    %c0_153 = arith.constant 0 : index
    %266 = vector.load %arg6[%c0_152, %c0_153] : memref<2x64xf32, #tpu.memory_space<vmem>>, vector<2x64xf32>
    tpu.vector_store %arg6[%c0_152, %c0_153], %265 {strides = array<i32>} : memref<2x64xf32, #tpu.memory_space<vmem>>, vector<2x64xf32>,
    return
  }
  func.func @transform_0(%arg0: i32) -> (i32, i32) {
    %c0_i32 = arith.constant 0 : i32
    %c0_i32_0 = arith.constant 0 : i32
    %c0_i32_1 = arith.constant 0 : i32
    return %c0_i32, %c0_i32_0 : i32, i32
  }
  func.func @transform_1(%arg0: i32) -> (i32, i32) {
    %c0_i32 = arith.constant 0 : i32
    %c0_i32_0 = arith.constant 0 : i32
    %c0_i32_1 = arith.constant 0 : i32
    return %c0_i32, %c0_i32_0 : i32, i32
  }
  func.func @transform_2(%arg0: i32) -> (i32, i32, i32) {
    %c0_i32 = arith.constant 0 : i32
    %c0_i32_0 = arith.constant 0 : i32
    %c0_i32_1 = arith.constant 0 : i32
    %c0_i32_2 = arith.constant 0 : i32
    return %c0_i32, %c0_i32_0, %c0_i32_1 : i32, i32, i32
  }
  func.func @transform_3(%arg0: i32) -> (i32, i32) {
    %c0_i32 = arith.constant 0 : i32
    %c0_i32_0 = arith.constant 0 : i32
    %c0_i32_1 = arith.constant 0 : i32
    return %c0_i32, %c0_i32_0 : i32, i32
  }
  func.func @transform_4(%arg0: i32) -> (i32, i32) {
    %c0_i32 = arith.constant 0 : i32
    %c0_i32_0 = arith.constant 0 : i32
    %c0_i32_1 = arith.constant 0 : i32
    return %c0_i32, %c0_i32_0 : i32, i32
  }
  func.func @transform_5(%arg0: i32) -> (i32, i32) {
    %c0_i32 = arith.constant 0 : i32
    %c0_i32_0 = arith.constant 0 : i32
    %c0_i32_1 = arith.constant 0 : i32
    return %c0_i32, %c0_i32_0 : i32, i32
  }
}

</mosaic_0001>

<llo_original>
// kernel: base_model_forward.1
$region0: #{base_model_forward.1}
  #allocation0 [shape = 'u32[]', space=smem, size = 0x4, offset = 0x4, fixed_abs, tag = 'smem constant byte address 0x4 - core index']
  #allocation1 [shape = 'u32[144,128]{1,0:T(1,128)}', space=vmem, size = 0x12000, scoped, tag = 'internal scratch']
  #allocation2 [shape = 'f32[2,10,17,64]{3,2,1,0:T(8,128)}', space=vmem, size = 0x3c000, scoped, tag = 'scratch operand']
  #allocation3 [shape = 'f32[2,6,13,64]{3,2,1,0:T(8,128)}', space=vmem, size = 0x18000, scoped, tag = 'scratch operand']
  #allocation4 [shape = 'f32[2,4,11,64]{3,2,1,0:T(8,128)}', space=vmem, size = 0x10000, scoped, tag = 'scratch operand']
  %s0 = inlined_call_operand.vmem [shape: bf16[512,27], index: 0, kind: input, shape index: {}]
  %s1 = inlined_call_operand.vmem [shape: bf16[27,64], index: 1, kind: input, shape index: {}]
  %s2 = inlined_call_operand.vmem [shape: bf16[27,64,64], index: 2, kind: input, shape index: {}]
  %s3 = inlined_call_operand.vmem [shape: f32[4,64], index: 3, kind: input, shape index: {}]
  %s4 = inlined_call_operand.vmem [shape: f32[4,64], index: 4, kind: input, shape index: {}]
  %s5 = inlined_call_operand.hbm [shape: f32[2,64], index: 5, kind: output, shape index: {}]
  %s6 = sld [smem:[#allocation0]]
  $region30: #{base_model_forward.1} parent=0
    _
  %s8 = ssub.s32 1, %s6
  %s9 = scalar_select 0, %s8, %s6
  $region1: #{base_model_forward.1} parent=0
    #allocation5 [shape = 'u8[1024]{0}', space=vmem, size = 0x400, scoped, tag = 'output window, operand 0, single buffered']
    #allocation6 [shape = 's32[1]{0}', space=sflag, size = 0x4, scoped, tag = 'scoped memory for base_model_forward.1']
    %10 = vsyncpa [#allocation6], 0
    // Predicated region
    $region2: #{base_model_forward.1} parent=1 // pred_check
      _
    $region3: #{base_model_forward.1} parent=1 // pred_check_branch
      %12 = sbr.rel (0) target = $region5
    $region4: #{base_model_forward.1} parent=1 // pred_region
      _
    $region5: #{base_model_forward.1} parent=1 // pred_fallthru
      _
    // Predicated region
    $region6: #{base_model_forward.1} parent=1 // pred_check
      _
    $region7: #{base_model_forward.1} parent=1 // pred_check_branch
      %14 = sbr.rel (0) target = $region9
    $region8: #{base_model_forward.1} parent=1 // pred_region
      _
    $region9: #{base_model_forward.1} parent=1 // pred_fallthru
      _
    // Predicated region
    $region10: #{base_model_forward.1} parent=1 // pred_check
      _
    $region11: #{base_model_forward.1} parent=1 // pred_check_branch
      %16 = sbr.rel (0) target = $region13
    $region12: #{base_model_forward.1} parent=1 // pred_region
      _
    $region13: #{base_model_forward.1} parent=1 // pred_fallthru
      _
    // Predicated region
    $region14: #{base_model_forward.1} parent=1 // pred_check
      _
    $region15: #{base_model_forward.1} parent=1 // pred_check_branch
      %18 = sbr.rel (0) target = $region17
    $region16: #{base_model_forward.1} parent=1 // pred_region
      _
    $region17: #{base_model_forward.1} parent=1 // pred_fallthru
      _
    // Predicated region
    $region18: #{base_model_forward.1} parent=1 // pred_check
      _
    $region19: #{base_model_forward.1} parent=1 // pred_check_branch
      %20 = sbr.rel (0) target = $region21
    $region20: #{base_model_forward.1} parent=1 // pred_region
      _
    $region21: #{base_model_forward.1} parent=1 // pred_fallthru
      _
    %v22 = vld [vmem:[%s0] sm:$0xf]
    %v23 = vld [vmem:[%s0 + $0x4] sm:$0xf]
    %v24 = vld [vmem:[%s0 + $0x8] sm:$0xf]
    %v25 = vld [vmem:[%s0 + $0xc] sm:$0xf]
    %v26 = vld [vmem:[%s0 + $0x10] sm:$0xf]
    %v27 = vld [vmem:[%s0 + $0x14] sm:$0xf]
    %v28 = vld [vmem:[%s0 + $0x18] sm:$0xf]
    %v29 = vld [vmem:[%s0 + $0x1c] sm:$0xf]
    %v30 = vld [vmem:[%s0 + $0x20] sm:$0xf]
    %v31 = vld [vmem:[%s0 + $0x24] sm:$0xf]
    %v32 = vld [vmem:[%s0 + $0x28] sm:$0xf]
    %v33 = vld [vmem:[%s0 + $0x2c] sm:$0xf]
    %v34 = vld [vmem:[%s0 + $0x30] sm:$0xf]
    %v35 = vld [vmem:[%s0 + $0x34] sm:$0xf]
    %v36 = vld [vmem:[%s0 + $0x38] sm:$0xf]
    %v37 = vld [vmem:[%s0 + $0x3c] sm:$0xf]
    %v38 = vld [vmem:[%s0 + $0x40] sm:$0xf]
    %v39 = vld [vmem:[%s0 + $0x44] sm:$0xf]
    %v40 = vld [vmem:[%s0 + $0x48] sm:$0xf]
    %v41 = vld [vmem:[%s0 + $0x4c] sm:$0xf]
    %v42 = vld [vmem:[%s0 + $0x50] sm:$0xf]
    %v43 = vld [vmem:[%s0 + $0x54] sm:$0xf]
    %v44 = vld [vmem:[%s0 + $0x58] sm:$0xf]
    %v45 = vld [vmem:[%s0 + $0x5c] sm:$0xf]
    %v46 = vld [vmem:[%s0 + $0x60] sm:$0xf]
    %v47 = vld [vmem:[%s0 + $0x64] sm:$0xf]
    %v48 = vld [vmem:[%s0 + $0x68] sm:$0xf]
    %v49 = vld [vmem:[%s0 + $0x6c] sm:$0xf]
    %v50 = vld [vmem:[%s0 + $0x70] sm:$0xf]
    %v51 = vld [vmem:[%s0 + $0x74] sm:$0xf]
    %v52 = vld [vmem:[%s0 + $0x78] sm:$0xf]
    %v53 = vld [vmem:[%s0 + $0x7c] sm:$0xf]
    %v54 = vld [vmem:[%s0 + $0x80] sm:$0xf]
    %v55 = vld [vmem:[%s0 + $0x84] sm:$0xf]
    %v56 = vld [vmem:[%s0 + $0x88] sm:$0xf]
    %v57 = vld [vmem:[%s0 + $0x8c] sm:$0xf]
    %v58 = vld [vmem:[%s0 + $0x90] sm:$0xf]
    %v59 = vld [vmem:[%s0 + $0x94] sm:$0xf]
    %v60 = vld [vmem:[%s0 + $0x98] sm:$0xf]
    %v61 = vld [vmem:[%s0 + $0x9c] sm:$0xf]
    %v62 = vld [vmem:[%s0 + $0xa0] sm:$0xf]
    %v63 = vld [vmem:[%s0 + $0xa4] sm:$0xf]
    %v64 = vld [vmem:[%s0 + $0xa8] sm:$0xf]
    %v65 = vld [vmem:[%s0 + $0xac] sm:$0xf]
    %v66 = vld [vmem:[%s0 + $0xb0] sm:$0xf]
    %v67 = vld [vmem:[%s0 + $0xb4] sm:$0xf]
    %v68 = vld [vmem:[%s0 + $0xb8] sm:$0xf]
    %v69 = vld [vmem:[%s0 + $0xbc] sm:$0xf]
    %v70 = vld [vmem:[%s0 + $0xc0] sm:$0xf]
    %v71 = vld [vmem:[%s0 + $0xc4] sm:$0xf]
    %v72 = vld [vmem:[%s0 + $0xc8] sm:$0xf]
    %v73 = vld [vmem:[%s0 + $0xcc] sm:$0xf]
    %v74 = vld [vmem:[%s0 + $0xd0] sm:$0xf]
    %v75 = vld [vmem:[%s0 + $0xd4] sm:$0xf]
    %v76 = vld [vmem:[%s0 + $0xd8] sm:$0xf]
    %v77 = vld [vmem:[%s0 + $0xdc] sm:$0xf]
    %v78 = vld [vmem:[%s0 + $0xe0] sm:$0xf]
    %v79 = vld [vmem:[%s0 + $0xe4] sm:$0xf]
    %v80 = vld [vmem:[%s0 + $0xe8] sm:$0xf]
    %v81 = vld [vmem:[%s0 + $0xec] sm:$0xf]
    %v82 = vld [vmem:[%s0 + $0xf0] sm:$0xf]
    %v83 = vld [vmem:[%s0 + $0xf4] sm:$0xf]
    %v84 = vld [vmem:[%s0 + $0xf8] sm:$0xf]
    %v85 = vld [vmem:[%s0 + $0xfc] sm:$0xf]
    %v86 = vld [vmem:[%s1] sm:$0xf]
    %v87 = vld [vmem:[%s1 + $0x4] sm:$0xf]
    %v88 = vld [vmem:[%s1 + $0x8] sm:$0xf]
    %v89 = vld [vmem:[%s1 + $0xc] sm:$0x3]
    %v154 = vunpack.c.l.b16 %v22
    %v155 = vunpack.c.l.b16 %v23
    %v156 = vunpack.c.l.b16 %v24
    %v157 = vunpack.c.l.b16 %v25
    %v158 = vunpack.c.l.b16 %v26
    %v159 = vunpack.c.l.b16 %v27
    %v160 = vunpack.c.l.b16 %v28
    %v161 = vunpack.c.l.b16 %v29
    %v162 = vunpack.c.l.b16 %v30
    %v163 = vunpack.c.l.b16 %v31
    %v164 = vunpack.c.l.b16 %v32
    %v165 = vunpack.c.l.b16 %v33
    %v166 = vunpack.c.l.b16 %v34
    %v167 = vunpack.c.l.b16 %v35
    %v168 = vunpack.c.l.b16 %v36
    %v169 = vunpack.c.l.b16 %v37
    %v170 = vunpack.c.l.b16 %v38
    %v171 = vunpack.c.l.b16 %v39
    %v172 = vunpack.c.l.b16 %v40
    %v173 = vunpack.c.l.b16 %v41
    %v174 = vunpack.c.l.b16 %v42
    %v175 = vunpack.c.l.b16 %v43
    %v176 = vunpack.c.l.b16 %v44
    %v177 = vunpack.c.l.b16 %v45
    %v178 = vunpack.c.l.b16 %v46
    %v179 = vunpack.c.l.b16 %v47
    %v180 = vunpack.c.l.b16 %v48
    %v181 = vunpack.c.l.b16 %v49
    %v182 = vunpack.c.l.b16 %v50
    %v183 = vunpack.c.l.b16 %v51
    %v184 = vunpack.c.l.b16 %v52
    %v185 = vunpack.c.l.b16 %v53
    %v186 = vunpack.c.l.b16 %v54
    %v187 = vunpack.c.l.b16 %v55
    %v188 = vunpack.c.l.b16 %v56
    %v189 = vunpack.c.l.b16 %v57
    %v190 = vunpack.c.l.b16 %v58
    %v191 = vunpack.c.l.b16 %v59
    %v192 = vunpack.c.l.b16 %v60
    %v193 = vunpack.c.l.b16 %v61
    %v194 = vunpack.c.l.b16 %v62
    %v195 = vunpack.c.l.b16 %v63
    %v196 = vunpack.c.l.b16 %v64
    %v197 = vunpack.c.l.b16 %v65
    %v198 = vunpack.c.l.b16 %v66
    %v199 = vunpack.c.l.b16 %v67
    %v200 = vunpack.c.l.b16 %v68
    %v201 = vunpack.c.l.b16 %v69
    %v202 = vunpack.c.l.b16 %v70
    %v203 = vunpack.c.l.b16 %v71
    %v204 = vunpack.c.l.b16 %v72
    %v205 = vunpack.c.l.b16 %v73
    %v206 = vunpack.c.l.b16 %v74
    %v207 = vunpack.c.l.b16 %v75
    %v208 = vunpack.c.l.b16 %v76
    %v209 = vunpack.c.l.b16 %v77
    %v210 = vunpack.c.l.b16 %v78
    %v211 = vunpack.c.l.b16 %v79
    %v212 = vunpack.c.l.b16 %v80
    %v213 = vunpack.c.l.b16 %v81
    %v214 = vunpack.c.l.b16 %v82
    %v215 = vunpack.c.l.b16 %v83
    %v216 = vunpack.c.l.b16 %v84
    %v217 = vunpack.c.l.b16 %v85
    %v218 = vpack.c.b16 %v155, %v154
    %v219 = vpack.c.b16 %v157, %v156
    %v220 = vpack.c.b16 %v159, %v158
    %v221 = vpack.c.b16 %v161, %v160
    %v222 = vpack.c.b16 %v163, %v162
    %v223 = vpack.c.b16 %v165, %v164
    %v224 = vpack.c.b16 %v167, %v166
    %v225 = vpack.c.b16 %v169, %v168
    %v226 = vpack.c.b16 %v171, %v170
    %v227 = vpack.c.b16 %v173, %v172
    %v228 = vpack.c.b16 %v175, %v174
    %v229 = vpack.c.b16 %v177, %v176
    %v230 = vpack.c.b16 %v179, %v178
    %v231 = vpack.c.b16 %v181, %v180
    %v232 = vpack.c.b16 %v183, %v182
    %v233 = vpack.c.b16 %v185, %v184
    %v234 = vpack.c.b16 %v187, %v186
    %v235 = vpack.c.b16 %v189, %v188
    %v236 = vpack.c.b16 %v191, %v190
    %v237 = vpack.c.b16 %v193, %v192
    %v238 = vpack.c.b16 %v195, %v194
    %v239 = vpack.c.b16 %v197, %v196
    %v240 = vpack.c.b16 %v199, %v198
    %v241 = vpack.c.b16 %v201, %v200
    %v242 = vpack.c.b16 %v203, %v202
    %v243 = vpack.c.b16 %v205, %v204
    %v244 = vpack.c.b16 %v207, %v206
    %v245 = vpack.c.b16 %v209, %v208
    %v246 = vpack.c.b16 %v211, %v210
    %v247 = vpack.c.b16 %v213, %v212
    %v248 = vpack.c.b16 %v215, %v214
    %v249 = vpack.c.b16 %v217, %v216
    %v254 = vunpack.c.l.b16 %v86
    %v255 = vunpack.c.l.b16 %v87
    %v256 = vunpack.c.l.b16 %v88
    %v257 = vunpack.c.l.b16 %v89
    %v258 = vpack.c.b16 %v255, %v254
    %v259 = vpack.c.b16 %v257, %v256
    %vm261 = vcmask 220160
    %v263 = vsel %vm261, %v218, 0
    %v266 = vsel %vm261, %v219, 0
    %v269 = vsel %vm261, %v220, 0
    %v272 = vsel %vm261, %v221, 0
    %v275 = vsel %vm261, %v222, 0
    %v278 = vsel %vm261, %v223, 0
    %v281 = vsel %vm261, %v224, 0
    %v284 = vsel %vm261, %v225, 0
    %v287 = vsel %vm261, %v226, 0
    %v290 = vsel %vm261, %v227, 0
    %v293 = vsel %vm261, %v228, 0
    %v296 = vsel %vm261, %v229, 0
    %v299 = vsel %vm261, %v230, 0
    %v302 = vsel %vm261, %v231, 0
    %v305 = vsel %vm261, %v232, 0
    %v308 = vsel %vm261, %v233, 0
    %v311 = vsel %vm261, %v234, 0
    %v314 = vsel %vm261, %v235, 0
    %v317 = vsel %vm261, %v236, 0
    %v320 = vsel %vm261, %v237, 0
    %v323 = vsel %vm261, %v238, 0
    %v326 = vsel %vm261, %v239, 0
    %v329 = vsel %vm261, %v240, 0
    %v332 = vsel %vm261, %v241, 0
    %v335 = vsel %vm261, %v242, 0
    %v338 = vsel %vm261, %v243, 0
    %v341 = vsel %vm261, %v244, 0
    %v344 = vsel %vm261, %v245, 0
    %v347 = vsel %vm261, %v246, 0
    %v350 = vsel %vm261, %v247, 0
    %v353 = vsel %vm261, %v248, 0
    %v356 = vsel %vm261, %v249, 0
    %vm358 = vcmask 1044480
    %vm359 = vcmask 1045504
    %v360 = vsel %vm358, 4294967295, 65535
    %v361 = vsel %vm359, %v360, 0
    %v363 = vand.u32 %v259, %v361
    %365 = vmatprep.subr.bf16.mxu0 0
    %366 = vmatpush1.bf16.msra.mxu0 0
    %367 = vmatprep.subr.bf16.mxu0 0
    %368 = vmatpush1.bf16.msra.mxu0 0
    %369 = vmatprep.subr.bf16.mxu0 0
    %370 = vmatpush1.bf16.msra.mxu0 0
    %371 = vmatprep.subr.bf16.mxu0 0
    %372 = vmatpush1.bf16.msra.mxu0 0
    %373 = vmatprep.subr.bf16.mxu0 0
    %374 = vmatpush1.bf16.msra.mxu0 0
    %375 = vmatprep.subr.bf16.mxu0 0
    %376 = vmatpush1.bf16.msra.mxu0 0
    %377 = vmatprep.subr.bf16.mxu0 0
    %378 = vmatpush1.bf16.msra.mxu0 %v363
    %379 = vmatprep.subr.bf16.mxu0 0
    %380 = vmatpush1.bf16.msra.mxu0 %v258
    %381 = vmatprep.subr.bf16.mxu0 0
    %382 = vmatpush2.bf16.msra.mxu0 0
    %383 = vmatprep.subr.bf16.mxu0 0
    %384 = vmatpush2.bf16.msra.mxu0 0
    %385 = vmatprep.subr.bf16.mxu0 0
    %386 = vmatpush2.bf16.msra.mxu0 0
    %387 = vmatprep.subr.bf16.mxu0 0
    %388 = vmatpush2.bf16.msra.mxu0 0
    %389 = vmatprep.subr.bf16.mxu0 0
    %390 = vmatpush2.bf16.msra.mxu0 0
    %391 = vmatprep.subr.bf16.mxu0 0
    %392 = vmatpush2.bf16.msra.mxu0 0
    %393 = vmatprep.subr.bf16.mxu0 0
    %394 = vmatpush2.bf16.msra.mxu0 0
    %395 = vmatprep.subr.bf16.mxu0 0
    %396 = vmatpush2.bf16.msra.mxu0 0
    %397 = vmatprep.mubr.bf16.mxu0 0
    %398 = vmatmul.mubr.bf16.gmra.mxu0 %v263
    %v399 = vpop.f32.mrf.mxu0
    %v400 = vadd.f32 0.0, %v399
    %v401 = vpop.f32.mrf.mxu0
    %v402 = vpop.f32.mrf.mxu0
    %v403 = vadd.f32 0.0, %v402
    %v404 = vpop.f32.mrf.mxu0
    %405 = vmatprep.mubr.bf16.mxu0 0
    %406 = vmatmul.mubr.bf16.gmra.mxu0 %v266
    %v407 = vpop.f32.mrf.mxu0
    %v408 = vadd.f32 0.0, %v407
    %v409 = vpop.f32.mrf.mxu0
    %v410 = vpop.f32.mrf.mxu0
    %v411 = vadd.f32 0.0, %v410
    %v412 = vpop.f32.mrf.mxu0
    %413 = vmatprep.mubr.bf16.mxu0 0
    %414 = vmatmul.mubr.bf16.gmra.mxu0 %v269
    %v415 = vpop.f32.mrf.mxu0
    %v416 = vadd.f32 0.0, %v415
    %v417 = vpop.f32.mrf.mxu0
    %v418 = vpop.f32.mrf.mxu0
    %v419 = vadd.f32 0.0, %v418
    %v420 = vpop.f32.mrf.mxu0
    %421 = vmatprep.mubr.bf16.mxu0 0
    %422 = vmatmul.mubr.bf16.gmra.mxu0 %v272
    %v423 = vpop.f32.mrf.mxu0
    %v424 = vadd.f32 0.0, %v423
    %v425 = vpop.f32.mrf.mxu0
    %v426 = vpop.f32.mrf.mxu0
    %v427 = vadd.f32 0.0, %v426
    %v428 = vpop.f32.mrf.mxu0
    %429 = vmatprep.mubr.bf16.mxu0 0
    %430 = vmatmul.mubr.bf16.gmra.mxu0 %v275
    %v431 = vpop.f32.mrf.mxu0
    %v432 = vadd.f32 0.0, %v431
    %v433 = vpop.f32.mrf.mxu0
    %v434 = vpop.f32.mrf.mxu0
    %v435 = vadd.f32 0.0, %v434
    %v436 = vpop.f32.mrf.mxu0
    %437 = vmatprep.mubr.bf16.mxu0 0
    %438 = vmatmul.mubr.bf16.gmra.mxu0 %v278
    %v439 = vpop.f32.mrf.mxu0
    %v440 = vadd.f32 0.0, %v439
    %v441 = vpop.f32.mrf.mxu0
    %v442 = vpop.f32.mrf.mxu0
    %v443 = vadd.f32 0.0, %v442
    %v444 = vpop.f32.mrf.mxu0
    %445 = vmatprep.mubr.bf16.mxu0 0
    %446 = vmatmul.mubr.bf16.gmra.mxu0 %v281
    %v447 = vpop.f32.mrf.mxu0
    %v448 = vadd.f32 0.0, %v447
    %v449 = vpop.f32.mrf.mxu0
    %v450 = vpop.f32.mrf.mxu0
    %v451 = vadd.f32 0.0, %v450
    %v452 = vpop.f32.mrf.mxu0
    %453 = vmatprep.mubr.bf16.mxu0 0
    %454 = vmatmul.mubr.bf16.gmra.mxu0 %v284
    %v455 = vpop.f32.mrf.mxu0
    %v456 = vadd.f32 0.0, %v455
    %v457 = vpop.f32.mrf.mxu0
    %v458 = vpop.f32.mrf.mxu0
    %v459 = vadd.f32 0.0, %v458
    %v460 = vpop.f32.mrf.mxu0
    %461 = vmatprep.mubr.bf16.mxu0 0
    %462 = vmatmul.mubr.bf16.gmra.mxu0 %v287
    %v463 = vpop.f32.mrf.mxu0
    %v464 = vadd.f32 0.0, %v463
    %v465 = vpop.f32.mrf.mxu0
    %v466 = vpop.f32.mrf.mxu0
    %v467 = vadd.f32 0.0, %v466
    %v468 = vpop.f32.mrf.mxu0
    %469 = vmatprep.mubr.bf16.mxu0 0
    %470 = vmatmul.mubr.bf16.gmra.mxu0 %v290
    %v471 = vpop.f32.mrf.mxu0
    %v472 = vadd.f32 0.0, %v471
    %v473 = vpop.f32.mrf.mxu0
    %v474 = vpop.f32.mrf.mxu0
    %v475 = vadd.f32 0.0, %v474
    %v476 = vpop.f32.mrf.mxu0
    %477 = vmatprep.mubr.bf16.mxu0 0
    %478 = vmatmul.mubr.bf16.gmra.mxu0 %v293
    %v479 = vpop.f32.mrf.mxu0
    %v480 = vadd.f32 0.0, %v479
    %v481 = vpop.f32.mrf.mxu0
    %v482 = vpop.f32.mrf.mxu0
    %v483 = vadd.f32 0.0, %v482
    %v484 = vpop.f32.mrf.mxu0
    %485 = vmatprep.mubr.bf16.mxu0 0
    %486 = vmatmul.mubr.bf16.gmra.mxu0 %v296
    %v487 = vpop.f32.mrf.mxu0
    %v488 = vadd.f32 0.0, %v487
    %v489 = vpop.f32.mrf.mxu0
    %v490 = vpop.f32.mrf.mxu0
    %v491 = vadd.f32 0.0, %v490
    %v492 = vpop.f32.mrf.mxu0
    %493 = vmatprep.mubr.bf16.mxu0 0
    %494 = vmatmul.mubr.bf16.gmra.mxu0 %v299
    %v495 = vpop.f32.mrf.mxu0
    %v496 = vadd.f32 0.0, %v495
    %v497 = vpop.f32.mrf.mxu0
    %v498 = vpop.f32.mrf.mxu0
    %v499 = vadd.f32 0.0, %v498
    %v500 = vpop.f32.mrf.mxu0
    %501 = vmatprep.mubr.bf16.mxu0 0
    %502 = vmatmul.mubr.bf16.gmra.mxu0 %v302
    %v503 = vpop.f32.mrf.mxu0
    %v504 = vadd.f32 0.0, %v503
    %v505 = vpop.f32.mrf.mxu0
    %v506 = vpop.f32.mrf.mxu0
    %v507 = vadd.f32 0.0, %v506
    %v508 = vpop.f32.mrf.mxu0
    %509 = vmatprep.mubr.bf16.mxu0 0
    %510 = vmatmul.mubr.bf16.gmra.mxu0 %v305
    %v511 = vpop.f32.mrf.mxu0
    %v512 = vadd.f32 0.0, %v511
    %v513 = vpop.f32.mrf.mxu0
    %v514 = vpop.f32.mrf.mxu0
    %v515 = vadd.f32 0.0, %v514
    %v516 = vpop.f32.mrf.mxu0
    %517 = vmatprep.mubr.bf16.mxu0 0
    %518 = vmatmul.mubr.bf16.gmra.mxu0 %v308
    %v519 = vpop.f32.mrf.mxu0
    %v520 = vadd.f32 0.0, %v519
    %v521 = vpop.f32.mrf.mxu0
    %v522 = vpop.f32.mrf.mxu0
    %v523 = vadd.f32 0.0, %v522
    %v524 = vpop.f32.mrf.mxu0
    %525 = vmatprep.mubr.bf16.mxu0 0
    %526 = vmatmul.mubr.bf16.gmra.mxu0 %v311
    %v527 = vpop.f32.mrf.mxu0
    %v528 = vadd.f32 0.0, %v527
    %v529 = vpop.f32.mrf.mxu0
    %v530 = vpop.f32.mrf.mxu0
    %v531 = vadd.f32 0.0, %v530
    %v532 = vpop.f32.mrf.mxu0
    %533 = vmatprep.mubr.bf16.mxu0 0
    %534 = vmatmul.mubr.bf16.gmra.mxu0 %v314
    %v535 = vpop.f32.mrf.mxu0
    %v536 = vadd.f32 0.0, %v535
    %v537 = vpop.f32.mrf.mxu0
    %v538 = vpop.f32.mrf.mxu0
    %v539 = vadd.f32 0.0, %v538
    %v540 = vpop.f32.mrf.mxu0
    %541 = vmatprep.mubr.bf16.mxu0 0
    %542 = vmatmul.mubr.bf16.gmra.mxu0 %v317
    %v543 = vpop.f32.mrf.mxu0
    %v544 = vadd.f32 0.0, %v543
    %v545 = vpop.f32.mrf.mxu0
    %v546 = vpop.f32.mrf.mxu0
    %v547 = vadd.f32 0.0, %v546
    %v548 = vpop.f32.mrf.mxu0
    %549 = vmatprep.mubr.bf16.mxu0 0
    %550 = vmatmul.mubr.bf16.gmra.mxu0 %v320
    %v551 = vpop.f32.mrf.mxu0
    %v552 = vadd.f32 0.0, %v551
    %v553 = vpop.f32.mrf.mxu0
    %v554 = vpop.f32.mrf.mxu0
    %v555 = vadd.f32 0.0, %v554
    %v556 = vpop.f32.mrf.mxu0
    %557 = vmatprep.mubr.bf16.mxu0 0
    %558 = vmatmul.mubr.bf16.gmra.mxu0 %v323
    %v559 = vpop.f32.mrf.mxu0
    %v560 = vadd.f32 0.0, %v559
    %v561 = vpop.f32.mrf.mxu0
    %v562 = vpop.f32.mrf.mxu0
    %v563 = vadd.f32 0.0, %v562
    %v564 = vpop.f32.mrf.mxu0
    %565 = vmatprep.mubr.bf16.mxu0 0
    %566 = vmatmul.mubr.bf16.gmra.mxu0 %v326
    %v567 = vpop.f32.mrf.mxu0
    %v568 = vadd.f32 0.0, %v567
    %v569 = vpop.f32.mrf.mxu0
    %v570 = vpop.f32.mrf.mxu0
    %v571 = vadd.f32 0.0, %v570
    %v572 = vpop.f32.mrf.mxu0
    %573 = vmatprep.mubr.bf16.mxu0 0
    %574 = vmatmul.mubr.bf16.gmra.mxu0 %v329
    %v575 = vpop.f32.mrf.mxu0
    %v576 = vadd.f32 0.0, %v575
    %v577 = vpop.f32.mrf.mxu0
    %v578 = vpop.f32.mrf.mxu0
    %v579 = vadd.f32 0.0, %v578
    %v580 = vpop.f32.mrf.mxu0
    %581 = vmatprep.mubr.bf16.mxu0 0
    %582 = vmatmul.mubr.bf16.gmra.mxu0 %v332
    %v583 = vpop.f32.mrf.mxu0
    %v584 = vadd.f32 0.0, %v583
    %v585 = vpop.f32.mrf.mxu0
    %v586 = vpop.f32.mrf.mxu0
    %v587 = vadd.f32 0.0, %v586
    %v588 = vpop.f32.mrf.mxu0
    %589 = vmatprep.mubr.bf16.mxu0 0
    %590 = vmatmul.mubr.bf16.gmra.mxu0 %v335
    %v591 = vpop.f32.mrf.mxu0
    %v592 = vadd.f32 0.0, %v591
    %v593 = vpop.f32.mrf.mxu0
    %v594 = vpop.f32.mrf.mxu0
    %v595 = vadd.f32 0.0, %v594
    %v596 = vpop.f32.mrf.mxu0
    %597 = vmatprep.mubr.bf16.mxu0 0
    %598 = vmatmul.mubr.bf16.gmra.mxu0 %v338
    %v599 = vpop.f32.mrf.mxu0
    %v600 = vadd.f32 0.0, %v599
    %v601 = vpop.f32.mrf.mxu0
    %v602 = vpop.f32.mrf.mxu0
    %v603 = vadd.f32 0.0, %v602
    %v604 = vpop.f32.mrf.mxu0
    %605 = vmatprep.mubr.bf16.mxu0 0
    %606 = vmatmul.mubr.bf16.gmra.mxu0 %v341
    %v607 = vpop.f32.mrf.mxu0
    %v608 = vadd.f32 0.0, %v607
    %v609 = vpop.f32.mrf.mxu0
    %v610 = vpop.f32.mrf.mxu0
    %v611 = vadd.f32 0.0, %v610
    %v612 = vpop.f32.mrf.mxu0
    %613 = vmatprep.mubr.bf16.mxu0 0
    %614 = vmatmul.mubr.bf16.gmra.mxu0 %v344
    %v615 = vpop.f32.mrf.mxu0
    %v616 = vadd.f32 0.0, %v615
    %v617 = vpop.f32.mrf.mxu0
    %v618 = vpop.f32.mrf.mxu0
    %v619 = vadd.f32 0.0, %v618
    %v620 = vpop.f32.mrf.mxu0
    %621 = vmatprep.mubr.bf16.mxu0 0
    %622 = vmatmul.mubr.bf16.gmra.mxu0 %v347
    %v623 = vpop.f32.mrf.mxu0
    %v624 = vadd.f32 0.0, %v623
    %v625 = vpop.f32.mrf.mxu0
    %v626 = vpop.f32.mrf.mxu0
    %v627 = vadd.f32 0.0, %v626
    %v628 = vpop.f32.mrf.mxu0
    %629 = vmatprep.mubr.bf16.mxu0 0
    %630 = vmatmul.mubr.bf16.gmra.mxu0 %v350
    %v631 = vpop.f32.mrf.mxu0
    %v632 = vadd.f32 0.0, %v631
    %v633 = vpop.f32.mrf.mxu0
    %v634 = vpop.f32.mrf.mxu0
    %v635 = vadd.f32 0.0, %v634
    %v636 = vpop.f32.mrf.mxu0
    %637 = vmatprep.mubr.bf16.mxu0 0
    %638 = vmatmul.mubr.bf16.gmra.mxu0 %v353
    %v639 = vpop.f32.mrf.mxu0
    %v640 = vadd.f32 0.0, %v639
    %v641 = vpop.f32.mrf.mxu0
    %v642 = vpop.f32.mrf.mxu0
    %v643 = vadd.f32 0.0, %v642
    %v644 = vpop.f32.mrf.mxu0
    %645 = vmatprep.mubr.bf16.mxu0 0
    %646 = vmatmul.mubr.bf16.gmra.mxu0 %v356
    %v647 = vpop.f32.mrf.mxu0
    %v648 = vadd.f32 0.0, %v647
    %v649 = vpop.f32.mrf.mxu0
    %v650 = vpop.f32.mrf.mxu0
    %v651 = vadd.f32 0.0, %v650
    %v652 = vpop.f32.mrf.mxu0
    %653 = vdwg.mxu0
    %v654 = vld [vmem:[%s3] sm:$0x1]
    %v655 = vld [vmem:[%s4] sm:$0x1]
    %v656 = vlaneseq
    %v657 = vshrl.u32 %v656, 7
    %v658 = vsub.s32 0, %v657
    %v659 = vrot.slane %v654, %v658
    %v660 = vmul.f32 %v400, %v659
    %v661 = vmul.f32 %v403, %v659
    %v662 = vmul.f32 %v408, %v659
    %v663 = vmul.f32 %v411, %v659
    %v664 = vmul.f32 %v416, %v659
    %v665 = vmul.f32 %v419, %v659
    %v666 = vmul.f32 %v424, %v659
    %v667 = vmul.f32 %v427, %v659
    %v668 = vmul.f32 %v432, %v659
    %v669 = vmul.f32 %v435, %v659
    %v670 = vmul.f32 %v440, %v659
    %v671 = vmul.f32 %v443, %v659
    %v672 = vmul.f32 %v448, %v659
    %v673 = vmul.f32 %v451, %v659
    %v674 = vmul.f32 %v456, %v659
    %v675 = vmul.f32 %v459, %v659
    %v676 = vmul.f32 %v464, %v659
    %v677 = vmul.f32 %v467, %v659
    %v678 = vmul.f32 %v472, %v659
    %v679 = vmul.f32 %v475, %v659
    %v680 = vmul.f32 %v480, %v659
    %v681 = vmul.f32 %v483, %v659
    %v682 = vmul.f32 %v488, %v659
    %v683 = vmul.f32 %v491, %v659
    %v684 = vmul.f32 %v496, %v659
    %v685 = vmul.f32 %v499, %v659
    %v686 = vmul.f32 %v504, %v659
    %v687 = vmul.f32 %v507, %v659
    %v688 = vmul.f32 %v512, %v659
    %v689 = vmul.f32 %v515, %v659
    %v690 = vmul.f32 %v520, %v659
    %v691 = vmul.f32 %v523, %v659
    %v692 = vmul.f32 %v528, %v659
    %v693 = vmul.f32 %v531, %v659
    %v694 = vmul.f32 %v536, %v659
    %v695 = vmul.f32 %v539, %v659
    %v696 = vmul.f32 %v544, %v659
    %v697 = vmul.f32 %v547, %v659
    %v698 = vmul.f32 %v552, %v659
    %v699 = vmul.f32 %v555, %v659
    %v700 = vmul.f32 %v560, %v659
    %v701 = vmul.f32 %v563, %v659
    %v702 = vmul.f32 %v568, %v659
    %v703 = vmul.f32 %v571, %v659
    %v704 = vmul.f32 %v576, %v659
    %v705 = vmul.f32 %v579, %v659
    %v706 = vmul.f32 %v584, %v659
    %v707 = vmul.f32 %v587, %v659
    %v708 = vmul.f32 %v592, %v659
    %v709 = vmul.f32 %v595, %v659
    %v710 = vmul.f32 %v600, %v659
    %v711 = vmul.f32 %v603, %v659
    %v712 = vmul.f32 %v608, %v659
    %v713 = vmul.f32 %v611, %v659
    %v714 = vmul.f32 %v616, %v659
    %v715 = vmul.f32 %v619, %v659
    %v716 = vmul.f32 %v624, %v659
    %v717 = vmul.f32 %v627, %v659
    %v718 = vmul.f32 %v632, %v659
    %v719 = vmul.f32 %v635, %v659
    %v720 = vmul.f32 %v640, %v659
    %v721 = vmul.f32 %v643, %v659
    %v722 = vmul.f32 %v648, %v659
    %v723 = vmul.f32 %v651, %v659
    %v724 = vlaneseq
    %v725 = vshrl.u32 %v724, 7
    %v726 = vsub.s32 0, %v725
    %v727 = vrot.slane %v655, %v726
    %v728 = vadd.f32 %v660, %v727
    %v729 = vadd.f32 %v661, %v727
    %v730 = vadd.f32 %v662, %v727
    %v731 = vadd.f32 %v663, %v727
    %v732 = vadd.f32 %v664, %v727
    %v733 = vadd.f32 %v665, %v727
    %v734 = vadd.f32 %v666, %v727
    %v735 = vadd.f32 %v667, %v727
    %v736 = vadd.f32 %v668, %v727
    %v737 = vadd.f32 %v669, %v727
    %v738 = vadd.f32 %v670, %v727
    %v739 = vadd.f32 %v671, %v727
    %v740 = vadd.f32 %v672, %v727
    %v741 = vadd.f32 %v673, %v727
    %v742 = vadd.f32 %v674, %v727
    %v743 = vadd.f32 %v675, %v727
    %v744 = vadd.f32 %v676, %v727
    %v745 = vadd.f32 %v677, %v727
    %v746 = vadd.f32 %v678, %v727
    %v747 = vadd.f32 %v679, %v727
    %v748 = vadd.f32 %v680, %v727
    %v749 = vadd.f32 %v681, %v727
    %v750 = vadd.f32 %v682, %v727
    %v751 = vadd.f32 %v683, %v727
    %v752 = vadd.f32 %v684, %v727
    %v753 = vadd.f32 %v685, %v727
    %v754 = vadd.f32 %v686, %v727
    %v755 = vadd.f32 %v687, %v727
    %v756 = vadd.f32 %v688, %v727
    %v757 = vadd.f32 %v689, %v727
    %v758 = vadd.f32 %v690, %v727
    %v759 = vadd.f32 %v691, %v727
    %v760 = vadd.f32 %v692, %v727
    %v761 = vadd.f32 %v693, %v727
    %v762 = vadd.f32 %v694, %v727
    %v763 = vadd.f32 %v695, %v727
    %v764 = vadd.f32 %v696, %v727
    %v765 = vadd.f32 %v697, %v727
    %v766 = vadd.f32 %v698, %v727
    %v767 = vadd.f32 %v699, %v727
    %v768 = vadd.f32 %v700, %v727
    %v769 = vadd.f32 %v701, %v727
    %v770 = vadd.f32 %v702, %v727
    %v771 = vadd.f32 %v703, %v727
    %v772 = vadd.f32 %v704, %v727
    %v773 = vadd.f32 %v705, %v727
    %v774 = vadd.f32 %v706, %v727
    %v775 = vadd.f32 %v707, %v727
    %v776 = vadd.f32 %v708, %v727
    %v777 = vadd.f32 %v709, %v727
    %v778 = vadd.f32 %v710, %v727
    %v779 = vadd.f32 %v711, %v727
    %v780 = vadd.f32 %v712, %v727
    %v781 = vadd.f32 %v713, %v727
    %v782 = vadd.f32 %v714, %v727
    %v783 = vadd.f32 %v715, %v727
    %v784 = vadd.f32 %v716, %v727
    %v785 = vadd.f32 %v717, %v727
    %v786 = vadd.f32 %v718, %v727
    %v787 = vadd.f32 %v719, %v727
    %v788 = vadd.f32 %v720, %v727
    %v789 = vadd.f32 %v721, %v727
    %v790 = vadd.f32 %v722, %v727
    %v791 = vadd.f32 %v723, %v727
    %v792 = vmax.f32 %v728, 0.0
    %v793 = vmax.f32 %v729, 0.0
    %v794 = vmax.f32 %v730, 0.0
    %v795 = vmax.f32 %v731, 0.0
    %v796 = vmax.f32 %v732, 0.0
    %v797 = vmax.f32 %v733, 0.0
    %v798 = vmax.f32 %v734, 0.0
    %v799 = vmax.f32 %v735, 0.0
    %v800 = vmax.f32 %v736, 0.0
    %v801 = vmax.f32 %v737, 0.0
    %v802 = vmax.f32 %v738, 0.0
    %v803 = vmax.f32 %v739, 0.0
    %v804 = vmax.f32 %v740, 0.0
    %v805 = vmax.f32 %v741, 0.0
    %v806 = vmax.f32 %v742, 0.0
    %v807 = vmax.f32 %v743, 0.0
    %v808 = vmax.f32 %v744, 0.0
    %v809 = vmax.f32 %v745, 0.0
    %v810 = vmax.f32 %v746, 0.0
    %v811 = vmax.f32 %v747, 0.0
    %v812 = vmax.f32 %v748, 0.0
    %v813 = vmax.f32 %v749, 0.0
    %v814 = vmax.f32 %v750, 0.0
    %v815 = vmax.f32 %v751, 0.0
    %v816 = vmax.f32 %v752, 0.0
    %v817 = vmax.f32 %v753, 0.0
    %v818 = vmax.f32 %v754, 0.0
    %v819 = vmax.f32 %v755, 0.0
    %v820 = vmax.f32 %v756, 0.0
    %v821 = vmax.f32 %v757, 0.0
    %v822 = vmax.f32 %v758, 0.0
    %v823 = vmax.f32 %v759, 0.0
    %v824 = vmax.f32 %v760, 0.0
    %v825 = vmax.f32 %v761, 0.0
    %v826 = vmax.f32 %v762, 0.0
    %v827 = vmax.f32 %v763, 0.0
    %v828 = vmax.f32 %v764, 0.0
    %v829 = vmax.f32 %v765, 0.0
    %v830 = vmax.f32 %v766, 0.0
    %v831 = vmax.f32 %v767, 0.0
    %v832 = vmax.f32 %v768, 0.0
    %v833 = vmax.f32 %v769, 0.0
    %v834 = vmax.f32 %v770, 0.0
    %v835 = vmax.f32 %v771, 0.0
    %v836 = vmax.f32 %v772, 0.0
    %v837 = vmax.f32 %v773, 0.0
    %v838 = vmax.f32 %v774, 0.0
    %v839 = vmax.f32 %v775, 0.0
    %v840 = vmax.f32 %v776, 0.0
    %v841 = vmax.f32 %v777, 0.0
    %v842 = vmax.f32 %v778, 0.0
    %v843 = vmax.f32 %v779, 0.0
    %v844 = vmax.f32 %v780, 0.0
    %v845 = vmax.f32 %v781, 0.0
    %v846 = vmax.f32 %v782, 0.0
    %v847 = vmax.f32 %v783, 0.0
    %v848 = vmax.f32 %v784, 0.0
    %v849 = vmax.f32 %v785, 0.0
    %v850 = vmax.f32 %v786, 0.0
    %v851 = vmax.f32 %v787, 0.0
    %v852 = vmax.f32 %v788, 0.0
    %v853 = vmax.f32 %v789, 0.0
    %v854 = vmax.f32 %v790, 0.0
    %v855 = vmax.f32 %v791, 0.0
    %v920 = vcombine.high %v792, %v792
    %v922 = vunpack.c.l.s4 1983009808
    %v923 = vunpack.c.0.s8 %v922
    %v924 = vlaneseq
    %v925 = vshrl.u32 %v924, 7
    %v926 = vsub.s32 %v923, %v925
    %v927 = vrot.slane %v792, %v926
    %v929 = vunpack.c.l.s4 1983009808
    %v930 = vunpack.c.0.s8 %v929
    %v931 = vlaneseq
    %v932 = vshrl.u32 %v931, 7
    %v933 = vsub.s32 %v930, %v932
    %v934 = vrot.slane %v920, %v933
    %v935 = vcombine.high %v927, %v927
    %v936 = vcombine.high %v934, %v934
    %v937 = vcombine.high %v793, %v793
    %v939 = vunpack.c.l.s4 1983009808
    %v940 = vunpack.c.0.s8 %v939
    %v941 = vlaneseq
    %v942 = vshrl.u32 %v941, 7
    %v943 = vsub.s32 %v940, %v942
    %v944 = vrot.slane %v793, %v943
    %v946 = vunpack.c.l.s4 1983009808
    %v947 = vunpack.c.0.s8 %v946
    %v948 = vlaneseq
    %v949 = vshrl.u32 %v948, 7
    %v950 = vsub.s32 %v947, %v949
    %v951 = vrot.slane %v937, %v950
    %v952 = vcombine.high %v944, %v944
    %v953 = vcombine.high %v951, %v951
    %v954 = vcombine.high %v794, %v794
    %v956 = vunpack.c.l.s4 1983009808
    %v957 = vunpack.c.0.s8 %v956
    %v958 = vlaneseq
    %v959 = vshrl.u32 %v958, 7
    %v960 = vsub.s32 %v957, %v959
    %v961 = vrot.slane %v794, %v960
    %v963 = vunpack.c.l.s4 1983009808
    %v964 = vunpack.c.0.s8 %v963
    %v965 = vlaneseq
    %v966 = vshrl.u32 %v965, 7
    %v967 = vsub.s32 %v964, %v966
    %v968 = vrot.slane %v954, %v967
    %v969 = vcombine.high %v961, %v961
    %v970 = vcombine.high %v968, %v968
    %v971 = vcombine.high %v795, %v795
    %v973 = vunpack.c.l.s4 1983009808
    %v974 = vunpack.c.0.s8 %v973
    %v975 = vlaneseq
    %v976 = vshrl.u32 %v975, 7
    %v977 = vsub.s32 %v974, %v976
    %v978 = vrot.slane %v795, %v977
    %v980 = vunpack.c.l.s4 1983009808
    %v981 = vunpack.c.0.s8 %v980
    %v982 = vlaneseq
    %v983 = vshrl.u32 %v982, 7
    %v984 = vsub.s32 %v981, %v983
    %v985 = vrot.slane %v971, %v984
    %v986 = vcombine.high %v978, %v978
    %v987 = vcombine.high %v985, %v985
    %v988 = vcombine.high %v796, %v796
    %v990 = vunpack.c.l.s4 1983009808
    %v991 = vunpack.c.0.s8 %v990
    %v992 = vlaneseq
    %v993 = vshrl.u32 %v992, 7
    %v994 = vsub.s32 %v991, %v993
    %v995 = vrot.slane %v796, %v994
    %v997 = vunpack.c.l.s4 1983009808
    %v998 = vunpack.c.0.s8 %v997
    %v999 = vlaneseq
    %v1000 = vshrl.u32 %v999, 7
    %v1001 = vsub.s32 %v998, %v1000
    %v1002 = vrot.slane %v988, %v1001
    %v1003 = vcombine.high %v995, %v995
    %v1004 = vcombine.high %v1002, %v1002
    %v1005 = vcombine.high %v797, %v797
    %v1007 = vunpack.c.l.s4 1983009808
    %v1008 = vunpack.c.0.s8 %v1007
    %v1009 = vlaneseq
    %v1010 = vshrl.u32 %v1009, 7
    %v1011 = vsub.s32 %v1008, %v1010
    %v1012 = vrot.slane %v797, %v1011
    %v1014 = vunpack.c.l.s4 1983009808
    %v1015 = vunpack.c.0.s8 %v1014
    %v1016 = vlaneseq
    %v1017 = vshrl.u32 %v1016, 7
    %v1018 = vsub.s32 %v1015, %v1017
    %v1019 = vrot.slane %v1005, %v1018
    %v1020 = vcombine.high %v1012, %v1012
    %v1021 = vcombine.high %v1019, %v1019
    %v1022 = vcombine.high %v798, %v798
    %v1024 = vunpack.c.l.s4 1983009808
    %v1025 = vunpack.c.0.s8 %v1024
    %v1026 = vlaneseq
    %v1027 = vshrl.u32 %v1026, 7
    %v1028 = vsub.s32 %v1025, %v1027
    %v1029 = vrot.slane %v798, %v1028
    %v1031 = vunpack.c.l.s4 1983009808
    %v1032 = vunpack.c.0.s8 %v1031
    %v1033 = vlaneseq
    %v1034 = vshrl.u32 %v1033, 7
    %v1035 = vsub.s32 %v1032, %v1034
    %v1036 = vrot.slane %v1022, %v1035
    %v1037 = vcombine.high %v1029, %v1029
    %v1038 = vcombine.high %v1036, %v1036
    %v1039 = vcombine.high %v799, %v799
    %v1041 = vunpack.c.l.s4 1983009808
    %v1042 = vunpack.c.0.s8 %v1041
    %v1043 = vlaneseq
    %v1044 = vshrl.u32 %v1043, 7
    %v1045 = vsub.s32 %v1042, %v1044
    %v1046 = vrot.slane %v799, %v1045
    %v1048 = vunpack.c.l.s4 1983009808
    %v1049 = vunpack.c.0.s8 %v1048
    %v1050 = vlaneseq
    %v1051 = vshrl.u32 %v1050, 7
    %v1052 = vsub.s32 %v1049, %v1051
    %v1053 = vrot.slane %v1039, %v1052
    %v1054 = vcombine.high %v1046, %v1046
    %v1055 = vcombine.high %v1053, %v1053
    %v1056 = vcombine.high %v800, %v800
    %v1058 = vunpack.c.l.s4 1983009808
    %v1059 = vunpack.c.0.s8 %v1058
    %v1060 = vlaneseq
    %v1061 = vshrl.u32 %v1060, 7
    %v1062 = vsub.s32 %v1059, %v1061
    %v1063 = vrot.slane %v800, %v1062
    %v1065 = vunpack.c.l.s4 1983009808
    %v1066 = vunpack.c.0.s8 %v1065
    %v1067 = vlaneseq
    %v1068 = vshrl.u32 %v1067, 7
    %v1069 = vsub.s32 %v1066, %v1068
    %v1070 = vrot.slane %v1056, %v1069
    %v1071 = vcombine.high %v1063, %v1063
    %v1072 = vcombine.high %v1070, %v1070
    %v1073 = vcombine.high %v801, %v801
    %v1075 = vunpack.c.l.s4 1983009808
    %v1076 = vunpack.c.0.s8 %v1075
    %v1077 = vlaneseq
    %v1078 = vshrl.u32 %v1077, 7
    %v1079 = vsub.s32 %v1076, %v1078
    %v1080 = vrot.slane %v801, %v1079
    %v1082 = vunpack.c.l.s4 1983009808
    %v1083 = vunpack.c.0.s8 %v1082
    %v1084 = vlaneseq
    %v1085 = vshrl.u32 %v1084, 7
    %v1086 = vsub.s32 %v1083, %v1085
    %v1087 = vrot.slane %v1073, %v1086
    %v1088 = vcombine.high %v1080, %v1080
    %v1089 = vcombine.high %v1087, %v1087
    %v1090 = vcombine.high %v802, %v802
    %v1092 = vunpack.c.l.s4 1983009808
    %v1093 = vunpack.c.0.s8 %v1092
    %v1094 = vlaneseq
    %v1095 = vshrl.u32 %v1094, 7
    %v1096 = vsub.s32 %v1093, %v1095
    %v1097 = vrot.slane %v802, %v1096
    %v1099 = vunpack.c.l.s4 1983009808
    %v1100 = vunpack.c.0.s8 %v1099
    %v1101 = vlaneseq
    %v1102 = vshrl.u32 %v1101, 7
    %v1103 = vsub.s32 %v1100, %v1102
    %v1104 = vrot.slane %v1090, %v1103
    %v1105 = vcombine.high %v1097, %v1097
    %v1106 = vcombine.high %v1104, %v1104
    %v1107 = vcombine.high %v803, %v803
    %v1109 = vunpack.c.l.s4 1983009808
    %v1110 = vunpack.c.0.s8 %v1109
    %v1111 = vlaneseq
    %v1112 = vshrl.u32 %v1111, 7
    %v1113 = vsub.s32 %v1110, %v1112
    %v1114 = vrot.slane %v803, %v1113
    %v1116 = vunpack.c.l.s4 1983009808
    %v1117 = vunpack.c.0.s8 %v1116
    %v1118 = vlaneseq
    %v1119 = vshrl.u32 %v1118, 7
    %v1120 = vsub.s32 %v1117, %v1119
    %v1121 = vrot.slane %v1107, %v1120
    %v1122 = vcombine.high %v1114, %v1114
    %v1123 = vcombine.high %v1121, %v1121
    %v1124 = vcombine.high %v804, %v804
    %v1126 = vunpack.c.l.s4 1983009808
    %v1127 = vunpack.c.0.s8 %v1126
    %v1128 = vlaneseq
    %v1129 = vshrl.u32 %v1128, 7
    %v1130 = vsub.s32 %v1127, %v1129
    %v1131 = vrot.slane %v804, %v1130
    %v1133 = vunpack.c.l.s4 1983009808
    %v1134 = vunpack.c.0.s8 %v1133
    %v1135 = vlaneseq
    %v1136 = vshrl.u32 %v1135, 7
    %v1137 = vsub.s32 %v1134, %v1136
    %v1138 = vrot.slane %v1124, %v1137
    %v1139 = vcombine.high %v1131, %v1131
    %v1140 = vcombine.high %v1138, %v1138
    %v1141 = vcombine.high %v805, %v805
    %v1143 = vunpack.c.l.s4 1983009808
    %v1144 = vunpack.c.0.s8 %v1143
    %v1145 = vlaneseq
    %v1146 = vshrl.u32 %v1145, 7
    %v1147 = vsub.s32 %v1144, %v1146
    %v1148 = vrot.slane %v805, %v1147
    %v1150 = vunpack.c.l.s4 1983009808
    %v1151 = vunpack.c.0.s8 %v1150
    %v1152 = vlaneseq
    %v1153 = vshrl.u32 %v1152, 7
    %v1154 = vsub.s32 %v1151, %v1153
    %v1155 = vrot.slane %v1141, %v1154
    %v1156 = vcombine.high %v1148, %v1148
    %v1157 = vcombine.high %v1155, %v1155
    %v1158 = vcombine.high %v806, %v806
    %v1160 = vunpack.c.l.s4 1983009808
    %v1161 = vunpack.c.0.s8 %v1160
    %v1162 = vlaneseq
    %v1163 = vshrl.u32 %v1162, 7
    %v1164 = vsub.s32 %v1161, %v1163
    %v1165 = vrot.slane %v806, %v1164
    %v1167 = vunpack.c.l.s4 1983009808
    %v1168 = vunpack.c.0.s8 %v1167
    %v1169 = vlaneseq
    %v1170 = vshrl.u32 %v1169, 7
    %v1171 = vsub.s32 %v1168, %v1170
    %v1172 = vrot.slane %v1158, %v1171
    %v1173 = vcombine.high %v1165, %v1165
    %v1174 = vcombine.high %v1172, %v1172
    %v1175 = vcombine.high %v807, %v807
    %v1177 = vunpack.c.l.s4 1983009808
    %v1178 = vunpack.c.0.s8 %v1177
    %v1179 = vlaneseq
    %v1180 = vshrl.u32 %v1179, 7
    %v1181 = vsub.s32 %v1178, %v1180
    %v1182 = vrot.slane %v807, %v1181
    %v1184 = vunpack.c.l.s4 1983009808
    %v1185 = vunpack.c.0.s8 %v1184
    %v1186 = vlaneseq
    %v1187 = vshrl.u32 %v1186, 7
    %v1188 = vsub.s32 %v1185, %v1187
    %v1189 = vrot.slane %v1175, %v1188
    %v1190 = vcombine.high %v1182, %v1182
    %v1191 = vcombine.high %v1189, %v1189
    %v1192 = vcombine.high %v808, %v808
    %v1194 = vunpack.c.l.s4 1983009808
    %v1195 = vunpack.c.0.s8 %v1194
    %v1196 = vlaneseq
    %v1197 = vshrl.u32 %v1196, 7
    %v1198 = vsub.s32 %v1195, %v1197
    %v1199 = vrot.slane %v808, %v1198
    %v1201 = vunpack.c.l.s4 1983009808
    %v1202 = vunpack.c.0.s8 %v1201
    %v1203 = vlaneseq
    %v1204 = vshrl.u32 %v1203, 7
    %v1205 = vsub.s32 %v1202, %v1204
    %v1206 = vrot.slane %v1192, %v1205
    %v1207 = vcombine.high %v1199, %v1199
    %v1208 = vcombine.high %v1206, %v1206
    %v1209 = vcombine.high %v809, %v809
    %v1211 = vunpack.c.l.s4 1983009808
    %v1212 = vunpack.c.0.s8 %v1211
    %v1213 = vlaneseq
    %v1214 = vshrl.u32 %v1213, 7
    %v1215 = vsub.s32 %v1212, %v1214
    %v1216 = vrot.slane %v809, %v1215
    %v1218 = vunpack.c.l.s4 1983009808
    %v1219 = vunpack.c.0.s8 %v1218
    %v1220 = vlaneseq
    %v1221 = vshrl.u32 %v1220, 7
    %v1222 = vsub.s32 %v1219, %v1221
    %v1223 = vrot.slane %v1209, %v1222
    %v1224 = vcombine.high %v1216, %v1216
    %v1225 = vcombine.high %v1223, %v1223
    %v1226 = vcombine.high %v810, %v810
    %v1228 = vunpack.c.l.s4 1983009808
    %v1229 = vunpack.c.0.s8 %v1228
    %v1230 = vlaneseq
    %v1231 = vshrl.u32 %v1230, 7
    %v1232 = vsub.s32 %v1229, %v1231
    %v1233 = vrot.slane %v810, %v1232
    %v1235 = vunpack.c.l.s4 1983009808
    %v1236 = vunpack.c.0.s8 %v1235
    %v1237 = vlaneseq
    %v1238 = vshrl.u32 %v1237, 7
    %v1239 = vsub.s32 %v1236, %v1238
    %v1240 = vrot.slane %v1226, %v1239
    %v1241 = vcombine.high %v1233, %v1233
    %v1242 = vcombine.high %v1240, %v1240
    %v1243 = vcombine.high %v811, %v811
    %v1245 = vunpack.c.l.s4 1983009808
    %v1246 = vunpack.c.0.s8 %v1245
    %v1247 = vlaneseq
    %v1248 = vshrl.u32 %v1247, 7
    %v1249 = vsub.s32 %v1246, %v1248
    %v1250 = vrot.slane %v811, %v1249
    %v1252 = vunpack.c.l.s4 1983009808
    %v1253 = vunpack.c.0.s8 %v1252
    %v1254 = vlaneseq
    %v1255 = vshrl.u32 %v1254, 7
    %v1256 = vsub.s32 %v1253, %v1255
    %v1257 = vrot.slane %v1243, %v1256
    %v1258 = vcombine.high %v1250, %v1250
    %v1259 = vcombine.high %v1257, %v1257
    %v1260 = vcombine.high %v812, %v812
    %v1262 = vunpack.c.l.s4 1983009808
    %v1263 = vunpack.c.0.s8 %v1262
    %v1264 = vlaneseq
    %v1265 = vshrl.u32 %v1264, 7
    %v1266 = vsub.s32 %v1263, %v1265
    %v1267 = vrot.slane %v812, %v1266
    %v1269 = vunpack.c.l.s4 1983009808
    %v1270 = vunpack.c.0.s8 %v1269
    %v1271 = vlaneseq
    %v1272 = vshrl.u32 %v1271, 7
    %v1273 = vsub.s32 %v1270, %v1272
    %v1274 = vrot.slane %v1260, %v1273
    %v1275 = vcombine.high %v1267, %v1267
    %v1276 = vcombine.high %v1274, %v1274
    %v1277 = vcombine.high %v813, %v813
    %v1279 = vunpack.c.l.s4 1983009808
    %v1280 = vunpack.c.0.s8 %v1279
    %v1281 = vlaneseq
    %v1282 = vshrl.u32 %v1281, 7
    %v1283 = vsub.s32 %v1280, %v1282
    %v1284 = vrot.slane %v813, %v1283
    %v1286 = vunpack.c.l.s4 1983009808
    %v1287 = vunpack.c.0.s8 %v1286
    %v1288 = vlaneseq
    %v1289 = vshrl.u32 %v1288, 7
    %v1290 = vsub.s32 %v1287, %v1289
    %v1291 = vrot.slane %v1277, %v1290
    %v1292 = vcombine.high %v1284, %v1284
    %v1293 = vcombine.high %v1291, %v1291
    %v1294 = vcombine.high %v814, %v814
    %v1296 = vunpack.c.l.s4 1983009808
    %v1297 = vunpack.c.0.s8 %v1296
    %v1298 = vlaneseq
    %v1299 = vshrl.u32 %v1298, 7
    %v1300 = vsub.s32 %v1297, %v1299
    %v1301 = vrot.slane %v814, %v1300
    %v1303 = vunpack.c.l.s4 1983009808
    %v1304 = vunpack.c.0.s8 %v1303
    %v1305 = vlaneseq
    %v1306 = vshrl.u32 %v1305, 7
    %v1307 = vsub.s32 %v1304, %v1306
    %v1308 = vrot.slane %v1294, %v1307
    %v1309 = vcombine.high %v1301, %v1301
    %v1310 = vcombine.high %v1308, %v1308
    %v1311 = vcombine.high %v815, %v815
    %v1313 = vunpack.c.l.s4 1983009808
    %v1314 = vunpack.c.0.s8 %v1313
    %v1315 = vlaneseq
    %v1316 = vshrl.u32 %v1315, 7
    %v1317 = vsub.s32 %v1314, %v1316
    %v1318 = vrot.slane %v815, %v1317
    %v1320 = vunpack.c.l.s4 1983009808
    %v1321 = vunpack.c.0.s8 %v1320
    %v1322 = vlaneseq
    %v1323 = vshrl.u32 %v1322, 7
    %v1324 = vsub.s32 %v1321, %v1323
    %v1325 = vrot.slane %v1311, %v1324
    %v1326 = vcombine.high %v1318, %v1318
    %v1327 = vcombine.high %v1325, %v1325
    %v1328 = vcombine.high %v816, %v816
    %v1330 = vunpack.c.l.s4 1983009808
    %v1331 = vunpack.c.0.s8 %v1330
    %v1332 = vlaneseq
    %v1333 = vshrl.u32 %v1332, 7
    %v1334 = vsub.s32 %v1331, %v1333
    %v1335 = vrot.slane %v816, %v1334
    %v1337 = vunpack.c.l.s4 1983009808
    %v1338 = vunpack.c.0.s8 %v1337
    %v1339 = vlaneseq
    %v1340 = vshrl.u32 %v1339, 7
    %v1341 = vsub.s32 %v1338, %v1340
    %v1342 = vrot.slane %v1328, %v1341
    %v1343 = vcombine.high %v1335, %v1335
    %v1344 = vcombine.high %v1342, %v1342
    %v1345 = vcombine.high %v817, %v817
    %v1347 = vunpack.c.l.s4 1983009808
    %v1348 = vunpack.c.0.s8 %v1347
    %v1349 = vlaneseq
    %v1350 = vshrl.u32 %v1349, 7
    %v1351 = vsub.s32 %v1348, %v1350
    %v1352 = vrot.slane %v817, %v1351
    %v1354 = vunpack.c.l.s4 1983009808
    %v1355 = vunpack.c.0.s8 %v1354
    %v1356 = vlaneseq
    %v1357 = vshrl.u32 %v1356, 7
    %v1358 = vsub.s32 %v1355, %v1357
    %v1359 = vrot.slane %v1345, %v1358
    %v1360 = vcombine.high %v1352, %v1352
    %v1361 = vcombine.high %v1359, %v1359
    %v1362 = vcombine.high %v818, %v818
    %v1364 = vunpack.c.l.s4 1983009808
    %v1365 = vunpack.c.0.s8 %v1364
    %v1366 = vlaneseq
    %v1367 = vshrl.u32 %v1366, 7
    %v1368 = vsub.s32 %v1365, %v1367
    %v1369 = vrot.slane %v818, %v1368
    %v1371 = vunpack.c.l.s4 1983009808
    %v1372 = vunpack.c.0.s8 %v1371
    %v1373 = vlaneseq
    %v1374 = vshrl.u32 %v1373, 7
    %v1375 = vsub.s32 %v1372, %v1374
    %v1376 = vrot.slane %v1362, %v1375
    %v1377 = vcombine.high %v1369, %v1369
    %v1378 = vcombine.high %v1376, %v1376
    %v1379 = vcombine.high %v819, %v819
    %v1381 = vunpack.c.l.s4 1983009808
    %v1382 = vunpack.c.0.s8 %v1381
    %v1383 = vlaneseq
    %v1384 = vshrl.u32 %v1383, 7
    %v1385 = vsub.s32 %v1382, %v1384
    %v1386 = vrot.slane %v819, %v1385
    %v1388 = vunpack.c.l.s4 1983009808
    %v1389 = vunpack.c.0.s8 %v1388
    %v1390 = vlaneseq
    %v1391 = vshrl.u32 %v1390, 7
    %v1392 = vsub.s32 %v1389, %v1391
    %v1393 = vrot.slane %v1379, %v1392
    %v1394 = vcombine.high %v1386, %v1386
    %v1395 = vcombine.high %v1393, %v1393
    %v1396 = vcombine.high %v820, %v820
    %v1398 = vunpack.c.l.s4 1983009808
    %v1399 = vunpack.c.0.s8 %v1398
    %v1400 = vlaneseq
    %v1401 = vshrl.u32 %v1400, 7
    %v1402 = vsub.s32 %v1399, %v1401
    %v1403 = vrot.slane %v820, %v1402
    %v1405 = vunpack.c.l.s4 1983009808
    %v1406 = vunpack.c.0.s8 %v1405
    %v1407 = vlaneseq
    %v1408 = vshrl.u32 %v1407, 7
    %v1409 = vsub.s32 %v1406, %v1408
    %v1410 = vrot.slane %v1396, %v1409
    %v1411 = vcombine.high %v1403, %v1403
    %v1412 = vcombine.high %v1410, %v1410
    %v1413 = vcombine.high %v821, %v821
    %v1415 = vunpack.c.l.s4 1983009808
    %v1416 = vunpack.c.0.s8 %v1415
    %v1417 = vlaneseq
    %v1418 = vshrl.u32 %v1417, 7
    %v1419 = vsub.s32 %v1416, %v1418
    %v1420 = vrot.slane %v821, %v1419
    %v1422 = vunpack.c.l.s4 1983009808
    %v1423 = vunpack.c.0.s8 %v1422
    %v1424 = vlaneseq
    %v1425 = vshrl.u32 %v1424, 7
    %v1426 = vsub.s32 %v1423, %v1425
    %v1427 = vrot.slane %v1413, %v1426
    %v1428 = vcombine.high %v1420, %v1420
    %v1429 = vcombine.high %v1427, %v1427
    %v1430 = vcombine.high %v822, %v822
    %v1432 = vunpack.c.l.s4 1983009808
    %v1433 = vunpack.c.0.s8 %v1432
    %v1434 = vlaneseq
    %v1435 = vshrl.u32 %v1434, 7
    %v1436 = vsub.s32 %v1433, %v1435
    %v1437 = vrot.slane %v822, %v1436
    %v1439 = vunpack.c.l.s4 1983009808
    %v1440 = vunpack.c.0.s8 %v1439
    %v1441 = vlaneseq
    %v1442 = vshrl.u32 %v1441, 7
    %v1443 = vsub.s32 %v1440, %v1442
    %v1444 = vrot.slane %v1430, %v1443
    %v1445 = vcombine.high %v1437, %v1437
    %v1446 = vcombine.high %v1444, %v1444
    %v1447 = vcombine.high %v823, %v823
    %v1449 = vunpack.c.l.s4 1983009808
    %v1450 = vunpack.c.0.s8 %v1449
    %v1451 = vlaneseq
    %v1452 = vshrl.u32 %v1451, 7
    %v1453 = vsub.s32 %v1450, %v1452
    %v1454 = vrot.slane %v823, %v1453
    %v1456 = vunpack.c.l.s4 1983009808
    %v1457 = vunpack.c.0.s8 %v1456
    %v1458 = vlaneseq
    %v1459 = vshrl.u32 %v1458, 7
    %v1460 = vsub.s32 %v1457, %v1459
    %v1461 = vrot.slane %v1447, %v1460
    %v1462 = vcombine.high %v1454, %v1454
    %v1463 = vcombine.high %v1461, %v1461
    %v1464 = vcombine.high %v824, %v824
    %v1466 = vunpack.c.l.s4 1983009808
    %v1467 = vunpack.c.0.s8 %v1466
    %v1468 = vlaneseq
    %v1469 = vshrl.u32 %v1468, 7
    %v1470 = vsub.s32 %v1467, %v1469
    %v1471 = vrot.slane %v824, %v1470
    %v1473 = vunpack.c.l.s4 1983009808
    %v1474 = vunpack.c.0.s8 %v1473
    %v1475 = vlaneseq
    %v1476 = vshrl.u32 %v1475, 7
    %v1477 = vsub.s32 %v1474, %v1476
    %v1478 = vrot.slane %v1464, %v1477
    %v1479 = vcombine.high %v1471, %v1471
    %v1480 = vcombine.high %v1478, %v1478
    %v1481 = vcombine.high %v825, %v825
    %v1483 = vunpack.c.l.s4 1983009808
    %v1484 = vunpack.c.0.s8 %v1483
    %v1485 = vlaneseq
    %v1486 = vshrl.u32 %v1485, 7
    %v1487 = vsub.s32 %v1484, %v1486
    %v1488 = vrot.slane %v825, %v1487
    %v1490 = vunpack.c.l.s4 1983009808
    %v1491 = vunpack.c.0.s8 %v1490
    %v1492 = vlaneseq
    %v1493 = vshrl.u32 %v1492, 7
    %v1494 = vsub.s32 %v1491, %v1493
    %v1495 = vrot.slane %v1481, %v1494
    %v1496 = vcombine.high %v1488, %v1488
    %v1497 = vcombine.high %v1495, %v1495
    %v1498 = vcombine.high %v826, %v826
    %v1500 = vunpack.c.l.s4 1983009808
    %v1501 = vunpack.c.0.s8 %v1500
    %v1502 = vlaneseq
    %v1503 = vshrl.u32 %v1502, 7
    %v1504 = vsub.s32 %v1501, %v1503
    %v1505 = vrot.slane %v826, %v1504
    %v1507 = vunpack.c.l.s4 1983009808
    %v1508 = vunpack.c.0.s8 %v1507
    %v1509 = vlaneseq
    %v1510 = vshrl.u32 %v1509, 7
    %v1511 = vsub.s32 %v1508, %v1510
    %v1512 = vrot.slane %v1498, %v1511
    %v1513 = vcombine.high %v1505, %v1505
    %v1514 = vcombine.high %v1512, %v1512
    %v1515 = vcombine.high %v827, %v827
    %v1517 = vunpack.c.l.s4 1983009808
    %v1518 = vunpack.c.0.s8 %v1517
    %v1519 = vlaneseq
    %v1520 = vshrl.u32 %v1519, 7
    %v1521 = vsub.s32 %v1518, %v1520
    %v1522 = vrot.slane %v827, %v1521
    %v1524 = vunpack.c.l.s4 1983009808
    %v1525 = vunpack.c.0.s8 %v1524
    %v1526 = vlaneseq
    %v1527 = vshrl.u32 %v1526, 7
    %v1528 = vsub.s32 %v1525, %v1527
    %v1529 = vrot.slane %v1515, %v1528
    %v1530 = vcombine.high %v1522, %v1522
    %v1531 = vcombine.high %v1529, %v1529
    %v1532 = vcombine.high %v828, %v828
    %v1534 = vunpack.c.l.s4 1983009808
    %v1535 = vunpack.c.0.s8 %v1534
    %v1536 = vlaneseq
    %v1537 = vshrl.u32 %v1536, 7
    %v1538 = vsub.s32 %v1535, %v1537
    %v1539 = vrot.slane %v828, %v1538
    %v1541 = vunpack.c.l.s4 1983009808
    %v1542 = vunpack.c.0.s8 %v1541
    %v1543 = vlaneseq
    %v1544 = vshrl.u32 %v1543, 7
    %v1545 = vsub.s32 %v1542, %v1544
    %v1546 = vrot.slane %v1532, %v1545
    %v1547 = vcombine.high %v1539, %v1539
    %v1548 = vcombine.high %v1546, %v1546
    %v1549 = vcombine.high %v829, %v829
    %v1551 = vunpack.c.l.s4 1983009808
    %v1552 = vunpack.c.0.s8 %v1551
    %v1553 = vlaneseq
    %v1554 = vshrl.u32 %v1553, 7
    %v1555 = vsub.s32 %v1552, %v1554
    %v1556 = vrot.slane %v829, %v1555
    %v1558 = vunpack.c.l.s4 1983009808
    %v1559 = vunpack.c.0.s8 %v1558
    %v1560 = vlaneseq
    %v1561 = vshrl.u32 %v1560, 7
    %v1562 = vsub.s32 %v1559, %v1561
    %v1563 = vrot.slane %v1549, %v1562
    %v1564 = vcombine.high %v1556, %v1556
    %v1565 = vcombine.high %v1563, %v1563
    %v1566 = vcombine.high %v830, %v830
    %v1568 = vunpack.c.l.s4 1983009808
    %v1569 = vunpack.c.0.s8 %v1568
    %v1570 = vlaneseq
    %v1571 = vshrl.u32 %v1570, 7
    %v1572 = vsub.s32 %v1569, %v1571
    %v1573 = vrot.slane %v830, %v1572
    %v1575 = vunpack.c.l.s4 1983009808
    %v1576 = vunpack.c.0.s8 %v1575
    %v1577 = vlaneseq
    %v1578 = vshrl.u32 %v1577, 7
    %v1579 = vsub.s32 %v1576, %v1578
    %v1580 = vrot.slane %v1566, %v1579
    %v1581 = vcombine.high %v1573, %v1573
    %v1582 = vcombine.high %v1580, %v1580
    %v1583 = vcombine.high %v831, %v831
    %v1585 = vunpack.c.l.s4 1983009808
    %v1586 = vunpack.c.0.s8 %v1585
    %v1587 = vlaneseq
    %v1588 = vshrl.u32 %v1587, 7
    %v1589 = vsub.s32 %v1586, %v1588
    %v1590 = vrot.slane %v831, %v1589
    %v1592 = vunpack.c.l.s4 1983009808
    %v1593 = vunpack.c.0.s8 %v1592
    %v1594 = vlaneseq
    %v1595 = vshrl.u32 %v1594, 7
    %v1596 = vsub.s32 %v1593, %v1595
    %v1597 = vrot.slane %v1583, %v1596
    %v1598 = vcombine.high %v1590, %v1590
    %v1599 = vcombine.high %v1597, %v1597
    %v1600 = vcombine.high %v832, %v832
    %v1602 = vunpack.c.l.s4 1983009808
    %v1603 = vunpack.c.0.s8 %v1602
    %v1604 = vlaneseq
    %v1605 = vshrl.u32 %v1604, 7
    %v1606 = vsub.s32 %v1603, %v1605
    %v1607 = vrot.slane %v832, %v1606
    %v1609 = vunpack.c.l.s4 1983009808
    %v1610 = vunpack.c.0.s8 %v1609
    %v1611 = vlaneseq
    %v1612 = vshrl.u32 %v1611, 7
    %v1613 = vsub.s32 %v1610, %v1612
    %v1614 = vrot.slane %v1600, %v1613
    %v1615 = vcombine.high %v1607, %v1607
    %v1616 = vcombine.high %v1614, %v1614
    %v1617 = vcombine.high %v833, %v833
    %v1619 = vunpack.c.l.s4 1983009808
    %v1620 = vunpack.c.0.s8 %v1619
    %v1621 = vlaneseq
    %v1622 = vshrl.u32 %v1621, 7
    %v1623 = vsub.s32 %v1620, %v1622
    %v1624 = vrot.slane %v833, %v1623
    %v1626 = vunpack.c.l.s4 1983009808
    %v1627 = vunpack.c.0.s8 %v1626
    %v1628 = vlaneseq
    %v1629 = vshrl.u32 %v1628, 7
    %v1630 = vsub.s32 %v1627, %v1629
    %v1631 = vrot.slane %v1617, %v1630
    %v1632 = vcombine.high %v1624, %v1624
    %v1633 = vcombine.high %v1631, %v1631
    %v1634 = vcombine.high %v834, %v834
    %v1636 = vunpack.c.l.s4 1983009808
    %v1637 = vunpack.c.0.s8 %v1636
    %v1638 = vlaneseq
    %v1639 = vshrl.u32 %v1638, 7
    %v1640 = vsub.s32 %v1637, %v1639
    %v1641 = vrot.slane %v834, %v1640
    %v1643 = vunpack.c.l.s4 1983009808
    %v1644 = vunpack.c.0.s8 %v1643
    %v1645 = vlaneseq
    %v1646 = vshrl.u32 %v1645, 7
    %v1647 = vsub.s32 %v1644, %v1646
    %v1648 = vrot.slane %v1634, %v1647
    %v1649 = vcombine.high %v1641, %v1641
    %v1650 = vcombine.high %v1648, %v1648
    %v1651 = vcombine.high %v835, %v835
    %v1653 = vunpack.c.l.s4 1983009808
    %v1654 = vunpack.c.0.s8 %v1653
    %v1655 = vlaneseq
    %v1656 = vshrl.u32 %v1655, 7
    %v1657 = vsub.s32 %v1654, %v1656
    %v1658 = vrot.slane %v835, %v1657
    %v1660 = vunpack.c.l.s4 1983009808
    %v1661 = vunpack.c.0.s8 %v1660
    %v1662 = vlaneseq
    %v1663 = vshrl.u32 %v1662, 7
    %v1664 = vsub.s32 %v1661, %v1663
    %v1665 = vrot.slane %v1651, %v1664
    %v1666 = vcombine.high %v1658, %v1658
    %v1667 = vcombine.high %v1665, %v1665
    %v1668 = vcombine.high %v836, %v836
    %v1670 = vunpack.c.l.s4 1983009808
    %v1671 = vunpack.c.0.s8 %v1670
    %v1672 = vlaneseq
    %v1673 = vshrl.u32 %v1672, 7
    %v1674 = vsub.s32 %v1671, %v1673
    %v1675 = vrot.slane %v836, %v1674
    %v1677 = vunpack.c.l.s4 1983009808
    %v1678 = vunpack.c.0.s8 %v1677
    %v1679 = vlaneseq
    %v1680 = vshrl.u32 %v1679, 7
    %v1681 = vsub.s32 %v1678, %v1680
    %v1682 = vrot.slane %v1668, %v1681
    %v1683 = vcombine.high %v1675, %v1675
    %v1684 = vcombine.high %v1682, %v1682
    %v1685 = vcombine.high %v837, %v837
    %v1687 = vunpack.c.l.s4 1983009808
    %v1688 = vunpack.c.0.s8 %v1687
    %v1689 = vlaneseq
    %v1690 = vshrl.u32 %v1689, 7
    %v1691 = vsub.s32 %v1688, %v1690
    %v1692 = vrot.slane %v837, %v1691
    %v1694 = vunpack.c.l.s4 1983009808
    %v1695 = vunpack.c.0.s8 %v1694
    %v1696 = vlaneseq
    %v1697 = vshrl.u32 %v1696, 7
    %v1698 = vsub.s32 %v1695, %v1697
    %v1699 = vrot.slane %v1685, %v1698
    %v1700 = vcombine.high %v1692, %v1692
    %v1701 = vcombine.high %v1699, %v1699
    %v1702 = vcombine.high %v838, %v838
    %v1704 = vunpack.c.l.s4 1983009808
    %v1705 = vunpack.c.0.s8 %v1704
    %v1706 = vlaneseq
    %v1707 = vshrl.u32 %v1706, 7
    %v1708 = vsub.s32 %v1705, %v1707
    %v1709 = vrot.slane %v838, %v1708
    %v1711 = vunpack.c.l.s4 1983009808
    %v1712 = vunpack.c.0.s8 %v1711
    %v1713 = vlaneseq
    %v1714 = vshrl.u32 %v1713, 7
    %v1715 = vsub.s32 %v1712, %v1714
    %v1716 = vrot.slane %v1702, %v1715
    %v1717 = vcombine.high %v1709, %v1709
    %v1718 = vcombine.high %v1716, %v1716
    %v1719 = vcombine.high %v839, %v839
    %v1721 = vunpack.c.l.s4 1983009808
    %v1722 = vunpack.c.0.s8 %v1721
    %v1723 = vlaneseq
    %v1724 = vshrl.u32 %v1723, 7
    %v1725 = vsub.s32 %v1722, %v1724
    %v1726 = vrot.slane %v839, %v1725
    %v1728 = vunpack.c.l.s4 1983009808
    %v1729 = vunpack.c.0.s8 %v1728
    %v1730 = vlaneseq
    %v1731 = vshrl.u32 %v1730, 7
    %v1732 = vsub.s32 %v1729, %v1731
    %v1733 = vrot.slane %v1719, %v1732
    %v1734 = vcombine.high %v1726, %v1726
    %v1735 = vcombine.high %v1733, %v1733
    %v1736 = vcombine.high %v840, %v840
    %v1738 = vunpack.c.l.s4 1983009808
    %v1739 = vunpack.c.0.s8 %v1738
    %v1740 = vlaneseq
    %v1741 = vshrl.u32 %v1740, 7
    %v1742 = vsub.s32 %v1739, %v1741
    %v1743 = vrot.slane %v840, %v1742
    %v1745 = vunpack.c.l.s4 1983009808
    %v1746 = vunpack.c.0.s8 %v1745
    %v1747 = vlaneseq
    %v1748 = vshrl.u32 %v1747, 7
    %v1749 = vsub.s32 %v1746, %v1748
    %v1750 = vrot.slane %v1736, %v1749
    %v1751 = vcombine.high %v1743, %v1743
    %v1752 = vcombine.high %v1750, %v1750
    %v1753 = vcombine.high %v841, %v841
    %v1755 = vunpack.c.l.s4 1983009808
    %v1756 = vunpack.c.0.s8 %v1755
    %v1757 = vlaneseq
    %v1758 = vshrl.u32 %v1757, 7
    %v1759 = vsub.s32 %v1756, %v1758
    %v1760 = vrot.slane %v841, %v1759
    %v1762 = vunpack.c.l.s4 1983009808
    %v1763 = vunpack.c.0.s8 %v1762
    %v1764 = vlaneseq
    %v1765 = vshrl.u32 %v1764, 7
    %v1766 = vsub.s32 %v1763, %v1765
    %v1767 = vrot.slane %v1753, %v1766
    %v1768 = vcombine.high %v1760, %v1760
    %v1769 = vcombine.high %v1767, %v1767
    %v1770 = vcombine.high %v842, %v842
    %v1772 = vunpack.c.l.s4 1983009808
    %v1773 = vunpack.c.0.s8 %v1772
    %v1774 = vlaneseq
    %v1775 = vshrl.u32 %v1774, 7
    %v1776 = vsub.s32 %v1773, %v1775
    %v1777 = vrot.slane %v842, %v1776
    %v1779 = vunpack.c.l.s4 1983009808
    %v1780 = vunpack.c.0.s8 %v1779
    %v1781 = vlaneseq
    %v1782 = vshrl.u32 %v1781, 7
    %v1783 = vsub.s32 %v1780, %v1782
    %v1784 = vrot.slane %v1770, %v1783
    %v1785 = vcombine.high %v1777, %v1777
    %v1786 = vcombine.high %v1784, %v1784
    %v1787 = vcombine.high %v843, %v843
    %v1789 = vunpack.c.l.s4 1983009808
    %v1790 = vunpack.c.0.s8 %v1789
    %v1791 = vlaneseq
    %v1792 = vshrl.u32 %v1791, 7
    %v1793 = vsub.s32 %v1790, %v1792
    %v1794 = vrot.slane %v843, %v1793
    %v1796 = vunpack.c.l.s4 1983009808
    %v1797 = vunpack.c.0.s8 %v1796
    %v1798 = vlaneseq
    %v1799 = vshrl.u32 %v1798, 7
    %v1800 = vsub.s32 %v1797, %v1799
    %v1801 = vrot.slane %v1787, %v1800
    %v1802 = vcombine.high %v1794, %v1794
    %v1803 = vcombine.high %v1801, %v1801
    %v1804 = vcombine.high %v844, %v844
    %v1806 = vunpack.c.l.s4 1983009808
    %v1807 = vunpack.c.0.s8 %v1806
    %v1808 = vlaneseq
    %v1809 = vshrl.u32 %v1808, 7
    %v1810 = vsub.s32 %v1807, %v1809
    %v1811 = vrot.slane %v844, %v1810
    %v1813 = vunpack.c.l.s4 1983009808
    %v1814 = vunpack.c.0.s8 %v1813
    %v1815 = vlaneseq
    %v1816 = vshrl.u32 %v1815, 7
    %v1817 = vsub.s32 %v1814, %v1816
    %v1818 = vrot.slane %v1804, %v1817
    %v1819 = vcombine.high %v1811, %v1811
    %v1820 = vcombine.high %v1818, %v1818
    %v1821 = vcombine.high %v845, %v845
    %v1823 = vunpack.c.l.s4 1983009808
    %v1824 = vunpack.c.0.s8 %v1823
    %v1825 = vlaneseq
    %v1826 = vshrl.u32 %v1825, 7
    %v1827 = vsub.s32 %v1824, %v1826
    %v1828 = vrot.slane %v845, %v1827
    %v1830 = vunpack.c.l.s4 1983009808
    %v1831 = vunpack.c.0.s8 %v1830
    %v1832 = vlaneseq
    %v1833 = vshrl.u32 %v1832, 7
    %v1834 = vsub.s32 %v1831, %v1833
    %v1835 = vrot.slane %v1821, %v1834
    %v1836 = vcombine.high %v1828, %v1828
    %v1837 = vcombine.high %v1835, %v1835
    %v1838 = vcombine.high %v846, %v846
    %v1840 = vunpack.c.l.s4 1983009808
    %v1841 = vunpack.c.0.s8 %v1840
    %v1842 = vlaneseq
    %v1843 = vshrl.u32 %v1842, 7
    %v1844 = vsub.s32 %v1841, %v1843
    %v1845 = vrot.slane %v846, %v1844
    %v1847 = vunpack.c.l.s4 1983009808
    %v1848 = vunpack.c.0.s8 %v1847
    %v1849 = vlaneseq
    %v1850 = vshrl.u32 %v1849, 7
    %v1851 = vsub.s32 %v1848, %v1850
    %v1852 = vrot.slane %v1838, %v1851
    %v1853 = vcombine.high %v1845, %v1845
    %v1854 = vcombine.high %v1852, %v1852
    %v1855 = vcombine.high %v847, %v847
    %v1857 = vunpack.c.l.s4 1983009808
    %v1858 = vunpack.c.0.s8 %v1857
    %v1859 = vlaneseq
    %v1860 = vshrl.u32 %v1859, 7
    %v1861 = vsub.s32 %v1858, %v1860
    %v1862 = vrot.slane %v847, %v1861
    %v1864 = vunpack.c.l.s4 1983009808
    %v1865 = vunpack.c.0.s8 %v1864
    %v1866 = vlaneseq
    %v1867 = vshrl.u32 %v1866, 7
    %v1868 = vsub.s32 %v1865, %v1867
    %v1869 = vrot.slane %v1855, %v1868
    %v1870 = vcombine.high %v1862, %v1862
    %v1871 = vcombine.high %v1869, %v1869
    %v1872 = vcombine.high %v848, %v848
    %v1874 = vunpack.c.l.s4 1983009808
    %v1875 = vunpack.c.0.s8 %v1874
    %v1876 = vlaneseq
    %v1877 = vshrl.u32 %v1876, 7
    %v1878 = vsub.s32 %v1875, %v1877
    %v1879 = vrot.slane %v848, %v1878
    %v1881 = vunpack.c.l.s4 1983009808
    %v1882 = vunpack.c.0.s8 %v1881
    %v1883 = vlaneseq
    %v1884 = vshrl.u32 %v1883, 7
    %v1885 = vsub.s32 %v1882, %v1884
    %v1886 = vrot.slane %v1872, %v1885
    %v1887 = vcombine.high %v1879, %v1879
    %v1888 = vcombine.high %v1886, %v1886
    %v1889 = vcombine.high %v849, %v849
    %v1891 = vunpack.c.l.s4 1983009808
    %v1892 = vunpack.c.0.s8 %v1891
    %v1893 = vlaneseq
    %v1894 = vshrl.u32 %v1893, 7
    %v1895 = vsub.s32 %v1892, %v1894
    %v1896 = vrot.slane %v849, %v1895
    %v1898 = vunpack.c.l.s4 1983009808
    %v1899 = vunpack.c.0.s8 %v1898
    %v1900 = vlaneseq
    %v1901 = vshrl.u32 %v1900, 7
    %v1902 = vsub.s32 %v1899, %v1901
    %v1903 = vrot.slane %v1889, %v1902
    %v1904 = vcombine.high %v1896, %v1896
    %v1905 = vcombine.high %v1903, %v1903
    %v1906 = vcombine.high %v850, %v850
    %v1908 = vunpack.c.l.s4 1983009808
    %v1909 = vunpack.c.0.s8 %v1908
    %v1910 = vlaneseq
    %v1911 = vshrl.u32 %v1910, 7
    %v1912 = vsub.s32 %v1909, %v1911
    %v1913 = vrot.slane %v850, %v1912
    %v1915 = vunpack.c.l.s4 1983009808
    %v1916 = vunpack.c.0.s8 %v1915
    %v1917 = vlaneseq
    %v1918 = vshrl.u32 %v1917, 7
    %v1919 = vsub.s32 %v1916, %v1918
    %v1920 = vrot.slane %v1906, %v1919
    %v1921 = vcombine.high %v1913, %v1913
    %v1922 = vcombine.high %v1920, %v1920
    %v1923 = vcombine.high %v851, %v851
    %v1925 = vunpack.c.l.s4 1983009808
    %v1926 = vunpack.c.0.s8 %v1925
    %v1927 = vlaneseq
    %v1928 = vshrl.u32 %v1927, 7
    %v1929 = vsub.s32 %v1926, %v1928
    %v1930 = vrot.slane %v851, %v1929
    %v1932 = vunpack.c.l.s4 1983009808
    %v1933 = vunpack.c.0.s8 %v1932
    %v1934 = vlaneseq
    %v1935 = vshrl.u32 %v1934, 7
    %v1936 = vsub.s32 %v1933, %v1935
    %v1937 = vrot.slane %v1923, %v1936
    %v1938 = vcombine.high %v1930, %v1930
    %v1939 = vcombine.high %v1937, %v1937
    %v1940 = vcombine.high %v852, %v852
    %v1942 = vunpack.c.l.s4 1983009808
    %v1943 = vunpack.c.0.s8 %v1942
    %v1944 = vlaneseq
    %v1945 = vshrl.u32 %v1944, 7
    %v1946 = vsub.s32 %v1943, %v1945
    %v1947 = vrot.slane %v852, %v1946
    %v1949 = vunpack.c.l.s4 1983009808
    %v1950 = vunpack.c.0.s8 %v1949
    %v1951 = vlaneseq
    %v1952 = vshrl.u32 %v1951, 7
    %v1953 = vsub.s32 %v1950, %v1952
    %v1954 = vrot.slane %v1940, %v1953
    %v1955 = vcombine.high %v1947, %v1947
    %v1956 = vcombine.high %v1954, %v1954
    %v1957 = vcombine.high %v853, %v853
    %v1959 = vunpack.c.l.s4 1983009808
    %v1960 = vunpack.c.0.s8 %v1959
    %v1961 = vlaneseq
    %v1962 = vshrl.u32 %v1961, 7
    %v1963 = vsub.s32 %v1960, %v1962
    %v1964 = vrot.slane %v853, %v1963
    %v1966 = vunpack.c.l.s4 1983009808
    %v1967 = vunpack.c.0.s8 %v1966
    %v1968 = vlaneseq
    %v1969 = vshrl.u32 %v1968, 7
    %v1970 = vsub.s32 %v1967, %v1969
    %v1971 = vrot.slane %v1957, %v1970
    %v1972 = vcombine.high %v1964, %v1964
    %v1973 = vcombine.high %v1971, %v1971
    %v1974 = vcombine.high %v854, %v854
    %v1976 = vunpack.c.l.s4 1983009808
    %v1977 = vunpack.c.0.s8 %v1976
    %v1978 = vlaneseq
    %v1979 = vshrl.u32 %v1978, 7
    %v1980 = vsub.s32 %v1977, %v1979
    %v1981 = vrot.slane %v854, %v1980
    %v1983 = vunpack.c.l.s4 1983009808
    %v1984 = vunpack.c.0.s8 %v1983
    %v1985 = vlaneseq
    %v1986 = vshrl.u32 %v1985, 7
    %v1987 = vsub.s32 %v1984, %v1986
    %v1988 = vrot.slane %v1974, %v1987
    %v1989 = vcombine.high %v1981, %v1981
    %v1990 = vcombine.high %v1988, %v1988
    %v1991 = vcombine.high %v855, %v855
    %v1993 = vunpack.c.l.s4 1983009808
    %v1994 = vunpack.c.0.s8 %v1993
    %v1995 = vlaneseq
    %v1996 = vshrl.u32 %v1995, 7
    %v1997 = vsub.s32 %v1994, %v1996
    %v1998 = vrot.slane %v855, %v1997
    %v2000 = vunpack.c.l.s4 1983009808
    %v2001 = vunpack.c.0.s8 %v2000
    %v2002 = vlaneseq
    %v2003 = vshrl.u32 %v2002, 7
    %v2004 = vsub.s32 %v2001, %v2003
    %v2005 = vrot.slane %v1991, %v2004
    %v2006 = vcombine.high %v1998, %v1998
    %v2007 = vcombine.high %v2005, %v2005
    %vm2264 = vcmask 517120
    %v2265 = vsel %vm2264, %v927, -inf
    %v2266 = vrot.slane %v2265, 4
    %v2267 = vmax.f32 %v2265, %v2266
    %v2268 = vrot.slane %v2267, 2
    %v2269 = vmax.f32 %v2267, %v2268
    %v2270 = vrot.slane %v2269, 1
    %v2271 = vmax.f32 %v2269, %v2270
    %v2272 = vsel %vm2264, %v935, -inf
    %v2273 = vrot.slane %v2272, 4
    %v2274 = vmax.f32 %v2272, %v2273
    %v2275 = vrot.slane %v2274, 2
    %v2276 = vmax.f32 %v2274, %v2275
    %v2277 = vrot.slane %v2276, 1
    %v2278 = vmax.f32 %v2276, %v2277
    %v2279 = vsel %vm2264, %v934, -inf
    %v2280 = vrot.slane %v2279, 4
    %v2281 = vmax.f32 %v2279, %v2280
    %v2282 = vrot.slane %v2281, 2
    %v2283 = vmax.f32 %v2281, %v2282
    %v2284 = vrot.slane %v2283, 1
    %v2285 = vmax.f32 %v2283, %v2284
    %v2286 = vsel %vm2264, %v936, -inf
    %v2287 = vrot.slane %v2286, 4
    %v2288 = vmax.f32 %v2286, %v2287
    %v2289 = vrot.slane %v2288, 2
    %v2290 = vmax.f32 %v2288, %v2289
    %v2291 = vrot.slane %v2290, 1
    %v2292 = vmax.f32 %v2290, %v2291
    %v2293 = vsel %vm2264, %v944, -inf
    %v2294 = vrot.slane %v2293, 4
    %v2295 = vmax.f32 %v2293, %v2294
    %v2296 = vrot.slane %v2295, 2
    %v2297 = vmax.f32 %v2295, %v2296
    %v2298 = vrot.slane %v2297, 1
    %v2299 = vmax.f32 %v2297, %v2298
    %v2300 = vsel %vm2264, %v952, -inf
    %v2301 = vrot.slane %v2300, 4
    %v2302 = vmax.f32 %v2300, %v2301
    %v2303 = vrot.slane %v2302, 2
    %v2304 = vmax.f32 %v2302, %v2303
    %v2305 = vrot.slane %v2304, 1
    %v2306 = vmax.f32 %v2304, %v2305
    %v2307 = vsel %vm2264, %v951, -inf
    %v2308 = vrot.slane %v2307, 4
    %v2309 = vmax.f32 %v2307, %v2308
    %v2310 = vrot.slane %v2309, 2
    %v2311 = vmax.f32 %v2309, %v2310
    %v2312 = vrot.slane %v2311, 1
    %v2313 = vmax.f32 %v2311, %v2312
    %v2314 = vsel %vm2264, %v953, -inf
    %v2315 = vrot.slane %v2314, 4
    %v2316 = vmax.f32 %v2314, %v2315
    %v2317 = vrot.slane %v2316, 2
    %v2318 = vmax.f32 %v2316, %v2317
    %v2319 = vrot.slane %v2318, 1
    %v2320 = vmax.f32 %v2318, %v2319
    %v2321 = vsel %vm2264, %v961, -inf
    %v2322 = vrot.slane %v2321, 4
    %v2323 = vmax.f32 %v2321, %v2322
    %v2324 = vrot.slane %v2323, 2
    %v2325 = vmax.f32 %v2323, %v2324
    %v2326 = vrot.slane %v2325, 1
    %v2327 = vmax.f32 %v2325, %v2326
    %v2328 = vsel %vm2264, %v969, -inf
    %v2329 = vrot.slane %v2328, 4
    %v2330 = vmax.f32 %v2328, %v2329
    %v2331 = vrot.slane %v2330, 2
    %v2332 = vmax.f32 %v2330, %v2331
    %v2333 = vrot.slane %v2332, 1
    %v2334 = vmax.f32 %v2332, %v2333
    %v2335 = vsel %vm2264, %v968, -inf
    %v2336 = vrot.slane %v2335, 4
    %v2337 = vmax.f32 %v2335, %v2336
    %v2338 = vrot.slane %v2337, 2
    %v2339 = vmax.f32 %v2337, %v2338
    %v2340 = vrot.slane %v2339, 1
    %v2341 = vmax.f32 %v2339, %v2340
    %v2342 = vsel %vm2264, %v970, -inf
    %v2343 = vrot.slane %v2342, 4
    %v2344 = vmax.f32 %v2342, %v2343
    %v2345 = vrot.slane %v2344, 2
    %v2346 = vmax.f32 %v2344, %v2345
    %v2347 = vrot.slane %v2346, 1
    %v2348 = vmax.f32 %v2346, %v2347
    %v2349 = vsel %vm2264, %v978, -inf
    %v2350 = vrot.slane %v2349, 4
    %v2351 = vmax.f32 %v2349, %v2350
    %v2352 = vrot.slane %v2351, 2
    %v2353 = vmax.f32 %v2351, %v2352
    %v2354 = vrot.slane %v2353, 1
    %v2355 = vmax.f32 %v2353, %v2354
    %v2356 = vsel %vm2264, %v986, -inf
    %v2357 = vrot.slane %v2356, 4
    %v2358 = vmax.f32 %v2356, %v2357
    %v2359 = vrot.slane %v2358, 2
    %v2360 = vmax.f32 %v2358, %v2359
    %v2361 = vrot.slane %v2360, 1
    %v2362 = vmax.f32 %v2360, %v2361
    %v2363 = vsel %vm2264, %v985, -inf
    %v2364 = vrot.slane %v2363, 4
    %v2365 = vmax.f32 %v2363, %v2364
    %v2366 = vrot.slane %v2365, 2
    %v2367 = vmax.f32 %v2365, %v2366
    %v2368 = vrot.slane %v2367, 1
    %v2369 = vmax.f32 %v2367, %v2368
    %v2370 = vsel %vm2264, %v987, -inf
    %v2371 = vrot.slane %v2370, 4
    %v2372 = vmax.f32 %v2370, %v2371
    %v2373 = vrot.slane %v2372, 2
    %v2374 = vmax.f32 %v2372, %v2373
    %v2375 = vrot.slane %v2374, 1
    %v2376 = vmax.f32 %v2374, %v2375
    %v2377 = vsel %vm2264, %v995, -inf
    %v2378 = vrot.slane %v2377, 4
    %v2379 = vmax.f32 %v2377, %v2378
    %v2380 = vrot.slane %v2379, 2
    %v2381 = vmax.f32 %v2379, %v2380
    %v2382 = vrot.slane %v2381, 1
    %v2383 = vmax.f32 %v2381, %v2382
    %v2384 = vsel %vm2264, %v1003, -inf
    %v2385 = vrot.slane %v2384, 4
    %v2386 = vmax.f32 %v2384, %v2385
    %v2387 = vrot.slane %v2386, 2
    %v2388 = vmax.f32 %v2386, %v2387
    %v2389 = vrot.slane %v2388, 1
    %v2390 = vmax.f32 %v2388, %v2389
    %v2391 = vsel %vm2264, %v1002, -inf
    %v2392 = vrot.slane %v2391, 4
    %v2393 = vmax.f32 %v2391, %v2392
    %v2394 = vrot.slane %v2393, 2
    %v2395 = vmax.f32 %v2393, %v2394
    %v2396 = vrot.slane %v2395, 1
    %v2397 = vmax.f32 %v2395, %v2396
    %v2398 = vsel %vm2264, %v1004, -inf
    %v2399 = vrot.slane %v2398, 4
    %v2400 = vmax.f32 %v2398, %v2399
    %v2401 = vrot.slane %v2400, 2
    %v2402 = vmax.f32 %v2400, %v2401
    %v2403 = vrot.slane %v2402, 1
    %v2404 = vmax.f32 %v2402, %v2403
    %v2405 = vsel %vm2264, %v1012, -inf
    %v2406 = vrot.slane %v2405, 4
    %v2407 = vmax.f32 %v2405, %v2406
    %v2408 = vrot.slane %v2407, 2
    %v2409 = vmax.f32 %v2407, %v2408
    %v2410 = vrot.slane %v2409, 1
    %v2411 = vmax.f32 %v2409, %v2410
    %v2412 = vsel %vm2264, %v1020, -inf
    %v2413 = vrot.slane %v2412, 4
    %v2414 = vmax.f32 %v2412, %v2413
    %v2415 = vrot.slane %v2414, 2
    %v2416 = vmax.f32 %v2414, %v2415
    %v2417 = vrot.slane %v2416, 1
    %v2418 = vmax.f32 %v2416, %v2417
    %v2419 = vsel %vm2264, %v1019, -inf
    %v2420 = vrot.slane %v2419, 4
    %v2421 = vmax.f32 %v2419, %v2420
    %v2422 = vrot.slane %v2421, 2
    %v2423 = vmax.f32 %v2421, %v2422
    %v2424 = vrot.slane %v2423, 1
    %v2425 = vmax.f32 %v2423, %v2424
    %v2426 = vsel %vm2264, %v1021, -inf
    %v2427 = vrot.slane %v2426, 4
    %v2428 = vmax.f32 %v2426, %v2427
    %v2429 = vrot.slane %v2428, 2
    %v2430 = vmax.f32 %v2428, %v2429
    %v2431 = vrot.slane %v2430, 1
    %v2432 = vmax.f32 %v2430, %v2431
    %v2433 = vsel %vm2264, %v1029, -inf
    %v2434 = vrot.slane %v2433, 4
    %v2435 = vmax.f32 %v2433, %v2434
    %v2436 = vrot.slane %v2435, 2
    %v2437 = vmax.f32 %v2435, %v2436
    %v2438 = vrot.slane %v2437, 1
    %v2439 = vmax.f32 %v2437, %v2438
    %v2440 = vsel %vm2264, %v1037, -inf
    %v2441 = vrot.slane %v2440, 4
    %v2442 = vmax.f32 %v2440, %v2441
    %v2443 = vrot.slane %v2442, 2
    %v2444 = vmax.f32 %v2442, %v2443
    %v2445 = vrot.slane %v2444, 1
    %v2446 = vmax.f32 %v2444, %v2445
    %v2447 = vsel %vm2264, %v1036, -inf
    %v2448 = vrot.slane %v2447, 4
    %v2449 = vmax.f32 %v2447, %v2448
    %v2450 = vrot.slane %v2449, 2
    %v2451 = vmax.f32 %v2449, %v2450
    %v2452 = vrot.slane %v2451, 1
    %v2453 = vmax.f32 %v2451, %v2452
    %v2454 = vsel %vm2264, %v1038, -inf
    %v2455 = vrot.slane %v2454, 4
    %v2456 = vmax.f32 %v2454, %v2455
    %v2457 = vrot.slane %v2456, 2
    %v2458 = vmax.f32 %v2456, %v2457
    %v2459 = vrot.slane %v2458, 1
    %v2460 = vmax.f32 %v2458, %v2459
    %v2461 = vsel %vm2264, %v1046, -inf
    %v2462 = vrot.slane %v2461, 4
    %v2463 = vmax.f32 %v2461, %v2462
    %v2464 = vrot.slane %v2463, 2
    %v2465 = vmax.f32 %v2463, %v2464
    %v2466 = vrot.slane %v2465, 1
    %v2467 = vmax.f32 %v2465, %v2466
    %v2468 = vsel %vm2264, %v1054, -inf
    %v2469 = vrot.slane %v2468, 4
    %v2470 = vmax.f32 %v2468, %v2469
    %v2471 = vrot.slane %v2470, 2
    %v2472 = vmax.f32 %v2470, %v2471
    %v2473 = vrot.slane %v2472, 1
    %v2474 = vmax.f32 %v2472, %v2473
    %v2475 = vsel %vm2264, %v1053, -inf
    %v2476 = vrot.slane %v2475, 4
    %v2477 = vmax.f32 %v2475, %v2476
    %v2478 = vrot.slane %v2477, 2
    %v2479 = vmax.f32 %v2477, %v2478
    %v2480 = vrot.slane %v2479, 1
    %v2481 = vmax.f32 %v2479, %v2480
    %v2482 = vsel %vm2264, %v1055, -inf
    %v2483 = vrot.slane %v2482, 4
    %v2484 = vmax.f32 %v2482, %v2483
    %v2485 = vrot.slane %v2484, 2
    %v2486 = vmax.f32 %v2484, %v2485
    %v2487 = vrot.slane %v2486, 1
    %v2488 = vmax.f32 %v2486, %v2487
    %v2489 = vsel %vm2264, %v1063, -inf
    %v2490 = vrot.slane %v2489, 4
    %v2491 = vmax.f32 %v2489, %v2490
    %v2492 = vrot.slane %v2491, 2
    %v2493 = vmax.f32 %v2491, %v2492
    %v2494 = vrot.slane %v2493, 1
    %v2495 = vmax.f32 %v2493, %v2494
    %v2496 = vsel %vm2264, %v1071, -inf
    %v2497 = vrot.slane %v2496, 4
    %v2498 = vmax.f32 %v2496, %v2497
    %v2499 = vrot.slane %v2498, 2
    %v2500 = vmax.f32 %v2498, %v2499
    %v2501 = vrot.slane %v2500, 1
    %v2502 = vmax.f32 %v2500, %v2501
    %v2503 = vsel %vm2264, %v1070, -inf
    %v2504 = vrot.slane %v2503, 4
    %v2505 = vmax.f32 %v2503, %v2504
    %v2506 = vrot.slane %v2505, 2
    %v2507 = vmax.f32 %v2505, %v2506
    %v2508 = vrot.slane %v2507, 1
    %v2509 = vmax.f32 %v2507, %v2508
    %v2510 = vsel %vm2264, %v1072, -inf
    %v2511 = vrot.slane %v2510, 4
    %v2512 = vmax.f32 %v2510, %v2511
    %v2513 = vrot.slane %v2512, 2
    %v2514 = vmax.f32 %v2512, %v2513
    %v2515 = vrot.slane %v2514, 1
    %v2516 = vmax.f32 %v2514, %v2515
    %v2517 = vsel %vm2264, %v1080, -inf
    %v2518 = vrot.slane %v2517, 4
    %v2519 = vmax.f32 %v2517, %v2518
    %v2520 = vrot.slane %v2519, 2
    %v2521 = vmax.f32 %v2519, %v2520
    %v2522 = vrot.slane %v2521, 1
    %v2523 = vmax.f32 %v2521, %v2522
    %v2524 = vsel %vm2264, %v1088, -inf
    %v2525 = vrot.slane %v2524, 4
    %v2526 = vmax.f32 %v2524, %v2525
    %v2527 = vrot.slane %v2526, 2
    %v2528 = vmax.f32 %v2526, %v2527
    %v2529 = vrot.slane %v2528, 1
    %v2530 = vmax.f32 %v2528, %v2529
    %v2531 = vsel %vm2264, %v1087, -inf
    %v2532 = vrot.slane %v2531, 4
    %v2533 = vmax.f32 %v2531, %v2532
    %v2534 = vrot.slane %v2533, 2
    %v2535 = vmax.f32 %v2533, %v2534
    %v2536 = vrot.slane %v2535, 1
    %v2537 = vmax.f32 %v2535, %v2536
    %v2538 = vsel %vm2264, %v1089, -inf
    %v2539 = vrot.slane %v2538, 4
    %v2540 = vmax.f32 %v2538, %v2539
    %v2541 = vrot.slane %v2540, 2
    %v2542 = vmax.f32 %v2540, %v2541
    %v2543 = vrot.slane %v2542, 1
    %v2544 = vmax.f32 %v2542, %v2543
    %v2545 = vsel %vm2264, %v1097, -inf
    %v2546 = vrot.slane %v2545, 4
    %v2547 = vmax.f32 %v2545, %v2546
    %v2548 = vrot.slane %v2547, 2
    %v2549 = vmax.f32 %v2547, %v2548
    %v2550 = vrot.slane %v2549, 1
    %v2551 = vmax.f32 %v2549, %v2550
    %v2552 = vsel %vm2264, %v1105, -inf
    %v2553 = vrot.slane %v2552, 4
    %v2554 = vmax.f32 %v2552, %v2553
    %v2555 = vrot.slane %v2554, 2
    %v2556 = vmax.f32 %v2554, %v2555
    %v2557 = vrot.slane %v2556, 1
    %v2558 = vmax.f32 %v2556, %v2557
    %v2559 = vsel %vm2264, %v1104, -inf
    %v2560 = vrot.slane %v2559, 4
    %v2561 = vmax.f32 %v2559, %v2560
    %v2562 = vrot.slane %v2561, 2
    %v2563 = vmax.f32 %v2561, %v2562
    %v2564 = vrot.slane %v2563, 1
    %v2565 = vmax.f32 %v2563, %v2564
    %v2566 = vsel %vm2264, %v1106, -inf
    %v2567 = vrot.slane %v2566, 4
    %v2568 = vmax.f32 %v2566, %v2567
    %v2569 = vrot.slane %v2568, 2
    %v2570 = vmax.f32 %v2568, %v2569
    %v2571 = vrot.slane %v2570, 1
    %v2572 = vmax.f32 %v2570, %v2571
    %v2573 = vsel %vm2264, %v1114, -inf
    %v2574 = vrot.slane %v2573, 4
    %v2575 = vmax.f32 %v2573, %v2574
    %v2576 = vrot.slane %v2575, 2
    %v2577 = vmax.f32 %v2575, %v2576
    %v2578 = vrot.slane %v2577, 1
    %v2579 = vmax.f32 %v2577, %v2578
    %v2580 = vsel %vm2264, %v1122, -inf
    %v2581 = vrot.slane %v2580, 4
    %v2582 = vmax.f32 %v2580, %v2581
    %v2583 = vrot.slane %v2582, 2
    %v2584 = vmax.f32 %v2582, %v2583
    %v2585 = vrot.slane %v2584, 1
    %v2586 = vmax.f32 %v2584, %v2585
    %v2587 = vsel %vm2264, %v1121, -inf
    %v2588 = vrot.slane %v2587, 4
    %v2589 = vmax.f32 %v2587, %v2588
    %v2590 = vrot.slane %v2589, 2
    %v2591 = vmax.f32 %v2589, %v2590
    %v2592 = vrot.slane %v2591, 1
    %v2593 = vmax.f32 %v2591, %v2592
    %v2594 = vsel %vm2264, %v1123, -inf
    %v2595 = vrot.slane %v2594, 4
    %v2596 = vmax.f32 %v2594, %v2595
    %v2597 = vrot.slane %v2596, 2
    %v2598 = vmax.f32 %v2596, %v2597
    %v2599 = vrot.slane %v2598, 1
    %v2600 = vmax.f32 %v2598, %v2599
    %v2601 = vsel %vm2264, %v1131, -inf
    %v2602 = vrot.slane %v2601, 4
    %v2603 = vmax.f32 %v2601, %v2602
    %v2604 = vrot.slane %v2603, 2
    %v2605 = vmax.f32 %v2603, %v2604
    %v2606 = vrot.slane %v2605, 1
    %v2607 = vmax.f32 %v2605, %v2606
    %v2608 = vsel %vm2264, %v1139, -inf
    %v2609 = vrot.slane %v2608, 4
    %v2610 = vmax.f32 %v2608, %v2609
    %v2611 = vrot.slane %v2610, 2
    %v2612 = vmax.f32 %v2610, %v2611
    %v2613 = vrot.slane %v2612, 1
    %v2614 = vmax.f32 %v2612, %v2613
    %v2615 = vsel %vm2264, %v1138, -inf
    %v2616 = vrot.slane %v2615, 4
    %v2617 = vmax.f32 %v2615, %v2616
    %v2618 = vrot.slane %v2617, 2
    %v2619 = vmax.f32 %v2617, %v2618
    %v2620 = vrot.slane %v2619, 1
    %v2621 = vmax.f32 %v2619, %v2620
    %v2622 = vsel %vm2264, %v1140, -inf
    %v2623 = vrot.slane %v2622, 4
    %v2624 = vmax.f32 %v2622, %v2623
    %v2625 = vrot.slane %v2624, 2
    %v2626 = vmax.f32 %v2624, %v2625
    %v2627 = vrot.slane %v2626, 1
    %v2628 = vmax.f32 %v2626, %v2627
    %v2629 = vsel %vm2264, %v1148, -inf
    %v2630 = vrot.slane %v2629, 4
    %v2631 = vmax.f32 %v2629, %v2630
    %v2632 = vrot.slane %v2631, 2
    %v2633 = vmax.f32 %v2631, %v2632
    %v2634 = vrot.slane %v2633, 1
    %v2635 = vmax.f32 %v2633, %v2634
    %v2636 = vsel %vm2264, %v1156, -inf
    %v2637 = vrot.slane %v2636, 4
    %v2638 = vmax.f32 %v2636, %v2637
    %v2639 = vrot.slane %v2638, 2
    %v2640 = vmax.f32 %v2638, %v2639
    %v2641 = vrot.slane %v2640, 1
    %v2642 = vmax.f32 %v2640, %v2641
    %v2643 = vsel %vm2264, %v1155, -inf
    %v2644 = vrot.slane %v2643, 4
    %v2645 = vmax.f32 %v2643, %v2644
    %v2646 = vrot.slane %v2645, 2
    %v2647 = vmax.f32 %v2645, %v2646
    %v2648 = vrot.slane %v2647, 1
    %v2649 = vmax.f32 %v2647, %v2648
    %v2650 = vsel %vm2264, %v1157, -inf
    %v2651 = vrot.slane %v2650, 4
    %v2652 = vmax.f32 %v2650, %v2651
    %v2653 = vrot.slane %v2652, 2
    %v2654 = vmax.f32 %v2652, %v2653
    %v2655 = vrot.slane %v2654, 1
    %v2656 = vmax.f32 %v2654, %v2655
    %v2657 = vsel %vm2264, %v1165, -inf
    %v2658 = vrot.slane %v2657, 4
    %v2659 = vmax.f32 %v2657, %v2658
    %v2660 = vrot.slane %v2659, 2
    %v2661 = vmax.f32 %v2659, %v2660
    %v2662 = vrot.slane %v2661, 1
    %v2663 = vmax.f32 %v2661, %v2662
    %v2664 = vsel %vm2264, %v1173, -inf
    %v2665 = vrot.slane %v2664, 4
    %v2666 = vmax.f32 %v2664, %v2665
    %v2667 = vrot.slane %v2666, 2
    %v2668 = vmax.f32 %v2666, %v2667
    %v2669 = vrot.slane %v2668, 1
    %v2670 = vmax.f32 %v2668, %v2669
    %v2671 = vsel %vm2264, %v1172, -inf
    %v2672 = vrot.slane %v2671, 4
    %v2673 = vmax.f32 %v2671, %v2672
    %v2674 = vrot.slane %v2673, 2
    %v2675 = vmax.f32 %v2673, %v2674
    %v2676 = vrot.slane %v2675, 1
    %v2677 = vmax.f32 %v2675, %v2676
    %v2678 = vsel %vm2264, %v1174, -inf
    %v2679 = vrot.slane %v2678, 4
    %v2680 = vmax.f32 %v2678, %v2679
    %v2681 = vrot.slane %v2680, 2
    %v2682 = vmax.f32 %v2680, %v2681
    %v2683 = vrot.slane %v2682, 1
    %v2684 = vmax.f32 %v2682, %v2683
    %v2685 = vsel %vm2264, %v1182, -inf
    %v2686 = vrot.slane %v2685, 4
    %v2687 = vmax.f32 %v2685, %v2686
    %v2688 = vrot.slane %v2687, 2
    %v2689 = vmax.f32 %v2687, %v2688
    %v2690 = vrot.slane %v2689, 1
    %v2691 = vmax.f32 %v2689, %v2690
    %v2692 = vsel %vm2264, %v1190, -inf
    %v2693 = vrot.slane %v2692, 4
    %v2694 = vmax.f32 %v2692, %v2693
    %v2695 = vrot.slane %v2694, 2
    %v2696 = vmax.f32 %v2694, %v2695
    %v2697 = vrot.slane %v2696, 1
    %v2698 = vmax.f32 %v2696, %v2697
    %v2699 = vsel %vm2264, %v1189, -inf
    %v2700 = vrot.slane %v2699, 4
    %v2701 = vmax.f32 %v2699, %v2700
    %v2702 = vrot.slane %v2701, 2
    %v2703 = vmax.f32 %v2701, %v2702
    %v2704 = vrot.slane %v2703, 1
    %v2705 = vmax.f32 %v2703, %v2704
    %v2706 = vsel %vm2264, %v1191, -inf
    %v2707 = vrot.slane %v2706, 4
    %v2708 = vmax.f32 %v2706, %v2707
    %v2709 = vrot.slane %v2708, 2
    %v2710 = vmax.f32 %v2708, %v2709
    %v2711 = vrot.slane %v2710, 1
    %v2712 = vmax.f32 %v2710, %v2711
    %v2713 = vsel %vm2264, %v1199, -inf
    %v2714 = vrot.slane %v2713, 4
    %v2715 = vmax.f32 %v2713, %v2714
    %v2716 = vrot.slane %v2715, 2
    %v2717 = vmax.f32 %v2715, %v2716
    %v2718 = vrot.slane %v2717, 1
    %v2719 = vmax.f32 %v2717, %v2718
    %v2720 = vsel %vm2264, %v1207, -inf
    %v2721 = vrot.slane %v2720, 4
    %v2722 = vmax.f32 %v2720, %v2721
    %v2723 = vrot.slane %v2722, 2
    %v2724 = vmax.f32 %v2722, %v2723
    %v2725 = vrot.slane %v2724, 1
    %v2726 = vmax.f32 %v2724, %v2725
    %v2727 = vsel %vm2264, %v1206, -inf
    %v2728 = vrot.slane %v2727, 4
    %v2729 = vmax.f32 %v2727, %v2728
    %v2730 = vrot.slane %v2729, 2
    %v2731 = vmax.f32 %v2729, %v2730
    %v2732 = vrot.slane %v2731, 1
    %v2733 = vmax.f32 %v2731, %v2732
    %v2734 = vsel %vm2264, %v1208, -inf
    %v2735 = vrot.slane %v2734, 4
    %v2736 = vmax.f32 %v2734, %v2735
    %v2737 = vrot.slane %v2736, 2
    %v2738 = vmax.f32 %v2736, %v2737
    %v2739 = vrot.slane %v2738, 1
    %v2740 = vmax.f32 %v2738, %v2739
    %v2741 = vsel %vm2264, %v1216, -inf
    %v2742 = vrot.slane %v2741, 4
    %v2743 = vmax.f32 %v2741, %v2742
    %v2744 = vrot.slane %v2743, 2
    %v2745 = vmax.f32 %v2743, %v2744
    %v2746 = vrot.slane %v2745, 1
    %v2747 = vmax.f32 %v2745, %v2746
    %v2748 = vsel %vm2264, %v1224, -inf
    %v2749 = vrot.slane %v2748, 4
    %v2750 = vmax.f32 %v2748, %v2749
    %v2751 = vrot.slane %v2750, 2
    %v2752 = vmax.f32 %v2750, %v2751
    %v2753 = vrot.slane %v2752, 1
    %v2754 = vmax.f32 %v2752, %v2753
    %v2755 = vsel %vm2264, %v1223, -inf
    %v2756 = vrot.slane %v2755, 4
    %v2757 = vmax.f32 %v2755, %v2756
    %v2758 = vrot.slane %v2757, 2
    %v2759 = vmax.f32 %v2757, %v2758
    %v2760 = vrot.slane %v2759, 1
    %v2761 = vmax.f32 %v2759, %v2760
    %v2762 = vsel %vm2264, %v1225, -inf
    %v2763 = vrot.slane %v2762, 4
    %v2764 = vmax.f32 %v2762, %v2763
    %v2765 = vrot.slane %v2764, 2
    %v2766 = vmax.f32 %v2764, %v2765
    %v2767 = vrot.slane %v2766, 1
    %v2768 = vmax.f32 %v2766, %v2767
    %v2769 = vsel %vm2264, %v1233, -inf
    %v2770 = vrot.slane %v2769, 4
    %v2771 = vmax.f32 %v2769, %v2770
    %v2772 = vrot.slane %v2771, 2
    %v2773 = vmax.f32 %v2771, %v2772
    %v2774 = vrot.slane %v2773, 1
    %v2775 = vmax.f32 %v2773, %v2774
    %v2776 = vsel %vm2264, %v1241, -inf
    %v2777 = vrot.slane %v2776, 4
    %v2778 = vmax.f32 %v2776, %v2777
    %v2779 = vrot.slane %v2778, 2
    %v2780 = vmax.f32 %v2778, %v2779
    %v2781 = vrot.slane %v2780, 1
    %v2782 = vmax.f32 %v2780, %v2781
    %v2783 = vsel %vm2264, %v1240, -inf
    %v2784 = vrot.slane %v2783, 4
    %v2785 = vmax.f32 %v2783, %v2784
    %v2786 = vrot.slane %v2785, 2
    %v2787 = vmax.f32 %v2785, %v2786
    %v2788 = vrot.slane %v2787, 1
    %v2789 = vmax.f32 %v2787, %v2788
    %v2790 = vsel %vm2264, %v1242, -inf
    %v2791 = vrot.slane %v2790, 4
    %v2792 = vmax.f32 %v2790, %v2791
    %v2793 = vrot.slane %v2792, 2
    %v2794 = vmax.f32 %v2792, %v2793
    %v2795 = vrot.slane %v2794, 1
    %v2796 = vmax.f32 %v2794, %v2795
    %v2797 = vsel %vm2264, %v1250, -inf
    %v2798 = vrot.slane %v2797, 4
    %v2799 = vmax.f32 %v2797, %v2798
    %v2800 = vrot.slane %v2799, 2
    %v2801 = vmax.f32 %v2799, %v2800
    %v2802 = vrot.slane %v2801, 1
    %v2803 = vmax.f32 %v2801, %v2802
    %v2804 = vsel %vm2264, %v1258, -inf
    %v2805 = vrot.slane %v2804, 4
    %v2806 = vmax.f32 %v2804, %v2805
    %v2807 = vrot.slane %v2806, 2
    %v2808 = vmax.f32 %v2806, %v2807
    %v2809 = vrot.slane %v2808, 1
    %v2810 = vmax.f32 %v2808, %v2809
    %v2811 = vsel %vm2264, %v1257, -inf
    %v2812 = vrot.slane %v2811, 4
    %v2813 = vmax.f32 %v2811, %v2812
    %v2814 = vrot.slane %v2813, 2
    %v2815 = vmax.f32 %v2813, %v2814
    %v2816 = vrot.slane %v2815, 1
    %v2817 = vmax.f32 %v2815, %v2816
    %v2818 = vsel %vm2264, %v1259, -inf
    %v2819 = vrot.slane %v2818, 4
    %v2820 = vmax.f32 %v2818, %v2819
    %v2821 = vrot.slane %v2820, 2
    %v2822 = vmax.f32 %v2820, %v2821
    %v2823 = vrot.slane %v2822, 1
    %v2824 = vmax.f32 %v2822, %v2823
    %v2825 = vsel %vm2264, %v1267, -inf
    %v2826 = vrot.slane %v2825, 4
    %v2827 = vmax.f32 %v2825, %v2826
    %v2828 = vrot.slane %v2827, 2
    %v2829 = vmax.f32 %v2827, %v2828
    %v2830 = vrot.slane %v2829, 1
    %v2831 = vmax.f32 %v2829, %v2830
    %v2832 = vsel %vm2264, %v1275, -inf
    %v2833 = vrot.slane %v2832, 4
    %v2834 = vmax.f32 %v2832, %v2833
    %v2835 = vrot.slane %v2834, 2
    %v2836 = vmax.f32 %v2834, %v2835
    %v2837 = vrot.slane %v2836, 1
    %v2838 = vmax.f32 %v2836, %v2837
    %v2839 = vsel %vm2264, %v1274, -inf
    %v2840 = vrot.slane %v2839, 4
    %v2841 = vmax.f32 %v2839, %v2840
    %v2842 = vrot.slane %v2841, 2
    %v2843 = vmax.f32 %v2841, %v2842
    %v2844 = vrot.slane %v2843, 1
    %v2845 = vmax.f32 %v2843, %v2844
    %v2846 = vsel %vm2264, %v1276, -inf
    %v2847 = vrot.slane %v2846, 4
    %v2848 = vmax.f32 %v2846, %v2847
    %v2849 = vrot.slane %v2848, 2
    %v2850 = vmax.f32 %v2848, %v2849
    %v2851 = vrot.slane %v2850, 1
    %v2852 = vmax.f32 %v2850, %v2851
    %v2853 = vsel %vm2264, %v1284, -inf
    %v2854 = vrot.slane %v2853, 4
    %v2855 = vmax.f32 %v2853, %v2854
    %v2856 = vrot.slane %v2855, 2
    %v2857 = vmax.f32 %v2855, %v2856
    %v2858 = vrot.slane %v2857, 1
    %v2859 = vmax.f32 %v2857, %v2858
    %v2860 = vsel %vm2264, %v1292, -inf
    %v2861 = vrot.slane %v2860, 4
    %v2862 = vmax.f32 %v2860, %v2861
    %v2863 = vrot.slane %v2862, 2
    %v2864 = vmax.f32 %v2862, %v2863
    %v2865 = vrot.slane %v2864, 1
    %v2866 = vmax.f32 %v2864, %v2865
    %v2867 = vsel %vm2264, %v1291, -inf
    %v2868 = vrot.slane %v2867, 4
    %v2869 = vmax.f32 %v2867, %v2868
    %v2870 = vrot.slane %v2869, 2
    %v2871 = vmax.f32 %v2869, %v2870
    %v2872 = vrot.slane %v2871, 1
    %v2873 = vmax.f32 %v2871, %v2872
    %v2874 = vsel %vm2264, %v1293, -inf
    %v2875 = vrot.slane %v2874, 4
    %v2876 = vmax.f32 %v2874, %v2875
    %v2877 = vrot.slane %v2876, 2
    %v2878 = vmax.f32 %v2876, %v2877
    %v2879 = vrot.slane %v2878, 1
    %v2880 = vmax.f32 %v2878, %v2879
    %v2881 = vsel %vm2264, %v1301, -inf
    %v2882 = vrot.slane %v2881, 4
    %v2883 = vmax.f32 %v2881, %v2882
    %v2884 = vrot.slane %v2883, 2
    %v2885 = vmax.f32 %v2883, %v2884
    %v2886 = vrot.slane %v2885, 1
    %v2887 = vmax.f32 %v2885, %v2886
    %v2888 = vsel %vm2264, %v1309, -inf
    %v2889 = vrot.slane %v2888, 4
    %v2890 = vmax.f32 %v2888, %v2889
    %v2891 = vrot.slane %v2890, 2
    %v2892 = vmax.f32 %v2890, %v2891
    %v2893 = vrot.slane %v2892, 1
    %v2894 = vmax.f32 %v2892, %v2893
    %v2895 = vsel %vm2264, %v1308, -inf
    %v2896 = vrot.slane %v2895, 4
    %v2897 = vmax.f32 %v2895, %v2896
    %v2898 = vrot.slane %v2897, 2
    %v2899 = vmax.f32 %v2897, %v2898
    %v2900 = vrot.slane %v2899, 1
    %v2901 = vmax.f32 %v2899, %v2900
    %v2902 = vsel %vm2264, %v1310, -inf
    %v2903 = vrot.slane %v2902, 4
    %v2904 = vmax.f32 %v2902, %v2903
    %v2905 = vrot.slane %v2904, 2
    %v2906 = vmax.f32 %v2904, %v2905
    %v2907 = vrot.slane %v2906, 1
    %v2908 = vmax.f32 %v2906, %v2907
    %v2909 = vsel %vm2264, %v1318, -inf
    %v2910 = vrot.slane %v2909, 4
    %v2911 = vmax.f32 %v2909, %v2910
    %v2912 = vrot.slane %v2911, 2
    %v2913 = vmax.f32 %v2911, %v2912
    %v2914 = vrot.slane %v2913, 1
    %v2915 = vmax.f32 %v2913, %v2914
    %v2916 = vsel %vm2264, %v1326, -inf
    %v2917 = vrot.slane %v2916, 4
    %v2918 = vmax.f32 %v2916, %v2917
    %v2919 = vrot.slane %v2918, 2
    %v2920 = vmax.f32 %v2918, %v2919
    %v2921 = vrot.slane %v2920, 1
    %v2922 = vmax.f32 %v2920, %v2921
    %v2923 = vsel %vm2264, %v1325, -inf
    %v2924 = vrot.slane %v2923, 4
    %v2925 = vmax.f32 %v2923, %v2924
    %v2926 = vrot.slane %v2925, 2
    %v2927 = vmax.f32 %v2925, %v2926
    %v2928 = vrot.slane %v2927, 1
    %v2929 = vmax.f32 %v2927, %v2928
    %v2930 = vsel %vm2264, %v1327, -inf
    %v2931 = vrot.slane %v2930, 4
    %v2932 = vmax.f32 %v2930, %v2931
    %v2933 = vrot.slane %v2932, 2
    %v2934 = vmax.f32 %v2932, %v2933
    %v2935 = vrot.slane %v2934, 1
    %v2936 = vmax.f32 %v2934, %v2935
    %v2937 = vsel %vm2264, %v1335, -inf
    %v2938 = vrot.slane %v2937, 4
    %v2939 = vmax.f32 %v2937, %v2938
    %v2940 = vrot.slane %v2939, 2
    %v2941 = vmax.f32 %v2939, %v2940
    %v2942 = vrot.slane %v2941, 1
    %v2943 = vmax.f32 %v2941, %v2942
    %v2944 = vsel %vm2264, %v1343, -inf
    %v2945 = vrot.slane %v2944, 4
    %v2946 = vmax.f32 %v2944, %v2945
    %v2947 = vrot.slane %v2946, 2
    %v2948 = vmax.f32 %v2946, %v2947
    %v2949 = vrot.slane %v2948, 1
    %v2950 = vmax.f32 %v2948, %v2949
    %v2951 = vsel %vm2264, %v1342, -inf
    %v2952 = vrot.slane %v2951, 4
    %v2953 = vmax.f32 %v2951, %v2952
    %v2954 = vrot.slane %v2953, 2
    %v2955 = vmax.f32 %v2953, %v2954
    %v2956 = vrot.slane %v2955, 1
    %v2957 = vmax.f32 %v2955, %v2956
    %v2958 = vsel %vm2264, %v1344, -inf
    %v2959 = vrot.slane %v2958, 4
    %v2960 = vmax.f32 %v2958, %v2959
    %v2961 = vrot.slane %v2960, 2
    %v2962 = vmax.f32 %v2960, %v2961
    %v2963 = vrot.slane %v2962, 1
    %v2964 = vmax.f32 %v2962, %v2963
    %v2965 = vsel %vm2264, %v1352, -inf
    %v2966 = vrot.slane %v2965, 4
    %v2967 = vmax.f32 %v2965, %v2966
    %v2968 = vrot.slane %v2967, 2
    %v2969 = vmax.f32 %v2967, %v2968
    %v2970 = vrot.slane %v2969, 1
    %v2971 = vmax.f32 %v2969, %v2970
    %v2972 = vsel %vm2264, %v1360, -inf
    %v2973 = vrot.slane %v2972, 4
    %v2974 = vmax.f32 %v2972, %v2973
    %v2975 = vrot.slane %v2974, 2
    %v2976 = vmax.f32 %v2974, %v2975
    %v2977 = vrot.slane %v2976, 1
    %v2978 = vmax.f32 %v2976, %v2977
    %v2979 = vsel %vm2264, %v1359, -inf
    %v2980 = vrot.slane %v2979, 4
    %v2981 = vmax.f32 %v2979, %v2980
    %v2982 = vrot.slane %v2981, 2
    %v2983 = vmax.f32 %v2981, %v2982
    %v2984 = vrot.slane %v2983, 1
    %v2985 = vmax.f32 %v2983, %v2984
    %v2986 = vsel %vm2264, %v1361, -inf
    %v2987 = vrot.slane %v2986, 4
    %v2988 = vmax.f32 %v2986, %v2987
    %v2989 = vrot.slane %v2988, 2
    %v2990 = vmax.f32 %v2988, %v2989
    %v2991 = vrot.slane %v2990, 1
    %v2992 = vmax.f32 %v2990, %v2991
    %v2993 = vsel %vm2264, %v1369, -inf
    %v2994 = vrot.slane %v2993, 4
    %v2995 = vmax.f32 %v2993, %v2994
    %v2996 = vrot.slane %v2995, 2
    %v2997 = vmax.f32 %v2995, %v2996
    %v2998 = vrot.slane %v2997, 1
    %v2999 = vmax.f32 %v2997, %v2998
    %v3000 = vsel %vm2264, %v1377, -inf
    %v3001 = vrot.slane %v3000, 4
    %v3002 = vmax.f32 %v3000, %v3001
    %v3003 = vrot.slane %v3002, 2
    %v3004 = vmax.f32 %v3002, %v3003
    %v3005 = vrot.slane %v3004, 1
    %v3006 = vmax.f32 %v3004, %v3005
    %v3007 = vsel %vm2264, %v1376, -inf
    %v3008 = vrot.slane %v3007, 4
    %v3009 = vmax.f32 %v3007, %v3008
    %v3010 = vrot.slane %v3009, 2
    %v3011 = vmax.f32 %v3009, %v3010
    %v3012 = vrot.slane %v3011, 1
    %v3013 = vmax.f32 %v3011, %v3012
    %v3014 = vsel %vm2264, %v1378, -inf
    %v3015 = vrot.slane %v3014, 4
    %v3016 = vmax.f32 %v3014, %v3015
    %v3017 = vrot.slane %v3016, 2
    %v3018 = vmax.f32 %v3016, %v3017
    %v3019 = vrot.slane %v3018, 1
    %v3020 = vmax.f32 %v3018, %v3019
    %v3021 = vsel %vm2264, %v1386, -inf
    %v3022 = vrot.slane %v3021, 4
    %v3023 = vmax.f32 %v3021, %v3022
    %v3024 = vrot.slane %v3023, 2
    %v3025 = vmax.f32 %v3023, %v3024
    %v3026 = vrot.slane %v3025, 1
    %v3027 = vmax.f32 %v3025, %v3026
    %v3028 = vsel %vm2264, %v1394, -inf
    %v3029 = vrot.slane %v3028, 4
    %v3030 = vmax.f32 %v3028, %v3029
    %v3031 = vrot.slane %v3030, 2
    %v3032 = vmax.f32 %v3030, %v3031
    %v3033 = vrot.slane %v3032, 1
    %v3034 = vmax.f32 %v3032, %v3033
    %v3035 = vsel %vm2264, %v1393, -inf
    %v3036 = vrot.slane %v3035, 4
    %v3037 = vmax.f32 %v3035, %v3036
    %v3038 = vrot.slane %v3037, 2
    %v3039 = vmax.f32 %v3037, %v3038
    %v3040 = vrot.slane %v3039, 1
    %v3041 = vmax.f32 %v3039, %v3040
    %v3042 = vsel %vm2264, %v1395, -inf
    %v3043 = vrot.slane %v3042, 4
    %v3044 = vmax.f32 %v3042, %v3043
    %v3045 = vrot.slane %v3044, 2
    %v3046 = vmax.f32 %v3044, %v3045
    %v3047 = vrot.slane %v3046, 1
    %v3048 = vmax.f32 %v3046, %v3047
    %v3049 = vsel %vm2264, %v1403, -inf
    %v3050 = vrot.slane %v3049, 4
    %v3051 = vmax.f32 %v3049, %v3050
    %v3052 = vrot.slane %v3051, 2
    %v3053 = vmax.f32 %v3051, %v3052
    %v3054 = vrot.slane %v3053, 1
    %v3055 = vmax.f32 %v3053, %v3054
    %v3056 = vsel %vm2264, %v1411, -inf
    %v3057 = vrot.slane %v3056, 4
    %v3058 = vmax.f32 %v3056, %v3057
    %v3059 = vrot.slane %v3058, 2
    %v3060 = vmax.f32 %v3058, %v3059
    %v3061 = vrot.slane %v3060, 1
    %v3062 = vmax.f32 %v3060, %v3061
    %v3063 = vsel %vm2264, %v1410, -inf
    %v3064 = vrot.slane %v3063, 4
    %v3065 = vmax.f32 %v3063, %v3064
    %v3066 = vrot.slane %v3065, 2
    %v3067 = vmax.f32 %v3065, %v3066
    %v3068 = vrot.slane %v3067, 1
    %v3069 = vmax.f32 %v3067, %v3068
    %v3070 = vsel %vm2264, %v1412, -inf
    %v3071 = vrot.slane %v3070, 4
    %v3072 = vmax.f32 %v3070, %v3071
    %v3073 = vrot.slane %v3072, 2
    %v3074 = vmax.f32 %v3072, %v3073
    %v3075 = vrot.slane %v3074, 1
    %v3076 = vmax.f32 %v3074, %v3075
    %v3077 = vsel %vm2264, %v1420, -inf
    %v3078 = vrot.slane %v3077, 4
    %v3079 = vmax.f32 %v3077, %v3078
    %v3080 = vrot.slane %v3079, 2
    %v3081 = vmax.f32 %v3079, %v3080
    %v3082 = vrot.slane %v3081, 1
    %v3083 = vmax.f32 %v3081, %v3082
    %v3084 = vsel %vm2264, %v1428, -inf
    %v3085 = vrot.slane %v3084, 4
    %v3086 = vmax.f32 %v3084, %v3085
    %v3087 = vrot.slane %v3086, 2
    %v3088 = vmax.f32 %v3086, %v3087
    %v3089 = vrot.slane %v3088, 1
    %v3090 = vmax.f32 %v3088, %v3089
    %v3091 = vsel %vm2264, %v1427, -inf
    %v3092 = vrot.slane %v3091, 4
    %v3093 = vmax.f32 %v3091, %v3092
    %v3094 = vrot.slane %v3093, 2
    %v3095 = vmax.f32 %v3093, %v3094
    %v3096 = vrot.slane %v3095, 1
    %v3097 = vmax.f32 %v3095, %v3096
    %v3098 = vsel %vm2264, %v1429, -inf
    %v3099 = vrot.slane %v3098, 4
    %v3100 = vmax.f32 %v3098, %v3099
    %v3101 = vrot.slane %v3100, 2
    %v3102 = vmax.f32 %v3100, %v3101
    %v3103 = vrot.slane %v3102, 1
    %v3104 = vmax.f32 %v3102, %v3103
    %v3105 = vsel %vm2264, %v1437, -inf
    %v3106 = vrot.slane %v3105, 4
    %v3107 = vmax.f32 %v3105, %v3106
    %v3108 = vrot.slane %v3107, 2
    %v3109 = vmax.f32 %v3107, %v3108
    %v3110 = vrot.slane %v3109, 1
    %v3111 = vmax.f32 %v3109, %v3110
    %v3112 = vsel %vm2264, %v1445, -inf
    %v3113 = vrot.slane %v3112, 4
    %v3114 = vmax.f32 %v3112, %v3113
    %v3115 = vrot.slane %v3114, 2
    %v3116 = vmax.f32 %v3114, %v3115
    %v3117 = vrot.slane %v3116, 1
    %v3118 = vmax.f32 %v3116, %v3117
    %v3119 = vsel %vm2264, %v1444, -inf
    %v3120 = vrot.slane %v3119, 4
    %v3121 = vmax.f32 %v3119, %v3120
    %v3122 = vrot.slane %v3121, 2
    %v3123 = vmax.f32 %v3121, %v3122
    %v3124 = vrot.slane %v3123, 1
    %v3125 = vmax.f32 %v3123, %v3124
    %v3126 = vsel %vm2264, %v1446, -inf
    %v3127 = vrot.slane %v3126, 4
    %v3128 = vmax.f32 %v3126, %v3127
    %v3129 = vrot.slane %v3128, 2
    %v3130 = vmax.f32 %v3128, %v3129
    %v3131 = vrot.slane %v3130, 1
    %v3132 = vmax.f32 %v3130, %v3131
    %v3133 = vsel %vm2264, %v1454, -inf
    %v3134 = vrot.slane %v3133, 4
    %v3135 = vmax.f32 %v3133, %v3134
    %v3136 = vrot.slane %v3135, 2
    %v3137 = vmax.f32 %v3135, %v3136
    %v3138 = vrot.slane %v3137, 1
    %v3139 = vmax.f32 %v3137, %v3138
    %v3140 = vsel %vm2264, %v1462, -inf
    %v3141 = vrot.slane %v3140, 4
    %v3142 = vmax.f32 %v3140, %v3141
    %v3143 = vrot.slane %v3142, 2
    %v3144 = vmax.f32 %v3142, %v3143
    %v3145 = vrot.slane %v3144, 1
    %v3146 = vmax.f32 %v3144, %v3145
    %v3147 = vsel %vm2264, %v1461, -inf
    %v3148 = vrot.slane %v3147, 4
    %v3149 = vmax.f32 %v3147, %v3148
    %v3150 = vrot.slane %v3149, 2
    %v3151 = vmax.f32 %v3149, %v3150
    %v3152 = vrot.slane %v3151, 1
    %v3153 = vmax.f32 %v3151, %v3152
    %v3154 = vsel %vm2264, %v1463, -inf
    %v3155 = vrot.slane %v3154, 4
    %v3156 = vmax.f32 %v3154, %v3155
    %v3157 = vrot.slane %v3156, 2
    %v3158 = vmax.f32 %v3156, %v3157
    %v3159 = vrot.slane %v3158, 1
    %v3160 = vmax.f32 %v3158, %v3159
    %v3161 = vsel %vm2264, %v1471, -inf
    %v3162 = vrot.slane %v3161, 4
    %v3163 = vmax.f32 %v3161, %v3162
    %v3164 = vrot.slane %v3163, 2
    %v3165 = vmax.f32 %v3163, %v3164
    %v3166 = vrot.slane %v3165, 1
    %v3167 = vmax.f32 %v3165, %v3166
    %v3168 = vsel %vm2264, %v1479, -inf
    %v3169 = vrot.slane %v3168, 4
    %v3170 = vmax.f32 %v3168, %v3169
    %v3171 = vrot.slane %v3170, 2
    %v3172 = vmax.f32 %v3170, %v3171
    %v3173 = vrot.slane %v3172, 1
    %v3174 = vmax.f32 %v3172, %v3173
    %v3175 = vsel %vm2264, %v1478, -inf
    %v3176 = vrot.slane %v3175, 4
    %v3177 = vmax.f32 %v3175, %v3176
    %v3178 = vrot.slane %v3177, 2
    %v3179 = vmax.f32 %v3177, %v3178
    %v3180 = vrot.slane %v3179, 1
    %v3181 = vmax.f32 %v3179, %v3180
    %v3182 = vsel %vm2264, %v1480, -inf
    %v3183 = vrot.slane %v3182, 4
    %v3184 = vmax.f32 %v3182, %v3183
    %v3185 = vrot.slane %v3184, 2
    %v3186 = vmax.f32 %v3184, %v3185
    %v3187 = vrot.slane %v3186, 1
    %v3188 = vmax.f32 %v3186, %v3187
    %v3189 = vsel %vm2264, %v1488, -inf
    %v3190 = vrot.slane %v3189, 4
    %v3191 = vmax.f32 %v3189, %v3190
    %v3192 = vrot.slane %v3191, 2
    %v3193 = vmax.f32 %v3191, %v3192
    %v3194 = vrot.slane %v3193, 1
    %v3195 = vmax.f32 %v3193, %v3194
    %v3196 = vsel %vm2264, %v1496, -inf
    %v3197 = vrot.slane %v3196, 4
    %v3198 = vmax.f32 %v3196, %v3197
    %v3199 = vrot.slane %v3198, 2
    %v3200 = vmax.f32 %v3198, %v3199
    %v3201 = vrot.slane %v3200, 1
    %v3202 = vmax.f32 %v3200, %v3201
    %v3203 = vsel %vm2264, %v1495, -inf
    %v3204 = vrot.slane %v3203, 4
    %v3205 = vmax.f32 %v3203, %v3204
    %v3206 = vrot.slane %v3205, 2
    %v3207 = vmax.f32 %v3205, %v3206
    %v3208 = vrot.slane %v3207, 1
    %v3209 = vmax.f32 %v3207, %v3208
    %v3210 = vsel %vm2264, %v1497, -inf
    %v3211 = vrot.slane %v3210, 4
    %v3212 = vmax.f32 %v3210, %v3211
    %v3213 = vrot.slane %v3212, 2
    %v3214 = vmax.f32 %v3212, %v3213
    %v3215 = vrot.slane %v3214, 1
    %v3216 = vmax.f32 %v3214, %v3215
    %v3217 = vsel %vm2264, %v1505, -inf
    %v3218 = vrot.slane %v3217, 4
    %v3219 = vmax.f32 %v3217, %v3218
    %v3220 = vrot.slane %v3219, 2
    %v3221 = vmax.f32 %v3219, %v3220
    %v3222 = vrot.slane %v3221, 1
    %v3223 = vmax.f32 %v3221, %v3222
    %v3224 = vsel %vm2264, %v1513, -inf
    %v3225 = vrot.slane %v3224, 4
    %v3226 = vmax.f32 %v3224, %v3225
    %v3227 = vrot.slane %v3226, 2
    %v3228 = vmax.f32 %v3226, %v3227
    %v3229 = vrot.slane %v3228, 1
    %v3230 = vmax.f32 %v3228, %v3229
    %v3231 = vsel %vm2264, %v1512, -inf
    %v3232 = vrot.slane %v3231, 4
    %v3233 = vmax.f32 %v3231, %v3232
    %v3234 = vrot.slane %v3233, 2
    %v3235 = vmax.f32 %v3233, %v3234
    %v3236 = vrot.slane %v3235, 1
    %v3237 = vmax.f32 %v3235, %v3236
    %v3238 = vsel %vm2264, %v1514, -inf
    %v3239 = vrot.slane %v3238, 4
    %v3240 = vmax.f32 %v3238, %v3239
    %v3241 = vrot.slane %v3240, 2
    %v3242 = vmax.f32 %v3240, %v3241
    %v3243 = vrot.slane %v3242, 1
    %v3244 = vmax.f32 %v3242, %v3243
    %v3245 = vsel %vm2264, %v1522, -inf
    %v3246 = vrot.slane %v3245, 4
    %v3247 = vmax.f32 %v3245, %v3246
    %v3248 = vrot.slane %v3247, 2
    %v3249 = vmax.f32 %v3247, %v3248
    %v3250 = vrot.slane %v3249, 1
    %v3251 = vmax.f32 %v3249, %v3250
    %v3252 = vsel %vm2264, %v1530, -inf
    %v3253 = vrot.slane %v3252, 4
    %v3254 = vmax.f32 %v3252, %v3253
    %v3255 = vrot.slane %v3254, 2
    %v3256 = vmax.f32 %v3254, %v3255
    %v3257 = vrot.slane %v3256, 1
    %v3258 = vmax.f32 %v3256, %v3257
    %v3259 = vsel %vm2264, %v1529, -inf
    %v3260 = vrot.slane %v3259, 4
    %v3261 = vmax.f32 %v3259, %v3260
    %v3262 = vrot.slane %v3261, 2
    %v3263 = vmax.f32 %v3261, %v3262
    %v3264 = vrot.slane %v3263, 1
    %v3265 = vmax.f32 %v3263, %v3264
    %v3266 = vsel %vm2264, %v1531, -inf
    %v3267 = vrot.slane %v3266, 4
    %v3268 = vmax.f32 %v3266, %v3267
    %v3269 = vrot.slane %v3268, 2
    %v3270 = vmax.f32 %v3268, %v3269
    %v3271 = vrot.slane %v3270, 1
    %v3272 = vmax.f32 %v3270, %v3271
    %v3273 = vsel %vm2264, %v1539, -inf
    %v3274 = vrot.slane %v3273, 4
    %v3275 = vmax.f32 %v3273, %v3274
    %v3276 = vrot.slane %v3275, 2
    %v3277 = vmax.f32 %v3275, %v3276
    %v3278 = vrot.slane %v3277, 1
    %v3279 = vmax.f32 %v3277, %v3278
    %v3280 = vsel %vm2264, %v1547, -inf
    %v3281 = vrot.slane %v3280, 4
    %v3282 = vmax.f32 %v3280, %v3281
    %v3283 = vrot.slane %v3282, 2
    %v3284 = vmax.f32 %v3282, %v3283
    %v3285 = vrot.slane %v3284, 1
    %v3286 = vmax.f32 %v3284, %v3285
    %v3287 = vsel %vm2264, %v1546, -inf
    %v3288 = vrot.slane %v3287, 4
    %v3289 = vmax.f32 %v3287, %v3288
    %v3290 = vrot.slane %v3289, 2
    %v3291 = vmax.f32 %v3289, %v3290
    %v3292 = vrot.slane %v3291, 1
    %v3293 = vmax.f32 %v3291, %v3292
    %v3294 = vsel %vm2264, %v1548, -inf
    %v3295 = vrot.slane %v3294, 4
    %v3296 = vmax.f32 %v3294, %v3295
    %v3297 = vrot.slane %v3296, 2
    %v3298 = vmax.f32 %v3296, %v3297
    %v3299 = vrot.slane %v3298, 1
    %v3300 = vmax.f32 %v3298, %v3299
    %v3301 = vsel %vm2264, %v1556, -inf
    %v3302 = vrot.slane %v3301, 4
    %v3303 = vmax.f32 %v3301, %v3302
    %v3304 = vrot.slane %v3303, 2
    %v3305 = vmax.f32 %v3303, %v3304
    %v3306 = vrot.slane %v3305, 1
    %v3307 = vmax.f32 %v3305, %v3306
    %v3308 = vsel %vm2264, %v1564, -inf
    %v3309 = vrot.slane %v3308, 4
    %v3310 = vmax.f32 %v3308, %v3309
    %v3311 = vrot.slane %v3310, 2
    %v3312 = vmax.f32 %v3310, %v3311
    %v3313 = vrot.slane %v3312, 1
    %v3314 = vmax.f32 %v3312, %v3313
    %v3315 = vsel %vm2264, %v1563, -inf
    %v3316 = vrot.slane %v3315, 4
    %v3317 = vmax.f32 %v3315, %v3316
    %v3318 = vrot.slane %v3317, 2
    %v3319 = vmax.f32 %v3317, %v3318
    %v3320 = vrot.slane %v3319, 1
    %v3321 = vmax.f32 %v3319, %v3320
    %v3322 = vsel %vm2264, %v1565, -inf
    %v3323 = vrot.slane %v3322, 4
    %v3324 = vmax.f32 %v3322, %v3323
    %v3325 = vrot.slane %v3324, 2
    %v3326 = vmax.f32 %v3324, %v3325
    %v3327 = vrot.slane %v3326, 1
    %v3328 = vmax.f32 %v3326, %v3327
    %v3329 = vsel %vm2264, %v1573, -inf
    %v3330 = vrot.slane %v3329, 4
    %v3331 = vmax.f32 %v3329, %v3330
    %v3332 = vrot.slane %v3331, 2
    %v3333 = vmax.f32 %v3331, %v3332
    %v3334 = vrot.slane %v3333, 1
    %v3335 = vmax.f32 %v3333, %v3334
    %v3336 = vsel %vm2264, %v1581, -inf
    %v3337 = vrot.slane %v3336, 4
    %v3338 = vmax.f32 %v3336, %v3337
    %v3339 = vrot.slane %v3338, 2
    %v3340 = vmax.f32 %v3338, %v3339
    %v3341 = vrot.slane %v3340, 1
    %v3342 = vmax.f32 %v3340, %v3341
    %v3343 = vsel %vm2264, %v1580, -inf
    %v3344 = vrot.slane %v3343, 4
    %v3345 = vmax.f32 %v3343, %v3344
    %v3346 = vrot.slane %v3345, 2
    %v3347 = vmax.f32 %v3345, %v3346
    %v3348 = vrot.slane %v3347, 1
    %v3349 = vmax.f32 %v3347, %v3348
    %v3350 = vsel %vm2264, %v1582, -inf
    %v3351 = vrot.slane %v3350, 4
    %v3352 = vmax.f32 %v3350, %v3351
    %v3353 = vrot.slane %v3352, 2
    %v3354 = vmax.f32 %v3352, %v3353
    %v3355 = vrot.slane %v3354, 1
    %v3356 = vmax.f32 %v3354, %v3355
    %v3357 = vsel %vm2264, %v1590, -inf
    %v3358 = vrot.slane %v3357, 4
    %v3359 = vmax.f32 %v3357, %v3358
    %v3360 = vrot.slane %v3359, 2
    %v3361 = vmax.f32 %v3359, %v3360
    %v3362 = vrot.slane %v3361, 1
    %v3363 = vmax.f32 %v3361, %v3362
    %v3364 = vsel %vm2264, %v1598, -inf
    %v3365 = vrot.slane %v3364, 4
    %v3366 = vmax.f32 %v3364, %v3365
    %v3367 = vrot.slane %v3366, 2
    %v3368 = vmax.f32 %v3366, %v3367
    %v3369 = vrot.slane %v3368, 1
    %v3370 = vmax.f32 %v3368, %v3369
    %v3371 = vsel %vm2264, %v1597, -inf
    %v3372 = vrot.slane %v3371, 4
    %v3373 = vmax.f32 %v3371, %v3372
    %v3374 = vrot.slane %v3373, 2
    %v3375 = vmax.f32 %v3373, %v3374
    %v3376 = vrot.slane %v3375, 1
    %v3377 = vmax.f32 %v3375, %v3376
    %v3378 = vsel %vm2264, %v1599, -inf
    %v3379 = vrot.slane %v3378, 4
    %v3380 = vmax.f32 %v3378, %v3379
    %v3381 = vrot.slane %v3380, 2
    %v3382 = vmax.f32 %v3380, %v3381
    %v3383 = vrot.slane %v3382, 1
    %v3384 = vmax.f32 %v3382, %v3383
    %v3385 = vsel %vm2264, %v1607, -inf
    %v3386 = vrot.slane %v3385, 4
    %v3387 = vmax.f32 %v3385, %v3386
    %v3388 = vrot.slane %v3387, 2
    %v3389 = vmax.f32 %v3387, %v3388
    %v3390 = vrot.slane %v3389, 1
    %v3391 = vmax.f32 %v3389, %v3390
    %v3392 = vsel %vm2264, %v1615, -inf
    %v3393 = vrot.slane %v3392, 4
    %v3394 = vmax.f32 %v3392, %v3393
    %v3395 = vrot.slane %v3394, 2
    %v3396 = vmax.f32 %v3394, %v3395
    %v3397 = vrot.slane %v3396, 1
    %v3398 = vmax.f32 %v3396, %v3397
    %v3399 = vsel %vm2264, %v1614, -inf
    %v3400 = vrot.slane %v3399, 4
    %v3401 = vmax.f32 %v3399, %v3400
    %v3402 = vrot.slane %v3401, 2
    %v3403 = vmax.f32 %v3401, %v3402
    %v3404 = vrot.slane %v3403, 1
    %v3405 = vmax.f32 %v3403, %v3404
    %v3406 = vsel %vm2264, %v1616, -inf
    %v3407 = vrot.slane %v3406, 4
    %v3408 = vmax.f32 %v3406, %v3407
    %v3409 = vrot.slane %v3408, 2
    %v3410 = vmax.f32 %v3408, %v3409
    %v3411 = vrot.slane %v3410, 1
    %v3412 = vmax.f32 %v3410, %v3411
    %v3413 = vsel %vm2264, %v1624, -inf
    %v3414 = vrot.slane %v3413, 4
    %v3415 = vmax.f32 %v3413, %v3414
    %v3416 = vrot.slane %v3415, 2
    %v3417 = vmax.f32 %v3415, %v3416
    %v3418 = vrot.slane %v3417, 1
    %v3419 = vmax.f32 %v3417, %v3418
    %v3420 = vsel %vm2264, %v1632, -inf
    %v3421 = vrot.slane %v3420, 4
    %v3422 = vmax.f32 %v3420, %v3421
    %v3423 = vrot.slane %v3422, 2
    %v3424 = vmax.f32 %v3422, %v3423
    %v3425 = vrot.slane %v3424, 1
    %v3426 = vmax.f32 %v3424, %v3425
    %v3427 = vsel %vm2264, %v1631, -inf
    %v3428 = vrot.slane %v3427, 4
    %v3429 = vmax.f32 %v3427, %v3428
    %v3430 = vrot.slane %v3429, 2
    %v3431 = vmax.f32 %v3429, %v3430
    %v3432 = vrot.slane %v3431, 1
    %v3433 = vmax.f32 %v3431, %v3432
    %v3434 = vsel %vm2264, %v1633, -inf
    %v3435 = vrot.slane %v3434, 4
    %v3436 = vmax.f32 %v3434, %v3435
    %v3437 = vrot.slane %v3436, 2
    %v3438 = vmax.f32 %v3436, %v3437
    %v3439 = vrot.slane %v3438, 1
    %v3440 = vmax.f32 %v3438, %v3439
    %v3441 = vsel %vm2264, %v1641, -inf
    %v3442 = vrot.slane %v3441, 4
    %v3443 = vmax.f32 %v3441, %v3442
    %v3444 = vrot.slane %v3443, 2
    %v3445 = vmax.f32 %v3443, %v3444
    %v3446 = vrot.slane %v3445, 1
    %v3447 = vmax.f32 %v3445, %v3446
    %v3448 = vsel %vm2264, %v1649, -inf
    %v3449 = vrot.slane %v3448, 4
    %v3450 = vmax.f32 %v3448, %v3449
    %v3451 = vrot.slane %v3450, 2
    %v3452 = vmax.f32 %v3450, %v3451
    %v3453 = vrot.slane %v3452, 1
    %v3454 = vmax.f32 %v3452, %v3453
    %v3455 = vsel %vm2264, %v1648, -inf
    %v3456 = vrot.slane %v3455, 4
    %v3457 = vmax.f32 %v3455, %v3456
    %v3458 = vrot.slane %v3457, 2
    %v3459 = vmax.f32 %v3457, %v3458
    %v3460 = vrot.slane %v3459, 1
    %v3461 = vmax.f32 %v3459, %v3460
    %v3462 = vsel %vm2264, %v1650, -inf
    %v3463 = vrot.slane %v3462, 4
    %v3464 = vmax.f32 %v3462, %v3463
    %v3465 = vrot.slane %v3464, 2
    %v3466 = vmax.f32 %v3464, %v3465
    %v3467 = vrot.slane %v3466, 1
    %v3468 = vmax.f32 %v3466, %v3467
    %v3469 = vsel %vm2264, %v1658, -inf
    %v3470 = vrot.slane %v3469, 4
    %v3471 = vmax.f32 %v3469, %v3470
    %v3472 = vrot.slane %v3471, 2
    %v3473 = vmax.f32 %v3471, %v3472
    %v3474 = vrot.slane %v3473, 1
    %v3475 = vmax.f32 %v3473, %v3474
    %v3476 = vsel %vm2264, %v1666, -inf
    %v3477 = vrot.slane %v3476, 4
    %v3478 = vmax.f32 %v3476, %v3477
    %v3479 = vrot.slane %v3478, 2
    %v3480 = vmax.f32 %v3478, %v3479
    %v3481 = vrot.slane %v3480, 1
    %v3482 = vmax.f32 %v3480, %v3481
    %v3483 = vsel %vm2264, %v1665, -inf
    %v3484 = vrot.slane %v3483, 4
    %v3485 = vmax.f32 %v3483, %v3484
    %v3486 = vrot.slane %v3485, 2
    %v3487 = vmax.f32 %v3485, %v3486
    %v3488 = vrot.slane %v3487, 1
    %v3489 = vmax.f32 %v3487, %v3488
    %v3490 = vsel %vm2264, %v1667, -inf
    %v3491 = vrot.slane %v3490, 4
    %v3492 = vmax.f32 %v3490, %v3491
    %v3493 = vrot.slane %v3492, 2
    %v3494 = vmax.f32 %v3492, %v3493
    %v3495 = vrot.slane %v3494, 1
    %v3496 = vmax.f32 %v3494, %v3495
    %v3497 = vsel %vm2264, %v1675, -inf
    %v3498 = vrot.slane %v3497, 4
    %v3499 = vmax.f32 %v3497, %v3498
    %v3500 = vrot.slane %v3499, 2
    %v3501 = vmax.f32 %v3499, %v3500
    %v3502 = vrot.slane %v3501, 1
    %v3503 = vmax.f32 %v3501, %v3502
    %v3504 = vsel %vm2264, %v1683, -inf
    %v3505 = vrot.slane %v3504, 4
    %v3506 = vmax.f32 %v3504, %v3505
    %v3507 = vrot.slane %v3506, 2
    %v3508 = vmax.f32 %v3506, %v3507
    %v3509 = vrot.slane %v3508, 1
    %v3510 = vmax.f32 %v3508, %v3509
    %v3511 = vsel %vm2264, %v1682, -inf
    %v3512 = vrot.slane %v3511, 4
    %v3513 = vmax.f32 %v3511, %v3512
    %v3514 = vrot.slane %v3513, 2
    %v3515 = vmax.f32 %v3513, %v3514
    %v3516 = vrot.slane %v3515, 1
    %v3517 = vmax.f32 %v3515, %v3516
    %v3518 = vsel %vm2264, %v1684, -inf
    %v3519 = vrot.slane %v3518, 4
    %v3520 = vmax.f32 %v3518, %v3519
    %v3521 = vrot.slane %v3520, 2
    %v3522 = vmax.f32 %v3520, %v3521
    %v3523 = vrot.slane %v3522, 1
    %v3524 = vmax.f32 %v3522, %v3523
    %v3525 = vsel %vm2264, %v1692, -inf
    %v3526 = vrot.slane %v3525, 4
    %v3527 = vmax.f32 %v3525, %v3526
    %v3528 = vrot.slane %v3527, 2
    %v3529 = vmax.f32 %v3527, %v3528
    %v3530 = vrot.slane %v3529, 1
    %v3531 = vmax.f32 %v3529, %v3530
    %v3532 = vsel %vm2264, %v1700, -inf
    %v3533 = vrot.slane %v3532, 4
    %v3534 = vmax.f32 %v3532, %v3533
    %v3535 = vrot.slane %v3534, 2
    %v3536 = vmax.f32 %v3534, %v3535
    %v3537 = vrot.slane %v3536, 1
    %v3538 = vmax.f32 %v3536, %v3537
    %v3539 = vsel %vm2264, %v1699, -inf
    %v3540 = vrot.slane %v3539, 4
    %v3541 = vmax.f32 %v3539, %v3540
    %v3542 = vrot.slane %v3541, 2
    %v3543 = vmax.f32 %v3541, %v3542
    %v3544 = vrot.slane %v3543, 1
    %v3545 = vmax.f32 %v3543, %v3544
    %v3546 = vsel %vm2264, %v1701, -inf
    %v3547 = vrot.slane %v3546, 4
    %v3548 = vmax.f32 %v3546, %v3547
    %v3549 = vrot.slane %v3548, 2
    %v3550 = vmax.f32 %v3548, %v3549
    %v3551 = vrot.slane %v3550, 1
    %v3552 = vmax.f32 %v3550, %v3551
    %v3553 = vsel %vm2264, %v1709, -inf
    %v3554 = vrot.slane %v3553, 4
    %v3555 = vmax.f32 %v3553, %v3554
    %v3556 = vrot.slane %v3555, 2
    %v3557 = vmax.f32 %v3555, %v3556
    %v3558 = vrot.slane %v3557, 1
    %v3559 = vmax.f32 %v3557, %v3558
    %v3560 = vsel %vm2264, %v1717, -inf
    %v3561 = vrot.slane %v3560, 4
    %v3562 = vmax.f32 %v3560, %v3561
    %v3563 = vrot.slane %v3562, 2
    %v3564 = vmax.f32 %v3562, %v3563
    %v3565 = vrot.slane %v3564, 1
    %v3566 = vmax.f32 %v3564, %v3565
    %v3567 = vsel %vm2264, %v1716, -inf
    %v3568 = vrot.slane %v3567, 4
    %v3569 = vmax.f32 %v3567, %v3568
    %v3570 = vrot.slane %v3569, 2
    %v3571 = vmax.f32 %v3569, %v3570
    %v3572 = vrot.slane %v3571, 1
    %v3573 = vmax.f32 %v3571, %v3572
    %v3574 = vsel %vm2264, %v1718, -inf
    %v3575 = vrot.slane %v3574, 4
    %v3576 = vmax.f32 %v3574, %v3575
    %v3577 = vrot.slane %v3576, 2
    %v3578 = vmax.f32 %v3576, %v3577
    %v3579 = vrot.slane %v3578, 1
    %v3580 = vmax.f32 %v3578, %v3579
    %v3581 = vsel %vm2264, %v1726, -inf
    %v3582 = vrot.slane %v3581, 4
    %v3583 = vmax.f32 %v3581, %v3582
    %v3584 = vrot.slane %v3583, 2
    %v3585 = vmax.f32 %v3583, %v3584
    %v3586 = vrot.slane %v3585, 1
    %v3587 = vmax.f32 %v3585, %v3586
    %v3588 = vsel %vm2264, %v1734, -inf
    %v3589 = vrot.slane %v3588, 4
    %v3590 = vmax.f32 %v3588, %v3589
    %v3591 = vrot.slane %v3590, 2
    %v3592 = vmax.f32 %v3590, %v3591
    %v3593 = vrot.slane %v3592, 1
    %v3594 = vmax.f32 %v3592, %v3593
    %v3595 = vsel %vm2264, %v1733, -inf
    %v3596 = vrot.slane %v3595, 4
    %v3597 = vmax.f32 %v3595, %v3596
    %v3598 = vrot.slane %v3597, 2
    %v3599 = vmax.f32 %v3597, %v3598
    %v3600 = vrot.slane %v3599, 1
    %v3601 = vmax.f32 %v3599, %v3600
    %v3602 = vsel %vm2264, %v1735, -inf
    %v3603 = vrot.slane %v3602, 4
    %v3604 = vmax.f32 %v3602, %v3603
    %v3605 = vrot.slane %v3604, 2
    %v3606 = vmax.f32 %v3604, %v3605
    %v3607 = vrot.slane %v3606, 1
    %v3608 = vmax.f32 %v3606, %v3607
    %v3609 = vsel %vm2264, %v1743, -inf
    %v3610 = vrot.slane %v3609, 4
    %v3611 = vmax.f32 %v3609, %v3610
    %v3612 = vrot.slane %v3611, 2
    %v3613 = vmax.f32 %v3611, %v3612
    %v3614 = vrot.slane %v3613, 1
    %v3615 = vmax.f32 %v3613, %v3614
    %v3616 = vsel %vm2264, %v1751, -inf
    %v3617 = vrot.slane %v3616, 4
    %v3618 = vmax.f32 %v3616, %v3617
    %v3619 = vrot.slane %v3618, 2
    %v3620 = vmax.f32 %v3618, %v3619
    %v3621 = vrot.slane %v3620, 1
    %v3622 = vmax.f32 %v3620, %v3621
    %v3623 = vsel %vm2264, %v1750, -inf
    %v3624 = vrot.slane %v3623, 4
    %v3625 = vmax.f32 %v3623, %v3624
    %v3626 = vrot.slane %v3625, 2
    %v3627 = vmax.f32 %v3625, %v3626
    %v3628 = vrot.slane %v3627, 1
    %v3629 = vmax.f32 %v3627, %v3628
    %v3630 = vsel %vm2264, %v1752, -inf
    %v3631 = vrot.slane %v3630, 4
    %v3632 = vmax.f32 %v3630, %v3631
    %v3633 = vrot.slane %v3632, 2
    %v3634 = vmax.f32 %v3632, %v3633
    %v3635 = vrot.slane %v3634, 1
    %v3636 = vmax.f32 %v3634, %v3635
    %v3637 = vsel %vm2264, %v1760, -inf
    %v3638 = vrot.slane %v3637, 4
    %v3639 = vmax.f32 %v3637, %v3638
    %v3640 = vrot.slane %v3639, 2
    %v3641 = vmax.f32 %v3639, %v3640
    %v3642 = vrot.slane %v3641, 1
    %v3643 = vmax.f32 %v3641, %v3642
    %v3644 = vsel %vm2264, %v1768, -inf
    %v3645 = vrot.slane %v3644, 4
    %v3646 = vmax.f32 %v3644, %v3645
    %v3647 = vrot.slane %v3646, 2
    %v3648 = vmax.f32 %v3646, %v3647
    %v3649 = vrot.slane %v3648, 1
    %v3650 = vmax.f32 %v3648, %v3649
    %v3651 = vsel %vm2264, %v1767, -inf
    %v3652 = vrot.slane %v3651, 4
    %v3653 = vmax.f32 %v3651, %v3652
    %v3654 = vrot.slane %v3653, 2
    %v3655 = vmax.f32 %v3653, %v3654
    %v3656 = vrot.slane %v3655, 1
    %v3657 = vmax.f32 %v3655, %v3656
    %v3658 = vsel %vm2264, %v1769, -inf
    %v3659 = vrot.slane %v3658, 4
    %v3660 = vmax.f32 %v3658, %v3659
    %v3661 = vrot.slane %v3660, 2
    %v3662 = vmax.f32 %v3660, %v3661
    %v3663 = vrot.slane %v3662, 1
    %v3664 = vmax.f32 %v3662, %v3663
    %v3665 = vsel %vm2264, %v1777, -inf
    %v3666 = vrot.slane %v3665, 4
    %v3667 = vmax.f32 %v3665, %v3666
    %v3668 = vrot.slane %v3667, 2
    %v3669 = vmax.f32 %v3667, %v3668
    %v3670 = vrot.slane %v3669, 1
    %v3671 = vmax.f32 %v3669, %v3670
    %v3672 = vsel %vm2264, %v1785, -inf
    %v3673 = vrot.slane %v3672, 4
    %v3674 = vmax.f32 %v3672, %v3673
    %v3675 = vrot.slane %v3674, 2
    %v3676 = vmax.f32 %v3674, %v3675
    %v3677 = vrot.slane %v3676, 1
    %v3678 = vmax.f32 %v3676, %v3677
    %v3679 = vsel %vm2264, %v1784, -inf
    %v3680 = vrot.slane %v3679, 4
    %v3681 = vmax.f32 %v3679, %v3680
    %v3682 = vrot.slane %v3681, 2
    %v3683 = vmax.f32 %v3681, %v3682
    %v3684 = vrot.slane %v3683, 1
    %v3685 = vmax.f32 %v3683, %v3684
    %v3686 = vsel %vm2264, %v1786, -inf
    %v3687 = vrot.slane %v3686, 4
    %v3688 = vmax.f32 %v3686, %v3687
    %v3689 = vrot.slane %v3688, 2
    %v3690 = vmax.f32 %v3688, %v3689
    %v3691 = vrot.slane %v3690, 1
    %v3692 = vmax.f32 %v3690, %v3691
    %v3693 = vsel %vm2264, %v1794, -inf
    %v3694 = vrot.slane %v3693, 4
    %v3695 = vmax.f32 %v3693, %v3694
    %v3696 = vrot.slane %v3695, 2
    %v3697 = vmax.f32 %v3695, %v3696
    %v3698 = vrot.slane %v3697, 1
    %v3699 = vmax.f32 %v3697, %v3698
    %v3700 = vsel %vm2264, %v1802, -inf
    %v3701 = vrot.slane %v3700, 4
    %v3702 = vmax.f32 %v3700, %v3701
    %v3703 = vrot.slane %v3702, 2
    %v3704 = vmax.f32 %v3702, %v3703
    %v3705 = vrot.slane %v3704, 1
    %v3706 = vmax.f32 %v3704, %v3705
    %v3707 = vsel %vm2264, %v1801, -inf
    %v3708 = vrot.slane %v3707, 4
    %v3709 = vmax.f32 %v3707, %v3708
    %v3710 = vrot.slane %v3709, 2
    %v3711 = vmax.f32 %v3709, %v3710
    %v3712 = vrot.slane %v3711, 1
    %v3713 = vmax.f32 %v3711, %v3712
    %v3714 = vsel %vm2264, %v1803, -inf
    %v3715 = vrot.slane %v3714, 4
    %v3716 = vmax.f32 %v3714, %v3715
    %v3717 = vrot.slane %v3716, 2
    %v3718 = vmax.f32 %v3716, %v3717
    %v3719 = vrot.slane %v3718, 1
    %v3720 = vmax.f32 %v3718, %v3719
    %v3721 = vsel %vm2264, %v1811, -inf
    %v3722 = vrot.slane %v3721, 4
    %v3723 = vmax.f32 %v3721, %v3722
    %v3724 = vrot.slane %v3723, 2
    %v3725 = vmax.f32 %v3723, %v3724
    %v3726 = vrot.slane %v3725, 1
    %v3727 = vmax.f32 %v3725, %v3726
    %v3728 = vsel %vm2264, %v1819, -inf
    %v3729 = vrot.slane %v3728, 4
    %v3730 = vmax.f32 %v3728, %v3729
    %v3731 = vrot.slane %v3730, 2
    %v3732 = vmax.f32 %v3730, %v3731
    %v3733 = vrot.slane %v3732, 1
    %v3734 = vmax.f32 %v3732, %v3733
    %v3735 = vsel %vm2264, %v1818, -inf
    %v3736 = vrot.slane %v3735, 4
    %v3737 = vmax.f32 %v3735, %v3736
    %v3738 = vrot.slane %v3737, 2
    %v3739 = vmax.f32 %v3737, %v3738
    %v3740 = vrot.slane %v3739, 1
    %v3741 = vmax.f32 %v3739, %v3740
    %v3742 = vsel %vm2264, %v1820, -inf
    %v3743 = vrot.slane %v3742, 4
    %v3744 = vmax.f32 %v3742, %v3743
    %v3745 = vrot.slane %v3744, 2
    %v3746 = vmax.f32 %v3744, %v3745
    %v3747 = vrot.slane %v3746, 1
    %v3748 = vmax.f32 %v3746, %v3747
    %v3749 = vsel %vm2264, %v1828, -inf
    %v3750 = vrot.slane %v3749, 4
    %v3751 = vmax.f32 %v3749, %v3750
    %v3752 = vrot.slane %v3751, 2
    %v3753 = vmax.f32 %v3751, %v3752
    %v3754 = vrot.slane %v3753, 1
    %v3755 = vmax.f32 %v3753, %v3754
    %v3756 = vsel %vm2264, %v1836, -inf
    %v3757 = vrot.slane %v3756, 4
    %v3758 = vmax.f32 %v3756, %v3757
    %v3759 = vrot.slane %v3758, 2
    %v3760 = vmax.f32 %v3758, %v3759
    %v3761 = vrot.slane %v3760, 1
    %v3762 = vmax.f32 %v3760, %v3761
    %v3763 = vsel %vm2264, %v1835, -inf
    %v3764 = vrot.slane %v3763, 4
    %v3765 = vmax.f32 %v3763, %v3764
    %v3766 = vrot.slane %v3765, 2
    %v3767 = vmax.f32 %v3765, %v3766
    %v3768 = vrot.slane %v3767, 1
    %v3769 = vmax.f32 %v3767, %v3768
    %v3770 = vsel %vm2264, %v1837, -inf
    %v3771 = vrot.slane %v3770, 4
    %v3772 = vmax.f32 %v3770, %v3771
    %v3773 = vrot.slane %v3772, 2
    %v3774 = vmax.f32 %v3772, %v3773
    %v3775 = vrot.slane %v3774, 1
    %v3776 = vmax.f32 %v3774, %v3775
    %v3777 = vsel %vm2264, %v1845, -inf
    %v3778 = vrot.slane %v3777, 4
    %v3779 = vmax.f32 %v3777, %v3778
    %v3780 = vrot.slane %v3779, 2
    %v3781 = vmax.f32 %v3779, %v3780
    %v3782 = vrot.slane %v3781, 1
    %v3783 = vmax.f32 %v3781, %v3782
    %v3784 = vsel %vm2264, %v1853, -inf
    %v3785 = vrot.slane %v3784, 4
    %v3786 = vmax.f32 %v3784, %v3785
    %v3787 = vrot.slane %v3786, 2
    %v3788 = vmax.f32 %v3786, %v3787
    %v3789 = vrot.slane %v3788, 1
    %v3790 = vmax.f32 %v3788, %v3789
    %v3791 = vsel %vm2264, %v1852, -inf
    %v3792 = vrot.slane %v3791, 4
    %v3793 = vmax.f32 %v3791, %v3792
    %v3794 = vrot.slane %v3793, 2
    %v3795 = vmax.f32 %v3793, %v3794
    %v3796 = vrot.slane %v3795, 1
    %v3797 = vmax.f32 %v3795, %v3796
    %v3798 = vsel %vm2264, %v1854, -inf
    %v3799 = vrot.slane %v3798, 4
    %v3800 = vmax.f32 %v3798, %v3799
    %v3801 = vrot.slane %v3800, 2
    %v3802 = vmax.f32 %v3800, %v3801
    %v3803 = vrot.slane %v3802, 1
    %v3804 = vmax.f32 %v3802, %v3803
    %v3805 = vsel %vm2264, %v1862, -inf
    %v3806 = vrot.slane %v3805, 4
    %v3807 = vmax.f32 %v3805, %v3806
    %v3808 = vrot.slane %v3807, 2
    %v3809 = vmax.f32 %v3807, %v3808
    %v3810 = vrot.slane %v3809, 1
    %v3811 = vmax.f32 %v3809, %v3810
    %v3812 = vsel %vm2264, %v1870, -inf
    %v3813 = vrot.slane %v3812, 4
    %v3814 = vmax.f32 %v3812, %v3813
    %v3815 = vrot.slane %v3814, 2
    %v3816 = vmax.f32 %v3814, %v3815
    %v3817 = vrot.slane %v3816, 1
    %v3818 = vmax.f32 %v3816, %v3817
    %v3819 = vsel %vm2264, %v1869, -inf
    %v3820 = vrot.slane %v3819, 4
    %v3821 = vmax.f32 %v3819, %v3820
    %v3822 = vrot.slane %v3821, 2
    %v3823 = vmax.f32 %v3821, %v3822
    %v3824 = vrot.slane %v3823, 1
    %v3825 = vmax.f32 %v3823, %v3824
    %v3826 = vsel %vm2264, %v1871, -inf
    %v3827 = vrot.slane %v3826, 4
    %v3828 = vmax.f32 %v3826, %v3827
    %v3829 = vrot.slane %v3828, 2
    %v3830 = vmax.f32 %v3828, %v3829
    %v3831 = vrot.slane %v3830, 1
    %v3832 = vmax.f32 %v3830, %v3831
    %v3833 = vsel %vm2264, %v1879, -inf
    %v3834 = vrot.slane %v3833, 4
    %v3835 = vmax.f32 %v3833, %v3834
    %v3836 = vrot.slane %v3835, 2
    %v3837 = vmax.f32 %v3835, %v3836
    %v3838 = vrot.slane %v3837, 1
    %v3839 = vmax.f32 %v3837, %v3838
    %v3840 = vsel %vm2264, %v1887, -inf
    %v3841 = vrot.slane %v3840, 4
    %v3842 = vmax.f32 %v3840, %v3841
    %v3843 = vrot.slane %v3842, 2
    %v3844 = vmax.f32 %v3842, %v3843
    %v3845 = vrot.slane %v3844, 1
    %v3846 = vmax.f32 %v3844, %v3845
    %v3847 = vsel %vm2264, %v1886, -inf
    %v3848 = vrot.slane %v3847, 4
    %v3849 = vmax.f32 %v3847, %v3848
    %v3850 = vrot.slane %v3849, 2
    %v3851 = vmax.f32 %v3849, %v3850
    %v3852 = vrot.slane %v3851, 1
    %v3853 = vmax.f32 %v3851, %v3852
    %v3854 = vsel %vm2264, %v1888, -inf
    %v3855 = vrot.slane %v3854, 4
    %v3856 = vmax.f32 %v3854, %v3855
    %v3857 = vrot.slane %v3856, 2
    %v3858 = vmax.f32 %v3856, %v3857
    %v3859 = vrot.slane %v3858, 1
    %v3860 = vmax.f32 %v3858, %v3859
    %v3861 = vsel %vm2264, %v1896, -inf
    %v3862 = vrot.slane %v3861, 4
    %v3863 = vmax.f32 %v3861, %v3862
    %v3864 = vrot.slane %v3863, 2
    %v3865 = vmax.f32 %v3863, %v3864
    %v3866 = vrot.slane %v3865, 1
    %v3867 = vmax.f32 %v3865, %v3866
    %v3868 = vsel %vm2264, %v1904, -inf
    %v3869 = vrot.slane %v3868, 4
    %v3870 = vmax.f32 %v3868, %v3869
    %v3871 = vrot.slane %v3870, 2
    %v3872 = vmax.f32 %v3870, %v3871
    %v3873 = vrot.slane %v3872, 1
    %v3874 = vmax.f32 %v3872, %v3873
    %v3875 = vsel %vm2264, %v1903, -inf
    %v3876 = vrot.slane %v3875, 4
    %v3877 = vmax.f32 %v3875, %v3876
    %v3878 = vrot.slane %v3877, 2
    %v3879 = vmax.f32 %v3877, %v3878
    %v3880 = vrot.slane %v3879, 1
    %v3881 = vmax.f32 %v3879, %v3880
    %v3882 = vsel %vm2264, %v1905, -inf
    %v3883 = vrot.slane %v3882, 4
    %v3884 = vmax.f32 %v3882, %v3883
    %v3885 = vrot.slane %v3884, 2
    %v3886 = vmax.f32 %v3884, %v3885
    %v3887 = vrot.slane %v3886, 1
    %v3888 = vmax.f32 %v3886, %v3887
    %v3889 = vsel %vm2264, %v1913, -inf
    %v3890 = vrot.slane %v3889, 4
    %v3891 = vmax.f32 %v3889, %v3890
    %v3892 = vrot.slane %v3891, 2
    %v3893 = vmax.f32 %v3891, %v3892
    %v3894 = vrot.slane %v3893, 1
    %v3895 = vmax.f32 %v3893, %v3894
    %v3896 = vsel %vm2264, %v1921, -inf
    %v3897 = vrot.slane %v3896, 4
    %v3898 = vmax.f32 %v3896, %v3897
    %v3899 = vrot.slane %v3898, 2
    %v3900 = vmax.f32 %v3898, %v3899
    %v3901 = vrot.slane %v3900, 1
    %v3902 = vmax.f32 %v3900, %v3901
    %v3903 = vsel %vm2264, %v1920, -inf
    %v3904 = vrot.slane %v3903, 4
    %v3905 = vmax.f32 %v3903, %v3904
    %v3906 = vrot.slane %v3905, 2
    %v3907 = vmax.f32 %v3905, %v3906
    %v3908 = vrot.slane %v3907, 1
    %v3909 = vmax.f32 %v3907, %v3908
    %v3910 = vsel %vm2264, %v1922, -inf
    %v3911 = vrot.slane %v3910, 4
    %v3912 = vmax.f32 %v3910, %v3911
    %v3913 = vrot.slane %v3912, 2
    %v3914 = vmax.f32 %v3912, %v3913
    %v3915 = vrot.slane %v3914, 1
    %v3916 = vmax.f32 %v3914, %v3915
    %v3917 = vsel %vm2264, %v1930, -inf
    %v3918 = vrot.slane %v3917, 4
    %v3919 = vmax.f32 %v3917, %v3918
    %v3920 = vrot.slane %v3919, 2
    %v3921 = vmax.f32 %v3919, %v3920
    %v3922 = vrot.slane %v3921, 1
    %v3923 = vmax.f32 %v3921, %v3922
    %v3924 = vsel %vm2264, %v1938, -inf
    %v3925 = vrot.slane %v3924, 4
    %v3926 = vmax.f32 %v3924, %v3925
    %v3927 = vrot.slane %v3926, 2
    %v3928 = vmax.f32 %v3926, %v3927
    %v3929 = vrot.slane %v3928, 1
    %v3930 = vmax.f32 %v3928, %v3929
    %v3931 = vsel %vm2264, %v1937, -inf
    %v3932 = vrot.slane %v3931, 4
    %v3933 = vmax.f32 %v3931, %v3932
    %v3934 = vrot.slane %v3933, 2
    %v3935 = vmax.f32 %v3933, %v3934
    %v3936 = vrot.slane %v3935, 1
    %v3937 = vmax.f32 %v3935, %v3936
    %v3938 = vsel %vm2264, %v1939, -inf
    %v3939 = vrot.slane %v3938, 4
    %v3940 = vmax.f32 %v3938, %v3939
    %v3941 = vrot.slane %v3940, 2
    %v3942 = vmax.f32 %v3940, %v3941
    %v3943 = vrot.slane %v3942, 1
    %v3944 = vmax.f32 %v3942, %v3943
    %v3945 = vsel %vm2264, %v1947, -inf
    %v3946 = vrot.slane %v3945, 4
    %v3947 = vmax.f32 %v3945, %v3946
    %v3948 = vrot.slane %v3947, 2
    %v3949 = vmax.f32 %v3947, %v3948
    %v3950 = vrot.slane %v3949, 1
    %v3951 = vmax.f32 %v3949, %v3950
    %v3952 = vsel %vm2264, %v1955, -inf
    %v3953 = vrot.slane %v3952, 4
    %v3954 = vmax.f32 %v3952, %v3953
    %v3955 = vrot.slane %v3954, 2
    %v3956 = vmax.f32 %v3954, %v3955
    %v3957 = vrot.slane %v3956, 1
    %v3958 = vmax.f32 %v3956, %v3957
    %v3959 = vsel %vm2264, %v1954, -inf
    %v3960 = vrot.slane %v3959, 4
    %v3961 = vmax.f32 %v3959, %v3960
    %v3962 = vrot.slane %v3961, 2
    %v3963 = vmax.f32 %v3961, %v3962
    %v3964 = vrot.slane %v3963, 1
    %v3965 = vmax.f32 %v3963, %v3964
    %v3966 = vsel %vm2264, %v1956, -inf
    %v3967 = vrot.slane %v3966, 4
    %v3968 = vmax.f32 %v3966, %v3967
    %v3969 = vrot.slane %v3968, 2
    %v3970 = vmax.f32 %v3968, %v3969
    %v3971 = vrot.slane %v3970, 1
    %v3972 = vmax.f32 %v3970, %v3971
    %v3973 = vsel %vm2264, %v1964, -inf
    %v3974 = vrot.slane %v3973, 4
    %v3975 = vmax.f32 %v3973, %v3974
    %v3976 = vrot.slane %v3975, 2
    %v3977 = vmax.f32 %v3975, %v3976
    %v3978 = vrot.slane %v3977, 1
    %v3979 = vmax.f32 %v3977, %v3978
    %v3980 = vsel %vm2264, %v1972, -inf
    %v3981 = vrot.slane %v3980, 4
    %v3982 = vmax.f32 %v3980, %v3981
    %v3983 = vrot.slane %v3982, 2
    %v3984 = vmax.f32 %v3982, %v3983
    %v3985 = vrot.slane %v3984, 1
    %v3986 = vmax.f32 %v3984, %v3985
    %v3987 = vsel %vm2264, %v1971, -inf
    %v3988 = vrot.slane %v3987, 4
    %v3989 = vmax.f32 %v3987, %v3988
    %v3990 = vrot.slane %v3989, 2
    %v3991 = vmax.f32 %v3989, %v3990
    %v3992 = vrot.slane %v3991, 1
    %v3993 = vmax.f32 %v3991, %v3992
    %v3994 = vsel %vm2264, %v1973, -inf
    %v3995 = vrot.slane %v3994, 4
    %v3996 = vmax.f32 %v3994, %v3995
    %v3997 = vrot.slane %v3996, 2
    %v3998 = vmax.f32 %v3996, %v3997
    %v3999 = vrot.slane %v3998, 1
    %v4000 = vmax.f32 %v3998, %v3999
    %v4001 = vsel %vm2264, %v1981, -inf
    %v4002 = vrot.slane %v4001, 4
    %v4003 = vmax.f32 %v4001, %v4002
    %v4004 = vrot.slane %v4003, 2
    %v4005 = vmax.f32 %v4003, %v4004
    %v4006 = vrot.slane %v4005, 1
    %v4007 = vmax.f32 %v4005, %v4006
    %v4008 = vsel %vm2264, %v1989, -inf
    %v4009 = vrot.slane %v4008, 4
    %v4010 = vmax.f32 %v4008, %v4009
    %v4011 = vrot.slane %v4010, 2
    %v4012 = vmax.f32 %v4010, %v4011
    %v4013 = vrot.slane %v4012, 1
    %v4014 = vmax.f32 %v4012, %v4013
    %v4015 = vsel %vm2264, %v1988, -inf
    %v4016 = vrot.slane %v4015, 4
    %v4017 = vmax.f32 %v4015, %v4016
    %v4018 = vrot.slane %v4017, 2
    %v4019 = vmax.f32 %v4017, %v4018
    %v4020 = vrot.slane %v4019, 1
    %v4021 = vmax.f32 %v4019, %v4020
    %v4022 = vsel %vm2264, %v1990, -inf
    %v4023 = vrot.slane %v4022, 4
    %v4024 = vmax.f32 %v4022, %v4023
    %v4025 = vrot.slane %v4024, 2
    %v4026 = vmax.f32 %v4024, %v4025
    %v4027 = vrot.slane %v4026, 1
    %v4028 = vmax.f32 %v4026, %v4027
    %v4029 = vsel %vm2264, %v1998, -inf
    %v4030 = vrot.slane %v4029, 4
    %v4031 = vmax.f32 %v4029, %v4030
    %v4032 = vrot.slane %v4031, 2
    %v4033 = vmax.f32 %v4031, %v4032
    %v4034 = vrot.slane %v4033, 1
    %v4035 = vmax.f32 %v4033, %v4034
    %v4036 = vsel %vm2264, %v2006, -inf
    %v4037 = vrot.slane %v4036, 4
    %v4038 = vmax.f32 %v4036, %v4037
    %v4039 = vrot.slane %v4038, 2
    %v4040 = vmax.f32 %v4038, %v4039
    %v4041 = vrot.slane %v4040, 1
    %v4042 = vmax.f32 %v4040, %v4041
    %v4043 = vsel %vm2264, %v2005, -inf
    %v4044 = vrot.slane %v4043, 4
    %v4045 = vmax.f32 %v4043, %v4044
    %v4046 = vrot.slane %v4045, 2
    %v4047 = vmax.f32 %v4045, %v4046
    %v4048 = vrot.slane %v4047, 1
    %v4049 = vmax.f32 %v4047, %v4048
    %v4050 = vsel %vm2264, %v2007, -inf
    %v4051 = vrot.slane %v4050, 4
    %v4052 = vmax.f32 %v4050, %v4051
    %v4053 = vrot.slane %v4052, 2
    %v4054 = vmax.f32 %v4052, %v4053
    %v4055 = vrot.slane %v4054, 1
    %v4056 = vmax.f32 %v4054, %v4055
    %vm4057 = vcmask 523264
    %v4058 = vsel %vm4057, %v2271, -inf
    %v4059 = vsel %vm4057, %v2327, -inf
    %v4060 = vmax.f32 %v4058, %v4059
    %v4061 = vsel %vm4057, %v2278, -inf
    %v4062 = vsel %vm4057, %v2334, -inf
    %v4063 = vmax.f32 %v4061, %v4062
    %v4064 = vsel %vm4057, %v2285, -inf
    %v4065 = vsel %vm4057, %v2341, -inf
    %v4066 = vmax.f32 %v4064, %v4065
    %v4067 = vsel %vm4057, %v2292, -inf
    %v4068 = vsel %vm4057, %v2348, -inf
    %v4069 = vmax.f32 %v4067, %v4068
    %v4070 = vsel %vm4057, %v2299, -inf
    %v4071 = vsel %vm4057, %v2355, -inf
    %v4072 = vmax.f32 %v4070, %v4071
    %v4073 = vsel %vm4057, %v2306, -inf
    %v4074 = vsel %vm4057, %v2362, -inf
    %v4075 = vmax.f32 %v4073, %v4074
    %v4076 = vsel %vm4057, %v2313, -inf
    %v4077 = vsel %vm4057, %v2369, -inf
    %v4078 = vmax.f32 %v4076, %v4077
    %v4079 = vsel %vm4057, %v2320, -inf
    %v4080 = vsel %vm4057, %v2376, -inf
    %v4081 = vmax.f32 %v4079, %v4080
    %v4082 = vsel %vm4057, %v2383, -inf
    %v4083 = vsel %vm4057, %v2439, -inf
    %v4084 = vmax.f32 %v4082, %v4083
    %v4085 = vsel %vm4057, %v2390, -inf
    %v4086 = vsel %vm4057, %v2446, -inf
    %v4087 = vmax.f32 %v4085, %v4086
    %v4088 = vsel %vm4057, %v2397, -inf
    %v4089 = vsel %vm4057, %v2453, -inf
    %v4090 = vmax.f32 %v4088, %v4089
    %v4091 = vsel %vm4057, %v2404, -inf
    %v4092 = vsel %vm4057, %v2460, -inf
    %v4093 = vmax.f32 %v4091, %v4092
    %v4094 = vsel %vm4057, %v2411, -inf
    %v4095 = vsel %vm4057, %v2467, -inf
    %v4096 = vmax.f32 %v4094, %v4095
    %v4097 = vsel %vm4057, %v2418, -inf
    %v4098 = vsel %vm4057, %v2474, -inf
    %v4099 = vmax.f32 %v4097, %v4098
    %v4100 = vsel %vm4057, %v2425, -inf
    %v4101 = vsel %vm4057, %v2481, -inf
    %v4102 = vmax.f32 %v4100, %v4101
    %v4103 = vsel %vm4057, %v2432, -inf
    %v4104 = vsel %vm4057, %v2488, -inf
    %v4105 = vmax.f32 %v4103, %v4104
    %v4106 = vsel %vm4057, %v2495, -inf
    %v4107 = vsel %vm4057, %v2551, -inf
    %v4108 = vmax.f32 %v4106, %v4107
    %v4109 = vsel %vm4057, %v2502, -inf
    %v4110 = vsel %vm4057, %v2558, -inf
    %v4111 = vmax.f32 %v4109, %v4110
    %v4112 = vsel %vm4057, %v2509, -inf
    %v4113 = vsel %vm4057, %v2565, -inf
    %v4114 = vmax.f32 %v4112, %v4113
    %v4115 = vsel %vm4057, %v2516, -inf
    %v4116 = vsel %vm4057, %v2572, -inf
    %v4117 = vmax.f32 %v4115, %v4116
    %v4118 = vsel %vm4057, %v2523, -inf
    %v4119 = vsel %vm4057, %v2579, -inf
    %v4120 = vmax.f32 %v4118, %v4119
    %v4121 = vsel %vm4057, %v2530, -inf
    %v4122 = vsel %vm4057, %v2586, -inf
    %v4123 = vmax.f32 %v4121, %v4122
    %v4124 = vsel %vm4057, %v2537, -inf
    %v4125 = vsel %vm4057, %v2593, -inf
    %v4126 = vmax.f32 %v4124, %v4125
    %v4127 = vsel %vm4057, %v2544, -inf
    %v4128 = vsel %vm4057, %v2600, -inf
    %v4129 = vmax.f32 %v4127, %v4128
    %v4130 = vsel %vm4057, %v2607, -inf
    %v4131 = vsel %vm4057, %v2663, -inf
    %v4132 = vmax.f32 %v4130, %v4131
    %v4133 = vsel %vm4057, %v2614, -inf
    %v4134 = vsel %vm4057, %v2670, -inf
    %v4135 = vmax.f32 %v4133, %v4134
    %v4136 = vsel %vm4057, %v2621, -inf
    %v4137 = vsel %vm4057, %v2677, -inf
    %v4138 = vmax.f32 %v4136, %v4137
    %v4139 = vsel %vm4057, %v2628, -inf
    %v4140 = vsel %vm4057, %v2684, -inf
    %v4141 = vmax.f32 %v4139, %v4140
    %v4142 = vsel %vm4057, %v2635, -inf
    %v4143 = vsel %vm4057, %v2691, -inf
    %v4144 = vmax.f32 %v4142, %v4143
    %v4145 = vsel %vm4057, %v2642, -inf
    %v4146 = vsel %vm4057, %v2698, -inf
    %v4147 = vmax.f32 %v4145, %v4146
    %v4148 = vsel %vm4057, %v2649, -inf
    %v4149 = vsel %vm4057, %v2705, -inf
    %v4150 = vmax.f32 %v4148, %v4149
    %v4151 = vsel %vm4057, %v2656, -inf
    %v4152 = vsel %vm4057, %v2712, -inf
    %v4153 = vmax.f32 %v4151, %v4152
    %v4154 = vsel %vm4057, %v2719, -inf
    %v4155 = vsel %vm4057, %v2775, -inf
    %v4156 = vmax.f32 %v4154, %v4155
    %v4157 = vsel %vm4057, %v2726, -inf
    %v4158 = vsel %vm4057, %v2782, -inf
    %v4159 = vmax.f32 %v4157, %v4158
    %v4160 = vsel %vm4057, %v2733, -inf
    %v4161 = vsel %vm4057, %v2789, -inf
    %v4162 = vmax.f32 %v4160, %v4161
    %v4163 = vsel %vm4057, %v2740, -inf
    %v4164 = vsel %vm4057, %v2796, -inf
    %v4165 = vmax.f32 %v4163, %v4164
    %v4166 = vsel %vm4057, %v2747, -inf
    %v4167 = vsel %vm4057, %v2803, -inf
    %v4168 = vmax.f32 %v4166, %v4167
    %v4169 = vsel %vm4057, %v2754, -inf
    %v4170 = vsel %vm4057, %v2810, -inf
    %v4171 = vmax.f32 %v4169, %v4170
    %v4172 = vsel %vm4057, %v2761, -inf
    %v4173 = vsel %vm4057, %v2817, -inf
    %v4174 = vmax.f32 %v4172, %v4173
    %v4175 = vsel %vm4057, %v2768, -inf
    %v4176 = vsel %vm4057, %v2824, -inf
    %v4177 = vmax.f32 %v4175, %v4176
    %v4178 = vsel %vm4057, %v2831, -inf
    %v4179 = vsel %vm4057, %v2887, -inf
    %v4180 = vmax.f32 %v4178, %v4179
    %v4181 = vsel %vm4057, %v2838, -inf
    %v4182 = vsel %vm4057, %v2894, -inf
    %v4183 = vmax.f32 %v4181, %v4182
    %v4184 = vsel %vm4057, %v2845, -inf
    %v4185 = vsel %vm4057, %v2901, -inf
    %v4186 = vmax.f32 %v4184, %v4185
    %v4187 = vsel %vm4057, %v2852, -inf
    %v4188 = vsel %vm4057, %v2908, -inf
    %v4189 = vmax.f32 %v4187, %v4188
    %v4190 = vsel %vm4057, %v2859, -inf
    %v4191 = vsel %vm4057, %v2915, -inf
    %v4192 = vmax.f32 %v4190, %v4191
    %v4193 = vsel %vm4057, %v2866, -inf
    %v4194 = vsel %vm4057, %v2922, -inf
    %v4195 = vmax.f32 %v4193, %v4194
    %v4196 = vsel %vm4057, %v2873, -inf
    %v4197 = vsel %vm4057, %v2929, -inf
    %v4198 = vmax.f32 %v4196, %v4197
    %v4199 = vsel %vm4057, %v2880, -inf
    %v4200 = vsel %vm4057, %v2936, -inf
    %v4201 = vmax.f32 %v4199, %v4200
    %v4202 = vsel %vm4057, %v2943, -inf
    %v4203 = vsel %vm4057, %v2999, -inf
    %v4204 = vmax.f32 %v4202, %v4203
    %v4205 = vsel %vm4057, %v2950, -inf
    %v4206 = vsel %vm4057, %v3006, -inf
    %v4207 = vmax.f32 %v4205, %v4206
    %v4208 = vsel %vm4057, %v2957, -inf
    %v4209 = vsel %vm4057, %v3013, -inf
    %v4210 = vmax.f32 %v4208, %v4209
    %v4211 = vsel %vm4057, %v2964, -inf
    %v4212 = vsel %vm4057, %v3020, -inf
    %v4213 = vmax.f32 %v4211, %v4212
    %v4214 = vsel %vm4057, %v2971, -inf
    %v4215 = vsel %vm4057, %v3027, -inf
    %v4216 = vmax.f32 %v4214, %v4215
    %v4217 = vsel %vm4057, %v2978, -inf
    %v4218 = vsel %vm4057, %v3034, -inf
    %v4219 = vmax.f32 %v4217, %v4218
    %v4220 = vsel %vm4057, %v2985, -inf
    %v4221 = vsel %vm4057, %v3041, -inf
    %v4222 = vmax.f32 %v4220, %v4221
    %v4223 = vsel %vm4057, %v2992, -inf
    %v4224 = vsel %vm4057, %v3048, -inf
    %v4225 = vmax.f32 %v4223, %v4224
    %v4226 = vsel %vm4057, %v3055, -inf
    %v4227 = vsel %vm4057, %v3111, -inf
    %v4228 = vmax.f32 %v4226, %v4227
    %v4229 = vsel %vm4057, %v3062, -inf
    %v4230 = vsel %vm4057, %v3118, -inf
    %v4231 = vmax.f32 %v4229, %v4230
    %v4232 = vsel %vm4057, %v3069, -inf
    %v4233 = vsel %vm4057, %v3125, -inf
    %v4234 = vmax.f32 %v4232, %v4233
    %v4235 = vsel %vm4057, %v3076, -inf
    %v4236 = vsel %vm4057, %v3132, -inf
    %v4237 = vmax.f32 %v4235, %v4236
    %v4238 = vsel %vm4057, %v3083, -inf
    %v4239 = vsel %vm4057, %v3139, -inf
    %v4240 = vmax.f32 %v4238, %v4239
    %v4241 = vsel %vm4057, %v3090, -inf
    %v4242 = vsel %vm4057, %v3146, -inf
    %v4243 = vmax.f32 %v4241, %v4242
    %v4244 = vsel %vm4057, %v3097, -inf
    %v4245 = vsel %vm4057, %v3153, -inf
    %v4246 = vmax.f32 %v4244, %v4245
    %v4247 = vsel %vm4057, %v3104, -inf
    %v4248 = vsel %vm4057, %v3160, -inf
    %v4249 = vmax.f32 %v4247, %v4248
    %v4250 = vsel %vm4057, %v3167, -inf
    %v4251 = vsel %vm4057, %v3223, -inf
    %v4252 = vmax.f32 %v4250, %v4251
    %v4253 = vsel %vm4057, %v3174, -inf
    %v4254 = vsel %vm4057, %v3230, -inf
    %v4255 = vmax.f32 %v4253, %v4254
    %v4256 = vsel %vm4057, %v3181, -inf
    %v4257 = vsel %vm4057, %v3237, -inf
    %v4258 = vmax.f32 %v4256, %v4257
    %v4259 = vsel %vm4057, %v3188, -inf
    %v4260 = vsel %vm4057, %v3244, -inf
    %v4261 = vmax.f32 %v4259, %v4260
    %v4262 = vsel %vm4057, %v3195, -inf
    %v4263 = vsel %vm4057, %v3251, -inf
    %v4264 = vmax.f32 %v4262, %v4263
    %v4265 = vsel %vm4057, %v3202, -inf
    %v4266 = vsel %vm4057, %v3258, -inf
    %v4267 = vmax.f32 %v4265, %v4266
    %v4268 = vsel %vm4057, %v3209, -inf
    %v4269 = vsel %vm4057, %v3265, -inf
    %v4270 = vmax.f32 %v4268, %v4269
    %v4271 = vsel %vm4057, %v3216, -inf
    %v4272 = vsel %vm4057, %v3272, -inf
    %v4273 = vmax.f32 %v4271, %v4272
    %v4274 = vsel %vm4057, %v3279, -inf
    %v4275 = vsel %vm4057, %v3335, -inf
    %v4276 = vmax.f32 %v4274, %v4275
    %v4277 = vsel %vm4057, %v3286, -inf
    %v4278 = vsel %vm4057, %v3342, -inf
    %v4279 = vmax.f32 %v4277, %v4278
    %v4280 = vsel %vm4057, %v3293, -inf
    %v4281 = vsel %vm4057, %v3349, -inf
    %v4282 = vmax.f32 %v4280, %v4281
    %v4283 = vsel %vm4057, %v3300, -inf
    %v4284 = vsel %vm4057, %v3356, -inf
    %v4285 = vmax.f32 %v4283, %v4284
    %v4286 = vsel %vm4057, %v3307, -inf
    %v4287 = vsel %vm4057, %v3363, -inf
    %v4288 = vmax.f32 %v4286, %v4287
    %v4289 = vsel %vm4057, %v3314, -inf
    %v4290 = vsel %vm4057, %v3370, -inf
    %v4291 = vmax.f32 %v4289, %v4290
    %v4292 = vsel %vm4057, %v3321, -inf
    %v4293 = vsel %vm4057, %v3377, -inf
    %v4294 = vmax.f32 %v4292, %v4293
    %v4295 = vsel %vm4057, %v3328, -inf
    %v4296 = vsel %vm4057, %v3384, -inf
    %v4297 = vmax.f32 %v4295, %v4296
    %v4298 = vsel %vm4057, %v3391, -inf
    %v4299 = vsel %vm4057, %v3447, -inf
    %v4300 = vmax.f32 %v4298, %v4299
    %v4301 = vsel %vm4057, %v3398, -inf
    %v4302 = vsel %vm4057, %v3454, -inf
    %v4303 = vmax.f32 %v4301, %v4302
    %v4304 = vsel %vm4057, %v3405, -inf
    %v4305 = vsel %vm4057, %v3461, -inf
    %v4306 = vmax.f32 %v4304, %v4305
    %v4307 = vsel %vm4057, %v3412, -inf
    %v4308 = vsel %vm4057, %v3468, -inf
    %v4309 = vmax.f32 %v4307, %v4308
    %v4310 = vsel %vm4057, %v3419, -inf
    %v4311 = vsel %vm4057, %v3475, -inf
    %v4312 = vmax.f32 %v4310, %v4311
    %v4313 = vsel %vm4057, %v3426, -inf
    %v4314 = vsel %vm4057, %v3482, -inf
    %v4315 = vmax.f32 %v4313, %v4314
    %v4316 = vsel %vm4057, %v3433, -inf
    %v4317 = vsel %vm4057, %v3489, -inf
    %v4318 = vmax.f32 %v4316, %v4317
    %v4319 = vsel %vm4057, %v3440, -inf
    %v4320 = vsel %vm4057, %v3496, -inf
    %v4321 = vmax.f32 %v4319, %v4320
    %v4322 = vsel %vm4057, %v3503, -inf
    %v4323 = vsel %vm4057, %v3559, -inf
    %v4324 = vmax.f32 %v4322, %v4323
    %v4325 = vsel %vm4057, %v3510, -inf
    %v4326 = vsel %vm4057, %v3566, -inf
    %v4327 = vmax.f32 %v4325, %v4326
    %v4328 = vsel %vm4057, %v3517, -inf
    %v4329 = vsel %vm4057, %v3573, -inf
    %v4330 = vmax.f32 %v4328, %v4329
    %v4331 = vsel %vm4057, %v3524, -inf
    %v4332 = vsel %vm4057, %v3580, -inf
    %v4333 = vmax.f32 %v4331, %v4332
    %v4334 = vsel %vm4057, %v3531, -inf
    %v4335 = vsel %vm4057, %v3587, -inf
    %v4336 = vmax.f32 %v4334, %v4335
    %v4337 = vsel %vm4057, %v3538, -inf
    %v4338 = vsel %vm4057, %v3594, -inf
    %v4339 = vmax.f32 %v4337, %v4338
    %v4340 = vsel %vm4057, %v3545, -inf
    %v4341 = vsel %vm4057, %v3601, -inf
    %v4342 = vmax.f32 %v4340, %v4341
    %v4343 = vsel %vm4057, %v3552, -inf
    %v4344 = vsel %vm4057, %v3608, -inf
    %v4345 = vmax.f32 %v4343, %v4344
    %v4346 = vsel %vm4057, %v3615, -inf
    %v4347 = vsel %vm4057, %v3671, -inf
    %v4348 = vmax.f32 %v4346, %v4347
    %v4349 = vsel %vm4057, %v3622, -inf
    %v4350 = vsel %vm4057, %v3678, -inf
    %v4351 = vmax.f32 %v4349, %v4350
    %v4352 = vsel %vm4057, %v3629, -inf
    %v4353 = vsel %vm4057, %v3685, -inf
    %v4354 = vmax.f32 %v4352, %v4353
    %v4355 = vsel %vm4057, %v3636, -inf
    %v4356 = vsel %vm4057, %v3692, -inf
    %v4357 = vmax.f32 %v4355, %v4356
    %v4358 = vsel %vm4057, %v3643, -inf
    %v4359 = vsel %vm4057, %v3699, -inf
    %v4360 = vmax.f32 %v4358, %v4359
    %v4361 = vsel %vm4057, %v3650, -inf
    %v4362 = vsel %vm4057, %v3706, -inf
    %v4363 = vmax.f32 %v4361, %v4362
    %v4364 = vsel %vm4057, %v3657, -inf
    %v4365 = vsel %vm4057, %v3713, -inf
    %v4366 = vmax.f32 %v4364, %v4365
    %v4367 = vsel %vm4057, %v3664, -inf
    %v4368 = vsel %vm4057, %v3720, -inf
    %v4369 = vmax.f32 %v4367, %v4368
    %v4370 = vsel %vm4057, %v3727, -inf
    %v4371 = vsel %vm4057, %v3783, -inf
    %v4372 = vmax.f32 %v4370, %v4371
    %v4373 = vsel %vm4057, %v3734, -inf
    %v4374 = vsel %vm4057, %v3790, -inf
    %v4375 = vmax.f32 %v4373, %v4374
    %v4376 = vsel %vm4057, %v3741, -inf
    %v4377 = vsel %vm4057, %v3797, -inf
    %v4378 = vmax.f32 %v4376, %v4377
    %v4379 = vsel %vm4057, %v3748, -inf
    %v4380 = vsel %vm4057, %v3804, -inf
    %v4381 = vmax.f32 %v4379, %v4380
    %v4382 = vsel %vm4057, %v3755, -inf
    %v4383 = vsel %vm4057, %v3811, -inf
    %v4384 = vmax.f32 %v4382, %v4383
    %v4385 = vsel %vm4057, %v3762, -inf
    %v4386 = vsel %vm4057, %v3818, -inf
    %v4387 = vmax.f32 %v4385, %v4386
    %v4388 = vsel %vm4057, %v3769, -inf
    %v4389 = vsel %vm4057, %v3825, -inf
    %v4390 = vmax.f32 %v4388, %v4389
    %v4391 = vsel %vm4057, %v3776, -inf
    %v4392 = vsel %vm4057, %v3832, -inf
    %v4393 = vmax.f32 %v4391, %v4392
    %v4394 = vsel %vm4057, %v3839, -inf
    %v4395 = vsel %vm4057, %v3895, -inf
    %v4396 = vmax.f32 %v4394, %v4395
    %v4397 = vsel %vm4057, %v3846, -inf
    %v4398 = vsel %vm4057, %v3902, -inf
    %v4399 = vmax.f32 %v4397, %v4398
    %v4400 = vsel %vm4057, %v3853, -inf
    %v4401 = vsel %vm4057, %v3909, -inf
    %v4402 = vmax.f32 %v4400, %v4401
    %v4403 = vsel %vm4057, %v3860, -inf
    %v4404 = vsel %vm4057, %v3916, -inf
    %v4405 = vmax.f32 %v4403, %v4404
    %v4406 = vsel %vm4057, %v3867, -inf
    %v4407 = vsel %vm4057, %v3923, -inf
    %v4408 = vmax.f32 %v4406, %v4407
    %v4409 = vsel %vm4057, %v3874, -inf
    %v4410 = vsel %vm4057, %v3930, -inf
    %v4411 = vmax.f32 %v4409, %v4410
    %v4412 = vsel %vm4057, %v3881, -inf
    %v4413 = vsel %vm4057, %v3937, -inf
    %v4414 = vmax.f32 %v4412, %v4413
    %v4415 = vsel %vm4057, %v3888, -inf
    %v4416 = vsel %vm4057, %v3944, -inf
    %v4417 = vmax.f32 %v4415, %v4416
    %v4418 = vsel %vm4057, %v3951, -inf
    %v4419 = vsel %vm4057, %v4007, -inf
    %v4420 = vmax.f32 %v4418, %v4419
    %v4421 = vsel %vm4057, %v3958, -inf
    %v4422 = vsel %vm4057, %v4014, -inf
    %v4423 = vmax.f32 %v4421, %v4422
    %v4424 = vsel %vm4057, %v3965, -inf
    %v4425 = vsel %vm4057, %v4021, -inf
    %v4426 = vmax.f32 %v4424, %v4425
    %v4427 = vsel %vm4057, %v3972, -inf
    %v4428 = vsel %vm4057, %v4028, -inf
    %v4429 = vmax.f32 %v4427, %v4428
    %v4430 = vsel %vm4057, %v3979, -inf
    %v4431 = vsel %vm4057, %v4035, -inf
    %v4432 = vmax.f32 %v4430, %v4431
    %v4433 = vsel %vm4057, %v3986, -inf
    %v4434 = vsel %vm4057, %v4042, -inf
    %v4435 = vmax.f32 %v4433, %v4434
    %v4436 = vsel %vm4057, %v3993, -inf
    %v4437 = vsel %vm4057, %v4049, -inf
    %v4438 = vmax.f32 %v4436, %v4437
    %v4439 = vsel %vm4057, %v4000, -inf
    %v4440 = vsel %vm4057, %v4056, -inf
    %v4441 = vmax.f32 %v4439, %v4440
    %4442 = vst.msk [vmem:[#allocation2] sm:$0xff] %vm4057, 0.0
    %4443 = vst.msk [vmem:[#allocation2 + $0x8] sm:$0xff] %vm4057, 0.0
    %vm4444 = vcmask 516096
    %4445 = vst.msk [vmem:[#allocation2 + $0x10] sm:$0x1] %vm4444, 0.0
    %4446 = vst.msk [vmem:[#allocation2 + $0x18] sm:$0xff] %vm4057, 0.0
    %4447 = vst.msk [vmem:[#allocation2 + $0x20] sm:$0xff] %vm4057, 0.0
    %4448 = vst.msk [vmem:[#allocation2 + $0x28] sm:$0x1] %vm4444, 0.0
    %4449 = vst.msk [vmem:[#allocation2 + $0x30] sm:$0xff] %vm4057, 0.0
    %4450 = vst.msk [vmem:[#allocation2 + $0x38] sm:$0xff] %vm4057, 0.0
    %4451 = vst.msk [vmem:[#allocation2 + $0x40] sm:$0x1] %vm4444, 0.0
    %4452 = vst.msk [vmem:[#allocation2 + $0x48] sm:$0xff] %vm4057, 0.0
    %4453 = vst.msk [vmem:[#allocation2 + $0x50] sm:$0xff] %vm4057, 0.0
    %4454 = vst.msk [vmem:[#allocation2 + $0x58] sm:$0x1] %vm4444, 0.0
    %4455 = vst.msk [vmem:[#allocation2 + $0x60] sm:$0xff] %vm4057, 0.0
    %4456 = vst.msk [vmem:[#allocation2 + $0x68] sm:$0xff] %vm4057, 0.0
    %4457 = vst.msk [vmem:[#allocation2 + $0x70] sm:$0x1] %vm4444, 0.0
    %4458 = vst.msk [vmem:[#allocation2 + $0x78] sm:$0xff] %vm4057, 0.0
    %4459 = vst.msk [vmem:[#allocation2 + $0x80] sm:$0xff] %vm4057, 0.0
    %4460 = vst.msk [vmem:[#allocation2 + $0x88] sm:$0x1] %vm4444, 0.0
    %4461 = vst.msk [vmem:[#allocation2 + $0x90] sm:$0xff] %vm4057, 0.0
    %4462 = vst.msk [vmem:[#allocation2 + $0x98] sm:$0xff] %vm4057, 0.0
    %4463 = vst.msk [vmem:[#allocation2 + $0xa0] sm:$0x1] %vm4444, 0.0
    %4464 = vst.msk [vmem:[#allocation2 + $0xa8] sm:$0xff] %vm4057, 0.0
    %4465 = vst.msk [vmem:[#allocation2 + $0xb0] sm:$0xff] %vm4057, 0.0
    %4466 = vst.msk [vmem:[#allocation2 + $0xb8] sm:$0x1] %vm4444, 0.0
    %4467 = vst.msk [vmem:[#allocation2 + $0xc0] sm:$0xff] %vm4057, 0.0
    %4468 = vst.msk [vmem:[#allocation2 + $0xc8] sm:$0xff] %vm4057, 0.0
    %4469 = vst.msk [vmem:[#allocation2 + $0xd0] sm:$0x1] %vm4444, 0.0
    %4470 = vst.msk [vmem:[#allocation2 + $0xd8] sm:$0xff] %vm4057, 0.0
    %4471 = vst.msk [vmem:[#allocation2 + $0xe0] sm:$0xff] %vm4057, 0.0
    %4472 = vst.msk [vmem:[#allocation2 + $0xe8] sm:$0x1] %vm4444, 0.0
    %4473 = vst.msk [vmem:[#allocation2 + $0xf0] sm:$0xff] %vm4057, 0.0
    %4474 = vst.msk [vmem:[#allocation2 + $0xf8] sm:$0xff] %vm4057, 0.0
    %4475 = vst.msk [vmem:[#allocation2 + $0x100] sm:$0x1] %vm4444, 0.0
    %4476 = vst.msk [vmem:[#allocation2 + $0x108] sm:$0xff] %vm4057, 0.0
    %4477 = vst.msk [vmem:[#allocation2 + $0x110] sm:$0xff] %vm4057, 0.0
    %4478 = vst.msk [vmem:[#allocation2 + $0x118] sm:$0x1] %vm4444, 0.0
    %4479 = vst.msk [vmem:[#allocation2 + $0x120] sm:$0xff] %vm4057, 0.0
    %4480 = vst.msk [vmem:[#allocation2 + $0x128] sm:$0xff] %vm4057, 0.0
    %4481 = vst.msk [vmem:[#allocation2 + $0x130] sm:$0x1] %vm4444, 0.0
    %4482 = vst.msk [vmem:[#allocation2 + $0x138] sm:$0xff] %vm4057, 0.0
    %4483 = vst.msk [vmem:[#allocation2 + $0x140] sm:$0xff] %vm4057, 0.0
    %4484 = vst.msk [vmem:[#allocation2 + $0x148] sm:$0x1] %vm4444, 0.0
    %4485 = vst.msk [vmem:[#allocation2 + $0x150] sm:$0xff] %vm4057, 0.0
    %4486 = vst.msk [vmem:[#allocation2 + $0x158] sm:$0xff] %vm4057, 0.0
    %4487 = vst.msk [vmem:[#allocation2 + $0x160] sm:$0x1] %vm4444, 0.0
    %4488 = vst.msk [vmem:[#allocation2 + $0x168] sm:$0xff] %vm4057, 0.0
    %4489 = vst.msk [vmem:[#allocation2 + $0x170] sm:$0xff] %vm4057, 0.0
    %4490 = vst.msk [vmem:[#allocation2 + $0x178] sm:$0x1] %vm4444, 0.0
    %4491 = vst.msk [vmem:[#allocation2 + $0x180] sm:$0xff] %vm4057, 0.0
    %4492 = vst.msk [vmem:[#allocation2 + $0x188] sm:$0xff] %vm4057, 0.0
    %4493 = vst.msk [vmem:[#allocation2 + $0x190] sm:$0x1] %vm4444, 0.0
    %4494 = vst.msk [vmem:[#allocation2 + $0x198] sm:$0xff] %vm4057, 0.0
    %4495 = vst.msk [vmem:[#allocation2 + $0x1a0] sm:$0xff] %vm4057, 0.0
    %4496 = vst.msk [vmem:[#allocation2 + $0x1a8] sm:$0x1] %vm4444, 0.0
    %4497 = vst.msk [vmem:[#allocation2 + $0x1b0] sm:$0xff] %vm4057, 0.0
    %4498 = vst.msk [vmem:[#allocation2 + $0x1b8] sm:$0xff] %vm4057, 0.0
    %4499 = vst.msk [vmem:[#allocation2 + $0x1c0] sm:$0x1] %vm4444, 0.0
    %4500 = vst.msk [vmem:[#allocation2 + $0x1c8] sm:$0xff] %vm4057, 0.0
    %4501 = vst.msk [vmem:[#allocation2 + $0x1d0] sm:$0xff] %vm4057, 0.0
    %4502 = vst.msk [vmem:[#allocation2 + $0x1d8] sm:$0x1] %vm4444, 0.0
    %vm4631 = vcmask 1041409
    %v4632 = vsel %vm4631, %v4063, %v4060
    %vm4633 = vcmask 1042434
    %v4634 = vsel %vm4633, %v4066, %v4632
    %vm4635 = vcmask 1043459
    %v4636 = vsel %vm4635, %v4069, %v4634
    %vm4637 = vcmask 1044484
    %v4638 = vsel %vm4637, %v4072, %v4636
    %vm4639 = vcmask 1045509
    %v4640 = vsel %vm4639, %v4075, %v4638
    %vm4641 = vcmask 1046534
    %v4642 = vsel %vm4641, %v4078, %v4640
    %vm4643 = vcmask 1047559
    %v4644 = vsel %vm4643, %v4081, %v4642
    %v4645 = vsel %vm4631, %v4087, %v4084
    %v4646 = vsel %vm4633, %v4090, %v4645
    %v4647 = vsel %vm4635, %v4093, %v4646
    %v4648 = vsel %vm4637, %v4096, %v4647
    %v4649 = vsel %vm4639, %v4099, %v4648
    %v4650 = vsel %vm4641, %v4102, %v4649
    %v4651 = vsel %vm4643, %v4105, %v4650
    %v4652 = vsel %vm4631, %v4111, %v4108
    %v4653 = vsel %vm4633, %v4114, %v4652
    %v4654 = vsel %vm4635, %v4117, %v4653
    %v4655 = vsel %vm4637, %v4120, %v4654
    %v4656 = vsel %vm4639, %v4123, %v4655
    %v4657 = vsel %vm4641, %v4126, %v4656
    %v4658 = vsel %vm4643, %v4129, %v4657
    %v4659 = vsel %vm4631, %v4135, %v4132
    %v4660 = vsel %vm4633, %v4138, %v4659
    %v4661 = vsel %vm4635, %v4141, %v4660
    %v4662 = vsel %vm4637, %v4144, %v4661
    %v4663 = vsel %vm4639, %v4147, %v4662
    %v4664 = vsel %vm4641, %v4150, %v4663
    %v4665 = vsel %vm4643, %v4153, %v4664
    %v4666 = vsel %vm4631, %v4159, %v4156
    %v4667 = vsel %vm4633, %v4162, %v4666
    %v4668 = vsel %vm4635, %v4165, %v4667
    %v4669 = vsel %vm4637, %v4168, %v4668
    %v4670 = vsel %vm4639, %v4171, %v4669
    %v4671 = vsel %vm4641, %v4174, %v4670
    %v4672 = vsel %vm4643, %v4177, %v4671
    %v4673 = vsel %vm4631, %v4183, %v4180
    %v4674 = vsel %vm4633, %v4186, %v4673
    %v4675 = vsel %vm4635, %v4189, %v4674
    %v4676 = vsel %vm4637, %v4192, %v4675
    %v4677 = vsel %vm4639, %v4195, %v4676
    %v4678 = vsel %vm4641, %v4198, %v4677
    %v4679 = vsel %vm4643, %v4201, %v4678
    %v4680 = vsel %vm4631, %v4207, %v4204
    %v4681 = vsel %vm4633, %v4210, %v4680
    %v4682 = vsel %vm4635, %v4213, %v4681
    %v4683 = vsel %vm4637, %v4216, %v4682
    %v4684 = vsel %vm4639, %v4219, %v4683
    %v4685 = vsel %vm4641, %v4222, %v4684
    %v4686 = vsel %vm4643, %v4225, %v4685
    %v4687 = vsel %vm4631, %v4231, %v4228
    %v4688 = vsel %vm4633, %v4234, %v4687
    %v4689 = vsel %vm4635, %v4237, %v4688
    %v4690 = vsel %vm4637, %v4240, %v4689
    %v4691 = vsel %vm4639, %v4243, %v4690
    %v4692 = vsel %vm4641, %v4246, %v4691
    %v4693 = vsel %vm4643, %v4249, %v4692
    %v4694 = vsel %vm4631, %v4255, %v4252
    %v4695 = vsel %vm4633, %v4258, %v4694
    %v4696 = vsel %vm4635, %v4261, %v4695
    %v4697 = vsel %vm4637, %v4264, %v4696
    %v4698 = vsel %vm4639, %v4267, %v4697
    %v4699 = vsel %vm4641, %v4270, %v4698
    %v4700 = vsel %vm4643, %v4273, %v4699
    %v4701 = vsel %vm4631, %v4279, %v4276
    %v4702 = vsel %vm4633, %v4282, %v4701
    %v4703 = vsel %vm4635, %v4285, %v4702
    %v4704 = vsel %vm4637, %v4288, %v4703
    %v4705 = vsel %vm4639, %v4291, %v4704
    %v4706 = vsel %vm4641, %v4294, %v4705
    %v4707 = vsel %vm4643, %v4297, %v4706
    %v4708 = vsel %vm4631, %v4303, %v4300
    %v4709 = vsel %vm4633, %v4306, %v4708
    %v4710 = vsel %vm4635, %v4309, %v4709
    %v4711 = vsel %vm4637, %v4312, %v4710
    %v4712 = vsel %vm4639, %v4315, %v4711
    %v4713 = vsel %vm4641, %v4318, %v4712
    %v4714 = vsel %vm4643, %v4321, %v4713
    %v4715 = vsel %vm4631, %v4327, %v4324
    %v4716 = vsel %vm4633, %v4330, %v4715
    %v4717 = vsel %vm4635, %v4333, %v4716
    %v4718 = vsel %vm4637, %v4336, %v4717
    %v4719 = vsel %vm4639, %v4339, %v4718
    %v4720 = vsel %vm4641, %v4342, %v4719
    %v4721 = vsel %vm4643, %v4345, %v4720
    %v4722 = vsel %vm4631, %v4351, %v4348
    %v4723 = vsel %vm4633, %v4354, %v4722
    %v4724 = vsel %vm4635, %v4357, %v4723
    %v4725 = vsel %vm4637, %v4360, %v4724
    %v4726 = vsel %vm4639, %v4363, %v4725
    %v4727 = vsel %vm4641, %v4366, %v4726
    %v4728 = vsel %vm4643, %v4369, %v4727
    %v4729 = vsel %vm4631, %v4375, %v4372
    %v4730 = vsel %vm4633, %v4378, %v4729
    %v4731 = vsel %vm4635, %v4381, %v4730
    %v4732 = vsel %vm4637, %v4384, %v4731
    %v4733 = vsel %vm4639, %v4387, %v4732
    %v4734 = vsel %vm4641, %v4390, %v4733
    %v4735 = vsel %vm4643, %v4393, %v4734
    %v4736 = vsel %vm4631, %v4399, %v4396
    %v4737 = vsel %vm4633, %v4402, %v4736
    %v4738 = vsel %vm4635, %v4405, %v4737
    %v4739 = vsel %vm4637, %v4408, %v4738
    %v4740 = vsel %vm4639, %v4411, %v4739
    %v4741 = vsel %vm4641, %v4414, %v4740
    %v4742 = vsel %vm4643, %v4417, %v4741
    %v4743 = vsel %vm4631, %v4423, %v4420
    %v4744 = vsel %vm4633, %v4426, %v4743
    %v4745 = vsel %vm4635, %v4429, %v4744
    %v4746 = vsel %vm4637, %v4432, %v4745
    %v4747 = vsel %vm4639, %v4435, %v4746
    %v4748 = vsel %vm4641, %v4438, %v4747
    %v4749 = vsel %vm4643, %v4441, %v4748
    %s4766 = scalar_lea.vmem [#allocation2], 24
    %4767 = vst.msk [vmem:[%s4766 + $0x8] sm:$0xff] %vm4057, %v4644
    %4768 = vst.msk [vmem:[%s4766 + $0x20] sm:$0xff] %vm4057, %v4651
    %4769 = vst.msk [vmem:[%s4766 + $0x38] sm:$0xff] %vm4057, %v4658
    %4770 = vst.msk [vmem:[%s4766 + $0x50] sm:$0xff] %vm4057, %v4665
    %4771 = vst.msk [vmem:[%s4766 + $0x68] sm:$0xff] %vm4057, %v4672
    %4772 = vst.msk [vmem:[%s4766 + $0x80] sm:$0xff] %vm4057, %v4679
    %4773 = vst.msk [vmem:[%s4766 + $0x98] sm:$0xff] %vm4057, %v4686
    %4774 = vst.msk [vmem:[%s4766 + $0xb0] sm:$0xff] %vm4057, %v4693
    %4775 = vst.msk [vmem:[%s4766 + $0xf8] sm:$0xff] %vm4057, %v4700
    %4776 = vst.msk [vmem:[%s4766 + $0x110] sm:$0xff] %vm4057, %v4707
    %4777 = vst.msk [vmem:[%s4766 + $0x128] sm:$0xff] %vm4057, %v4714
    %4778 = vst.msk [vmem:[%s4766 + $0x140] sm:$0xff] %vm4057, %v4721
    %4779 = vst.msk [vmem:[%s4766 + $0x158] sm:$0xff] %vm4057, %v4728
    %4780 = vst.msk [vmem:[%s4766 + $0x170] sm:$0xff] %vm4057, %v4735
    %4781 = vst.msk [vmem:[%s4766 + $0x188] sm:$0xff] %vm4057, %v4742
    %4782 = vst.msk [vmem:[%s4766 + $0x1a0] sm:$0xff] %vm4057, %v4749
    %v4783 = vld [vmem:[#allocation2] sm:$0xff]
    %v4784 = vld [vmem:[#allocation2 + $0x8] sm:$0xff]
    %v4785 = vld [vmem:[#allocation2 + $0x10] sm:$0x1]
    %v4786 = vld [vmem:[#allocation2 + $0x18] sm:$0xff]
    %v4787 = vld [vmem:[#allocation2 + $0x20] sm:$0xff]
    %v4788 = vld [vmem:[#allocation2 + $0x28] sm:$0x1]
    %v4789 = vld [vmem:[#allocation2 + $0x30] sm:$0xff]
    %v4790 = vld [vmem:[#allocation2 + $0x38] sm:$0xff]
    %v4791 = vld [vmem:[#allocation2 + $0x40] sm:$0x1]
    %v4792 = vld [vmem:[#allocation2 + $0x48] sm:$0xff]
    %v4793 = vld [vmem:[#allocation2 + $0x50] sm:$0xff]
    %v4794 = vld [vmem:[#allocation2 + $0x58] sm:$0x1]
    %v4795 = vld [vmem:[#allocation2 + $0x60] sm:$0xff]
    %v4796 = vld [vmem:[#allocation2 + $0x68] sm:$0xff]
    %v4797 = vld [vmem:[#allocation2 + $0x70] sm:$0x1]
    %v4798 = vld [vmem:[#allocation2 + $0x78] sm:$0xff]
    %v4799 = vld [vmem:[#allocation2 + $0x80] sm:$0xff]
    %v4800 = vld [vmem:[#allocation2 + $0x88] sm:$0x1]
    %v4801 = vld [vmem:[#allocation2 + $0x90] sm:$0xff]
    %v4802 = vld [vmem:[#allocation2 + $0x98] sm:$0xff]
    %v4803 = vld [vmem:[#allocation2 + $0xa0] sm:$0x1]
    %v4804 = vld [vmem:[#allocation2 + $0xa8] sm:$0xff]
    %v4805 = vld [vmem:[#allocation2 + $0xb0] sm:$0xff]
    %v4806 = vld [vmem:[#allocation2 + $0xb8] sm:$0x1]
    %v4807 = vld [vmem:[#allocation2 + $0xc0] sm:$0xff]
    %v4808 = vld [vmem:[#allocation2 + $0xc8] sm:$0xff]
    %v4809 = vld [vmem:[#allocation2 + $0xd0] sm:$0x1]
    %v4810 = vld [vmem:[#allocation2 + $0xd8] sm:$0xff]
    %v4811 = vld [vmem:[#allocation2 + $0xe0] sm:$0xff]
    %v4812 = vld [vmem:[#allocation2 + $0xe8] sm:$0x1]
    %v4813 = vld [vmem:[#allocation2 + $0xf0] sm:$0xff]
    %v4814 = vld [vmem:[#allocation2 + $0xf8] sm:$0xff]
    %v4815 = vld [vmem:[#allocation2 + $0x100] sm:$0x1]
    %v4816 = vld [vmem:[#allocation2 + $0x108] sm:$0xff]
    %v4817 = vld [vmem:[#allocation2 + $0x110] sm:$0xff]
    %v4818 = vld [vmem:[#allocation2 + $0x118] sm:$0x1]
    %v4819 = vld [vmem:[#allocation2 + $0x120] sm:$0xff]
    %v4820 = vld [vmem:[#allocation2 + $0x128] sm:$0xff]
    %v4821 = vld [vmem:[#allocation2 + $0x130] sm:$0x1]
    %v4822 = vld [vmem:[#allocation2 + $0x138] sm:$0xff]
    %v4823 = vld [vmem:[#allocation2 + $0x140] sm:$0xff]
    %v4824 = vld [vmem:[#allocation2 + $0x148] sm:$0x1]
    %v4825 = vld [vmem:[#allocation2 + $0x150] sm:$0xff]
    %v4826 = vld [vmem:[#allocation2 + $0x158] sm:$0xff]
    %v4827 = vld [vmem:[#allocation2 + $0x160] sm:$0x1]
    %v4828 = vld [vmem:[#allocation2 + $0x168] sm:$0xff]
    %v4829 = vld [vmem:[#allocation2 + $0x170] sm:$0xff]
    %v4830 = vld [vmem:[#allocation2 + $0x178] sm:$0x1]
    %v4831 = vld [vmem:[#allocation2 + $0x180] sm:$0xff]
    %v4832 = vld [vmem:[#allocation2 + $0x188] sm:$0xff]
    %v4833 = vld [vmem:[#allocation2 + $0x190] sm:$0x1]
    %v4834 = vld [vmem:[#allocation2 + $0x198] sm:$0xff]
    %v4835 = vld [vmem:[#allocation2 + $0x1a0] sm:$0xff]
    %v4836 = vld [vmem:[#allocation2 + $0x1a8] sm:$0x1]
    %v4837 = vld [vmem:[#allocation2 + $0x1b0] sm:$0xff]
    %v4838 = vld [vmem:[#allocation2 + $0x1b8] sm:$0xff]
    %v4839 = vld [vmem:[#allocation2 + $0x1c0] sm:$0x1]
    %v4840 = vld [vmem:[#allocation2 + $0x1c8] sm:$0xff]
    %v4841 = vld [vmem:[#allocation2 + $0x1d0] sm:$0xff]
    %v4842 = vld [vmem:[#allocation2 + $0x1d8] sm:$0x1]
    %vm4875 = vcmask 1040384
    %v4876 = vrot.slane %v4783, 7
    %v4877 = vrot.slane %v4784, 7
    %v4878 = vsel %vm4875, %v4876, %v4877
    %v4879 = vrot.slane %v4786, 7
    %v4880 = vrot.slane %v4787, 7
    %v4881 = vsel %vm4875, %v4879, %v4880
    %v4882 = vrot.slane %v4789, 7
    %v4883 = vrot.slane %v4790, 7
    %v4884 = vsel %vm4875, %v4882, %v4883
    %v4885 = vrot.slane %v4792, 7
    %v4886 = vrot.slane %v4793, 7
    %v4887 = vsel %vm4875, %v4885, %v4886
    %v4888 = vrot.slane %v4795, 7
    %v4889 = vrot.slane %v4796, 7
    %v4890 = vsel %vm4875, %v4888, %v4889
    %v4891 = vrot.slane %v4798, 7
    %v4892 = vrot.slane %v4799, 7
    %v4893 = vsel %vm4875, %v4891, %v4892
    %v4894 = vrot.slane %v4801, 7
    %v4895 = vrot.slane %v4802, 7
    %v4896 = vsel %vm4875, %v4894, %v4895
    %v4897 = vrot.slane %v4804, 7
    %v4898 = vrot.slane %v4805, 7
    %v4899 = vsel %vm4875, %v4897, %v4898
    %v4900 = vrot.slane %v4813, 7
    %v4901 = vrot.slane %v4814, 7
    %v4902 = vsel %vm4875, %v4900, %v4901
    %v4903 = vrot.slane %v4816, 7
    %v4904 = vrot.slane %v4817, 7
    %v4905 = vsel %vm4875, %v4903, %v4904
    %v4906 = vrot.slane %v4819, 7
    %v4907 = vrot.slane %v4820, 7
    %v4908 = vsel %vm4875, %v4906, %v4907
    %v4909 = vrot.slane %v4822, 7
    %v4910 = vrot.slane %v4823, 7
    %v4911 = vsel %vm4875, %v4909, %v4910
    %v4912 = vrot.slane %v4825, 7
    %v4913 = vrot.slane %v4826, 7
    %v4914 = vsel %vm4875, %v4912, %v4913
    %v4915 = vrot.slane %v4828, 7
    %v4916 = vrot.slane %v4829, 7
    %v4917 = vsel %vm4875, %v4915, %v4916
    %v4918 = vrot.slane %v4831, 7
    %v4919 = vrot.slane %v4832, 7
    %v4920 = vsel %vm4875, %v4918, %v4919
    %v4921 = vrot.slane %v4834, 7
    %v4922 = vrot.slane %v4835, 7
    %v4923 = vsel %vm4875, %v4921, %v4922
    %v4940 = vpack.c.bf16 %v4881, %v4878
    %v4941 = vpack.c.bf16 %v4887, %v4884
    %v4942 = vpack.c.bf16 %v4893, %v4890
    %v4943 = vpack.c.bf16 %v4899, %v4896
    %v4944 = vpack.c.bf16 %v4905, %v4902
    %v4945 = vpack.c.bf16 %v4911, %v4908
    %v4946 = vpack.c.bf16 %v4917, %v4914
    %v4947 = vpack.c.bf16 %v4923, %v4920
    %v4948 = vld [vmem:[%s2] sm:$0xf]
    %v4949 = vld [vmem:[%s2 + $0x4] sm:$0xf]
    %v4950 = vld [vmem:[%s2 + $0x8] sm:$0xf]
    %v4951 = vld [vmem:[%s2 + $0xc] sm:$0xf]
    %v4952 = vld [vmem:[%s2 + $0x10] sm:$0xf]
    %v4953 = vld [vmem:[%s2 + $0x14] sm:$0xf]
    %v4954 = vld [vmem:[%s2 + $0x18] sm:$0xf]
    %v4955 = vld [vmem:[%s2 + $0x1c] sm:$0xf]
    %v4956 = vpack.c.bf16 %v4787, %v4784
    %v4957 = vpack.c.bf16 %v4793, %v4790
    %v4958 = vpack.c.bf16 %v4799, %v4796
    %v4959 = vpack.c.bf16 %v4805, %v4802
    %v4960 = vpack.c.bf16 %v4817, %v4814
    %v4961 = vpack.c.bf16 %v4823, %v4820
    %v4962 = vpack.c.bf16 %v4829, %v4826
    %v4963 = vpack.c.bf16 %v4835, %v4832
    %s4964 = scalar_lea.vmem %s2, 32
    %v4965 = vld [vmem:[%s4964] sm:$0xf]
    %v4966 = vld [vmem:[%s4964 + $0x4] sm:$0xf]
    %v4967 = vld [vmem:[%s4964 + $0x8] sm:$0xf]
    %v4968 = vld [vmem:[%s4964 + $0xc] sm:$0xf]
    %v4969 = vld [vmem:[%s4964 + $0x10] sm:$0xf]
    %v4970 = vld [vmem:[%s4964 + $0x14] sm:$0xf]
    %v4971 = vld [vmem:[%s4964 + $0x18] sm:$0xf]
    %v4972 = vld [vmem:[%s4964 + $0x1c] sm:$0xf]
    %v4981 = vunpack.c.l.b16 %v4965
    %v4982 = vunpack.c.l.b16 %v4966
    %v4983 = vunpack.c.l.b16 %v4967
    %v4984 = vunpack.c.l.b16 %v4968
    %v4985 = vunpack.c.l.b16 %v4969
    %v4986 = vunpack.c.l.b16 %v4970
    %v4987 = vunpack.c.l.b16 %v4971
    %v4988 = vunpack.c.l.b16 %v4972
    %v4989 = vpack.c.b16 %v4982, %v4981
    %v4990 = vpack.c.b16 %v4984, %v4983
    %v4991 = vpack.c.b16 %v4986, %v4985
    %v4992 = vpack.c.b16 %v4988, %v4987
    %v4998 = vsel %vm4057, %v4956, 0
    %v5001 = vsel %vm4057, %v4957, 0
    %v5004 = vsel %vm4057, %v4958, 0
    %v5007 = vsel %vm4057, %v4959, 0
    %v5010 = vsel %vm4057, %v4960, 0
    %v5013 = vsel %vm4057, %v4961, 0
    %v5016 = vsel %vm4057, %v4962, 0
    %v5019 = vsel %vm4057, %v4963, 0
    %5021 = vmatprep.subr.bf16.mxu0 0
    %5022 = vmatpush1.bf16.msra.mxu0 0
    %5023 = vmatprep.subr.bf16.mxu0 0
    %5024 = vmatpush1.bf16.msra.mxu0 0
    %5025 = vmatprep.subr.bf16.mxu0 0
    %5026 = vmatpush1.bf16.msra.mxu0 0
    %5027 = vmatprep.subr.bf16.mxu0 0
    %5028 = vmatpush1.bf16.msra.mxu0 0
    %5029 = vmatprep.subr.bf16.mxu0 0
    %5030 = vmatpush1.bf16.msra.mxu0 %v4992
    %5031 = vmatprep.subr.bf16.mxu0 0
    %5032 = vmatpush1.bf16.msra.mxu0 %v4991
    %5033 = vmatprep.subr.bf16.mxu0 0
    %5034 = vmatpush1.bf16.msra.mxu0 %v4990
    %5035 = vmatprep.subr.bf16.mxu0 0
    %5036 = vmatpush1.bf16.msra.mxu0 %v4989
    %5037 = vmatprep.subr.bf16.mxu0 0
    %5038 = vmatpush2.bf16.msra.mxu0 0
    %5039 = vmatprep.subr.bf16.mxu0 0
    %5040 = vmatpush2.bf16.msra.mxu0 0
    %5041 = vmatprep.subr.bf16.mxu0 0
    %5042 = vmatpush2.bf16.msra.mxu0 0
    %5043 = vmatprep.subr.bf16.mxu0 0
    %5044 = vmatpush2.bf16.msra.mxu0 0
    %5045 = vmatprep.subr.bf16.mxu0 0
    %5046 = vmatpush2.bf16.msra.mxu0 0
    %5047 = vmatprep.subr.bf16.mxu0 0
    %5048 = vmatpush2.bf16.msra.mxu0 0
    %5049 = vmatprep.subr.bf16.mxu0 0
    %5050 = vmatpush2.bf16.msra.mxu0 0
    %5051 = vmatprep.subr.bf16.mxu0 0
    %5052 = vmatpush2.bf16.msra.mxu0 0
    %5053 = vmatprep.mubr.bf16.mxu0 0
    %5054 = vmatmul.mubr.bf16.gmra.mxu0 %v4998
    %v5055 = vpop.f32.mrf.mxu0
    %v5056 = vadd.f32 0.0, %v5055
    %v5057 = vpop.f32.mrf.mxu0
    %v5058 = vpop.f32.mrf.mxu0
    %v5059 = vadd.f32 0.0, %v5058
    %v5060 = vpop.f32.mrf.mxu0
    %5061 = vmatprep.mubr.bf16.mxu0 0
    %5062 = vmatmul.mubr.bf16.gmra.mxu0 %v5001
    %v5063 = vpop.f32.mrf.mxu0
    %v5064 = vadd.f32 0.0, %v5063
    %v5065 = vpop.f32.mrf.mxu0
    %v5066 = vpop.f32.mrf.mxu0
    %v5067 = vadd.f32 0.0, %v5066
    %v5068 = vpop.f32.mrf.mxu0
    %5069 = vmatprep.mubr.bf16.mxu0 0
    %5070 = vmatmul.mubr.bf16.gmra.mxu0 %v5004
    %v5071 = vpop.f32.mrf.mxu0
    %v5072 = vadd.f32 0.0, %v5071
    %v5073 = vpop.f32.mrf.mxu0
    %v5074 = vpop.f32.mrf.mxu0
    %v5075 = vadd.f32 0.0, %v5074
    %v5076 = vpop.f32.mrf.mxu0
    %5077 = vmatprep.mubr.bf16.mxu0 0
    %5078 = vmatmul.mubr.bf16.gmra.mxu0 %v5007
    %v5079 = vpop.f32.mrf.mxu0
    %v5080 = vadd.f32 0.0, %v5079
    %v5081 = vpop.f32.mrf.mxu0
    %v5082 = vpop.f32.mrf.mxu0
    %v5083 = vadd.f32 0.0, %v5082
    %v5084 = vpop.f32.mrf.mxu0
    %5085 = vmatprep.mubr.bf16.mxu0 0
    %5086 = vmatmul.mubr.bf16.gmra.mxu0 %v5010
    %v5087 = vpop.f32.mrf.mxu0
    %v5088 = vadd.f32 0.0, %v5087
    %v5089 = vpop.f32.mrf.mxu0
    %v5090 = vpop.f32.mrf.mxu0
    %v5091 = vadd.f32 0.0, %v5090
    %v5092 = vpop.f32.mrf.mxu0
    %5093 = vmatprep.mubr.bf16.mxu0 0
    %5094 = vmatmul.mubr.bf16.gmra.mxu0 %v5013
    %v5095 = vpop.f32.mrf.mxu0
    %v5096 = vadd.f32 0.0, %v5095
    %v5097 = vpop.f32.mrf.mxu0
    %v5098 = vpop.f32.mrf.mxu0
    %v5099 = vadd.f32 0.0, %v5098
    %v5100 = vpop.f32.mrf.mxu0
    %5101 = vmatprep.mubr.bf16.mxu0 0
    %5102 = vmatmul.mubr.bf16.gmra.mxu0 %v5016
    %v5103 = vpop.f32.mrf.mxu0
    %v5104 = vadd.f32 0.0, %v5103
    %v5105 = vpop.f32.mrf.mxu0
    %v5106 = vpop.f32.mrf.mxu0
    %v5107 = vadd.f32 0.0, %v5106
    %v5108 = vpop.f32.mrf.mxu0
    %5109 = vmatprep.mubr.bf16.mxu0 0
    %5110 = vmatmul.mubr.bf16.gmra.mxu0 %v5019
    %v5111 = vpop.f32.mrf.mxu0
    %v5112 = vadd.f32 0.0, %v5111
    %v5113 = vpop.f32.mrf.mxu0
    %v5114 = vpop.f32.mrf.mxu0
    %v5115 = vadd.f32 0.0, %v5114
    %v5116 = vpop.f32.mrf.mxu0
    %5117 = vdwg.mxu0
    %v5126 = vunpack.c.l.b16 %v4948
    %v5127 = vunpack.c.l.b16 %v4949
    %v5128 = vunpack.c.l.b16 %v4950
    %v5129 = vunpack.c.l.b16 %v4951
    %v5130 = vunpack.c.l.b16 %v4952
    %v5131 = vunpack.c.l.b16 %v4953
    %v5132 = vunpack.c.l.b16 %v4954
    %v5133 = vunpack.c.l.b16 %v4955
    %v5134 = vpack.c.b16 %v5127, %v5126
    %v5135 = vpack.c.b16 %v5129, %v5128
    %v5136 = vpack.c.b16 %v5131, %v5130
    %v5137 = vpack.c.b16 %v5133, %v5132
    %v5143 = vsel %vm4057, %v4940, 0
    %v5146 = vsel %vm4057, %v4941, 0
    %v5149 = vsel %vm4057, %v4942, 0
    %v5152 = vsel %vm4057, %v4943, 0
    %v5155 = vsel %vm4057, %v4944, 0
    %v5158 = vsel %vm4057, %v4945, 0
    %v5161 = vsel %vm4057, %v4946, 0
    %v5164 = vsel %vm4057, %v4947, 0
    %5166 = vmatprep.subr.bf16.mxu0 0
    %5167 = vmatpush1.bf16.msra.mxu0 0
    %5168 = vmatprep.subr.bf16.mxu0 0
    %5169 = vmatpush1.bf16.msra.mxu0 0
    %5170 = vmatprep.subr.bf16.mxu0 0
    %5171 = vmatpush1.bf16.msra.mxu0 0
    %5172 = vmatprep.subr.bf16.mxu0 0
    %5173 = vmatpush1.bf16.msra.mxu0 0
    %5174 = vmatprep.subr.bf16.mxu0 0
    %5175 = vmatpush1.bf16.msra.mxu0 %v5137
    %5176 = vmatprep.subr.bf16.mxu0 0
    %5177 = vmatpush1.bf16.msra.mxu0 %v5136
    %5178 = vmatprep.subr.bf16.mxu0 0
    %5179 = vmatpush1.bf16.msra.mxu0 %v5135
    %5180 = vmatprep.subr.bf16.mxu0 0
    %5181 = vmatpush1.bf16.msra.mxu0 %v5134
    %5182 = vmatprep.subr.bf16.mxu0 0
    %5183 = vmatpush2.bf16.msra.mxu0 0
    %5184 = vmatprep.subr.bf16.mxu0 0
    %5185 = vmatpush2.bf16.msra.mxu0 0
    %5186 = vmatprep.subr.bf16.mxu0 0
    %5187 = vmatpush2.bf16.msra.mxu0 0
    %5188 = vmatprep.subr.bf16.mxu0 0
    %5189 = vmatpush2.bf16.msra.mxu0 0
    %5190 = vmatprep.subr.bf16.mxu0 0
    %5191 = vmatpush2.bf16.msra.mxu0 0
    %5192 = vmatprep.subr.bf16.mxu0 0
    %5193 = vmatpush2.bf16.msra.mxu0 0
    %5194 = vmatprep.subr.bf16.mxu0 0
    %5195 = vmatpush2.bf16.msra.mxu0 0
    %5196 = vmatprep.subr.bf16.mxu0 0
    %5197 = vmatpush2.bf16.msra.mxu0 0
    %5198 = vmatprep.mubr.bf16.mxu0 0
    %5199 = vmatmul.mubr.bf16.gmra.mxu0 %v5143
    %v5200 = vpop.f32.mrf.mxu0
    %v5201 = vadd.f32 %v5056, %v5200
    %v5202 = vpop.f32.mrf.mxu0
    %v5203 = vpop.f32.mrf.mxu0
    %v5204 = vadd.f32 %v5059, %v5203
    %v5205 = vpop.f32.mrf.mxu0
    %5206 = vmatprep.mubr.bf16.mxu0 0
    %5207 = vmatmul.mubr.bf16.gmra.mxu0 %v5146
    %v5208 = vpop.f32.mrf.mxu0
    %v5209 = vadd.f32 %v5064, %v5208
    %v5210 = vpop.f32.mrf.mxu0
    %v5211 = vpop.f32.mrf.mxu0
    %v5212 = vadd.f32 %v5067, %v5211
    %v5213 = vpop.f32.mrf.mxu0
    %5214 = vmatprep.mubr.bf16.mxu0 0
    %5215 = vmatmul.mubr.bf16.gmra.mxu0 %v5149
    %v5216 = vpop.f32.mrf.mxu0
    %v5217 = vadd.f32 %v5072, %v5216
    %v5218 = vpop.f32.mrf.mxu0
    %v5219 = vpop.f32.mrf.mxu0
    %v5220 = vadd.f32 %v5075, %v5219
    %v5221 = vpop.f32.mrf.mxu0
    %5222 = vmatprep.mubr.bf16.mxu0 0
    %5223 = vmatmul.mubr.bf16.gmra.mxu0 %v5152
    %v5224 = vpop.f32.mrf.mxu0
    %v5225 = vadd.f32 %v5080, %v5224
    %v5226 = vpop.f32.mrf.mxu0
    %v5227 = vpop.f32.mrf.mxu0
    %v5228 = vadd.f32 %v5083, %v5227
    %v5229 = vpop.f32.mrf.mxu0
    %5230 = vmatprep.mubr.bf16.mxu0 0
    %5231 = vmatmul.mubr.bf16.gmra.mxu0 %v5155
    %v5232 = vpop.f32.mrf.mxu0
    %v5233 = vadd.f32 %v5088, %v5232
    %v5234 = vpop.f32.mrf.mxu0
    %v5235 = vpop.f32.mrf.mxu0
    %v5236 = vadd.f32 %v5091, %v5235
    %v5237 = vpop.f32.mrf.mxu0
    %5238 = vmatprep.mubr.bf16.mxu0 0
    %5239 = vmatmul.mubr.bf16.gmra.mxu0 %v5158
    %v5240 = vpop.f32.mrf.mxu0
    %v5241 = vadd.f32 %v5096, %v5240
    %v5242 = vpop.f32.mrf.mxu0
    %v5243 = vpop.f32.mrf.mxu0
    %v5244 = vadd.f32 %v5099, %v5243
    %v5245 = vpop.f32.mrf.mxu0
    %5246 = vmatprep.mubr.bf16.mxu0 0
    %5247 = vmatmul.mubr.bf16.gmra.mxu0 %v5161
    %v5248 = vpop.f32.mrf.mxu0
    %v5249 = vadd.f32 %v5104, %v5248
    %v5250 = vpop.f32.mrf.mxu0
    %v5251 = vpop.f32.mrf.mxu0
    %v5252 = vadd.f32 %v5107, %v5251
    %v5253 = vpop.f32.mrf.mxu0
    %5254 = vmatprep.mubr.bf16.mxu0 0
    %5255 = vmatmul.mubr.bf16.gmra.mxu0 %v5164
    %v5256 = vpop.f32.mrf.mxu0
    %v5257 = vadd.f32 %v5112, %v5256
    %v5258 = vpop.f32.mrf.mxu0
    %v5259 = vpop.f32.mrf.mxu0
    %v5260 = vadd.f32 %v5115, %v5259
    %v5261 = vpop.f32.mrf.mxu0
    %5262 = vdwg.mxu0
    %vm5279 = vcmask 1046528
    %v5280 = vrot.slane %v4784, 1
    %v5281 = vrot.slane %v4785, 1
    %v5282 = vsel %vm5279, %v5280, %v5281
    %v5283 = vrot.slane %v4787, 1
    %v5284 = vrot.slane %v4788, 1
    %v5285 = vsel %vm5279, %v5283, %v5284
    %v5286 = vrot.slane %v4790, 1
    %v5287 = vrot.slane %v4791, 1
    %v5288 = vsel %vm5279, %v5286, %v5287
    %v5289 = vrot.slane %v4793, 1
    %v5290 = vrot.slane %v4794, 1
    %v5291 = vsel %vm5279, %v5289, %v5290
    %v5292 = vrot.slane %v4796, 1
    %v5293 = vrot.slane %v4797, 1
    %v5294 = vsel %vm5279, %v5292, %v5293
    %v5295 = vrot.slane %v4799, 1
    %v5296 = vrot.slane %v4800, 1
    %v5297 = vsel %vm5279, %v5295, %v5296
    %v5298 = vrot.slane %v4802, 1
    %v5299 = vrot.slane %v4803, 1
    %v5300 = vsel %vm5279, %v5298, %v5299
    %v5301 = vrot.slane %v4805, 1
    %v5302 = vrot.slane %v4806, 1
    %v5303 = vsel %vm5279, %v5301, %v5302
    %v5304 = vrot.slane %v4814, 1
    %v5305 = vrot.slane %v4815, 1
    %v5306 = vsel %vm5279, %v5304, %v5305
    %v5307 = vrot.slane %v4817, 1
    %v5308 = vrot.slane %v4818, 1
    %v5309 = vsel %vm5279, %v5307, %v5308
    %v5310 = vrot.slane %v4820, 1
    %v5311 = vrot.slane %v4821, 1
    %v5312 = vsel %vm5279, %v5310, %v5311
    %v5313 = vrot.slane %v4823, 1
    %v5314 = vrot.slane %v4824, 1
    %v5315 = vsel %vm5279, %v5313, %v5314
    %v5316 = vrot.slane %v4826, 1
    %v5317 = vrot.slane %v4827, 1
    %v5318 = vsel %vm5279, %v5316, %v5317
    %v5319 = vrot.slane %v4829, 1
    %v5320 = vrot.slane %v4830, 1
    %v5321 = vsel %vm5279, %v5319, %v5320
    %v5322 = vrot.slane %v4832, 1
    %v5323 = vrot.slane %v4833, 1
    %v5324 = vsel %vm5279, %v5322, %v5323
    %v5325 = vrot.slane %v4835, 1
    %v5326 = vrot.slane %v4836, 1
    %v5327 = vsel %vm5279, %v5325, %v5326
    %v5344 = vpack.c.bf16 %v5285, %v5282
    %v5345 = vpack.c.bf16 %v5291, %v5288
    %v5346 = vpack.c.bf16 %v5297, %v5294
    %v5347 = vpack.c.bf16 %v5303, %v5300
    %v5348 = vpack.c.bf16 %v5309, %v5306
    %v5349 = vpack.c.bf16 %v5315, %v5312
    %v5350 = vpack.c.bf16 %v5321, %v5318
    %v5351 = vpack.c.bf16 %v5327, %v5324
    %s5352 = scalar_lea.vmem %s2, 64
    %v5353 = vld [vmem:[%s5352] sm:$0xf]
    %v5354 = vld [vmem:[%s5352 + $0x4] sm:$0xf]
    %v5355 = vld [vmem:[%s5352 + $0x8] sm:$0xf]
    %v5356 = vld [vmem:[%s5352 + $0xc] sm:$0xf]
    %v5357 = vld [vmem:[%s5352 + $0x10] sm:$0xf]
    %v5358 = vld [vmem:[%s5352 + $0x14] sm:$0xf]
    %v5359 = vld [vmem:[%s5352 + $0x18] sm:$0xf]
    %v5360 = vld [vmem:[%s5352 + $0x1c] sm:$0xf]
    %v5369 = vunpack.c.l.b16 %v5353
    %v5370 = vunpack.c.l.b16 %v5354
    %v5371 = vunpack.c.l.b16 %v5355
    %v5372 = vunpack.c.l.b16 %v5356
    %v5373 = vunpack.c.l.b16 %v5357
    %v5374 = vunpack.c.l.b16 %v5358
    %v5375 = vunpack.c.l.b16 %v5359
    %v5376 = vunpack.c.l.b16 %v5360
    %v5377 = vpack.c.b16 %v5370, %v5369
    %v5378 = vpack.c.b16 %v5372, %v5371
    %v5379 = vpack.c.b16 %v5374, %v5373
    %v5380 = vpack.c.b16 %v5376, %v5375
    %v5386 = vsel %vm4057, %v5344, 0
    %v5389 = vsel %vm4057, %v5345, 0
    %v5392 = vsel %vm4057, %v5346, 0
    %v5395 = vsel %vm4057, %v5347, 0
    %v5398 = vsel %vm4057, %v5348, 0
    %v5401 = vsel %vm4057, %v5349, 0
    %v5404 = vsel %vm4057, %v5350, 0
    %v5407 = vsel %vm4057, %v5351, 0
    %5409 = vmatprep.subr.bf16.mxu0 0
    %5410 = vmatpush1.bf16.msra.mxu0 0
    %5411 = vmatprep.subr.bf16.mxu0 0
    %5412 = vmatpush1.bf16.msra.mxu0 0
    %5413 = vmatprep.subr.bf16.mxu0 0
    %5414 = vmatpush1.bf16.msra.mxu0 0
    %5415 = vmatprep.subr.bf16.mxu0 0
    %5416 = vmatpush1.bf16.msra.mxu0 0
    %5417 = vmatprep.subr.bf16.mxu0 0
    %5418 = vmatpush1.bf16.msra.mxu0 %v5380
    %5419 = vmatprep.subr.bf16.mxu0 0
    %5420 = vmatpush1.bf16.msra.mxu0 %v5379
    %5421 = vmatprep.subr.bf16.mxu0 0
    %5422 = vmatpush1.bf16.msra.mxu0 %v5378
    %5423 = vmatprep.subr.bf16.mxu0 0
    %5424 = vmatpush1.bf16.msra.mxu0 %v5377
    %5425 = vmatprep.subr.bf16.mxu0 0
    %5426 = vmatpush2.bf16.msra.mxu0 0
    %5427 = vmatprep.subr.bf16.mxu0 0
    %5428 = vmatpush2.bf16.msra.mxu0 0
    %5429 = vmatprep.subr.bf16.mxu0 0
    %5430 = vmatpush2.bf16.msra.mxu0 0
    %5431 = vmatprep.subr.bf16.mxu0 0
    %5432 = vmatpush2.bf16.msra.mxu0 0
    %5433 = vmatprep.subr.bf16.mxu0 0
    %5434 = vmatpush2.bf16.msra.mxu0 0
    %5435 = vmatprep.subr.bf16.mxu0 0
    %5436 = vmatpush2.bf16.msra.mxu0 0
    %5437 = vmatprep.subr.bf16.mxu0 0
    %5438 = vmatpush2.bf16.msra.mxu0 0
    %5439 = vmatprep.subr.bf16.mxu0 0
    %5440 = vmatpush2.bf16.msra.mxu0 0
    %5441 = vmatprep.mubr.bf16.mxu0 0
    %5442 = vmatmul.mubr.bf16.gmra.mxu0 %v5386
    %v5443 = vpop.f32.mrf.mxu0
    %v5444 = vadd.f32 0.0, %v5443
    %v5445 = vpop.f32.mrf.mxu0
    %v5446 = vpop.f32.mrf.mxu0
    %v5447 = vadd.f32 0.0, %v5446
    %v5448 = vpop.f32.mrf.mxu0
    %5449 = vmatprep.mubr.bf16.mxu0 0
    %5450 = vmatmul.mubr.bf16.gmra.mxu0 %v5389
    %v5451 = vpop.f32.mrf.mxu0
    %v5452 = vadd.f32 0.0, %v5451
    %v5453 = vpop.f32.mrf.mxu0
    %v5454 = vpop.f32.mrf.mxu0
    %v5455 = vadd.f32 0.0, %v5454
    %v5456 = vpop.f32.mrf.mxu0
    %5457 = vmatprep.mubr.bf16.mxu0 0
    %5458 = vmatmul.mubr.bf16.gmra.mxu0 %v5392
    %v5459 = vpop.f32.mrf.mxu0
    %v5460 = vadd.f32 0.0, %v5459
    %v5461 = vpop.f32.mrf.mxu0
    %v5462 = vpop.f32.mrf.mxu0
    %v5463 = vadd.f32 0.0, %v5462
    %v5464 = vpop.f32.mrf.mxu0
    %5465 = vmatprep.mubr.bf16.mxu0 0
    %5466 = vmatmul.mubr.bf16.gmra.mxu0 %v5395
    %v5467 = vpop.f32.mrf.mxu0
    %v5468 = vadd.f32 0.0, %v5467
    %v5469 = vpop.f32.mrf.mxu0
    %v5470 = vpop.f32.mrf.mxu0
    %v5471 = vadd.f32 0.0, %v5470
    %v5472 = vpop.f32.mrf.mxu0
    %5473 = vmatprep.mubr.bf16.mxu0 0
    %5474 = vmatmul.mubr.bf16.gmra.mxu0 %v5398
    %v5475 = vpop.f32.mrf.mxu0
    %v5476 = vadd.f32 0.0, %v5475
    %v5477 = vpop.f32.mrf.mxu0
    %v5478 = vpop.f32.mrf.mxu0
    %v5479 = vadd.f32 0.0, %v5478
    %v5480 = vpop.f32.mrf.mxu0
    %5481 = vmatprep.mubr.bf16.mxu0 0
    %5482 = vmatmul.mubr.bf16.gmra.mxu0 %v5401
    %v5483 = vpop.f32.mrf.mxu0
    %v5484 = vadd.f32 0.0, %v5483
    %v5485 = vpop.f32.mrf.mxu0
    %v5486 = vpop.f32.mrf.mxu0
    %v5487 = vadd.f32 0.0, %v5486
    %v5488 = vpop.f32.mrf.mxu0
    %5489 = vmatprep.mubr.bf16.mxu0 0
    %5490 = vmatmul.mubr.bf16.gmra.mxu0 %v5404
    %v5491 = vpop.f32.mrf.mxu0
    %v5492 = vadd.f32 0.0, %v5491
    %v5493 = vpop.f32.mrf.mxu0
    %v5494 = vpop.f32.mrf.mxu0
    %v5495 = vadd.f32 0.0, %v5494
    %v5496 = vpop.f32.mrf.mxu0
    %5497 = vmatprep.mubr.bf16.mxu0 0
    %5498 = vmatmul.mubr.bf16.gmra.mxu0 %v5407
    %v5499 = vpop.f32.mrf.mxu0
    %v5500 = vadd.f32 0.0, %v5499
    %v5501 = vpop.f32.mrf.mxu0
    %v5502 = vpop.f32.mrf.mxu0
    %v5503 = vadd.f32 0.0, %v5502
    %v5504 = vpop.f32.mrf.mxu0
    %5505 = vdwg.mxu0
    %v5506 = vadd.f32 %v5201, %v5444
    %v5507 = vadd.f32 %v5204, %v5447
    %v5508 = vadd.f32 %v5209, %v5452
    %v5509 = vadd.f32 %v5212, %v5455
    %v5510 = vadd.f32 %v5217, %v5460
    %v5511 = vadd.f32 %v5220, %v5463
    %v5512 = vadd.f32 %v5225, %v5468
    %v5513 = vadd.f32 %v5228, %v5471
    %v5514 = vadd.f32 %v5233, %v5476
    %v5515 = vadd.f32 %v5236, %v5479
    %v5516 = vadd.f32 %v5241, %v5484
    %v5517 = vadd.f32 %v5244, %v5487
    %v5518 = vadd.f32 %v5249, %v5492
    %v5519 = vadd.f32 %v5252, %v5495
    %v5520 = vadd.f32 %v5257, %v5500
    %v5521 = vadd.f32 %v5260, %v5503
    %v5526 = vrot.slane %v4807, 7
    %v5527 = vrot.slane %v4808, 7
    %v5528 = vsel %vm4875, %v5526, %v5527
    %v5529 = vrot.slane %v4837, 7
    %v5530 = vrot.slane %v4838, 7
    %v5531 = vsel %vm4875, %v5529, %v5530
    %v5534 = vpack.c.bf16 %v4884, %v4881
    %v5535 = vpack.c.bf16 %v4890, %v4887
    %v5536 = vpack.c.bf16 %v4896, %v4893
    %v5537 = vpack.c.bf16 %v5528, %v4899
    %v5538 = vpack.c.bf16 %v4908, %v4905
    %v5539 = vpack.c.bf16 %v4914, %v4911
    %v5540 = vpack.c.bf16 %v4920, %v4917
    %v5541 = vpack.c.bf16 %v5531, %v4923
    %s5542 = scalar_lea.vmem %s2, 96
    %v5543 = vld [vmem:[%s5542] sm:$0xf]
    %v5544 = vld [vmem:[%s5542 + $0x4] sm:$0xf]
    %v5545 = vld [vmem:[%s5542 + $0x8] sm:$0xf]
    %v5546 = vld [vmem:[%s5542 + $0xc] sm:$0xf]
    %v5547 = vld [vmem:[%s5542 + $0x10] sm:$0xf]
    %v5548 = vld [vmem:[%s5542 + $0x14] sm:$0xf]
    %v5549 = vld [vmem:[%s5542 + $0x18] sm:$0xf]
    %v5550 = vld [vmem:[%s5542 + $0x1c] sm:$0xf]
    %v5559 = vunpack.c.l.b16 %v5543
    %v5560 = vunpack.c.l.b16 %v5544
    %v5561 = vunpack.c.l.b16 %v5545
    %v5562 = vunpack.c.l.b16 %v5546
    %v5563 = vunpack.c.l.b16 %v5547
    %v5564 = vunpack.c.l.b16 %v5548
    %v5565 = vunpack.c.l.b16 %v5549
    %v5566 = vunpack.c.l.b16 %v5550
    %v5567 = vpack.c.b16 %v5560, %v5559
    %v5568 = vpack.c.b16 %v5562, %v5561
    %v5569 = vpack.c.b16 %v5564, %v5563
    %v5570 = vpack.c.b16 %v5566, %v5565
    %v5576 = vsel %vm4057, %v5534, 0
    %v5579 = vsel %vm4057, %v5535, 0
    %v5582 = vsel %vm4057, %v5536, 0
    %v5585 = vsel %vm4057, %v5537, 0
    %v5588 = vsel %vm4057, %v5538, 0
    %v5591 = vsel %vm4057, %v5539, 0
    %v5594 = vsel %vm4057, %v5540, 0
    %v5597 = vsel %vm4057, %v5541, 0
    %5599 = vmatprep.subr.bf16.mxu0 0
    %5600 = vmatpush1.bf16.msra.mxu0 0
    %5601 = vmatprep.subr.bf16.mxu0 0
    %5602 = vmatpush1.bf16.msra.mxu0 0
    %5603 = vmatprep.subr.bf16.mxu0 0
    %5604 = vmatpush1.bf16.msra.mxu0 0
    %5605 = vmatprep.subr.bf16.mxu0 0
    %5606 = vmatpush1.bf16.msra.mxu0 0
    %5607 = vmatprep.subr.bf16.mxu0 0
    %5608 = vmatpush1.bf16.msra.mxu0 %v5570
    %5609 = vmatprep.subr.bf16.mxu0 0
    %5610 = vmatpush1.bf16.msra.mxu0 %v5569
    %5611 = vmatprep.subr.bf16.mxu0 0
    %5612 = vmatpush1.bf16.msra.mxu0 %v5568
    %5613 = vmatprep.subr.bf16.mxu0 0
    %5614 = vmatpush1.bf16.msra.mxu0 %v5567
    %5615 = vmatprep.subr.bf16.mxu0 0
    %5616 = vmatpush2.bf16.msra.mxu0 0
    %5617 = vmatprep.subr.bf16.mxu0 0
    %5618 = vmatpush2.bf16.msra.mxu0 0
    %5619 = vmatprep.subr.bf16.mxu0 0
    %5620 = vmatpush2.bf16.msra.mxu0 0
    %5621 = vmatprep.subr.bf16.mxu0 0
    %5622 = vmatpush2.bf16.msra.mxu0 0
    %5623 = vmatprep.subr.bf16.mxu0 0
    %5624 = vmatpush2.bf16.msra.mxu0 0
    %5625 = vmatprep.subr.bf16.mxu0 0
    %5626 = vmatpush2.bf16.msra.mxu0 0
    %5627 = vmatprep.subr.bf16.mxu0 0
    %5628 = vmatpush2.bf16.msra.mxu0 0
    %5629 = vmatprep.subr.bf16.mxu0 0
    %5630 = vmatpush2.bf16.msra.mxu0 0
    %5631 = vmatprep.mubr.bf16.mxu0 0
    %5632 = vmatmul.mubr.bf16.gmra.mxu0 %v5576
    %v5633 = vpop.f32.mrf.mxu0
    %v5634 = vadd.f32 0.0, %v5633
    %v5635 = vpop.f32.mrf.mxu0
    %v5636 = vpop.f32.mrf.mxu0
    %v5637 = vadd.f32 0.0, %v5636
    %v5638 = vpop.f32.mrf.mxu0
    %5639 = vmatprep.mubr.bf16.mxu0 0
    %5640 = vmatmul.mubr.bf16.gmra.mxu0 %v5579
    %v5641 = vpop.f32.mrf.mxu0
    %v5642 = vadd.f32 0.0, %v5641
    %v5643 = vpop.f32.mrf.mxu0
    %v5644 = vpop.f32.mrf.mxu0
    %v5645 = vadd.f32 0.0, %v5644
    %v5646 = vpop.f32.mrf.mxu0
    %5647 = vmatprep.mubr.bf16.mxu0 0
    %5648 = vmatmul.mubr.bf16.gmra.mxu0 %v5582
    %v5649 = vpop.f32.mrf.mxu0
    %v5650 = vadd.f32 0.0, %v5649
    %v5651 = vpop.f32.mrf.mxu0
    %v5652 = vpop.f32.mrf.mxu0
    %v5653 = vadd.f32 0.0, %v5652
    %v5654 = vpop.f32.mrf.mxu0
    %5655 = vmatprep.mubr.bf16.mxu0 0
    %5656 = vmatmul.mubr.bf16.gmra.mxu0 %v5585
    %v5657 = vpop.f32.mrf.mxu0
    %v5658 = vadd.f32 0.0, %v5657
    %v5659 = vpop.f32.mrf.mxu0
    %v5660 = vpop.f32.mrf.mxu0
    %v5661 = vadd.f32 0.0, %v5660
    %v5662 = vpop.f32.mrf.mxu0
    %5663 = vmatprep.mubr.bf16.mxu0 0
    %5664 = vmatmul.mubr.bf16.gmra.mxu0 %v5588
    %v5665 = vpop.f32.mrf.mxu0
    %v5666 = vadd.f32 0.0, %v5665
    %v5667 = vpop.f32.mrf.mxu0
    %v5668 = vpop.f32.mrf.mxu0
    %v5669 = vadd.f32 0.0, %v5668
    %v5670 = vpop.f32.mrf.mxu0
    %5671 = vmatprep.mubr.bf16.mxu0 0
    %5672 = vmatmul.mubr.bf16.gmra.mxu0 %v5591
    %v5673 = vpop.f32.mrf.mxu0
    %v5674 = vadd.f32 0.0, %v5673
    %v5675 = vpop.f32.mrf.mxu0
    %v5676 = vpop.f32.mrf.mxu0
    %v5677 = vadd.f32 0.0, %v5676
    %v5678 = vpop.f32.mrf.mxu0
    %5679 = vmatprep.mubr.bf16.mxu0 0
    %5680 = vmatmul.mubr.bf16.gmra.mxu0 %v5594
    %v5681 = vpop.f32.mrf.mxu0
    %v5682 = vadd.f32 0.0, %v5681
    %v5683 = vpop.f32.mrf.mxu0
    %v5684 = vpop.f32.mrf.mxu0
    %v5685 = vadd.f32 0.0, %v5684
    %v5686 = vpop.f32.mrf.mxu0
    %5687 = vmatprep.mubr.bf16.mxu0 0
    %5688 = vmatmul.mubr.bf16.gmra.mxu0 %v5597
    %v5689 = vpop.f32.mrf.mxu0
    %v5690 = vadd.f32 0.0, %v5689
    %v5691 = vpop.f32.mrf.mxu0
    %v5692 = vpop.f32.mrf.mxu0
    %v5693 = vadd.f32 0.0, %v5692
    %v5694 = vpop.f32.mrf.mxu0
    %5695 = vdwg.mxu0
    %v5696 = vadd.f32 %v5506, %v5634
    %v5697 = vadd.f32 %v5507, %v5637
    %v5698 = vadd.f32 %v5508, %v5642
    %v5699 = vadd.f32 %v5509, %v5645
    %v5700 = vadd.f32 %v5510, %v5650
    %v5701 = vadd.f32 %v5511, %v5653
    %v5702 = vadd.f32 %v5512, %v5658
    %v5703 = vadd.f32 %v5513, %v5661
    %v5704 = vadd.f32 %v5514, %v5666
    %v5705 = vadd.f32 %v5515, %v5669
    %v5706 = vadd.f32 %v5516, %v5674
    %v5707 = vadd.f32 %v5517, %v5677
    %v5708 = vadd.f32 %v5518, %v5682
    %v5709 = vadd.f32 %v5519, %v5685
    %v5710 = vadd.f32 %v5520, %v5690
    %v5711 = vadd.f32 %v5521, %v5693
    %v5712 = vpack.c.bf16 %v4790, %v4787
    %v5713 = vpack.c.bf16 %v4796, %v4793
    %v5714 = vpack.c.bf16 %v4802, %v4799
    %v5715 = vpack.c.bf16 %v4808, %v4805
    %v5716 = vpack.c.bf16 %v4820, %v4817
    %v5717 = vpack.c.bf16 %v4826, %v4823
    %v5718 = vpack.c.bf16 %v4832, %v4829
    %v5719 = vpack.c.bf16 %v4838, %v4835
    %s5720 = scalar_lea.vmem %s2, 128
    %v5721 = vld [vmem:[%s5720] sm:$0xf]
    %v5722 = vld [vmem:[%s5720 + $0x4] sm:$0xf]
    %v5723 = vld [vmem:[%s5720 + $0x8] sm:$0xf]
    %v5724 = vld [vmem:[%s5720 + $0xc] sm:$0xf]
    %v5725 = vld [vmem:[%s5720 + $0x10] sm:$0xf]
    %v5726 = vld [vmem:[%s5720 + $0x14] sm:$0xf]
    %v5727 = vld [vmem:[%s5720 + $0x18] sm:$0xf]
    %v5728 = vld [vmem:[%s5720 + $0x1c] sm:$0xf]
    %v5737 = vunpack.c.l.b16 %v5721
    %v5738 = vunpack.c.l.b16 %v5722
    %v5739 = vunpack.c.l.b16 %v5723
    %v5740 = vunpack.c.l.b16 %v5724
    %v5741 = vunpack.c.l.b16 %v5725
    %v5742 = vunpack.c.l.b16 %v5726
    %v5743 = vunpack.c.l.b16 %v5727
    %v5744 = vunpack.c.l.b16 %v5728
    %v5745 = vpack.c.b16 %v5738, %v5737
    %v5746 = vpack.c.b16 %v5740, %v5739
    %v5747 = vpack.c.b16 %v5742, %v5741
    %v5748 = vpack.c.b16 %v5744, %v5743
    %v5754 = vsel %vm4057, %v5712, 0
    %v5757 = vsel %vm4057, %v5713, 0
    %v5760 = vsel %vm4057, %v5714, 0
    %v5763 = vsel %vm4057, %v5715, 0
    %v5766 = vsel %vm4057, %v5716, 0
    %v5769 = vsel %vm4057, %v5717, 0
    %v5772 = vsel %vm4057, %v5718, 0
    %v5775 = vsel %vm4057, %v5719, 0
    %5777 = vmatprep.subr.bf16.mxu0 0
    %5778 = vmatpush1.bf16.msra.mxu0 0
    %5779 = vmatprep.subr.bf16.mxu0 0
    %5780 = vmatpush1.bf16.msra.mxu0 0
    %5781 = vmatprep.subr.bf16.mxu0 0
    %5782 = vmatpush1.bf16.msra.mxu0 0
    %5783 = vmatprep.subr.bf16.mxu0 0
    %5784 = vmatpush1.bf16.msra.mxu0 0
    %5785 = vmatprep.subr.bf16.mxu0 0
    %5786 = vmatpush1.bf16.msra.mxu0 %v5748
    %5787 = vmatprep.subr.bf16.mxu0 0
    %5788 = vmatpush1.bf16.msra.mxu0 %v5747
    %5789 = vmatprep.subr.bf16.mxu0 0
    %5790 = vmatpush1.bf16.msra.mxu0 %v5746
    %5791 = vmatprep.subr.bf16.mxu0 0
    %5792 = vmatpush1.bf16.msra.mxu0 %v5745
    %5793 = vmatprep.subr.bf16.mxu0 0
    %5794 = vmatpush2.bf16.msra.mxu0 0
    %5795 = vmatprep.subr.bf16.mxu0 0
    %5796 = vmatpush2.bf16.msra.mxu0 0
    %5797 = vmatprep.subr.bf16.mxu0 0
    %5798 = vmatpush2.bf16.msra.mxu0 0
    %5799 = vmatprep.subr.bf16.mxu0 0
    %5800 = vmatpush2.bf16.msra.mxu0 0
    %5801 = vmatprep.subr.bf16.mxu0 0
    %5802 = vmatpush2.bf16.msra.mxu0 0
    %5803 = vmatprep.subr.bf16.mxu0 0
    %5804 = vmatpush2.bf16.msra.mxu0 0
    %5805 = vmatprep.subr.bf16.mxu0 0
    %5806 = vmatpush2.bf16.msra.mxu0 0
    %5807 = vmatprep.subr.bf16.mxu0 0
    %5808 = vmatpush2.bf16.msra.mxu0 0
    %5809 = vmatprep.mubr.bf16.mxu0 0
    %5810 = vmatmul.mubr.bf16.gmra.mxu0 %v5754
    %v5811 = vpop.f32.mrf.mxu0
    %v5812 = vadd.f32 0.0, %v5811
    %v5813 = vpop.f32.mrf.mxu0
    %v5814 = vpop.f32.mrf.mxu0
    %v5815 = vadd.f32 0.0, %v5814
    %v5816 = vpop.f32.mrf.mxu0
    %5817 = vmatprep.mubr.bf16.mxu0 0
    %5818 = vmatmul.mubr.bf16.gmra.mxu0 %v5757
    %v5819 = vpop.f32.mrf.mxu0
    %v5820 = vadd.f32 0.0, %v5819
    %v5821 = vpop.f32.mrf.mxu0
    %v5822 = vpop.f32.mrf.mxu0
    %v5823 = vadd.f32 0.0, %v5822
    %v5824 = vpop.f32.mrf.mxu0
    %5825 = vmatprep.mubr.bf16.mxu0 0
    %5826 = vmatmul.mubr.bf16.gmra.mxu0 %v5760
    %v5827 = vpop.f32.mrf.mxu0
    %v5828 = vadd.f32 0.0, %v5827
    %v5829 = vpop.f32.mrf.mxu0
    %v5830 = vpop.f32.mrf.mxu0
    %v5831 = vadd.f32 0.0, %v5830
    %v5832 = vpop.f32.mrf.mxu0
    %5833 = vmatprep.mubr.bf16.mxu0 0
    %5834 = vmatmul.mubr.bf16.gmra.mxu0 %v5763
    %v5835 = vpop.f32.mrf.mxu0
    %v5836 = vadd.f32 0.0, %v5835
    %v5837 = vpop.f32.mrf.mxu0
    %v5838 = vpop.f32.mrf.mxu0
    %v5839 = vadd.f32 0.0, %v5838
    %v5840 = vpop.f32.mrf.mxu0
    %5841 = vmatprep.mubr.bf16.mxu0 0
    %5842 = vmatmul.mubr.bf16.gmra.mxu0 %v5766
    %v5843 = vpop.f32.mrf.mxu0
    %v5844 = vadd.f32 0.0, %v5843
    %v5845 = vpop.f32.mrf.mxu0
    %v5846 = vpop.f32.mrf.mxu0
    %v5847 = vadd.f32 0.0, %v5846
    %v5848 = vpop.f32.mrf.mxu0
    %5849 = vmatprep.mubr.bf16.mxu0 0
    %5850 = vmatmul.mubr.bf16.gmra.mxu0 %v5769
    %v5851 = vpop.f32.mrf.mxu0
    %v5852 = vadd.f32 0.0, %v5851
    %v5853 = vpop.f32.mrf.mxu0
    %v5854 = vpop.f32.mrf.mxu0
    %v5855 = vadd.f32 0.0, %v5854
    %v5856 = vpop.f32.mrf.mxu0
    %5857 = vmatprep.mubr.bf16.mxu0 0
    %5858 = vmatmul.mubr.bf16.gmra.mxu0 %v5772
    %v5859 = vpop.f32.mrf.mxu0
    %v5860 = vadd.f32 0.0, %v5859
    %v5861 = vpop.f32.mrf.mxu0
    %v5862 = vpop.f32.mrf.mxu0
    %v5863 = vadd.f32 0.0, %v5862
    %v5864 = vpop.f32.mrf.mxu0
    %5865 = vmatprep.mubr.bf16.mxu0 0
    %5866 = vmatmul.mubr.bf16.gmra.mxu0 %v5775
    %v5867 = vpop.f32.mrf.mxu0
    %v5868 = vadd.f32 0.0, %v5867
    %v5869 = vpop.f32.mrf.mxu0
    %v5870 = vpop.f32.mrf.mxu0
    %v5871 = vadd.f32 0.0, %v5870
    %v5872 = vpop.f32.mrf.mxu0
    %5873 = vdwg.mxu0
    %v5874 = vadd.f32 %v5696, %v5812
    %v5875 = vadd.f32 %v5697, %v5815
    %v5876 = vadd.f32 %v5698, %v5820
    %v5877 = vadd.f32 %v5699, %v5823
    %v5878 = vadd.f32 %v5700, %v5828
    %v5879 = vadd.f32 %v5701, %v5831
    %v5880 = vadd.f32 %v5702, %v5836
    %v5881 = vadd.f32 %v5703, %v5839
    %v5882 = vadd.f32 %v5704, %v5844
    %v5883 = vadd.f32 %v5705, %v5847
    %v5884 = vadd.f32 %v5706, %v5852
    %v5885 = vadd.f32 %v5707, %v5855
    %v5886 = vadd.f32 %v5708, %v5860
    %v5887 = vadd.f32 %v5709, %v5863
    %v5888 = vadd.f32 %v5710, %v5868
    %v5889 = vadd.f32 %v5711, %v5871
    %v5892 = vrot.slane %v4808, 1
    %v5893 = vrot.slane %v4809, 1
    %v5894 = vsel %vm5279, %v5892, %v5893
    %v5895 = vrot.slane %v4838, 1
    %v5896 = vrot.slane %v4839, 1
    %v5897 = vsel %vm5279, %v5895, %v5896
    %v5900 = vpack.c.bf16 %v5288, %v5285
    %v5901 = vpack.c.bf16 %v5294, %v5291
    %v5902 = vpack.c.bf16 %v5300, %v5297
    %v5903 = vpack.c.bf16 %v5894, %v5303
    %v5904 = vpack.c.bf16 %v5312, %v5309
    %v5905 = vpack.c.bf16 %v5318, %v5315
    %v5906 = vpack.c.bf16 %v5324, %v5321
    %v5907 = vpack.c.bf16 %v5897, %v5327
    %s5908 = scalar_lea.vmem %s2, 160
    %v5909 = vld [vmem:[%s5908] sm:$0xf]
    %v5910 = vld [vmem:[%s5908 + $0x4] sm:$0xf]
    %v5911 = vld [vmem:[%s5908 + $0x8] sm:$0xf]
    %v5912 = vld [vmem:[%s5908 + $0xc] sm:$0xf]
    %v5913 = vld [vmem:[%s5908 + $0x10] sm:$0xf]
    %v5914 = vld [vmem:[%s5908 + $0x14] sm:$0xf]
    %v5915 = vld [vmem:[%s5908 + $0x18] sm:$0xf]
    %v5916 = vld [vmem:[%s5908 + $0x1c] sm:$0xf]
    %v5925 = vunpack.c.l.b16 %v5909
    %v5926 = vunpack.c.l.b16 %v5910
    %v5927 = vunpack.c.l.b16 %v5911
    %v5928 = vunpack.c.l.b16 %v5912
    %v5929 = vunpack.c.l.b16 %v5913
    %v5930 = vunpack.c.l.b16 %v5914
    %v5931 = vunpack.c.l.b16 %v5915
    %v5932 = vunpack.c.l.b16 %v5916
    %v5933 = vpack.c.b16 %v5926, %v5925
    %v5934 = vpack.c.b16 %v5928, %v5927
    %v5935 = vpack.c.b16 %v5930, %v5929
    %v5936 = vpack.c.b16 %v5932, %v5931
    %v5942 = vsel %vm4057, %v5900, 0
    %v5945 = vsel %vm4057, %v5901, 0
    %v5948 = vsel %vm4057, %v5902, 0
    %v5951 = vsel %vm4057, %v5903, 0
    %v5954 = vsel %vm4057, %v5904, 0
    %v5957 = vsel %vm4057, %v5905, 0
    %v5960 = vsel %vm4057, %v5906, 0
    %v5963 = vsel %vm4057, %v5907, 0
    %5965 = vmatprep.subr.bf16.mxu0 0
    %5966 = vmatpush1.bf16.msra.mxu0 0
    %5967 = vmatprep.subr.bf16.mxu0 0
    %5968 = vmatpush1.bf16.msra.mxu0 0
    %5969 = vmatprep.subr.bf16.mxu0 0
    %5970 = vmatpush1.bf16.msra.mxu0 0
    %5971 = vmatprep.subr.bf16.mxu0 0
    %5972 = vmatpush1.bf16.msra.mxu0 0
    %5973 = vmatprep.subr.bf16.mxu0 0
    %5974 = vmatpush1.bf16.msra.mxu0 %v5936
    %5975 = vmatprep.subr.bf16.mxu0 0
    %5976 = vmatpush1.bf16.msra.mxu0 %v5935
    %5977 = vmatprep.subr.bf16.mxu0 0
    %5978 = vmatpush1.bf16.msra.mxu0 %v5934
    %5979 = vmatprep.subr.bf16.mxu0 0
    %5980 = vmatpush1.bf16.msra.mxu0 %v5933
    %5981 = vmatprep.subr.bf16.mxu0 0
    %5982 = vmatpush2.bf16.msra.mxu0 0
    %5983 = vmatprep.subr.bf16.mxu0 0
    %5984 = vmatpush2.bf16.msra.mxu0 0
    %5985 = vmatprep.subr.bf16.mxu0 0
    %5986 = vmatpush2.bf16.msra.mxu0 0
    %5987 = vmatprep.subr.bf16.mxu0 0
    %5988 = vmatpush2.bf16.msra.mxu0 0
    %5989 = vmatprep.subr.bf16.mxu0 0
    %5990 = vmatpush2.bf16.msra.mxu0 0
    %5991 = vmatprep.subr.bf16.mxu0 0
    %5992 = vmatpush2.bf16.msra.mxu0 0
    %5993 = vmatprep.subr.bf16.mxu0 0
    %5994 = vmatpush2.bf16.msra.mxu0 0
    %5995 = vmatprep.subr.bf16.mxu0 0
    %5996 = vmatpush2.bf16.msra.mxu0 0
    %5997 = vmatprep.mubr.bf16.mxu0 0
    %5998 = vmatmul.mubr.bf16.gmra.mxu0 %v5942
    %v5999 = vpop.f32.mrf.mxu0
    %v6000 = vadd.f32 0.0, %v5999
    %v6001 = vpop.f32.mrf.mxu0
    %v6002 = vpop.f32.mrf.mxu0
    %v6003 = vadd.f32 0.0, %v6002
    %v6004 = vpop.f32.mrf.mxu0
    %6005 = vmatprep.mubr.bf16.mxu0 0
    %6006 = vmatmul.mubr.bf16.gmra.mxu0 %v5945
    %v6007 = vpop.f32.mrf.mxu0
    %v6008 = vadd.f32 0.0, %v6007
    %v6009 = vpop.f32.mrf.mxu0
    %v6010 = vpop.f32.mrf.mxu0
    %v6011 = vadd.f32 0.0, %v6010
    %v6012 = vpop.f32.mrf.mxu0
    %6013 = vmatprep.mubr.bf16.mxu0 0
    %6014 = vmatmul.mubr.bf16.gmra.mxu0 %v5948
    %v6015 = vpop.f32.mrf.mxu0
    %v6016 = vadd.f32 0.0, %v6015
    %v6017 = vpop.f32.mrf.mxu0
    %v6018 = vpop.f32.mrf.mxu0
    %v6019 = vadd.f32 0.0, %v6018
    %v6020 = vpop.f32.mrf.mxu0
    %6021 = vmatprep.mubr.bf16.mxu0 0
    %6022 = vmatmul.mubr.bf16.gmra.mxu0 %v5951
    %v6023 = vpop.f32.mrf.mxu0
    %v6024 = vadd.f32 0.0, %v6023
    %v6025 = vpop.f32.mrf.mxu0
    %v6026 = vpop.f32.mrf.mxu0
    %v6027 = vadd.f32 0.0, %v6026
    %v6028 = vpop.f32.mrf.mxu0
    %6029 = vmatprep.mubr.bf16.mxu0 0
    %6030 = vmatmul.mubr.bf16.gmra.mxu0 %v5954
    %v6031 = vpop.f32.mrf.mxu0
    %v6032 = vadd.f32 0.0, %v6031
    %v6033 = vpop.f32.mrf.mxu0
    %v6034 = vpop.f32.mrf.mxu0
    %v6035 = vadd.f32 0.0, %v6034
    %v6036 = vpop.f32.mrf.mxu0
    %6037 = vmatprep.mubr.bf16.mxu0 0
    %6038 = vmatmul.mubr.bf16.gmra.mxu0 %v5957
    %v6039 = vpop.f32.mrf.mxu0
    %v6040 = vadd.f32 0.0, %v6039
    %v6041 = vpop.f32.mrf.mxu0
    %v6042 = vpop.f32.mrf.mxu0
    %v6043 = vadd.f32 0.0, %v6042
    %v6044 = vpop.f32.mrf.mxu0
    %6045 = vmatprep.mubr.bf16.mxu0 0
    %6046 = vmatmul.mubr.bf16.gmra.mxu0 %v5960
    %v6047 = vpop.f32.mrf.mxu0
    %v6048 = vadd.f32 0.0, %v6047
    %v6049 = vpop.f32.mrf.mxu0
    %v6050 = vpop.f32.mrf.mxu0
    %v6051 = vadd.f32 0.0, %v6050
    %v6052 = vpop.f32.mrf.mxu0
    %6053 = vmatprep.mubr.bf16.mxu0 0
    %6054 = vmatmul.mubr.bf16.gmra.mxu0 %v5963
    %v6055 = vpop.f32.mrf.mxu0
    %v6056 = vadd.f32 0.0, %v6055
    %v6057 = vpop.f32.mrf.mxu0
    %v6058 = vpop.f32.mrf.mxu0
    %v6059 = vadd.f32 0.0, %v6058
    %v6060 = vpop.f32.mrf.mxu0
    %6061 = vdwg.mxu0
    %v6062 = vadd.f32 %v5874, %v6000
    %v6063 = vadd.f32 %v5875, %v6003
    %v6064 = vadd.f32 %v5876, %v6008
    %v6065 = vadd.f32 %v5877, %v6011
    %v6066 = vadd.f32 %v5878, %v6016
    %v6067 = vadd.f32 %v5879, %v6019
    %v6068 = vadd.f32 %v5880, %v6024
    %v6069 = vadd.f32 %v5881, %v6027
    %v6070 = vadd.f32 %v5882, %v6032
    %v6071 = vadd.f32 %v5883, %v6035
    %v6072 = vadd.f32 %v5884, %v6040
    %v6073 = vadd.f32 %v5885, %v6043
    %v6074 = vadd.f32 %v5886, %v6048
    %v6075 = vadd.f32 %v5887, %v6051
    %v6076 = vadd.f32 %v5888, %v6056
    %v6077 = vadd.f32 %v5889, %v6059
    %v6082 = vrot.slane %v4810, 7
    %v6083 = vrot.slane %v4811, 7
    %v6084 = vsel %vm4875, %v6082, %v6083
    %v6085 = vrot.slane %v4840, 7
    %v6086 = vrot.slane %v4841, 7
    %v6087 = vsel %vm4875, %v6085, %v6086
    %v6090 = vpack.c.bf16 %v6084, %v5528
    %v6091 = vpack.c.bf16 %v6087, %v5531
    %s6092 = scalar_lea.vmem %s2, 192
    %v6093 = vld [vmem:[%s6092] sm:$0xf]
    %v6094 = vld [vmem:[%s6092 + $0x4] sm:$0xf]
    %v6095 = vld [vmem:[%s6092 + $0x8] sm:$0xf]
    %v6096 = vld [vmem:[%s6092 + $0xc] sm:$0xf]
    %v6097 = vld [vmem:[%s6092 + $0x10] sm:$0xf]
    %v6098 = vld [vmem:[%s6092 + $0x14] sm:$0xf]
    %v6099 = vld [vmem:[%s6092 + $0x18] sm:$0xf]
    %v6100 = vld [vmem:[%s6092 + $0x1c] sm:$0xf]
    %v6109 = vunpack.c.l.b16 %v6093
    %v6110 = vunpack.c.l.b16 %v6094
    %v6111 = vunpack.c.l.b16 %v6095
    %v6112 = vunpack.c.l.b16 %v6096
    %v6113 = vunpack.c.l.b16 %v6097
    %v6114 = vunpack.c.l.b16 %v6098
    %v6115 = vunpack.c.l.b16 %v6099
    %v6116 = vunpack.c.l.b16 %v6100
    %v6117 = vpack.c.b16 %v6110, %v6109
    %v6118 = vpack.c.b16 %v6112, %v6111
    %v6119 = vpack.c.b16 %v6114, %v6113
    %v6120 = vpack.c.b16 %v6116, %v6115
    %v6126 = vsel %vm4057, %v6090, 0
    %v6129 = vsel %vm4057, %v6091, 0
    %6131 = vmatprep.subr.bf16.mxu0 0
    %6132 = vmatpush1.bf16.msra.mxu0 0
    %6133 = vmatprep.subr.bf16.mxu0 0
    %6134 = vmatpush1.bf16.msra.mxu0 0
    %6135 = vmatprep.subr.bf16.mxu0 0
    %6136 = vmatpush1.bf16.msra.mxu0 0
    %6137 = vmatprep.subr.bf16.mxu0 0
    %6138 = vmatpush1.bf16.msra.mxu0 0
    %6139 = vmatprep.subr.bf16.mxu0 0
    %6140 = vmatpush1.bf16.msra.mxu0 %v6120
    %6141 = vmatprep.subr.bf16.mxu0 0
    %6142 = vmatpush1.bf16.msra.mxu0 %v6119
    %6143 = vmatprep.subr.bf16.mxu0 0
    %6144 = vmatpush1.bf16.msra.mxu0 %v6118
    %6145 = vmatprep.subr.bf16.mxu0 0
    %6146 = vmatpush1.bf16.msra.mxu0 %v6117
    %6147 = vmatprep.subr.bf16.mxu0 0
    %6148 = vmatpush2.bf16.msra.mxu0 0
    %6149 = vmatprep.subr.bf16.mxu0 0
    %6150 = vmatpush2.bf16.msra.mxu0 0
    %6151 = vmatprep.subr.bf16.mxu0 0
    %6152 = vmatpush2.bf16.msra.mxu0 0
    %6153 = vmatprep.subr.bf16.mxu0 0
    %6154 = vmatpush2.bf16.msra.mxu0 0
    %6155 = vmatprep.subr.bf16.mxu0 0
    %6156 = vmatpush2.bf16.msra.mxu0 0
    %6157 = vmatprep.subr.bf16.mxu0 0
    %6158 = vmatpush2.bf16.msra.mxu0 0
    %6159 = vmatprep.subr.bf16.mxu0 0
    %6160 = vmatpush2.bf16.msra.mxu0 0
    %6161 = vmatprep.subr.bf16.mxu0 0
    %6162 = vmatpush2.bf16.msra.mxu0 0
    %6163 = vmatprep.mubr.bf16.mxu0 0
    %6164 = vmatmul.mubr.bf16.gmra.mxu0 %v5146
    %v6165 = vpop.f32.mrf.mxu0
    %v6166 = vadd.f32 0.0, %v6165
    %v6167 = vpop.f32.mrf.mxu0
    %v6168 = vpop.f32.mrf.mxu0
    %v6169 = vadd.f32 0.0, %v6168
    %v6170 = vpop.f32.mrf.mxu0
    %6171 = vmatprep.mubr.bf16.mxu0 0
    %6172 = vmatmul.mubr.bf16.gmra.mxu0 %v5149
    %v6173 = vpop.f32.mrf.mxu0
    %v6174 = vadd.f32 0.0, %v6173
    %v6175 = vpop.f32.mrf.mxu0
    %v6176 = vpop.f32.mrf.mxu0
    %v6177 = vadd.f32 0.0, %v6176
    %v6178 = vpop.f32.mrf.mxu0
    %6179 = vmatprep.mubr.bf16.mxu0 0
    %6180 = vmatmul.mubr.bf16.gmra.mxu0 %v5152
    %v6181 = vpop.f32.mrf.mxu0
    %v6182 = vadd.f32 0.0, %v6181
    %v6183 = vpop.f32.mrf.mxu0
    %v6184 = vpop.f32.mrf.mxu0
    %v6185 = vadd.f32 0.0, %v6184
    %v6186 = vpop.f32.mrf.mxu0
    %6187 = vmatprep.mubr.bf16.mxu0 0
    %6188 = vmatmul.mubr.bf16.gmra.mxu0 %v6126
    %v6189 = vpop.f32.mrf.mxu0
    %v6190 = vadd.f32 0.0, %v6189
    %v6191 = vpop.f32.mrf.mxu0
    %v6192 = vpop.f32.mrf.mxu0
    %v6193 = vadd.f32 0.0, %v6192
    %v6194 = vpop.f32.mrf.mxu0
    %6195 = vmatprep.mubr.bf16.mxu0 0
    %6196 = vmatmul.mubr.bf16.gmra.mxu0 %v5158
    %v6197 = vpop.f32.mrf.mxu0
    %v6198 = vadd.f32 0.0, %v6197
    %v6199 = vpop.f32.mrf.mxu0
    %v6200 = vpop.f32.mrf.mxu0
    %v6201 = vadd.f32 0.0, %v6200
    %v6202 = vpop.f32.mrf.mxu0
    %6203 = vmatprep.mubr.bf16.mxu0 0
    %6204 = vmatmul.mubr.bf16.gmra.mxu0 %v5161
    %v6205 = vpop.f32.mrf.mxu0
    %v6206 = vadd.f32 0.0, %v6205
    %v6207 = vpop.f32.mrf.mxu0
    %v6208 = vpop.f32.mrf.mxu0
    %v6209 = vadd.f32 0.0, %v6208
    %v6210 = vpop.f32.mrf.mxu0
    %6211 = vmatprep.mubr.bf16.mxu0 0
    %6212 = vmatmul.mubr.bf16.gmra.mxu0 %v5164
    %v6213 = vpop.f32.mrf.mxu0
    %v6214 = vadd.f32 0.0, %v6213
    %v6215 = vpop.f32.mrf.mxu0
    %v6216 = vpop.f32.mrf.mxu0
    %v6217 = vadd.f32 0.0, %v6216
    %v6218 = vpop.f32.mrf.mxu0
    %6219 = vmatprep.mubr.bf16.mxu0 0
    %6220 = vmatmul.mubr.bf16.gmra.mxu0 %v6129
    %v6221 = vpop.f32.mrf.mxu0
    %v6222 = vadd.f32 0.0, %v6221
    %v6223 = vpop.f32.mrf.mxu0
    %v6224 = vpop.f32.mrf.mxu0
    %v6225 = vadd.f32 0.0, %v6224
    %v6226 = vpop.f32.mrf.mxu0
    %6227 = vdwg.mxu0
    %v6228 = vadd.f32 %v6062, %v6166
    %v6229 = vadd.f32 %v6063, %v6169
    %v6230 = vadd.f32 %v6064, %v6174
    %v6231 = vadd.f32 %v6065, %v6177
    %v6232 = vadd.f32 %v6066, %v6182
    %v6233 = vadd.f32 %v6067, %v6185
    %v6234 = vadd.f32 %v6068, %v6190
    %v6235 = vadd.f32 %v6069, %v6193
    %v6236 = vadd.f32 %v6070, %v6198
    %v6237 = vadd.f32 %v6071, %v6201
    %v6238 = vadd.f32 %v6072, %v6206
    %v6239 = vadd.f32 %v6073, %v6209
    %v6240 = vadd.f32 %v6074, %v6214
    %v6241 = vadd.f32 %v6075, %v6217
    %v6242 = vadd.f32 %v6076, %v6222
    %v6243 = vadd.f32 %v6077, %v6225
    %v6244 = vpack.c.bf16 %v4811, %v4808
    %v6245 = vpack.c.bf16 %v4841, %v4838
    %s6246 = scalar_lea.vmem %s2, 224
    %v6247 = vld [vmem:[%s6246] sm:$0xf]
    %v6248 = vld [vmem:[%s6246 + $0x4] sm:$0xf]
    %v6249 = vld [vmem:[%s6246 + $0x8] sm:$0xf]
    %v6250 = vld [vmem:[%s6246 + $0xc] sm:$0xf]
    %v6251 = vld [vmem:[%s6246 + $0x10] sm:$0xf]
    %v6252 = vld [vmem:[%s6246 + $0x14] sm:$0xf]
    %v6253 = vld [vmem:[%s6246 + $0x18] sm:$0xf]
    %v6254 = vld [vmem:[%s6246 + $0x1c] sm:$0xf]
    %v6263 = vunpack.c.l.b16 %v6247
    %v6264 = vunpack.c.l.b16 %v6248
    %v6265 = vunpack.c.l.b16 %v6249
    %v6266 = vunpack.c.l.b16 %v6250
    %v6267 = vunpack.c.l.b16 %v6251
    %v6268 = vunpack.c.l.b16 %v6252
    %v6269 = vunpack.c.l.b16 %v6253
    %v6270 = vunpack.c.l.b16 %v6254
    %v6271 = vpack.c.b16 %v6264, %v6263
    %v6272 = vpack.c.b16 %v6266, %v6265
    %v6273 = vpack.c.b16 %v6268, %v6267
    %v6274 = vpack.c.b16 %v6270, %v6269
    %v6280 = vsel %vm4057, %v6244, 0
    %v6283 = vsel %vm4057, %v6245, 0
    %6285 = vmatprep.subr.bf16.mxu0 0
    %6286 = vmatpush1.bf16.msra.mxu0 0
    %6287 = vmatprep.subr.bf16.mxu0 0
    %6288 = vmatpush1.bf16.msra.mxu0 0
    %6289 = vmatprep.subr.bf16.mxu0 0
    %6290 = vmatpush1.bf16.msra.mxu0 0
    %6291 = vmatprep.subr.bf16.mxu0 0
    %6292 = vmatpush1.bf16.msra.mxu0 0
    %6293 = vmatprep.subr.bf16.mxu0 0
    %6294 = vmatpush1.bf16.msra.mxu0 %v6274
    %6295 = vmatprep.subr.bf16.mxu0 0
    %6296 = vmatpush1.bf16.msra.mxu0 %v6273
    %6297 = vmatprep.subr.bf16.mxu0 0
    %6298 = vmatpush1.bf16.msra.mxu0 %v6272
    %6299 = vmatprep.subr.bf16.mxu0 0
    %6300 = vmatpush1.bf16.msra.mxu0 %v6271
    %6301 = vmatprep.subr.bf16.mxu0 0
    %6302 = vmatpush2.bf16.msra.mxu0 0
    %6303 = vmatprep.subr.bf16.mxu0 0
    %6304 = vmatpush2.bf16.msra.mxu0 0
    %6305 = vmatprep.subr.bf16.mxu0 0
    %6306 = vmatpush2.bf16.msra.mxu0 0
    %6307 = vmatprep.subr.bf16.mxu0 0
    %6308 = vmatpush2.bf16.msra.mxu0 0
    %6309 = vmatprep.subr.bf16.mxu0 0
    %6310 = vmatpush2.bf16.msra.mxu0 0
    %6311 = vmatprep.subr.bf16.mxu0 0
    %6312 = vmatpush2.bf16.msra.mxu0 0
    %6313 = vmatprep.subr.bf16.mxu0 0
    %6314 = vmatpush2.bf16.msra.mxu0 0
    %6315 = vmatprep.subr.bf16.mxu0 0
    %6316 = vmatpush2.bf16.msra.mxu0 0
    %6317 = vmatprep.mubr.bf16.mxu0 0
    %6318 = vmatmul.mubr.bf16.gmra.mxu0 %v5001
    %v6319 = vpop.f32.mrf.mxu0
    %v6320 = vadd.f32 0.0, %v6319
    %v6321 = vpop.f32.mrf.mxu0
    %v6322 = vpop.f32.mrf.mxu0
    %v6323 = vadd.f32 0.0, %v6322
    %v6324 = vpop.f32.mrf.mxu0
    %6325 = vmatprep.mubr.bf16.mxu0 0
    %6326 = vmatmul.mubr.bf16.gmra.mxu0 %v5004
    %v6327 = vpop.f32.mrf.mxu0
    %v6328 = vadd.f32 0.0, %v6327
    %v6329 = vpop.f32.mrf.mxu0
    %v6330 = vpop.f32.mrf.mxu0
    %v6331 = vadd.f32 0.0, %v6330
    %v6332 = vpop.f32.mrf.mxu0
    %6333 = vmatprep.mubr.bf16.mxu0 0
    %6334 = vmatmul.mubr.bf16.gmra.mxu0 %v5007
    %v6335 = vpop.f32.mrf.mxu0
    %v6336 = vadd.f32 0.0, %v6335
    %v6337 = vpop.f32.mrf.mxu0
    %v6338 = vpop.f32.mrf.mxu0
    %v6339 = vadd.f32 0.0, %v6338
    %v6340 = vpop.f32.mrf.mxu0
    %6341 = vmatprep.mubr.bf16.mxu0 0
    %6342 = vmatmul.mubr.bf16.gmra.mxu0 %v6280
    %v6343 = vpop.f32.mrf.mxu0
    %v6344 = vadd.f32 0.0, %v6343
    %v6345 = vpop.f32.mrf.mxu0
    %v6346 = vpop.f32.mrf.mxu0
    %v6347 = vadd.f32 0.0, %v6346
    %v6348 = vpop.f32.mrf.mxu0
    %6349 = vmatprep.mubr.bf16.mxu0 0
    %6350 = vmatmul.mubr.bf16.gmra.mxu0 %v5013
    %v6351 = vpop.f32.mrf.mxu0
    %v6352 = vadd.f32 0.0, %v6351
    %v6353 = vpop.f32.mrf.mxu0
    %v6354 = vpop.f32.mrf.mxu0
    %v6355 = vadd.f32 0.0, %v6354
    %v6356 = vpop.f32.mrf.mxu0
    %6357 = vmatprep.mubr.bf16.mxu0 0
    %6358 = vmatmul.mubr.bf16.gmra.mxu0 %v5016
    %v6359 = vpop.f32.mrf.mxu0
    %v6360 = vadd.f32 0.0, %v6359
    %v6361 = vpop.f32.mrf.mxu0
    %v6362 = vpop.f32.mrf.mxu0
    %v6363 = vadd.f32 0.0, %v6362
    %v6364 = vpop.f32.mrf.mxu0
    %6365 = vmatprep.mubr.bf16.mxu0 0
    %6366 = vmatmul.mubr.bf16.gmra.mxu0 %v5019
    %v6367 = vpop.f32.mrf.mxu0
    %v6368 = vadd.f32 0.0, %v6367
    %v6369 = vpop.f32.mrf.mxu0
    %v6370 = vpop.f32.mrf.mxu0
    %v6371 = vadd.f32 0.0, %v6370
    %v6372 = vpop.f32.mrf.mxu0
    %6373 = vmatprep.mubr.bf16.mxu0 0
    %6374 = vmatmul.mubr.bf16.gmra.mxu0 %v6283
    %v6375 = vpop.f32.mrf.mxu0
    %v6376 = vadd.f32 0.0, %v6375
    %v6377 = vpop.f32.mrf.mxu0
    %v6378 = vpop.f32.mrf.mxu0
    %v6379 = vadd.f32 0.0, %v6378
    %v6380 = vpop.f32.mrf.mxu0
    %6381 = vdwg.mxu0
    %v6382 = vadd.f32 %v6228, %v6320
    %v6383 = vadd.f32 %v6229, %v6323
    %v6384 = vadd.f32 %v6230, %v6328
    %v6385 = vadd.f32 %v6231, %v6331
    %v6386 = vadd.f32 %v6232, %v6336
    %v6387 = vadd.f32 %v6233, %v6339
    %v6388 = vadd.f32 %v6234, %v6344
    %v6389 = vadd.f32 %v6235, %v6347
    %v6390 = vadd.f32 %v6236, %v6352
    %v6391 = vadd.f32 %v6237, %v6355
    %v6392 = vadd.f32 %v6238, %v6360
    %v6393 = vadd.f32 %v6239, %v6363
    %v6394 = vadd.f32 %v6240, %v6368
    %v6395 = vadd.f32 %v6241, %v6371
    %v6396 = vadd.f32 %v6242, %v6376
    %v6397 = vadd.f32 %v6243, %v6379
    %v6400 = vrot.slane %v4811, 1
    %v6401 = vrot.slane %v4812, 1
    %v6402 = vsel %vm5279, %v6400, %v6401
    %v6403 = vrot.slane %v4841, 1
    %v6404 = vrot.slane %v4842, 1
    %v6405 = vsel %vm5279, %v6403, %v6404
    %v6408 = vpack.c.bf16 %v6402, %v5894
    %v6409 = vpack.c.bf16 %v6405, %v5897
    %s6410 = scalar_lea.vmem %s2, 256
    %v6411 = vld [vmem:[%s6410] sm:$0xf]
    %v6412 = vld [vmem:[%s6410 + $0x4] sm:$0xf]
    %v6413 = vld [vmem:[%s6410 + $0x8] sm:$0xf]
    %v6414 = vld [vmem:[%s6410 + $0xc] sm:$0xf]
    %v6415 = vld [vmem:[%s6410 + $0x10] sm:$0xf]
    %v6416 = vld [vmem:[%s6410 + $0x14] sm:$0xf]
    %v6417 = vld [vmem:[%s6410 + $0x18] sm:$0xf]
    %v6418 = vld [vmem:[%s6410 + $0x1c] sm:$0xf]
    %v6427 = vunpack.c.l.b16 %v6411
    %v6428 = vunpack.c.l.b16 %v6412
    %v6429 = vunpack.c.l.b16 %v6413
    %v6430 = vunpack.c.l.b16 %v6414
    %v6431 = vunpack.c.l.b16 %v6415
    %v6432 = vunpack.c.l.b16 %v6416
    %v6433 = vunpack.c.l.b16 %v6417
    %v6434 = vunpack.c.l.b16 %v6418
    %v6435 = vpack.c.b16 %v6428, %v6427
    %v6436 = vpack.c.b16 %v6430, %v6429
    %v6437 = vpack.c.b16 %v6432, %v6431
    %v6438 = vpack.c.b16 %v6434, %v6433
    %v6444 = vsel %vm4057, %v6408, 0
    %v6447 = vsel %vm4057, %v6409, 0
    %6449 = vmatprep.subr.bf16.mxu0 0
    %6450 = vmatpush1.bf16.msra.mxu0 0
    %6451 = vmatprep.subr.bf16.mxu0 0
    %6452 = vmatpush1.bf16.msra.mxu0 0
    %6453 = vmatprep.subr.bf16.mxu0 0
    %6454 = vmatpush1.bf16.msra.mxu0 0
    %6455 = vmatprep.subr.bf16.mxu0 0
    %6456 = vmatpush1.bf16.msra.mxu0 0
    %6457 = vmatprep.subr.bf16.mxu0 0
    %6458 = vmatpush1.bf16.msra.mxu0 %v6438
    %6459 = vmatprep.subr.bf16.mxu0 0
    %6460 = vmatpush1.bf16.msra.mxu0 %v6437
    %6461 = vmatprep.subr.bf16.mxu0 0
    %6462 = vmatpush1.bf16.msra.mxu0 %v6436
    %6463 = vmatprep.subr.bf16.mxu0 0
    %6464 = vmatpush1.bf16.msra.mxu0 %v6435
    %6465 = vmatprep.subr.bf16.mxu0 0
    %6466 = vmatpush2.bf16.msra.mxu0 0
    %6467 = vmatprep.subr.bf16.mxu0 0
    %6468 = vmatpush2.bf16.msra.mxu0 0
    %6469 = vmatprep.subr.bf16.mxu0 0
    %6470 = vmatpush2.bf16.msra.mxu0 0
    %6471 = vmatprep.subr.bf16.mxu0 0
    %6472 = vmatpush2.bf16.msra.mxu0 0
    %6473 = vmatprep.subr.bf16.mxu0 0
    %6474 = vmatpush2.bf16.msra.mxu0 0
    %6475 = vmatprep.subr.bf16.mxu0 0
    %6476 = vmatpush2.bf16.msra.mxu0 0
    %6477 = vmatprep.subr.bf16.mxu0 0
    %6478 = vmatpush2.bf16.msra.mxu0 0
    %6479 = vmatprep.subr.bf16.mxu0 0
    %6480 = vmatpush2.bf16.msra.mxu0 0
    %6481 = vmatprep.mubr.bf16.mxu0 0
    %6482 = vmatmul.mubr.bf16.gmra.mxu0 %v5389
    %v6483 = vpop.f32.mrf.mxu0
    %v6484 = vadd.f32 0.0, %v6483
    %v6485 = vpop.f32.mrf.mxu0
    %v6486 = vpop.f32.mrf.mxu0
    %v6487 = vadd.f32 0.0, %v6486
    %v6488 = vpop.f32.mrf.mxu0
    %6489 = vmatprep.mubr.bf16.mxu0 0
    %6490 = vmatmul.mubr.bf16.gmra.mxu0 %v5392
    %v6491 = vpop.f32.mrf.mxu0
    %v6492 = vadd.f32 0.0, %v6491
    %v6493 = vpop.f32.mrf.mxu0
    %v6494 = vpop.f32.mrf.mxu0
    %v6495 = vadd.f32 0.0, %v6494
    %v6496 = vpop.f32.mrf.mxu0
    %6497 = vmatprep.mubr.bf16.mxu0 0
    %6498 = vmatmul.mubr.bf16.gmra.mxu0 %v5395
    %v6499 = vpop.f32.mrf.mxu0
    %v6500 = vadd.f32 0.0, %v6499
    %v6501 = vpop.f32.mrf.mxu0
    %v6502 = vpop.f32.mrf.mxu0
    %v6503 = vadd.f32 0.0, %v6502
    %v6504 = vpop.f32.mrf.mxu0
    %6505 = vmatprep.mubr.bf16.mxu0 0
    %6506 = vmatmul.mubr.bf16.gmra.mxu0 %v6444
    %v6507 = vpop.f32.mrf.mxu0
    %v6508 = vadd.f32 0.0, %v6507
    %v6509 = vpop.f32.mrf.mxu0
    %v6510 = vpop.f32.mrf.mxu0
    %v6511 = vadd.f32 0.0, %v6510
    %v6512 = vpop.f32.mrf.mxu0
    %6513 = vmatprep.mubr.bf16.mxu0 0
    %6514 = vmatmul.mubr.bf16.gmra.mxu0 %v5401
    %v6515 = vpop.f32.mrf.mxu0
    %v6516 = vadd.f32 0.0, %v6515
    %v6517 = vpop.f32.mrf.mxu0
    %v6518 = vpop.f32.mrf.mxu0
    %v6519 = vadd.f32 0.0, %v6518
    %v6520 = vpop.f32.mrf.mxu0
    %6521 = vmatprep.mubr.bf16.mxu0 0
    %6522 = vmatmul.mubr.bf16.gmra.mxu0 %v5404
    %v6523 = vpop.f32.mrf.mxu0
    %v6524 = vadd.f32 0.0, %v6523
    %v6525 = vpop.f32.mrf.mxu0
    %v6526 = vpop.f32.mrf.mxu0
    %v6527 = vadd.f32 0.0, %v6526
    %v6528 = vpop.f32.mrf.mxu0
    %6529 = vmatprep.mubr.bf16.mxu0 0
    %6530 = vmatmul.mubr.bf16.gmra.mxu0 %v5407
    %v6531 = vpop.f32.mrf.mxu0
    %v6532 = vadd.f32 0.0, %v6531
    %v6533 = vpop.f32.mrf.mxu0
    %v6534 = vpop.f32.mrf.mxu0
    %v6535 = vadd.f32 0.0, %v6534
    %v6536 = vpop.f32.mrf.mxu0
    %6537 = vmatprep.mubr.bf16.mxu0 0
    %6538 = vmatmul.mubr.bf16.gmra.mxu0 %v6447
    %v6539 = vpop.f32.mrf.mxu0
    %v6540 = vadd.f32 0.0, %v6539
    %v6541 = vpop.f32.mrf.mxu0
    %v6542 = vpop.f32.mrf.mxu0
    %v6543 = vadd.f32 0.0, %v6542
    %v6544 = vpop.f32.mrf.mxu0
    %6545 = vdwg.mxu0
    %v6546 = vadd.f32 %v6382, %v6484
    %v6547 = vadd.f32 %v6383, %v6487
    %v6548 = vadd.f32 %v6384, %v6492
    %v6549 = vadd.f32 %v6385, %v6495
    %v6550 = vadd.f32 %v6386, %v6500
    %v6551 = vadd.f32 %v6387, %v6503
    %v6552 = vadd.f32 %v6388, %v6508
    %v6553 = vadd.f32 %v6389, %v6511
    %v6554 = vadd.f32 %v6390, %v6516
    %v6555 = vadd.f32 %v6391, %v6519
    %v6556 = vadd.f32 %v6392, %v6524
    %v6557 = vadd.f32 %v6393, %v6527
    %v6558 = vadd.f32 %v6394, %v6532
    %v6559 = vadd.f32 %v6395, %v6535
    %v6560 = vadd.f32 %v6396, %v6540
    %v6561 = vadd.f32 %v6397, %v6543
    %v6562 = vld [vmem:[%s3 + $0x1] sm:$0x1]
    %v6563 = vld [vmem:[%s4 + $0x1] sm:$0x1]
    %v6564 = vlaneseq
    %v6565 = vshrl.u32 %v6564, 7
    %v6566 = vsub.s32 0, %v6565
    %v6567 = vrot.slane %v6562, %v6566
    %v6568 = vmul.f32 %v6546, %v6567
    %v6569 = vmul.f32 %v6547, %v6567
    %v6570 = vmul.f32 %v6548, %v6567
    %v6571 = vmul.f32 %v6549, %v6567
    %v6572 = vmul.f32 %v6550, %v6567
    %v6573 = vmul.f32 %v6551, %v6567
    %v6574 = vmul.f32 %v6552, %v6567
    %v6575 = vmul.f32 %v6553, %v6567
    %v6576 = vmul.f32 %v6554, %v6567
    %v6577 = vmul.f32 %v6555, %v6567
    %v6578 = vmul.f32 %v6556, %v6567
    %v6579 = vmul.f32 %v6557, %v6567
    %v6580 = vmul.f32 %v6558, %v6567
    %v6581 = vmul.f32 %v6559, %v6567
    %v6582 = vmul.f32 %v6560, %v6567
    %v6583 = vmul.f32 %v6561, %v6567
    %v6584 = vlaneseq
    %v6585 = vshrl.u32 %v6584, 7
    %v6586 = vsub.s32 0, %v6585
    %v6587 = vrot.slane %v6563, %v6586
    %v6588 = vadd.f32 %v6568, %v6587
    %v6589 = vadd.f32 %v6569, %v6587
    %v6590 = vadd.f32 %v6570, %v6587
    %v6591 = vadd.f32 %v6571, %v6587
    %v6592 = vadd.f32 %v6572, %v6587
    %v6593 = vadd.f32 %v6573, %v6587
    %v6594 = vadd.f32 %v6574, %v6587
    %v6595 = vadd.f32 %v6575, %v6587
    %v6596 = vadd.f32 %v6576, %v6587
    %v6597 = vadd.f32 %v6577, %v6587
    %v6598 = vadd.f32 %v6578, %v6587
    %v6599 = vadd.f32 %v6579, %v6587
    %v6600 = vadd.f32 %v6580, %v6587
    %v6601 = vadd.f32 %v6581, %v6587
    %v6602 = vadd.f32 %v6582, %v6587
    %v6603 = vadd.f32 %v6583, %v6587
    %v6604 = vmax.f32 %v6588, 0.0
    %v6605 = vmax.f32 %v6589, 0.0
    %v6606 = vmax.f32 %v6590, 0.0
    %v6607 = vmax.f32 %v6591, 0.0
    %v6608 = vmax.f32 %v6592, 0.0
    %v6609 = vmax.f32 %v6593, 0.0
    %v6610 = vmax.f32 %v6594, 0.0
    %v6611 = vmax.f32 %v6595, 0.0
    %v6612 = vmax.f32 %v6596, 0.0
    %v6613 = vmax.f32 %v6597, 0.0
    %v6614 = vmax.f32 %v6598, 0.0
    %v6615 = vmax.f32 %v6599, 0.0
    %v6616 = vmax.f32 %v6600, 0.0
    %v6617 = vmax.f32 %v6601, 0.0
    %v6618 = vmax.f32 %v6602, 0.0
    %v6619 = vmax.f32 %v6603, 0.0
    %v6636 = vcombine.high %v6604, %v6604
    %v6638 = vunpack.c.l.s4 1983009808
    %v6639 = vunpack.c.0.s8 %v6638
    %v6640 = vlaneseq
    %v6641 = vshrl.u32 %v6640, 7
    %v6642 = vsub.s32 %v6639, %v6641
    %v6643 = vrot.slane %v6604, %v6642
    %v6645 = vunpack.c.l.s4 1983009808
    %v6646 = vunpack.c.0.s8 %v6645
    %v6647 = vlaneseq
    %v6648 = vshrl.u32 %v6647, 7
    %v6649 = vsub.s32 %v6646, %v6648
    %v6650 = vrot.slane %v6636, %v6649
    %v6651 = vcombine.high %v6643, %v6643
    %v6652 = vcombine.high %v6650, %v6650
    %v6653 = vcombine.high %v6605, %v6605
    %v6655 = vunpack.c.l.s4 1983009808
    %v6656 = vunpack.c.0.s8 %v6655
    %v6657 = vlaneseq
    %v6658 = vshrl.u32 %v6657, 7
    %v6659 = vsub.s32 %v6656, %v6658
    %v6660 = vrot.slane %v6605, %v6659
    %v6662 = vunpack.c.l.s4 1983009808
    %v6663 = vunpack.c.0.s8 %v6662
    %v6664 = vlaneseq
    %v6665 = vshrl.u32 %v6664, 7
    %v6666 = vsub.s32 %v6663, %v6665
    %v6667 = vrot.slane %v6653, %v6666
    %v6668 = vcombine.high %v6660, %v6660
    %v6669 = vcombine.high %v6667, %v6667
    %v6670 = vcombine.high %v6606, %v6606
    %v6672 = vunpack.c.l.s4 1983009808
    %v6673 = vunpack.c.0.s8 %v6672
    %v6674 = vlaneseq
    %v6675 = vshrl.u32 %v6674, 7
    %v6676 = vsub.s32 %v6673, %v6675
    %v6677 = vrot.slane %v6606, %v6676
    %v6679 = vunpack.c.l.s4 1983009808
    %v6680 = vunpack.c.0.s8 %v6679
    %v6681 = vlaneseq
    %v6682 = vshrl.u32 %v6681, 7
    %v6683 = vsub.s32 %v6680, %v6682
    %v6684 = vrot.slane %v6670, %v6683
    %v6685 = vcombine.high %v6677, %v6677
    %v6686 = vcombine.high %v6684, %v6684
    %v6687 = vcombine.high %v6607, %v6607
    %v6689 = vunpack.c.l.s4 1983009808
    %v6690 = vunpack.c.0.s8 %v6689
    %v6691 = vlaneseq
    %v6692 = vshrl.u32 %v6691, 7
    %v6693 = vsub.s32 %v6690, %v6692
    %v6694 = vrot.slane %v6607, %v6693
    %v6696 = vunpack.c.l.s4 1983009808
    %v6697 = vunpack.c.0.s8 %v6696
    %v6698 = vlaneseq
    %v6699 = vshrl.u32 %v6698, 7
    %v6700 = vsub.s32 %v6697, %v6699
    %v6701 = vrot.slane %v6687, %v6700
    %v6702 = vcombine.high %v6694, %v6694
    %v6703 = vcombine.high %v6701, %v6701
    %v6704 = vcombine.high %v6608, %v6608
    %v6706 = vunpack.c.l.s4 1983009808
    %v6707 = vunpack.c.0.s8 %v6706
    %v6708 = vlaneseq
    %v6709 = vshrl.u32 %v6708, 7
    %v6710 = vsub.s32 %v6707, %v6709
    %v6711 = vrot.slane %v6608, %v6710
    %v6713 = vunpack.c.l.s4 1983009808
    %v6714 = vunpack.c.0.s8 %v6713
    %v6715 = vlaneseq
    %v6716 = vshrl.u32 %v6715, 7
    %v6717 = vsub.s32 %v6714, %v6716
    %v6718 = vrot.slane %v6704, %v6717
    %v6719 = vcombine.high %v6711, %v6711
    %v6720 = vcombine.high %v6718, %v6718
    %v6721 = vcombine.high %v6609, %v6609
    %v6723 = vunpack.c.l.s4 1983009808
    %v6724 = vunpack.c.0.s8 %v6723
    %v6725 = vlaneseq
    %v6726 = vshrl.u32 %v6725, 7
    %v6727 = vsub.s32 %v6724, %v6726
    %v6728 = vrot.slane %v6609, %v6727
    %v6730 = vunpack.c.l.s4 1983009808
    %v6731 = vunpack.c.0.s8 %v6730
    %v6732 = vlaneseq
    %v6733 = vshrl.u32 %v6732, 7
    %v6734 = vsub.s32 %v6731, %v6733
    %v6735 = vrot.slane %v6721, %v6734
    %v6736 = vcombine.high %v6728, %v6728
    %v6737 = vcombine.high %v6735, %v6735
    %v6738 = vcombine.high %v6610, %v6610
    %v6740 = vunpack.c.l.s4 1983009808
    %v6741 = vunpack.c.0.s8 %v6740
    %v6742 = vlaneseq
    %v6743 = vshrl.u32 %v6742, 7
    %v6744 = vsub.s32 %v6741, %v6743
    %v6745 = vrot.slane %v6610, %v6744
    %v6747 = vunpack.c.l.s4 1983009808
    %v6748 = vunpack.c.0.s8 %v6747
    %v6749 = vlaneseq
    %v6750 = vshrl.u32 %v6749, 7
    %v6751 = vsub.s32 %v6748, %v6750
    %v6752 = vrot.slane %v6738, %v6751
    %v6753 = vcombine.high %v6745, %v6745
    %v6754 = vcombine.high %v6752, %v6752
    %v6755 = vcombine.high %v6611, %v6611
    %v6757 = vunpack.c.l.s4 1983009808
    %v6758 = vunpack.c.0.s8 %v6757
    %v6759 = vlaneseq
    %v6760 = vshrl.u32 %v6759, 7
    %v6761 = vsub.s32 %v6758, %v6760
    %v6762 = vrot.slane %v6611, %v6761
    %v6764 = vunpack.c.l.s4 1983009808
    %v6765 = vunpack.c.0.s8 %v6764
    %v6766 = vlaneseq
    %v6767 = vshrl.u32 %v6766, 7
    %v6768 = vsub.s32 %v6765, %v6767
    %v6769 = vrot.slane %v6755, %v6768
    %v6770 = vcombine.high %v6762, %v6762
    %v6771 = vcombine.high %v6769, %v6769
    %v6772 = vcombine.high %v6612, %v6612
    %v6774 = vunpack.c.l.s4 1983009808
    %v6775 = vunpack.c.0.s8 %v6774
    %v6776 = vlaneseq
    %v6777 = vshrl.u32 %v6776, 7
    %v6778 = vsub.s32 %v6775, %v6777
    %v6779 = vrot.slane %v6612, %v6778
    %v6781 = vunpack.c.l.s4 1983009808
    %v6782 = vunpack.c.0.s8 %v6781
    %v6783 = vlaneseq
    %v6784 = vshrl.u32 %v6783, 7
    %v6785 = vsub.s32 %v6782, %v6784
    %v6786 = vrot.slane %v6772, %v6785
    %v6787 = vcombine.high %v6779, %v6779
    %v6788 = vcombine.high %v6786, %v6786
    %v6789 = vcombine.high %v6613, %v6613
    %v6791 = vunpack.c.l.s4 1983009808
    %v6792 = vunpack.c.0.s8 %v6791
    %v6793 = vlaneseq
    %v6794 = vshrl.u32 %v6793, 7
    %v6795 = vsub.s32 %v6792, %v6794
    %v6796 = vrot.slane %v6613, %v6795
    %v6798 = vunpack.c.l.s4 1983009808
    %v6799 = vunpack.c.0.s8 %v6798
    %v6800 = vlaneseq
    %v6801 = vshrl.u32 %v6800, 7
    %v6802 = vsub.s32 %v6799, %v6801
    %v6803 = vrot.slane %v6789, %v6802
    %v6804 = vcombine.high %v6796, %v6796
    %v6805 = vcombine.high %v6803, %v6803
    %v6806 = vcombine.high %v6614, %v6614
    %v6808 = vunpack.c.l.s4 1983009808
    %v6809 = vunpack.c.0.s8 %v6808
    %v6810 = vlaneseq
    %v6811 = vshrl.u32 %v6810, 7
    %v6812 = vsub.s32 %v6809, %v6811
    %v6813 = vrot.slane %v6614, %v6812
    %v6815 = vunpack.c.l.s4 1983009808
    %v6816 = vunpack.c.0.s8 %v6815
    %v6817 = vlaneseq
    %v6818 = vshrl.u32 %v6817, 7
    %v6819 = vsub.s32 %v6816, %v6818
    %v6820 = vrot.slane %v6806, %v6819
    %v6821 = vcombine.high %v6813, %v6813
    %v6822 = vcombine.high %v6820, %v6820
    %v6823 = vcombine.high %v6615, %v6615
    %v6825 = vunpack.c.l.s4 1983009808
    %v6826 = vunpack.c.0.s8 %v6825
    %v6827 = vlaneseq
    %v6828 = vshrl.u32 %v6827, 7
    %v6829 = vsub.s32 %v6826, %v6828
    %v6830 = vrot.slane %v6615, %v6829
    %v6832 = vunpack.c.l.s4 1983009808
    %v6833 = vunpack.c.0.s8 %v6832
    %v6834 = vlaneseq
    %v6835 = vshrl.u32 %v6834, 7
    %v6836 = vsub.s32 %v6833, %v6835
    %v6837 = vrot.slane %v6823, %v6836
    %v6838 = vcombine.high %v6830, %v6830
    %v6839 = vcombine.high %v6837, %v6837
    %v6840 = vcombine.high %v6616, %v6616
    %v6842 = vunpack.c.l.s4 1983009808
    %v6843 = vunpack.c.0.s8 %v6842
    %v6844 = vlaneseq
    %v6845 = vshrl.u32 %v6844, 7
    %v6846 = vsub.s32 %v6843, %v6845
    %v6847 = vrot.slane %v6616, %v6846
    %v6849 = vunpack.c.l.s4 1983009808
    %v6850 = vunpack.c.0.s8 %v6849
    %v6851 = vlaneseq
    %v6852 = vshrl.u32 %v6851, 7
    %v6853 = vsub.s32 %v6850, %v6852
    %v6854 = vrot.slane %v6840, %v6853
    %v6855 = vcombine.high %v6847, %v6847
    %v6856 = vcombine.high %v6854, %v6854
    %v6857 = vcombine.high %v6617, %v6617
    %v6859 = vunpack.c.l.s4 1983009808
    %v6860 = vunpack.c.0.s8 %v6859
    %v6861 = vlaneseq
    %v6862 = vshrl.u32 %v6861, 7
    %v6863 = vsub.s32 %v6860, %v6862
    %v6864 = vrot.slane %v6617, %v6863
    %v6866 = vunpack.c.l.s4 1983009808
    %v6867 = vunpack.c.0.s8 %v6866
    %v6868 = vlaneseq
    %v6869 = vshrl.u32 %v6868, 7
    %v6870 = vsub.s32 %v6867, %v6869
    %v6871 = vrot.slane %v6857, %v6870
    %v6872 = vcombine.high %v6864, %v6864
    %v6873 = vcombine.high %v6871, %v6871
    %v6874 = vcombine.high %v6618, %v6618
    %v6876 = vunpack.c.l.s4 1983009808
    %v6877 = vunpack.c.0.s8 %v6876
    %v6878 = vlaneseq
    %v6879 = vshrl.u32 %v6878, 7
    %v6880 = vsub.s32 %v6877, %v6879
    %v6881 = vrot.slane %v6618, %v6880
    %v6883 = vunpack.c.l.s4 1983009808
    %v6884 = vunpack.c.0.s8 %v6883
    %v6885 = vlaneseq
    %v6886 = vshrl.u32 %v6885, 7
    %v6887 = vsub.s32 %v6884, %v6886
    %v6888 = vrot.slane %v6874, %v6887
    %v6889 = vcombine.high %v6881, %v6881
    %v6890 = vcombine.high %v6888, %v6888
    %v6891 = vcombine.high %v6619, %v6619
    %v6893 = vunpack.c.l.s4 1983009808
    %v6894 = vunpack.c.0.s8 %v6893
    %v6895 = vlaneseq
    %v6896 = vshrl.u32 %v6895, 7
    %v6897 = vsub.s32 %v6894, %v6896
    %v6898 = vrot.slane %v6619, %v6897
    %v6900 = vunpack.c.l.s4 1983009808
    %v6901 = vunpack.c.0.s8 %v6900
    %v6902 = vlaneseq
    %v6903 = vshrl.u32 %v6902, 7
    %v6904 = vsub.s32 %v6901, %v6903
    %v6905 = vrot.slane %v6891, %v6904
    %v6906 = vcombine.high %v6898, %v6898
    %v6907 = vcombine.high %v6905, %v6905
    %v6972 = vsel %vm2264, %v6643, -inf
    %v6973 = vrot.slane %v6972, 4
    %v6974 = vmax.f32 %v6972, %v6973
    %v6975 = vrot.slane %v6974, 2
    %v6976 = vmax.f32 %v6974, %v6975
    %v6977 = vrot.slane %v6976, 1
    %v6978 = vmax.f32 %v6976, %v6977
    %v6979 = vsel %vm2264, %v6651, -inf
    %v6980 = vrot.slane %v6979, 4
    %v6981 = vmax.f32 %v6979, %v6980
    %v6982 = vrot.slane %v6981, 2
    %v6983 = vmax.f32 %v6981, %v6982
    %v6984 = vrot.slane %v6983, 1
    %v6985 = vmax.f32 %v6983, %v6984
    %v6986 = vsel %vm2264, %v6650, -inf
    %v6987 = vrot.slane %v6986, 4
    %v6988 = vmax.f32 %v6986, %v6987
    %v6989 = vrot.slane %v6988, 2
    %v6990 = vmax.f32 %v6988, %v6989
    %v6991 = vrot.slane %v6990, 1
    %v6992 = vmax.f32 %v6990, %v6991
    %v6993 = vsel %vm2264, %v6652, -inf
    %v6994 = vrot.slane %v6993, 4
    %v6995 = vmax.f32 %v6993, %v6994
    %v6996 = vrot.slane %v6995, 2
    %v6997 = vmax.f32 %v6995, %v6996
    %v6998 = vrot.slane %v6997, 1
    %v6999 = vmax.f32 %v6997, %v6998
    %v7000 = vsel %vm2264, %v6660, -inf
    %v7001 = vrot.slane %v7000, 4
    %v7002 = vmax.f32 %v7000, %v7001
    %v7003 = vrot.slane %v7002, 2
    %v7004 = vmax.f32 %v7002, %v7003
    %v7005 = vrot.slane %v7004, 1
    %v7006 = vmax.f32 %v7004, %v7005
    %v7007 = vsel %vm2264, %v6668, -inf
    %v7008 = vrot.slane %v7007, 4
    %v7009 = vmax.f32 %v7007, %v7008
    %v7010 = vrot.slane %v7009, 2
    %v7011 = vmax.f32 %v7009, %v7010
    %v7012 = vrot.slane %v7011, 1
    %v7013 = vmax.f32 %v7011, %v7012
    %v7014 = vsel %vm2264, %v6667, -inf
    %v7015 = vrot.slane %v7014, 4
    %v7016 = vmax.f32 %v7014, %v7015
    %v7017 = vrot.slane %v7016, 2
    %v7018 = vmax.f32 %v7016, %v7017
    %v7019 = vrot.slane %v7018, 1
    %v7020 = vmax.f32 %v7018, %v7019
    %v7021 = vsel %vm2264, %v6669, -inf
    %v7022 = vrot.slane %v7021, 4
    %v7023 = vmax.f32 %v7021, %v7022
    %v7024 = vrot.slane %v7023, 2
    %v7025 = vmax.f32 %v7023, %v7024
    %v7026 = vrot.slane %v7025, 1
    %v7027 = vmax.f32 %v7025, %v7026
    %v7028 = vsel %vm2264, %v6677, -inf
    %v7029 = vrot.slane %v7028, 4
    %v7030 = vmax.f32 %v7028, %v7029
    %v7031 = vrot.slane %v7030, 2
    %v7032 = vmax.f32 %v7030, %v7031
    %v7033 = vrot.slane %v7032, 1
    %v7034 = vmax.f32 %v7032, %v7033
    %v7035 = vsel %vm2264, %v6685, -inf
    %v7036 = vrot.slane %v7035, 4
    %v7037 = vmax.f32 %v7035, %v7036
    %v7038 = vrot.slane %v7037, 2
    %v7039 = vmax.f32 %v7037, %v7038
    %v7040 = vrot.slane %v7039, 1
    %v7041 = vmax.f32 %v7039, %v7040
    %v7042 = vsel %vm2264, %v6684, -inf
    %v7043 = vrot.slane %v7042, 4
    %v7044 = vmax.f32 %v7042, %v7043
    %v7045 = vrot.slane %v7044, 2
    %v7046 = vmax.f32 %v7044, %v7045
    %v7047 = vrot.slane %v7046, 1
    %v7048 = vmax.f32 %v7046, %v7047
    %v7049 = vsel %vm2264, %v6686, -inf
    %v7050 = vrot.slane %v7049, 4
    %v7051 = vmax.f32 %v7049, %v7050
    %v7052 = vrot.slane %v7051, 2
    %v7053 = vmax.f32 %v7051, %v7052
    %v7054 = vrot.slane %v7053, 1
    %v7055 = vmax.f32 %v7053, %v7054
    %v7056 = vsel %vm2264, %v6694, -inf
    %v7057 = vrot.slane %v7056, 4
    %v7058 = vmax.f32 %v7056, %v7057
    %v7059 = vrot.slane %v7058, 2
    %v7060 = vmax.f32 %v7058, %v7059
    %v7061 = vrot.slane %v7060, 1
    %v7062 = vmax.f32 %v7060, %v7061
    %v7063 = vsel %vm2264, %v6702, -inf
    %v7064 = vrot.slane %v7063, 4
    %v7065 = vmax.f32 %v7063, %v7064
    %v7066 = vrot.slane %v7065, 2
    %v7067 = vmax.f32 %v7065, %v7066
    %v7068 = vrot.slane %v7067, 1
    %v7069 = vmax.f32 %v7067, %v7068
    %v7070 = vsel %vm2264, %v6701, -inf
    %v7071 = vrot.slane %v7070, 4
    %v7072 = vmax.f32 %v7070, %v7071
    %v7073 = vrot.slane %v7072, 2
    %v7074 = vmax.f32 %v7072, %v7073
    %v7075 = vrot.slane %v7074, 1
    %v7076 = vmax.f32 %v7074, %v7075
    %v7077 = vsel %vm2264, %v6703, -inf
    %v7078 = vrot.slane %v7077, 4
    %v7079 = vmax.f32 %v7077, %v7078
    %v7080 = vrot.slane %v7079, 2
    %v7081 = vmax.f32 %v7079, %v7080
    %v7082 = vrot.slane %v7081, 1
    %v7083 = vmax.f32 %v7081, %v7082
    %v7084 = vsel %vm2264, %v6711, -inf
    %v7085 = vrot.slane %v7084, 4
    %v7086 = vmax.f32 %v7084, %v7085
    %v7087 = vrot.slane %v7086, 2
    %v7088 = vmax.f32 %v7086, %v7087
    %v7089 = vrot.slane %v7088, 1
    %v7090 = vmax.f32 %v7088, %v7089
    %v7091 = vsel %vm2264, %v6719, -inf
    %v7092 = vrot.slane %v7091, 4
    %v7093 = vmax.f32 %v7091, %v7092
    %v7094 = vrot.slane %v7093, 2
    %v7095 = vmax.f32 %v7093, %v7094
    %v7096 = vrot.slane %v7095, 1
    %v7097 = vmax.f32 %v7095, %v7096
    %v7098 = vsel %vm2264, %v6718, -inf
    %v7099 = vrot.slane %v7098, 4
    %v7100 = vmax.f32 %v7098, %v7099
    %v7101 = vrot.slane %v7100, 2
    %v7102 = vmax.f32 %v7100, %v7101
    %v7103 = vrot.slane %v7102, 1
    %v7104 = vmax.f32 %v7102, %v7103
    %v7105 = vsel %vm2264, %v6720, -inf
    %v7106 = vrot.slane %v7105, 4
    %v7107 = vmax.f32 %v7105, %v7106
    %v7108 = vrot.slane %v7107, 2
    %v7109 = vmax.f32 %v7107, %v7108
    %v7110 = vrot.slane %v7109, 1
    %v7111 = vmax.f32 %v7109, %v7110
    %v7112 = vsel %vm2264, %v6728, -inf
    %v7113 = vrot.slane %v7112, 4
    %v7114 = vmax.f32 %v7112, %v7113
    %v7115 = vrot.slane %v7114, 2
    %v7116 = vmax.f32 %v7114, %v7115
    %v7117 = vrot.slane %v7116, 1
    %v7118 = vmax.f32 %v7116, %v7117
    %v7119 = vsel %vm2264, %v6736, -inf
    %v7120 = vrot.slane %v7119, 4
    %v7121 = vmax.f32 %v7119, %v7120
    %v7122 = vrot.slane %v7121, 2
    %v7123 = vmax.f32 %v7121, %v7122
    %v7124 = vrot.slane %v7123, 1
    %v7125 = vmax.f32 %v7123, %v7124
    %v7126 = vsel %vm2264, %v6735, -inf
    %v7127 = vrot.slane %v7126, 4
    %v7128 = vmax.f32 %v7126, %v7127
    %v7129 = vrot.slane %v7128, 2
    %v7130 = vmax.f32 %v7128, %v7129
    %v7131 = vrot.slane %v7130, 1
    %v7132 = vmax.f32 %v7130, %v7131
    %v7133 = vsel %vm2264, %v6737, -inf
    %v7134 = vrot.slane %v7133, 4
    %v7135 = vmax.f32 %v7133, %v7134
    %v7136 = vrot.slane %v7135, 2
    %v7137 = vmax.f32 %v7135, %v7136
    %v7138 = vrot.slane %v7137, 1
    %v7139 = vmax.f32 %v7137, %v7138
    %v7140 = vsel %vm2264, %v6745, -inf
    %v7141 = vrot.slane %v7140, 4
    %v7142 = vmax.f32 %v7140, %v7141
    %v7143 = vrot.slane %v7142, 2
    %v7144 = vmax.f32 %v7142, %v7143
    %v7145 = vrot.slane %v7144, 1
    %v7146 = vmax.f32 %v7144, %v7145
    %v7147 = vsel %vm2264, %v6753, -inf
    %v7148 = vrot.slane %v7147, 4
    %v7149 = vmax.f32 %v7147, %v7148
    %v7150 = vrot.slane %v7149, 2
    %v7151 = vmax.f32 %v7149, %v7150
    %v7152 = vrot.slane %v7151, 1
    %v7153 = vmax.f32 %v7151, %v7152
    %v7154 = vsel %vm2264, %v6752, -inf
    %v7155 = vrot.slane %v7154, 4
    %v7156 = vmax.f32 %v7154, %v7155
    %v7157 = vrot.slane %v7156, 2
    %v7158 = vmax.f32 %v7156, %v7157
    %v7159 = vrot.slane %v7158, 1
    %v7160 = vmax.f32 %v7158, %v7159
    %v7161 = vsel %vm2264, %v6754, -inf
    %v7162 = vrot.slane %v7161, 4
    %v7163 = vmax.f32 %v7161, %v7162
    %v7164 = vrot.slane %v7163, 2
    %v7165 = vmax.f32 %v7163, %v7164
    %v7166 = vrot.slane %v7165, 1
    %v7167 = vmax.f32 %v7165, %v7166
    %v7168 = vsel %vm2264, %v6762, -inf
    %v7169 = vrot.slane %v7168, 4
    %v7170 = vmax.f32 %v7168, %v7169
    %v7171 = vrot.slane %v7170, 2
    %v7172 = vmax.f32 %v7170, %v7171
    %v7173 = vrot.slane %v7172, 1
    %v7174 = vmax.f32 %v7172, %v7173
    %v7175 = vsel %vm2264, %v6770, -inf
    %v7176 = vrot.slane %v7175, 4
    %v7177 = vmax.f32 %v7175, %v7176
    %v7178 = vrot.slane %v7177, 2
    %v7179 = vmax.f32 %v7177, %v7178
    %v7180 = vrot.slane %v7179, 1
    %v7181 = vmax.f32 %v7179, %v7180
    %v7182 = vsel %vm2264, %v6769, -inf
    %v7183 = vrot.slane %v7182, 4
    %v7184 = vmax.f32 %v7182, %v7183
    %v7185 = vrot.slane %v7184, 2
    %v7186 = vmax.f32 %v7184, %v7185
    %v7187 = vrot.slane %v7186, 1
    %v7188 = vmax.f32 %v7186, %v7187
    %v7189 = vsel %vm2264, %v6771, -inf
    %v7190 = vrot.slane %v7189, 4
    %v7191 = vmax.f32 %v7189, %v7190
    %v7192 = vrot.slane %v7191, 2
    %v7193 = vmax.f32 %v7191, %v7192
    %v7194 = vrot.slane %v7193, 1
    %v7195 = vmax.f32 %v7193, %v7194
    %v7196 = vsel %vm2264, %v6779, -inf
    %v7197 = vrot.slane %v7196, 4
    %v7198 = vmax.f32 %v7196, %v7197
    %v7199 = vrot.slane %v7198, 2
    %v7200 = vmax.f32 %v7198, %v7199
    %v7201 = vrot.slane %v7200, 1
    %v7202 = vmax.f32 %v7200, %v7201
    %v7203 = vsel %vm2264, %v6787, -inf
    %v7204 = vrot.slane %v7203, 4
    %v7205 = vmax.f32 %v7203, %v7204
    %v7206 = vrot.slane %v7205, 2
    %v7207 = vmax.f32 %v7205, %v7206
    %v7208 = vrot.slane %v7207, 1
    %v7209 = vmax.f32 %v7207, %v7208
    %v7210 = vsel %vm2264, %v6786, -inf
    %v7211 = vrot.slane %v7210, 4
    %v7212 = vmax.f32 %v7210, %v7211
    %v7213 = vrot.slane %v7212, 2
    %v7214 = vmax.f32 %v7212, %v7213
    %v7215 = vrot.slane %v7214, 1
    %v7216 = vmax.f32 %v7214, %v7215
    %v7217 = vsel %vm2264, %v6788, -inf
    %v7218 = vrot.slane %v7217, 4
    %v7219 = vmax.f32 %v7217, %v7218
    %v7220 = vrot.slane %v7219, 2
    %v7221 = vmax.f32 %v7219, %v7220
    %v7222 = vrot.slane %v7221, 1
    %v7223 = vmax.f32 %v7221, %v7222
    %v7224 = vsel %vm2264, %v6796, -inf
    %v7225 = vrot.slane %v7224, 4
    %v7226 = vmax.f32 %v7224, %v7225
    %v7227 = vrot.slane %v7226, 2
    %v7228 = vmax.f32 %v7226, %v7227
    %v7229 = vrot.slane %v7228, 1
    %v7230 = vmax.f32 %v7228, %v7229
    %v7231 = vsel %vm2264, %v6804, -inf
    %v7232 = vrot.slane %v7231, 4
    %v7233 = vmax.f32 %v7231, %v7232
    %v7234 = vrot.slane %v7233, 2
    %v7235 = vmax.f32 %v7233, %v7234
    %v7236 = vrot.slane %v7235, 1
    %v7237 = vmax.f32 %v7235, %v7236
    %v7238 = vsel %vm2264, %v6803, -inf
    %v7239 = vrot.slane %v7238, 4
    %v7240 = vmax.f32 %v7238, %v7239
    %v7241 = vrot.slane %v7240, 2
    %v7242 = vmax.f32 %v7240, %v7241
    %v7243 = vrot.slane %v7242, 1
    %v7244 = vmax.f32 %v7242, %v7243
    %v7245 = vsel %vm2264, %v6805, -inf
    %v7246 = vrot.slane %v7245, 4
    %v7247 = vmax.f32 %v7245, %v7246
    %v7248 = vrot.slane %v7247, 2
    %v7249 = vmax.f32 %v7247, %v7248
    %v7250 = vrot.slane %v7249, 1
    %v7251 = vmax.f32 %v7249, %v7250
    %v7252 = vsel %vm2264, %v6813, -inf
    %v7253 = vrot.slane %v7252, 4
    %v7254 = vmax.f32 %v7252, %v7253
    %v7255 = vrot.slane %v7254, 2
    %v7256 = vmax.f32 %v7254, %v7255
    %v7257 = vrot.slane %v7256, 1
    %v7258 = vmax.f32 %v7256, %v7257
    %v7259 = vsel %vm2264, %v6821, -inf
    %v7260 = vrot.slane %v7259, 4
    %v7261 = vmax.f32 %v7259, %v7260
    %v7262 = vrot.slane %v7261, 2
    %v7263 = vmax.f32 %v7261, %v7262
    %v7264 = vrot.slane %v7263, 1
    %v7265 = vmax.f32 %v7263, %v7264
    %v7266 = vsel %vm2264, %v6820, -inf
    %v7267 = vrot.slane %v7266, 4
    %v7268 = vmax.f32 %v7266, %v7267
    %v7269 = vrot.slane %v7268, 2
    %v7270 = vmax.f32 %v7268, %v7269
    %v7271 = vrot.slane %v7270, 1
    %v7272 = vmax.f32 %v7270, %v7271
    %v7273 = vsel %vm2264, %v6822, -inf
    %v7274 = vrot.slane %v7273, 4
    %v7275 = vmax.f32 %v7273, %v7274
    %v7276 = vrot.slane %v7275, 2
    %v7277 = vmax.f32 %v7275, %v7276
    %v7278 = vrot.slane %v7277, 1
    %v7279 = vmax.f32 %v7277, %v7278
    %v7280 = vsel %vm2264, %v6830, -inf
    %v7281 = vrot.slane %v7280, 4
    %v7282 = vmax.f32 %v7280, %v7281
    %v7283 = vrot.slane %v7282, 2
    %v7284 = vmax.f32 %v7282, %v7283
    %v7285 = vrot.slane %v7284, 1
    %v7286 = vmax.f32 %v7284, %v7285
    %v7287 = vsel %vm2264, %v6838, -inf
    %v7288 = vrot.slane %v7287, 4
    %v7289 = vmax.f32 %v7287, %v7288
    %v7290 = vrot.slane %v7289, 2
    %v7291 = vmax.f32 %v7289, %v7290
    %v7292 = vrot.slane %v7291, 1
    %v7293 = vmax.f32 %v7291, %v7292
    %v7294 = vsel %vm2264, %v6837, -inf
    %v7295 = vrot.slane %v7294, 4
    %v7296 = vmax.f32 %v7294, %v7295
    %v7297 = vrot.slane %v7296, 2
    %v7298 = vmax.f32 %v7296, %v7297
    %v7299 = vrot.slane %v7298, 1
    %v7300 = vmax.f32 %v7298, %v7299
    %v7301 = vsel %vm2264, %v6839, -inf
    %v7302 = vrot.slane %v7301, 4
    %v7303 = vmax.f32 %v7301, %v7302
    %v7304 = vrot.slane %v7303, 2
    %v7305 = vmax.f32 %v7303, %v7304
    %v7306 = vrot.slane %v7305, 1
    %v7307 = vmax.f32 %v7305, %v7306
    %v7308 = vsel %vm2264, %v6847, -inf
    %v7309 = vrot.slane %v7308, 4
    %v7310 = vmax.f32 %v7308, %v7309
    %v7311 = vrot.slane %v7310, 2
    %v7312 = vmax.f32 %v7310, %v7311
    %v7313 = vrot.slane %v7312, 1
    %v7314 = vmax.f32 %v7312, %v7313
    %v7315 = vsel %vm2264, %v6855, -inf
    %v7316 = vrot.slane %v7315, 4
    %v7317 = vmax.f32 %v7315, %v7316
    %v7318 = vrot.slane %v7317, 2
    %v7319 = vmax.f32 %v7317, %v7318
    %v7320 = vrot.slane %v7319, 1
    %v7321 = vmax.f32 %v7319, %v7320
    %v7322 = vsel %vm2264, %v6854, -inf
    %v7323 = vrot.slane %v7322, 4
    %v7324 = vmax.f32 %v7322, %v7323
    %v7325 = vrot.slane %v7324, 2
    %v7326 = vmax.f32 %v7324, %v7325
    %v7327 = vrot.slane %v7326, 1
    %v7328 = vmax.f32 %v7326, %v7327
    %v7329 = vsel %vm2264, %v6856, -inf
    %v7330 = vrot.slane %v7329, 4
    %v7331 = vmax.f32 %v7329, %v7330
    %v7332 = vrot.slane %v7331, 2
    %v7333 = vmax.f32 %v7331, %v7332
    %v7334 = vrot.slane %v7333, 1
    %v7335 = vmax.f32 %v7333, %v7334
    %v7336 = vsel %vm2264, %v6864, -inf
    %v7337 = vrot.slane %v7336, 4
    %v7338 = vmax.f32 %v7336, %v7337
    %v7339 = vrot.slane %v7338, 2
    %v7340 = vmax.f32 %v7338, %v7339
    %v7341 = vrot.slane %v7340, 1
    %v7342 = vmax.f32 %v7340, %v7341
    %v7343 = vsel %vm2264, %v6872, -inf
    %v7344 = vrot.slane %v7343, 4
    %v7345 = vmax.f32 %v7343, %v7344
    %v7346 = vrot.slane %v7345, 2
    %v7347 = vmax.f32 %v7345, %v7346
    %v7348 = vrot.slane %v7347, 1
    %v7349 = vmax.f32 %v7347, %v7348
    %v7350 = vsel %vm2264, %v6871, -inf
    %v7351 = vrot.slane %v7350, 4
    %v7352 = vmax.f32 %v7350, %v7351
    %v7353 = vrot.slane %v7352, 2
    %v7354 = vmax.f32 %v7352, %v7353
    %v7355 = vrot.slane %v7354, 1
    %v7356 = vmax.f32 %v7354, %v7355
    %v7357 = vsel %vm2264, %v6873, -inf
    %v7358 = vrot.slane %v7357, 4
    %v7359 = vmax.f32 %v7357, %v7358
    %v7360 = vrot.slane %v7359, 2
    %v7361 = vmax.f32 %v7359, %v7360
    %v7362 = vrot.slane %v7361, 1
    %v7363 = vmax.f32 %v7361, %v7362
    %v7364 = vsel %vm2264, %v6881, -inf
    %v7365 = vrot.slane %v7364, 4
    %v7366 = vmax.f32 %v7364, %v7365
    %v7367 = vrot.slane %v7366, 2
    %v7368 = vmax.f32 %v7366, %v7367
    %v7369 = vrot.slane %v7368, 1
    %v7370 = vmax.f32 %v7368, %v7369
    %v7371 = vsel %vm2264, %v6889, -inf
    %v7372 = vrot.slane %v7371, 4
    %v7373 = vmax.f32 %v7371, %v7372
    %v7374 = vrot.slane %v7373, 2
    %v7375 = vmax.f32 %v7373, %v7374
    %v7376 = vrot.slane %v7375, 1
    %v7377 = vmax.f32 %v7375, %v7376
    %v7378 = vsel %vm2264, %v6888, -inf
    %v7379 = vrot.slane %v7378, 4
    %v7380 = vmax.f32 %v7378, %v7379
    %v7381 = vrot.slane %v7380, 2
    %v7382 = vmax.f32 %v7380, %v7381
    %v7383 = vrot.slane %v7382, 1
    %v7384 = vmax.f32 %v7382, %v7383
    %v7385 = vsel %vm2264, %v6890, -inf
    %v7386 = vrot.slane %v7385, 4
    %v7387 = vmax.f32 %v7385, %v7386
    %v7388 = vrot.slane %v7387, 2
    %v7389 = vmax.f32 %v7387, %v7388
    %v7390 = vrot.slane %v7389, 1
    %v7391 = vmax.f32 %v7389, %v7390
    %v7392 = vsel %vm2264, %v6898, -inf
    %v7393 = vrot.slane %v7392, 4
    %v7394 = vmax.f32 %v7392, %v7393
    %v7395 = vrot.slane %v7394, 2
    %v7396 = vmax.f32 %v7394, %v7395
    %v7397 = vrot.slane %v7396, 1
    %v7398 = vmax.f32 %v7396, %v7397
    %v7399 = vsel %vm2264, %v6906, -inf
    %v7400 = vrot.slane %v7399, 4
    %v7401 = vmax.f32 %v7399, %v7400
    %v7402 = vrot.slane %v7401, 2
    %v7403 = vmax.f32 %v7401, %v7402
    %v7404 = vrot.slane %v7403, 1
    %v7405 = vmax.f32 %v7403, %v7404
    %v7406 = vsel %vm2264, %v6905, -inf
    %v7407 = vrot.slane %v7406, 4
    %v7408 = vmax.f32 %v7406, %v7407
    %v7409 = vrot.slane %v7408, 2
    %v7410 = vmax.f32 %v7408, %v7409
    %v7411 = vrot.slane %v7410, 1
    %v7412 = vmax.f32 %v7410, %v7411
    %v7413 = vsel %vm2264, %v6907, -inf
    %v7414 = vrot.slane %v7413, 4
    %v7415 = vmax.f32 %v7413, %v7414
    %v7416 = vrot.slane %v7415, 2
    %v7417 = vmax.f32 %v7415, %v7416
    %v7418 = vrot.slane %v7417, 1
    %v7419 = vmax.f32 %v7417, %v7418
    %v7420 = vsel %vm4057, %v6978, -inf
    %v7421 = vsel %vm4057, %v7006, -inf
    %v7422 = vmax.f32 %v7420, %v7421
    %v7423 = vsel %vm4057, %v6985, -inf
    %v7424 = vsel %vm4057, %v7013, -inf
    %v7425 = vmax.f32 %v7423, %v7424
    %v7426 = vsel %vm4057, %v6992, -inf
    %v7427 = vsel %vm4057, %v7020, -inf
    %v7428 = vmax.f32 %v7426, %v7427
    %v7429 = vsel %vm4057, %v6999, -inf
    %v7430 = vsel %vm4057, %v7027, -inf
    %v7431 = vmax.f32 %v7429, %v7430
    %v7432 = vsel %vm4057, %v7034, -inf
    %v7433 = vsel %vm4057, %v7062, -inf
    %v7434 = vmax.f32 %v7432, %v7433
    %v7435 = vsel %vm4057, %v7041, -inf
    %v7436 = vsel %vm4057, %v7069, -inf
    %v7437 = vmax.f32 %v7435, %v7436
    %v7438 = vsel %vm4057, %v7048, -inf
    %v7439 = vsel %vm4057, %v7076, -inf
    %v7440 = vmax.f32 %v7438, %v7439
    %v7441 = vsel %vm4057, %v7055, -inf
    %v7442 = vsel %vm4057, %v7083, -inf
    %v7443 = vmax.f32 %v7441, %v7442
    %v7444 = vsel %vm4057, %v7090, -inf
    %v7445 = vsel %vm4057, %v7118, -inf
    %v7446 = vmax.f32 %v7444, %v7445
    %v7447 = vsel %vm4057, %v7097, -inf
    %v7448 = vsel %vm4057, %v7125, -inf
    %v7449 = vmax.f32 %v7447, %v7448
    %v7450 = vsel %vm4057, %v7104, -inf
    %v7451 = vsel %vm4057, %v7132, -inf
    %v7452 = vmax.f32 %v7450, %v7451
    %v7453 = vsel %vm4057, %v7111, -inf
    %v7454 = vsel %vm4057, %v7139, -inf
    %v7455 = vmax.f32 %v7453, %v7454
    %v7456 = vsel %vm4057, %v7146, -inf
    %v7457 = vsel %vm4057, %v7174, -inf
    %v7458 = vmax.f32 %v7456, %v7457
    %v7459 = vsel %vm4057, %v7153, -inf
    %v7460 = vsel %vm4057, %v7181, -inf
    %v7461 = vmax.f32 %v7459, %v7460
    %v7462 = vsel %vm4057, %v7160, -inf
    %v7463 = vsel %vm4057, %v7188, -inf
    %v7464 = vmax.f32 %v7462, %v7463
    %v7465 = vsel %vm4057, %v7167, -inf
    %v7466 = vsel %vm4057, %v7195, -inf
    %v7467 = vmax.f32 %v7465, %v7466
    %v7468 = vsel %vm4057, %v7202, -inf
    %v7469 = vsel %vm4057, %v7230, -inf
    %v7470 = vmax.f32 %v7468, %v7469
    %v7471 = vsel %vm4057, %v7209, -inf
    %v7472 = vsel %vm4057, %v7237, -inf
    %v7473 = vmax.f32 %v7471, %v7472
    %v7474 = vsel %vm4057, %v7216, -inf
    %v7475 = vsel %vm4057, %v7244, -inf
    %v7476 = vmax.f32 %v7474, %v7475
    %v7477 = vsel %vm4057, %v7223, -inf
    %v7478 = vsel %vm4057, %v7251, -inf
    %v7479 = vmax.f32 %v7477, %v7478
    %v7480 = vsel %vm4057, %v7258, -inf
    %v7481 = vsel %vm4057, %v7286, -inf
    %v7482 = vmax.f32 %v7480, %v7481
    %v7483 = vsel %vm4057, %v7265, -inf
    %v7484 = vsel %vm4057, %v7293, -inf
    %v7485 = vmax.f32 %v7483, %v7484
    %v7486 = vsel %vm4057, %v7272, -inf
    %v7487 = vsel %vm4057, %v7300, -inf
    %v7488 = vmax.f32 %v7486, %v7487
    %v7489 = vsel %vm4057, %v7279, -inf
    %v7490 = vsel %vm4057, %v7307, -inf
    %v7491 = vmax.f32 %v7489, %v7490
    %v7492 = vsel %vm4057, %v7314, -inf
    %v7493 = vsel %vm4057, %v7342, -inf
    %v7494 = vmax.f32 %v7492, %v7493
    %v7495 = vsel %vm4057, %v7321, -inf
    %v7496 = vsel %vm4057, %v7349, -inf
    %v7497 = vmax.f32 %v7495, %v7496
    %v7498 = vsel %vm4057, %v7328, -inf
    %v7499 = vsel %vm4057, %v7356, -inf
    %v7500 = vmax.f32 %v7498, %v7499
    %v7501 = vsel %vm4057, %v7335, -inf
    %v7502 = vsel %vm4057, %v7363, -inf
    %v7503 = vmax.f32 %v7501, %v7502
    %v7504 = vsel %vm4057, %v7370, -inf
    %v7505 = vsel %vm4057, %v7398, -inf
    %v7506 = vmax.f32 %v7504, %v7505
    %v7507 = vsel %vm4057, %v7377, -inf
    %v7508 = vsel %vm4057, %v7405, -inf
    %v7509 = vmax.f32 %v7507, %v7508
    %v7510 = vsel %vm4057, %v7384, -inf
    %v7511 = vsel %vm4057, %v7412, -inf
    %v7512 = vmax.f32 %v7510, %v7511
    %v7513 = vsel %vm4057, %v7391, -inf
    %v7514 = vsel %vm4057, %v7419, -inf
    %v7515 = vmax.f32 %v7513, %v7514
    %7516 = vst.msk [vmem:[#allocation3] sm:$0xff] %vm4057, 0.0
    %vm7517 = vcmask 520192
    %7518 = vst.msk [vmem:[#allocation3 + $0x8] sm:$0x1f] %vm7517, 0.0
    %7519 = vst.msk [vmem:[#allocation3 + $0x10] sm:$0xff] %vm4057, 0.0
    %7520 = vst.msk [vmem:[#allocation3 + $0x18] sm:$0x1f] %vm7517, 0.0
    %7521 = vst.msk [vmem:[#allocation3 + $0x20] sm:$0xff] %vm4057, 0.0
    %7522 = vst.msk [vmem:[#allocation3 + $0x28] sm:$0x1f] %vm7517, 0.0
    %7523 = vst.msk [vmem:[#allocation3 + $0x30] sm:$0xff] %vm4057, 0.0
    %7524 = vst.msk [vmem:[#allocation3 + $0x38] sm:$0x1f] %vm7517, 0.0
    %7525 = vst.msk [vmem:[#allocation3 + $0x40] sm:$0xff] %vm4057, 0.0
    %7526 = vst.msk [vmem:[#allocation3 + $0x48] sm:$0x1f] %vm7517, 0.0
    %7527 = vst.msk [vmem:[#allocation3 + $0x50] sm:$0xff] %vm4057, 0.0
    %7528 = vst.msk [vmem:[#allocation3 + $0x58] sm:$0x1f] %vm7517, 0.0
    %7529 = vst.msk [vmem:[#allocation3 + $0x60] sm:$0xff] %vm4057, 0.0
    %7530 = vst.msk [vmem:[#allocation3 + $0x68] sm:$0x1f] %vm7517, 0.0
    %7531 = vst.msk [vmem:[#allocation3 + $0x70] sm:$0xff] %vm4057, 0.0
    %7532 = vst.msk [vmem:[#allocation3 + $0x78] sm:$0x1f] %vm7517, 0.0
    %7533 = vst.msk [vmem:[#allocation3 + $0x80] sm:$0xff] %vm4057, 0.0
    %7534 = vst.msk [vmem:[#allocation3 + $0x88] sm:$0x1f] %vm7517, 0.0
    %7535 = vst.msk [vmem:[#allocation3 + $0x90] sm:$0xff] %vm4057, 0.0
    %7536 = vst.msk [vmem:[#allocation3 + $0x98] sm:$0x1f] %vm7517, 0.0
    %7537 = vst.msk [vmem:[#allocation3 + $0xa0] sm:$0xff] %vm4057, 0.0
    %7538 = vst.msk [vmem:[#allocation3 + $0xa8] sm:$0x1f] %vm7517, 0.0
    %7539 = vst.msk [vmem:[#allocation3 + $0xb0] sm:$0xff] %vm4057, 0.0
    %7540 = vst.msk [vmem:[#allocation3 + $0xb8] sm:$0x1f] %vm7517, 0.0
    %v7573 = vsel %vm4631, %v7425, %v7422
    %v7574 = vsel %vm4633, %v7428, %v7573
    %v7575 = vsel %vm4635, %v7431, %v7574
    %v7576 = vsel %vm4631, %v7437, %v7434
    %v7577 = vsel %vm4633, %v7440, %v7576
    %v7578 = vsel %vm4635, %v7443, %v7577
    %v7579 = vsel %vm4631, %v7449, %v7446
    %v7580 = vsel %vm4633, %v7452, %v7579
    %v7581 = vsel %vm4635, %v7455, %v7580
    %v7582 = vsel %vm4631, %v7461, %v7458
    %v7583 = vsel %vm4633, %v7464, %v7582
    %v7584 = vsel %vm4635, %v7467, %v7583
    %v7585 = vsel %vm4631, %v7473, %v7470
    %v7586 = vsel %vm4633, %v7476, %v7585
    %v7587 = vsel %vm4635, %v7479, %v7586
    %v7588 = vsel %vm4631, %v7485, %v7482
    %v7589 = vsel %vm4633, %v7488, %v7588
    %v7590 = vsel %vm4635, %v7491, %v7589
    %v7591 = vsel %vm4631, %v7497, %v7494
    %v7592 = vsel %vm4633, %v7500, %v7591
    %v7593 = vsel %vm4635, %v7503, %v7592
    %v7594 = vsel %vm4631, %v7509, %v7506
    %v7595 = vsel %vm4633, %v7512, %v7594
    %v7596 = vsel %vm4635, %v7515, %v7595
    %s7605 = scalar_lea.vmem [#allocation3], 16
    %vm7606 = vcmask 519168
    %7607 = vst.msk [vmem:[%s7605 + $0x8] sm:$0xf] %vm7606, %v7575
    %7608 = vst.msk [vmem:[%s7605 + $0x18] sm:$0xf] %vm7606, %v7578
    %7609 = vst.msk [vmem:[%s7605 + $0x28] sm:$0xf] %vm7606, %v7581
    %7610 = vst.msk [vmem:[%s7605 + $0x38] sm:$0xf] %vm7606, %v7584
    %7611 = vst.msk [vmem:[%s7605 + $0x68] sm:$0xf] %vm7606, %v7587
    %7612 = vst.msk [vmem:[%s7605 + $0x78] sm:$0xf] %vm7606, %v7590
    %7613 = vst.msk [vmem:[%s7605 + $0x88] sm:$0xf] %vm7606, %v7593
    %7614 = vst.msk [vmem:[%s7605 + $0x98] sm:$0xf] %vm7606, %v7596
    %v7615 = vld [vmem:[#allocation3] sm:$0xff]
    %v7616 = vld [vmem:[#allocation3 + $0x8] sm:$0x1f]
    %v7617 = vld [vmem:[#allocation3 + $0x10] sm:$0xff]
    %v7618 = vld [vmem:[#allocation3 + $0x18] sm:$0x1f]
    %v7619 = vld [vmem:[#allocation3 + $0x20] sm:$0xff]
    %v7620 = vld [vmem:[#allocation3 + $0x28] sm:$0x1f]
    %v7621 = vld [vmem:[#allocation3 + $0x30] sm:$0xff]
    %v7622 = vld [vmem:[#allocation3 + $0x38] sm:$0x1f]
    %v7623 = vld [vmem:[#allocation3 + $0x40] sm:$0xff]
    %v7624 = vld [vmem:[#allocation3 + $0x48] sm:$0x1f]
    %v7625 = vld [vmem:[#allocation3 + $0x50] sm:$0xff]
    %v7626 = vld [vmem:[#allocation3 + $0x58] sm:$0x1f]
    %v7627 = vld [vmem:[#allocation3 + $0x60] sm:$0xff]
    %v7628 = vld [vmem:[#allocation3 + $0x68] sm:$0x1f]
    %v7629 = vld [vmem:[#allocation3 + $0x70] sm:$0xff]
    %v7630 = vld [vmem:[#allocation3 + $0x78] sm:$0x1f]
    %v7631 = vld [vmem:[#allocation3 + $0x80] sm:$0xff]
    %v7632 = vld [vmem:[#allocation3 + $0x88] sm:$0x1f]
    %v7633 = vld [vmem:[#allocation3 + $0x90] sm:$0xff]
    %v7634 = vld [vmem:[#allocation3 + $0x98] sm:$0x1f]
    %v7635 = vld [vmem:[#allocation3 + $0xa0] sm:$0xff]
    %v7636 = vld [vmem:[#allocation3 + $0xa8] sm:$0x1f]
    %v7637 = vld [vmem:[#allocation3 + $0xb0] sm:$0xff]
    %v7638 = vld [vmem:[#allocation3 + $0xb8] sm:$0x1f]
    %v7655 = vcombine.high %v7615, %v7615
    %v7656 = vcombine.high %v7617, %v7617
    %v7657 = vcombine.high %v7619, %v7619
    %v7658 = vcombine.high %v7621, %v7621
    %v7659 = vcombine.high %v7627, %v7627
    %v7660 = vcombine.high %v7629, %v7629
    %v7661 = vcombine.high %v7631, %v7631
    %v7662 = vcombine.high %v7633, %v7633
    %vm7663 = vmor %vm4875, %vm4637
    %v7664 = vrot.slane %v7655, 7
    %v7665 = vrot.slane %v7664, 4
    %v7666 = vrot.slane %v7616, 7
    %v7667 = vsel %vm7663, %v7665, %v7666
    %v7668 = vrot.slane %v7656, 7
    %v7669 = vrot.slane %v7668, 4
    %v7670 = vrot.slane %v7618, 7
    %v7671 = vsel %vm7663, %v7669, %v7670
    %v7672 = vrot.slane %v7657, 7
    %v7673 = vrot.slane %v7672, 4
    %v7674 = vrot.slane %v7620, 7
    %v7675 = vsel %vm7663, %v7673, %v7674
    %v7676 = vrot.slane %v7658, 7
    %v7677 = vrot.slane %v7676, 4
    %v7678 = vrot.slane %v7622, 7
    %v7679 = vsel %vm7663, %v7677, %v7678
    %v7680 = vrot.slane %v7659, 7
    %v7681 = vrot.slane %v7680, 4
    %v7682 = vrot.slane %v7628, 7
    %v7683 = vsel %vm7663, %v7681, %v7682
    %v7684 = vrot.slane %v7660, 7
    %v7685 = vrot.slane %v7684, 4
    %v7686 = vrot.slane %v7630, 7
    %v7687 = vsel %vm7663, %v7685, %v7686
    %v7688 = vrot.slane %v7661, 7
    %v7689 = vrot.slane %v7688, 4
    %v7690 = vrot.slane %v7632, 7
    %v7691 = vsel %vm7663, %v7689, %v7690
    %v7692 = vrot.slane %v7662, 7
    %v7693 = vrot.slane %v7692, 4
    %v7694 = vrot.slane %v7634, 7
    %v7695 = vsel %vm7663, %v7693, %v7694
    %v7696 = vcombine.low %v7667, %v7671
    %v7697 = vcombine.low %v7675, %v7679
    %v7698 = vcombine.low %v7683, %v7687
    %v7699 = vcombine.low %v7691, %v7695
    %v7704 = vpack.c.bf16 %v7697, %v7696
    %v7705 = vpack.c.bf16 %v7699, %v7698
    %s7706 = scalar_lea.vmem %s2, 288
    %v7707 = vld [vmem:[%s7706] sm:$0xf]
    %v7708 = vld [vmem:[%s7706 + $0x4] sm:$0xf]
    %v7709 = vld [vmem:[%s7706 + $0x8] sm:$0xf]
    %v7710 = vld [vmem:[%s7706 + $0xc] sm:$0xf]
    %v7711 = vld [vmem:[%s7706 + $0x10] sm:$0xf]
    %v7712 = vld [vmem:[%s7706 + $0x14] sm:$0xf]
    %v7713 = vld [vmem:[%s7706 + $0x18] sm:$0xf]
    %v7714 = vld [vmem:[%s7706 + $0x1c] sm:$0xf]
    %v7715 = vcombine.low %v7616, %v7618
    %v7716 = vcombine.low %v7620, %v7622
    %v7717 = vcombine.low %v7628, %v7630
    %v7718 = vcombine.low %v7632, %v7634
    %v7723 = vpack.c.bf16 %v7716, %v7715
    %v7724 = vpack.c.bf16 %v7718, %v7717
    %s7725 = scalar_lea.vmem %s2, 320
    %v7726 = vld [vmem:[%s7725] sm:$0xf]
    %v7727 = vld [vmem:[%s7725 + $0x4] sm:$0xf]
    %v7728 = vld [vmem:[%s7725 + $0x8] sm:$0xf]
    %v7729 = vld [vmem:[%s7725 + $0xc] sm:$0xf]
    %v7730 = vld [vmem:[%s7725 + $0x10] sm:$0xf]
    %v7731 = vld [vmem:[%s7725 + $0x14] sm:$0xf]
    %v7732 = vld [vmem:[%s7725 + $0x18] sm:$0xf]
    %v7733 = vld [vmem:[%s7725 + $0x1c] sm:$0xf]
    %v7742 = vunpack.c.l.b16 %v7726
    %v7743 = vunpack.c.l.b16 %v7727
    %v7744 = vunpack.c.l.b16 %v7728
    %v7745 = vunpack.c.l.b16 %v7729
    %v7746 = vunpack.c.l.b16 %v7730
    %v7747 = vunpack.c.l.b16 %v7731
    %v7748 = vunpack.c.l.b16 %v7732
    %v7749 = vunpack.c.l.b16 %v7733
    %v7750 = vpack.c.b16 %v7743, %v7742
    %v7751 = vpack.c.b16 %v7745, %v7744
    %v7752 = vpack.c.b16 %v7747, %v7746
    %v7753 = vpack.c.b16 %v7749, %v7748
    %v7759 = vsel %vm4057, %v7723, 0
    %v7762 = vsel %vm4057, %v7724, 0
    %7764 = vmatprep.subr.bf16.mxu0 0
    %7765 = vmatpush1.bf16.msra.mxu0 0
    %7766 = vmatprep.subr.bf16.mxu0 0
    %7767 = vmatpush1.bf16.msra.mxu0 0
    %7768 = vmatprep.subr.bf16.mxu0 0
    %7769 = vmatpush1.bf16.msra.mxu0 0
    %7770 = vmatprep.subr.bf16.mxu0 0
    %7771 = vmatpush1.bf16.msra.mxu0 0
    %7772 = vmatprep.subr.bf16.mxu0 0
    %7773 = vmatpush1.bf16.msra.mxu0 %v7753
    %7774 = vmatprep.subr.bf16.mxu0 0
    %7775 = vmatpush1.bf16.msra.mxu0 %v7752
    %7776 = vmatprep.subr.bf16.mxu0 0
    %7777 = vmatpush1.bf16.msra.mxu0 %v7751
    %7778 = vmatprep.subr.bf16.mxu0 0
    %7779 = vmatpush1.bf16.msra.mxu0 %v7750
    %7780 = vmatprep.subr.bf16.mxu0 0
    %7781 = vmatpush2.bf16.msra.mxu0 0
    %7782 = vmatprep.subr.bf16.mxu0 0
    %7783 = vmatpush2.bf16.msra.mxu0 0
    %7784 = vmatprep.subr.bf16.mxu0 0
    %7785 = vmatpush2.bf16.msra.mxu0 0
    %7786 = vmatprep.subr.bf16.mxu0 0
    %7787 = vmatpush2.bf16.msra.mxu0 0
    %7788 = vmatprep.subr.bf16.mxu0 0
    %7789 = vmatpush2.bf16.msra.mxu0 0
    %7790 = vmatprep.subr.bf16.mxu0 0
    %7791 = vmatpush2.bf16.msra.mxu0 0
    %7792 = vmatprep.subr.bf16.mxu0 0
    %7793 = vmatpush2.bf16.msra.mxu0 0
    %7794 = vmatprep.subr.bf16.mxu0 0
    %7795 = vmatpush2.bf16.msra.mxu0 0
    %7796 = vmatprep.mubr.bf16.mxu0 0
    %7797 = vmatmul.mubr.bf16.gmra.mxu0 %v7759
    %v7798 = vpop.f32.mrf.mxu0
    %v7799 = vadd.f32 0.0, %v7798
    %v7800 = vpop.f32.mrf.mxu0
    %v7801 = vpop.f32.mrf.mxu0
    %v7802 = vadd.f32 0.0, %v7801
    %v7803 = vpop.f32.mrf.mxu0
    %7804 = vmatprep.mubr.bf16.mxu0 0
    %7805 = vmatmul.mubr.bf16.gmra.mxu0 %v7762
    %v7806 = vpop.f32.mrf.mxu0
    %v7807 = vadd.f32 0.0, %v7806
    %v7808 = vpop.f32.mrf.mxu0
    %v7809 = vpop.f32.mrf.mxu0
    %v7810 = vadd.f32 0.0, %v7809
    %v7811 = vpop.f32.mrf.mxu0
    %7812 = vdwg.mxu0
    %v7821 = vunpack.c.l.b16 %v7707
    %v7822 = vunpack.c.l.b16 %v7708
    %v7823 = vunpack.c.l.b16 %v7709
    %v7824 = vunpack.c.l.b16 %v7710
    %v7825 = vunpack.c.l.b16 %v7711
    %v7826 = vunpack.c.l.b16 %v7712
    %v7827 = vunpack.c.l.b16 %v7713
    %v7828 = vunpack.c.l.b16 %v7714
    %v7829 = vpack.c.b16 %v7822, %v7821
    %v7830 = vpack.c.b16 %v7824, %v7823
    %v7831 = vpack.c.b16 %v7826, %v7825
    %v7832 = vpack.c.b16 %v7828, %v7827
    %v7838 = vsel %vm4057, %v7704, 0
    %v7841 = vsel %vm4057, %v7705, 0
    %7843 = vmatprep.subr.bf16.mxu0 0
    %7844 = vmatpush1.bf16.msra.mxu0 0
    %7845 = vmatprep.subr.bf16.mxu0 0
    %7846 = vmatpush1.bf16.msra.mxu0 0
    %7847 = vmatprep.subr.bf16.mxu0 0
    %7848 = vmatpush1.bf16.msra.mxu0 0
    %7849 = vmatprep.subr.bf16.mxu0 0
    %7850 = vmatpush1.bf16.msra.mxu0 0
    %7851 = vmatprep.subr.bf16.mxu0 0
    %7852 = vmatpush1.bf16.msra.mxu0 %v7832
    %7853 = vmatprep.subr.bf16.mxu0 0
    %7854 = vmatpush1.bf16.msra.mxu0 %v7831
    %7855 = vmatprep.subr.bf16.mxu0 0
    %7856 = vmatpush1.bf16.msra.mxu0 %v7830
    %7857 = vmatprep.subr.bf16.mxu0 0
    %7858 = vmatpush1.bf16.msra.mxu0 %v7829
    %7859 = vmatprep.subr.bf16.mxu0 0
    %7860 = vmatpush2.bf16.msra.mxu0 0
    %7861 = vmatprep.subr.bf16.mxu0 0
    %7862 = vmatpush2.bf16.msra.mxu0 0
    %7863 = vmatprep.subr.bf16.mxu0 0
    %7864 = vmatpush2.bf16.msra.mxu0 0
    %7865 = vmatprep.subr.bf16.mxu0 0
    %7866 = vmatpush2.bf16.msra.mxu0 0
    %7867 = vmatprep.subr.bf16.mxu0 0
    %7868 = vmatpush2.bf16.msra.mxu0 0
    %7869 = vmatprep.subr.bf16.mxu0 0
    %7870 = vmatpush2.bf16.msra.mxu0 0
    %7871 = vmatprep.subr.bf16.mxu0 0
    %7872 = vmatpush2.bf16.msra.mxu0 0
    %7873 = vmatprep.subr.bf16.mxu0 0
    %7874 = vmatpush2.bf16.msra.mxu0 0
    %7875 = vmatprep.mubr.bf16.mxu0 0
    %7876 = vmatmul.mubr.bf16.gmra.mxu0 %v7838
    %v7877 = vpop.f32.mrf.mxu0
    %v7878 = vadd.f32 %v7799, %v7877
    %v7879 = vpop.f32.mrf.mxu0
    %v7880 = vpop.f32.mrf.mxu0
    %v7881 = vadd.f32 %v7802, %v7880
    %v7882 = vpop.f32.mrf.mxu0
    %7883 = vmatprep.mubr.bf16.mxu0 0
    %7884 = vmatmul.mubr.bf16.gmra.mxu0 %v7841
    %v7885 = vpop.f32.mrf.mxu0
    %v7886 = vadd.f32 %v7807, %v7885
    %v7887 = vpop.f32.mrf.mxu0
    %v7888 = vpop.f32.mrf.mxu0
    %v7889 = vadd.f32 %v7810, %v7888
    %v7890 = vpop.f32.mrf.mxu0
    %7891 = vdwg.mxu0
    %v7892 = vcombine.high %v7616, %v7616
    %v7893 = vcombine.high %v7618, %v7618
    %v7894 = vcombine.high %v7620, %v7620
    %v7895 = vcombine.high %v7622, %v7622
    %v7896 = vcombine.high %v7628, %v7628
    %v7897 = vcombine.high %v7630, %v7630
    %v7898 = vcombine.high %v7632, %v7632
    %v7899 = vcombine.high %v7634, %v7634
    %vm7900 = vcmask 1042432
    %vm7901 = vcmask 1046532
    %vm7902 = vmor %vm7900, %vm7901
    %v7903 = vrot.slane %v7616, 5
    %v7904 = vrot.slane %v7903, 4
    %v7905 = vrot.slane %v7892, 5
    %v7906 = vsel %vm7902, %v7904, %v7905
    %v7907 = vrot.slane %v7618, 5
    %v7908 = vrot.slane %v7907, 4
    %v7909 = vrot.slane %v7893, 5
    %v7910 = vsel %vm7902, %v7908, %v7909
    %v7911 = vrot.slane %v7620, 5
    %v7912 = vrot.slane %v7911, 4
    %v7913 = vrot.slane %v7894, 5
    %v7914 = vsel %vm7902, %v7912, %v7913
    %v7915 = vrot.slane %v7622, 5
    %v7916 = vrot.slane %v7915, 4
    %v7917 = vrot.slane %v7895, 5
    %v7918 = vsel %vm7902, %v7916, %v7917
    %v7919 = vrot.slane %v7628, 5
    %v7920 = vrot.slane %v7919, 4
    %v7921 = vrot.slane %v7896, 5
    %v7922 = vsel %vm7902, %v7920, %v7921
    %v7923 = vrot.slane %v7630, 5
    %v7924 = vrot.slane %v7923, 4
    %v7925 = vrot.slane %v7897, 5
    %v7926 = vsel %vm7902, %v7924, %v7925
    %v7927 = vrot.slane %v7632, 5
    %v7928 = vrot.slane %v7927, 4
    %v7929 = vrot.slane %v7898, 5
    %v7930 = vsel %vm7902, %v7928, %v7929
    %v7931 = vrot.slane %v7634, 5
    %v7932 = vrot.slane %v7931, 4
    %v7933 = vrot.slane %v7899, 5
    %v7934 = vsel %vm7902, %v7932, %v7933
    %v7935 = vcombine.low %v7906, %v7910
    %v7936 = vcombine.low %v7914, %v7918
    %v7937 = vcombine.low %v7922, %v7926
    %v7938 = vcombine.low %v7930, %v7934
    %v7943 = vpack.c.bf16 %v7936, %v7935
    %v7944 = vpack.c.bf16 %v7938, %v7937
    %s7945 = scalar_lea.vmem %s2, 352
    %v7946 = vld [vmem:[%s7945] sm:$0xf]
    %v7947 = vld [vmem:[%s7945 + $0x4] sm:$0xf]
    %v7948 = vld [vmem:[%s7945 + $0x8] sm:$0xf]
    %v7949 = vld [vmem:[%s7945 + $0xc] sm:$0xf]
    %v7950 = vld [vmem:[%s7945 + $0x10] sm:$0xf]
    %v7951 = vld [vmem:[%s7945 + $0x14] sm:$0xf]
    %v7952 = vld [vmem:[%s7945 + $0x18] sm:$0xf]
    %v7953 = vld [vmem:[%s7945 + $0x1c] sm:$0xf]
    %v7962 = vunpack.c.l.b16 %v7946
    %v7963 = vunpack.c.l.b16 %v7947
    %v7964 = vunpack.c.l.b16 %v7948
    %v7965 = vunpack.c.l.b16 %v7949
    %v7966 = vunpack.c.l.b16 %v7950
    %v7967 = vunpack.c.l.b16 %v7951
    %v7968 = vunpack.c.l.b16 %v7952
    %v7969 = vunpack.c.l.b16 %v7953
    %v7970 = vpack.c.b16 %v7963, %v7962
    %v7971 = vpack.c.b16 %v7965, %v7964
    %v7972 = vpack.c.b16 %v7967, %v7966
    %v7973 = vpack.c.b16 %v7969, %v7968
    %v7979 = vsel %vm4057, %v7943, 0
    %v7982 = vsel %vm4057, %v7944, 0
    %7984 = vmatprep.subr.bf16.mxu0 0
    %7985 = vmatpush1.bf16.msra.mxu0 0
    %7986 = vmatprep.subr.bf16.mxu0 0
    %7987 = vmatpush1.bf16.msra.mxu0 0
    %7988 = vmatprep.subr.bf16.mxu0 0
    %7989 = vmatpush1.bf16.msra.mxu0 0
    %7990 = vmatprep.subr.bf16.mxu0 0
    %7991 = vmatpush1.bf16.msra.mxu0 0
    %7992 = vmatprep.subr.bf16.mxu0 0
    %7993 = vmatpush1.bf16.msra.mxu0 %v7973
    %7994 = vmatprep.subr.bf16.mxu0 0
    %7995 = vmatpush1.bf16.msra.mxu0 %v7972
    %7996 = vmatprep.subr.bf16.mxu0 0
    %7997 = vmatpush1.bf16.msra.mxu0 %v7971
    %7998 = vmatprep.subr.bf16.mxu0 0
    %7999 = vmatpush1.bf16.msra.mxu0 %v7970
    %8000 = vmatprep.subr.bf16.mxu0 0
    %8001 = vmatpush2.bf16.msra.mxu0 0
    %8002 = vmatprep.subr.bf16.mxu0 0
    %8003 = vmatpush2.bf16.msra.mxu0 0
    %8004 = vmatprep.subr.bf16.mxu0 0
    %8005 = vmatpush2.bf16.msra.mxu0 0
    %8006 = vmatprep.subr.bf16.mxu0 0
    %8007 = vmatpush2.bf16.msra.mxu0 0
    %8008 = vmatprep.subr.bf16.mxu0 0
    %8009 = vmatpush2.bf16.msra.mxu0 0
    %8010 = vmatprep.subr.bf16.mxu0 0
    %8011 = vmatpush2.bf16.msra.mxu0 0
    %8012 = vmatprep.subr.bf16.mxu0 0
    %8013 = vmatpush2.bf16.msra.mxu0 0
    %8014 = vmatprep.subr.bf16.mxu0 0
    %8015 = vmatpush2.bf16.msra.mxu0 0
    %8016 = vmatprep.mubr.bf16.mxu0 0
    %8017 = vmatmul.mubr.bf16.gmra.mxu0 %v7979
    %v8018 = vpop.f32.mrf.mxu0
    %v8019 = vadd.f32 0.0, %v8018
    %v8020 = vpop.f32.mrf.mxu0
    %v8021 = vpop.f32.mrf.mxu0
    %v8022 = vadd.f32 0.0, %v8021
    %v8023 = vpop.f32.mrf.mxu0
    %8024 = vmatprep.mubr.bf16.mxu0 0
    %8025 = vmatmul.mubr.bf16.gmra.mxu0 %v7982
    %v8026 = vpop.f32.mrf.mxu0
    %v8027 = vadd.f32 0.0, %v8026
    %v8028 = vpop.f32.mrf.mxu0
    %v8029 = vpop.f32.mrf.mxu0
    %v8030 = vadd.f32 0.0, %v8029
    %v8031 = vpop.f32.mrf.mxu0
    %8032 = vdwg.mxu0
    %v8033 = vadd.f32 %v7878, %v8019
    %v8034 = vadd.f32 %v7881, %v8022
    %v8035 = vadd.f32 %v7886, %v8027
    %v8036 = vadd.f32 %v7889, %v8030
    %v8041 = vcombine.high %v7623, %v7623
    %v8042 = vcombine.high %v7635, %v7635
    %v8043 = vrot.slane %v8041, 7
    %v8044 = vrot.slane %v8043, 4
    %v8045 = vrot.slane %v7624, 7
    %v8046 = vsel %vm7663, %v8044, %v8045
    %v8047 = vrot.slane %v8042, 7
    %v8048 = vrot.slane %v8047, 4
    %v8049 = vrot.slane %v7636, 7
    %v8050 = vsel %vm7663, %v8048, %v8049
    %v8051 = vcombine.low %v7671, %v7675
    %v8052 = vcombine.low %v7679, %v8046
    %v8053 = vcombine.low %v7687, %v7691
    %v8054 = vcombine.low %v7695, %v8050
    %v8059 = vpack.c.bf16 %v8052, %v8051
    %v8060 = vpack.c.bf16 %v8054, %v8053
    %s8061 = scalar_lea.vmem %s2, 384
    %v8062 = vld [vmem:[%s8061] sm:$0xf]
    %v8063 = vld [vmem:[%s8061 + $0x4] sm:$0xf]
    %v8064 = vld [vmem:[%s8061 + $0x8] sm:$0xf]
    %v8065 = vld [vmem:[%s8061 + $0xc] sm:$0xf]
    %v8066 = vld [vmem:[%s8061 + $0x10] sm:$0xf]
    %v8067 = vld [vmem:[%s8061 + $0x14] sm:$0xf]
    %v8068 = vld [vmem:[%s8061 + $0x18] sm:$0xf]
    %v8069 = vld [vmem:[%s8061 + $0x1c] sm:$0xf]
    %v8078 = vunpack.c.l.b16 %v8062
    %v8079 = vunpack.c.l.b16 %v8063
    %v8080 = vunpack.c.l.b16 %v8064
    %v8081 = vunpack.c.l.b16 %v8065
    %v8082 = vunpack.c.l.b16 %v8066
    %v8083 = vunpack.c.l.b16 %v8067
    %v8084 = vunpack.c.l.b16 %v8068
    %v8085 = vunpack.c.l.b16 %v8069
    %v8086 = vpack.c.b16 %v8079, %v8078
    %v8087 = vpack.c.b16 %v8081, %v8080
    %v8088 = vpack.c.b16 %v8083, %v8082
    %v8089 = vpack.c.b16 %v8085, %v8084
    %v8095 = vsel %vm4057, %v8059, 0
    %v8098 = vsel %vm4057, %v8060, 0
    %8100 = vmatprep.subr.bf16.mxu0 0
    %8101 = vmatpush1.bf16.msra.mxu0 0
    %8102 = vmatprep.subr.bf16.mxu0 0
    %8103 = vmatpush1.bf16.msra.mxu0 0
    %8104 = vmatprep.subr.bf16.mxu0 0
    %8105 = vmatpush1.bf16.msra.mxu0 0
    %8106 = vmatprep.subr.bf16.mxu0 0
    %8107 = vmatpush1.bf16.msra.mxu0 0
    %8108 = vmatprep.subr.bf16.mxu0 0
    %8109 = vmatpush1.bf16.msra.mxu0 %v8089
    %8110 = vmatprep.subr.bf16.mxu0 0
    %8111 = vmatpush1.bf16.msra.mxu0 %v8088
    %8112 = vmatprep.subr.bf16.mxu0 0
    %8113 = vmatpush1.bf16.msra.mxu0 %v8087
    %8114 = vmatprep.subr.bf16.mxu0 0
    %8115 = vmatpush1.bf16.msra.mxu0 %v8086
    %8116 = vmatprep.subr.bf16.mxu0 0
    %8117 = vmatpush2.bf16.msra.mxu0 0
    %8118 = vmatprep.subr.bf16.mxu0 0
    %8119 = vmatpush2.bf16.msra.mxu0 0
    %8120 = vmatprep.subr.bf16.mxu0 0
    %8121 = vmatpush2.bf16.msra.mxu0 0
    %8122 = vmatprep.subr.bf16.mxu0 0
    %8123 = vmatpush2.bf16.msra.mxu0 0
    %8124 = vmatprep.subr.bf16.mxu0 0
    %8125 = vmatpush2.bf16.msra.mxu0 0
    %8126 = vmatprep.subr.bf16.mxu0 0
    %8127 = vmatpush2.bf16.msra.mxu0 0
    %8128 = vmatprep.subr.bf16.mxu0 0
    %8129 = vmatpush2.bf16.msra.mxu0 0
    %8130 = vmatprep.subr.bf16.mxu0 0
    %8131 = vmatpush2.bf16.msra.mxu0 0
    %8132 = vmatprep.mubr.bf16.mxu0 0
    %8133 = vmatmul.mubr.bf16.gmra.mxu0 %v8095
    %v8134 = vpop.f32.mrf.mxu0
    %v8135 = vadd.f32 0.0, %v8134
    %v8136 = vpop.f32.mrf.mxu0
    %v8137 = vpop.f32.mrf.mxu0
    %v8138 = vadd.f32 0.0, %v8137
    %v8139 = vpop.f32.mrf.mxu0
    %8140 = vmatprep.mubr.bf16.mxu0 0
    %8141 = vmatmul.mubr.bf16.gmra.mxu0 %v8098
    %v8142 = vpop.f32.mrf.mxu0
    %v8143 = vadd.f32 0.0, %v8142
    %v8144 = vpop.f32.mrf.mxu0
    %v8145 = vpop.f32.mrf.mxu0
    %v8146 = vadd.f32 0.0, %v8145
    %v8147 = vpop.f32.mrf.mxu0
    %8148 = vdwg.mxu0
    %v8149 = vadd.f32 %v8033, %v8135
    %v8150 = vadd.f32 %v8034, %v8138
    %v8151 = vadd.f32 %v8035, %v8143
    %v8152 = vadd.f32 %v8036, %v8146
    %v8153 = vcombine.low %v7618, %v7620
    %v8154 = vcombine.low %v7622, %v7624
    %v8155 = vcombine.low %v7630, %v7632
    %v8156 = vcombine.low %v7634, %v7636
    %v8161 = vpack.c.bf16 %v8154, %v8153
    %v8162 = vpack.c.bf16 %v8156, %v8155
    %s8163 = scalar_lea.vmem %s2, 416
    %v8164 = vld [vmem:[%s8163] sm:$0xf]
    %v8165 = vld [vmem:[%s8163 + $0x4] sm:$0xf]
    %v8166 = vld [vmem:[%s8163 + $0x8] sm:$0xf]
    %v8167 = vld [vmem:[%s8163 + $0xc] sm:$0xf]
    %v8168 = vld [vmem:[%s8163 + $0x10] sm:$0xf]
    %v8169 = vld [vmem:[%s8163 + $0x14] sm:$0xf]
    %v8170 = vld [vmem:[%s8163 + $0x18] sm:$0xf]
    %v8171 = vld [vmem:[%s8163 + $0x1c] sm:$0xf]
    %v8180 = vunpack.c.l.b16 %v8164
    %v8181 = vunpack.c.l.b16 %v8165
    %v8182 = vunpack.c.l.b16 %v8166
    %v8183 = vunpack.c.l.b16 %v8167
    %v8184 = vunpack.c.l.b16 %v8168
    %v8185 = vunpack.c.l.b16 %v8169
    %v8186 = vunpack.c.l.b16 %v8170
    %v8187 = vunpack.c.l.b16 %v8171
    %v8188 = vpack.c.b16 %v8181, %v8180
    %v8189 = vpack.c.b16 %v8183, %v8182
    %v8190 = vpack.c.b16 %v8185, %v8184
    %v8191 = vpack.c.b16 %v8187, %v8186
    %v8197 = vsel %vm4057, %v8161, 0
    %v8200 = vsel %vm4057, %v8162, 0
    %8202 = vmatprep.subr.bf16.mxu0 0
    %8203 = vmatpush1.bf16.msra.mxu0 0
    %8204 = vmatprep.subr.bf16.mxu0 0
    %8205 = vmatpush1.bf16.msra.mxu0 0
    %8206 = vmatprep.subr.bf16.mxu0 0
    %8207 = vmatpush1.bf16.msra.mxu0 0
    %8208 = vmatprep.subr.bf16.mxu0 0
    %8209 = vmatpush1.bf16.msra.mxu0 0
    %8210 = vmatprep.subr.bf16.mxu0 0
    %8211 = vmatpush1.bf16.msra.mxu0 %v8191
    %8212 = vmatprep.subr.bf16.mxu0 0
    %8213 = vmatpush1.bf16.msra.mxu0 %v8190
    %8214 = vmatprep.subr.bf16.mxu0 0
    %8215 = vmatpush1.bf16.msra.mxu0 %v8189
    %8216 = vmatprep.subr.bf16.mxu0 0
    %8217 = vmatpush1.bf16.msra.mxu0 %v8188
    %8218 = vmatprep.subr.bf16.mxu0 0
    %8219 = vmatpush2.bf16.msra.mxu0 0
    %8220 = vmatprep.subr.bf16.mxu0 0
    %8221 = vmatpush2.bf16.msra.mxu0 0
    %8222 = vmatprep.subr.bf16.mxu0 0
    %8223 = vmatpush2.bf16.msra.mxu0 0
    %8224 = vmatprep.subr.bf16.mxu0 0
    %8225 = vmatpush2.bf16.msra.mxu0 0
    %8226 = vmatprep.subr.bf16.mxu0 0
    %8227 = vmatpush2.bf16.msra.mxu0 0
    %8228 = vmatprep.subr.bf16.mxu0 0
    %8229 = vmatpush2.bf16.msra.mxu0 0
    %8230 = vmatprep.subr.bf16.mxu0 0
    %8231 = vmatpush2.bf16.msra.mxu0 0
    %8232 = vmatprep.subr.bf16.mxu0 0
    %8233 = vmatpush2.bf16.msra.mxu0 0
    %8234 = vmatprep.mubr.bf16.mxu0 0
    %8235 = vmatmul.mubr.bf16.gmra.mxu0 %v8197
    %v8236 = vpop.f32.mrf.mxu0
    %v8237 = vadd.f32 0.0, %v8236
    %v8238 = vpop.f32.mrf.mxu0
    %v8239 = vpop.f32.mrf.mxu0
    %v8240 = vadd.f32 0.0, %v8239
    %v8241 = vpop.f32.mrf.mxu0
    %8242 = vmatprep.mubr.bf16.mxu0 0
    %8243 = vmatmul.mubr.bf16.gmra.mxu0 %v8200
    %v8244 = vpop.f32.mrf.mxu0
    %v8245 = vadd.f32 0.0, %v8244
    %v8246 = vpop.f32.mrf.mxu0
    %v8247 = vpop.f32.mrf.mxu0
    %v8248 = vadd.f32 0.0, %v8247
    %v8249 = vpop.f32.mrf.mxu0
    %8250 = vdwg.mxu0
    %v8251 = vadd.f32 %v8149, %v8237
    %v8252 = vadd.f32 %v8150, %v8240
    %v8253 = vadd.f32 %v8151, %v8245
    %v8254 = vadd.f32 %v8152, %v8248
    %v8255 = vcombine.high %v7624, %v7624
    %v8256 = vcombine.high %v7636, %v7636
    %v8257 = vrot.slane %v7624, 5
    %v8258 = vrot.slane %v8257, 4
    %v8259 = vrot.slane %v8255, 5
    %v8260 = vsel %vm7902, %v8258, %v8259
    %v8261 = vrot.slane %v7636, 5
    %v8262 = vrot.slane %v8261, 4
    %v8263 = vrot.slane %v8256, 5
    %v8264 = vsel %vm7902, %v8262, %v8263
    %v8265 = vcombine.low %v7910, %v7914
    %v8266 = vcombine.low %v7918, %v8260
    %v8267 = vcombine.low %v7926, %v7930
    %v8268 = vcombine.low %v7934, %v8264
    %v8273 = vpack.c.bf16 %v8266, %v8265
    %v8274 = vpack.c.bf16 %v8268, %v8267
    %s8275 = scalar_lea.vmem %s2, 448
    %v8276 = vld [vmem:[%s8275] sm:$0xf]
    %v8277 = vld [vmem:[%s8275 + $0x4] sm:$0xf]
    %v8278 = vld [vmem:[%s8275 + $0x8] sm:$0xf]
    %v8279 = vld [vmem:[%s8275 + $0xc] sm:$0xf]
    %v8280 = vld [vmem:[%s8275 + $0x10] sm:$0xf]
    %v8281 = vld [vmem:[%s8275 + $0x14] sm:$0xf]
    %v8282 = vld [vmem:[%s8275 + $0x18] sm:$0xf]
    %v8283 = vld [vmem:[%s8275 + $0x1c] sm:$0xf]
    %v8292 = vunpack.c.l.b16 %v8276
    %v8293 = vunpack.c.l.b16 %v8277
    %v8294 = vunpack.c.l.b16 %v8278
    %v8295 = vunpack.c.l.b16 %v8279
    %v8296 = vunpack.c.l.b16 %v8280
    %v8297 = vunpack.c.l.b16 %v8281
    %v8298 = vunpack.c.l.b16 %v8282
    %v8299 = vunpack.c.l.b16 %v8283
    %v8300 = vpack.c.b16 %v8293, %v8292
    %v8301 = vpack.c.b16 %v8295, %v8294
    %v8302 = vpack.c.b16 %v8297, %v8296
    %v8303 = vpack.c.b16 %v8299, %v8298
    %v8309 = vsel %vm4057, %v8273, 0
    %v8312 = vsel %vm4057, %v8274, 0
    %8314 = vmatprep.subr.bf16.mxu0 0
    %8315 = vmatpush1.bf16.msra.mxu0 0
    %8316 = vmatprep.subr.bf16.mxu0 0
    %8317 = vmatpush1.bf16.msra.mxu0 0
    %8318 = vmatprep.subr.bf16.mxu0 0
    %8319 = vmatpush1.bf16.msra.mxu0 0
    %8320 = vmatprep.subr.bf16.mxu0 0
    %8321 = vmatpush1.bf16.msra.mxu0 0
    %8322 = vmatprep.subr.bf16.mxu0 0
    %8323 = vmatpush1.bf16.msra.mxu0 %v8303
    %8324 = vmatprep.subr.bf16.mxu0 0
    %8325 = vmatpush1.bf16.msra.mxu0 %v8302
    %8326 = vmatprep.subr.bf16.mxu0 0
    %8327 = vmatpush1.bf16.msra.mxu0 %v8301
    %8328 = vmatprep.subr.bf16.mxu0 0
    %8329 = vmatpush1.bf16.msra.mxu0 %v8300
    %8330 = vmatprep.subr.bf16.mxu0 0
    %8331 = vmatpush2.bf16.msra.mxu0 0
    %8332 = vmatprep.subr.bf16.mxu0 0
    %8333 = vmatpush2.bf16.msra.mxu0 0
    %8334 = vmatprep.subr.bf16.mxu0 0
    %8335 = vmatpush2.bf16.msra.mxu0 0
    %8336 = vmatprep.subr.bf16.mxu0 0
    %8337 = vmatpush2.bf16.msra.mxu0 0
    %8338 = vmatprep.subr.bf16.mxu0 0
    %8339 = vmatpush2.bf16.msra.mxu0 0
    %8340 = vmatprep.subr.bf16.mxu0 0
    %8341 = vmatpush2.bf16.msra.mxu0 0
    %8342 = vmatprep.subr.bf16.mxu0 0
    %8343 = vmatpush2.bf16.msra.mxu0 0
    %8344 = vmatprep.subr.bf16.mxu0 0
    %8345 = vmatpush2.bf16.msra.mxu0 0
    %8346 = vmatprep.mubr.bf16.mxu0 0
    %8347 = vmatmul.mubr.bf16.gmra.mxu0 %v8309
    %v8348 = vpop.f32.mrf.mxu0
    %v8349 = vadd.f32 0.0, %v8348
    %v8350 = vpop.f32.mrf.mxu0
    %v8351 = vpop.f32.mrf.mxu0
    %v8352 = vadd.f32 0.0, %v8351
    %v8353 = vpop.f32.mrf.mxu0
    %8354 = vmatprep.mubr.bf16.mxu0 0
    %8355 = vmatmul.mubr.bf16.gmra.mxu0 %v8312
    %v8356 = vpop.f32.mrf.mxu0
    %v8357 = vadd.f32 0.0, %v8356
    %v8358 = vpop.f32.mrf.mxu0
    %v8359 = vpop.f32.mrf.mxu0
    %v8360 = vadd.f32 0.0, %v8359
    %v8361 = vpop.f32.mrf.mxu0
    %8362 = vdwg.mxu0
    %v8363 = vadd.f32 %v8251, %v8349
    %v8364 = vadd.f32 %v8252, %v8352
    %v8365 = vadd.f32 %v8253, %v8357
    %v8366 = vadd.f32 %v8254, %v8360
    %v8371 = vcombine.high %v7625, %v7625
    %v8372 = vcombine.high %v7637, %v7637
    %v8373 = vrot.slane %v8371, 7
    %v8374 = vrot.slane %v8373, 4
    %v8375 = vrot.slane %v7626, 7
    %v8376 = vsel %vm7663, %v8374, %v8375
    %v8377 = vrot.slane %v8372, 7
    %v8378 = vrot.slane %v8377, 4
    %v8379 = vrot.slane %v7638, 7
    %v8380 = vsel %vm7663, %v8378, %v8379
    %v8381 = vcombine.low %v8046, %v8376
    %v8382 = vcombine.low %v8050, %v8380
    %v8385 = vpack.c.bf16 %v8381, %v7697
    %v8386 = vpack.c.bf16 %v8382, %v7699
    %s8387 = scalar_lea.vmem %s2, 480
    %v8388 = vld [vmem:[%s8387] sm:$0xf]
    %v8389 = vld [vmem:[%s8387 + $0x4] sm:$0xf]
    %v8390 = vld [vmem:[%s8387 + $0x8] sm:$0xf]
    %v8391 = vld [vmem:[%s8387 + $0xc] sm:$0xf]
    %v8392 = vld [vmem:[%s8387 + $0x10] sm:$0xf]
    %v8393 = vld [vmem:[%s8387 + $0x14] sm:$0xf]
    %v8394 = vld [vmem:[%s8387 + $0x18] sm:$0xf]
    %v8395 = vld [vmem:[%s8387 + $0x1c] sm:$0xf]
    %v8404 = vunpack.c.l.b16 %v8388
    %v8405 = vunpack.c.l.b16 %v8389
    %v8406 = vunpack.c.l.b16 %v8390
    %v8407 = vunpack.c.l.b16 %v8391
    %v8408 = vunpack.c.l.b16 %v8392
    %v8409 = vunpack.c.l.b16 %v8393
    %v8410 = vunpack.c.l.b16 %v8394
    %v8411 = vunpack.c.l.b16 %v8395
    %v8412 = vpack.c.b16 %v8405, %v8404
    %v8413 = vpack.c.b16 %v8407, %v8406
    %v8414 = vpack.c.b16 %v8409, %v8408
    %v8415 = vpack.c.b16 %v8411, %v8410
    %v8421 = vsel %vm4057, %v8385, 0
    %v8424 = vsel %vm4057, %v8386, 0
    %8426 = vmatprep.subr.bf16.mxu0 0
    %8427 = vmatpush1.bf16.msra.mxu0 0
    %8428 = vmatprep.subr.bf16.mxu0 0
    %8429 = vmatpush1.bf16.msra.mxu0 0
    %8430 = vmatprep.subr.bf16.mxu0 0
    %8431 = vmatpush1.bf16.msra.mxu0 0
    %8432 = vmatprep.subr.bf16.mxu0 0
    %8433 = vmatpush1.bf16.msra.mxu0 0
    %8434 = vmatprep.subr.bf16.mxu0 0
    %8435 = vmatpush1.bf16.msra.mxu0 %v8415
    %8436 = vmatprep.subr.bf16.mxu0 0
    %8437 = vmatpush1.bf16.msra.mxu0 %v8414
    %8438 = vmatprep.subr.bf16.mxu0 0
    %8439 = vmatpush1.bf16.msra.mxu0 %v8413
    %8440 = vmatprep.subr.bf16.mxu0 0
    %8441 = vmatpush1.bf16.msra.mxu0 %v8412
    %8442 = vmatprep.subr.bf16.mxu0 0
    %8443 = vmatpush2.bf16.msra.mxu0 0
    %8444 = vmatprep.subr.bf16.mxu0 0
    %8445 = vmatpush2.bf16.msra.mxu0 0
    %8446 = vmatprep.subr.bf16.mxu0 0
    %8447 = vmatpush2.bf16.msra.mxu0 0
    %8448 = vmatprep.subr.bf16.mxu0 0
    %8449 = vmatpush2.bf16.msra.mxu0 0
    %8450 = vmatprep.subr.bf16.mxu0 0
    %8451 = vmatpush2.bf16.msra.mxu0 0
    %8452 = vmatprep.subr.bf16.mxu0 0
    %8453 = vmatpush2.bf16.msra.mxu0 0
    %8454 = vmatprep.subr.bf16.mxu0 0
    %8455 = vmatpush2.bf16.msra.mxu0 0
    %8456 = vmatprep.subr.bf16.mxu0 0
    %8457 = vmatpush2.bf16.msra.mxu0 0
    %8458 = vmatprep.mubr.bf16.mxu0 0
    %8459 = vmatmul.mubr.bf16.gmra.mxu0 %v8421
    %v8460 = vpop.f32.mrf.mxu0
    %v8461 = vadd.f32 0.0, %v8460
    %v8462 = vpop.f32.mrf.mxu0
    %v8463 = vpop.f32.mrf.mxu0
    %v8464 = vadd.f32 0.0, %v8463
    %v8465 = vpop.f32.mrf.mxu0
    %8466 = vmatprep.mubr.bf16.mxu0 0
    %8467 = vmatmul.mubr.bf16.gmra.mxu0 %v8424
    %v8468 = vpop.f32.mrf.mxu0
    %v8469 = vadd.f32 0.0, %v8468
    %v8470 = vpop.f32.mrf.mxu0
    %v8471 = vpop.f32.mrf.mxu0
    %v8472 = vadd.f32 0.0, %v8471
    %v8473 = vpop.f32.mrf.mxu0
    %8474 = vdwg.mxu0
    %v8475 = vadd.f32 %v8363, %v8461
    %v8476 = vadd.f32 %v8364, %v8464
    %v8477 = vadd.f32 %v8365, %v8469
    %v8478 = vadd.f32 %v8366, %v8472
    %v8479 = vcombine.low %v7624, %v7626
    %v8480 = vcombine.low %v7636, %v7638
    %v8483 = vpack.c.bf16 %v8479, %v7716
    %v8484 = vpack.c.bf16 %v8480, %v7718
    %s8485 = scalar_lea.vmem %s2, 512
    %v8486 = vld [vmem:[%s8485] sm:$0xf]
    %v8487 = vld [vmem:[%s8485 + $0x4] sm:$0xf]
    %v8488 = vld [vmem:[%s8485 + $0x8] sm:$0xf]
    %v8489 = vld [vmem:[%s8485 + $0xc] sm:$0xf]
    %v8490 = vld [vmem:[%s8485 + $0x10] sm:$0xf]
    %v8491 = vld [vmem:[%s8485 + $0x14] sm:$0xf]
    %v8492 = vld [vmem:[%s8485 + $0x18] sm:$0xf]
    %v8493 = vld [vmem:[%s8485 + $0x1c] sm:$0xf]
    %v8502 = vunpack.c.l.b16 %v8486
    %v8503 = vunpack.c.l.b16 %v8487
    %v8504 = vunpack.c.l.b16 %v8488
    %v8505 = vunpack.c.l.b16 %v8489
    %v8506 = vunpack.c.l.b16 %v8490
    %v8507 = vunpack.c.l.b16 %v8491
    %v8508 = vunpack.c.l.b16 %v8492
    %v8509 = vunpack.c.l.b16 %v8493
    %v8510 = vpack.c.b16 %v8503, %v8502
    %v8511 = vpack.c.b16 %v8505, %v8504
    %v8512 = vpack.c.b16 %v8507, %v8506
    %v8513 = vpack.c.b16 %v8509, %v8508
    %v8519 = vsel %vm4057, %v8483, 0
    %v8522 = vsel %vm4057, %v8484, 0
    %8524 = vmatprep.subr.bf16.mxu0 0
    %8525 = vmatpush1.bf16.msra.mxu0 0
    %8526 = vmatprep.subr.bf16.mxu0 0
    %8527 = vmatpush1.bf16.msra.mxu0 0
    %8528 = vmatprep.subr.bf16.mxu0 0
    %8529 = vmatpush1.bf16.msra.mxu0 0
    %8530 = vmatprep.subr.bf16.mxu0 0
    %8531 = vmatpush1.bf16.msra.mxu0 0
    %8532 = vmatprep.subr.bf16.mxu0 0
    %8533 = vmatpush1.bf16.msra.mxu0 %v8513
    %8534 = vmatprep.subr.bf16.mxu0 0
    %8535 = vmatpush1.bf16.msra.mxu0 %v8512
    %8536 = vmatprep.subr.bf16.mxu0 0
    %8537 = vmatpush1.bf16.msra.mxu0 %v8511
    %8538 = vmatprep.subr.bf16.mxu0 0
    %8539 = vmatpush1.bf16.msra.mxu0 %v8510
    %8540 = vmatprep.subr.bf16.mxu0 0
    %8541 = vmatpush2.bf16.msra.mxu0 0
    %8542 = vmatprep.subr.bf16.mxu0 0
    %8543 = vmatpush2.bf16.msra.mxu0 0
    %8544 = vmatprep.subr.bf16.mxu0 0
    %8545 = vmatpush2.bf16.msra.mxu0 0
    %8546 = vmatprep.subr.bf16.mxu0 0
    %8547 = vmatpush2.bf16.msra.mxu0 0
    %8548 = vmatprep.subr.bf16.mxu0 0
    %8549 = vmatpush2.bf16.msra.mxu0 0
    %8550 = vmatprep.subr.bf16.mxu0 0
    %8551 = vmatpush2.bf16.msra.mxu0 0
    %8552 = vmatprep.subr.bf16.mxu0 0
    %8553 = vmatpush2.bf16.msra.mxu0 0
    %8554 = vmatprep.subr.bf16.mxu0 0
    %8555 = vmatpush2.bf16.msra.mxu0 0
    %8556 = vmatprep.mubr.bf16.mxu0 0
    %8557 = vmatmul.mubr.bf16.gmra.mxu0 %v8519
    %v8558 = vpop.f32.mrf.mxu0
    %v8559 = vadd.f32 0.0, %v8558
    %v8560 = vpop.f32.mrf.mxu0
    %v8561 = vpop.f32.mrf.mxu0
    %v8562 = vadd.f32 0.0, %v8561
    %v8563 = vpop.f32.mrf.mxu0
    %8564 = vmatprep.mubr.bf16.mxu0 0
    %8565 = vmatmul.mubr.bf16.gmra.mxu0 %v8522
    %v8566 = vpop.f32.mrf.mxu0
    %v8567 = vadd.f32 0.0, %v8566
    %v8568 = vpop.f32.mrf.mxu0
    %v8569 = vpop.f32.mrf.mxu0
    %v8570 = vadd.f32 0.0, %v8569
    %v8571 = vpop.f32.mrf.mxu0
    %8572 = vdwg.mxu0
    %v8573 = vadd.f32 %v8475, %v8559
    %v8574 = vadd.f32 %v8476, %v8562
    %v8575 = vadd.f32 %v8477, %v8567
    %v8576 = vadd.f32 %v8478, %v8570
    %v8577 = vcombine.high %v7626, %v7626
    %v8578 = vcombine.high %v7638, %v7638
    %v8579 = vrot.slane %v7626, 5
    %v8580 = vrot.slane %v8579, 4
    %v8581 = vrot.slane %v8577, 5
    %v8582 = vsel %vm7902, %v8580, %v8581
    %v8583 = vrot.slane %v7638, 5
    %v8584 = vrot.slane %v8583, 4
    %v8585 = vrot.slane %v8578, 5
    %v8586 = vsel %vm7902, %v8584, %v8585
    %v8587 = vcombine.low %v8260, %v8582
    %v8588 = vcombine.low %v8264, %v8586
    %v8591 = vpack.c.bf16 %v8587, %v7936
    %v8592 = vpack.c.bf16 %v8588, %v7938
    %s8593 = scalar_lea.vmem %s2, 544
    %v8594 = vld [vmem:[%s8593] sm:$0xf]
    %v8595 = vld [vmem:[%s8593 + $0x4] sm:$0xf]
    %v8596 = vld [vmem:[%s8593 + $0x8] sm:$0xf]
    %v8597 = vld [vmem:[%s8593 + $0xc] sm:$0xf]
    %v8598 = vld [vmem:[%s8593 + $0x10] sm:$0xf]
    %v8599 = vld [vmem:[%s8593 + $0x14] sm:$0xf]
    %v8600 = vld [vmem:[%s8593 + $0x18] sm:$0xf]
    %v8601 = vld [vmem:[%s8593 + $0x1c] sm:$0xf]
    %v8610 = vunpack.c.l.b16 %v8594
    %v8611 = vunpack.c.l.b16 %v8595
    %v8612 = vunpack.c.l.b16 %v8596
    %v8613 = vunpack.c.l.b16 %v8597
    %v8614 = vunpack.c.l.b16 %v8598
    %v8615 = vunpack.c.l.b16 %v8599
    %v8616 = vunpack.c.l.b16 %v8600
    %v8617 = vunpack.c.l.b16 %v8601
    %v8618 = vpack.c.b16 %v8611, %v8610
    %v8619 = vpack.c.b16 %v8613, %v8612
    %v8620 = vpack.c.b16 %v8615, %v8614
    %v8621 = vpack.c.b16 %v8617, %v8616
    %v8627 = vsel %vm4057, %v8591, 0
    %v8630 = vsel %vm4057, %v8592, 0
    %8632 = vmatprep.subr.bf16.mxu0 0
    %8633 = vmatpush1.bf16.msra.mxu0 0
    %8634 = vmatprep.subr.bf16.mxu0 0
    %8635 = vmatpush1.bf16.msra.mxu0 0
    %8636 = vmatprep.subr.bf16.mxu0 0
    %8637 = vmatpush1.bf16.msra.mxu0 0
    %8638 = vmatprep.subr.bf16.mxu0 0
    %8639 = vmatpush1.bf16.msra.mxu0 0
    %8640 = vmatprep.subr.bf16.mxu0 0
    %8641 = vmatpush1.bf16.msra.mxu0 %v8621
    %8642 = vmatprep.subr.bf16.mxu0 0
    %8643 = vmatpush1.bf16.msra.mxu0 %v8620
    %8644 = vmatprep.subr.bf16.mxu0 0
    %8645 = vmatpush1.bf16.msra.mxu0 %v8619
    %8646 = vmatprep.subr.bf16.mxu0 0
    %8647 = vmatpush1.bf16.msra.mxu0 %v8618
    %8648 = vmatprep.subr.bf16.mxu0 0
    %8649 = vmatpush2.bf16.msra.mxu0 0
    %8650 = vmatprep.subr.bf16.mxu0 0
    %8651 = vmatpush2.bf16.msra.mxu0 0
    %8652 = vmatprep.subr.bf16.mxu0 0
    %8653 = vmatpush2.bf16.msra.mxu0 0
    %8654 = vmatprep.subr.bf16.mxu0 0
    %8655 = vmatpush2.bf16.msra.mxu0 0
    %8656 = vmatprep.subr.bf16.mxu0 0
    %8657 = vmatpush2.bf16.msra.mxu0 0
    %8658 = vmatprep.subr.bf16.mxu0 0
    %8659 = vmatpush2.bf16.msra.mxu0 0
    %8660 = vmatprep.subr.bf16.mxu0 0
    %8661 = vmatpush2.bf16.msra.mxu0 0
    %8662 = vmatprep.subr.bf16.mxu0 0
    %8663 = vmatpush2.bf16.msra.mxu0 0
    %8664 = vmatprep.mubr.bf16.mxu0 0
    %8665 = vmatmul.mubr.bf16.gmra.mxu0 %v8627
    %v8666 = vpop.f32.mrf.mxu0
    %v8667 = vadd.f32 0.0, %v8666
    %v8668 = vpop.f32.mrf.mxu0
    %v8669 = vpop.f32.mrf.mxu0
    %v8670 = vadd.f32 0.0, %v8669
    %v8671 = vpop.f32.mrf.mxu0
    %8672 = vmatprep.mubr.bf16.mxu0 0
    %8673 = vmatmul.mubr.bf16.gmra.mxu0 %v8630
    %v8674 = vpop.f32.mrf.mxu0
    %v8675 = vadd.f32 0.0, %v8674
    %v8676 = vpop.f32.mrf.mxu0
    %v8677 = vpop.f32.mrf.mxu0
    %v8678 = vadd.f32 0.0, %v8677
    %v8679 = vpop.f32.mrf.mxu0
    %8680 = vdwg.mxu0
    %v8681 = vadd.f32 %v8573, %v8667
    %v8682 = vadd.f32 %v8574, %v8670
    %v8683 = vadd.f32 %v8575, %v8675
    %v8684 = vadd.f32 %v8576, %v8678
    %v8685 = vld [vmem:[%s3 + $0x2] sm:$0x1]
    %v8686 = vld [vmem:[%s4 + $0x2] sm:$0x1]
    %v8687 = vlaneseq
    %v8688 = vshrl.u32 %v8687, 7
    %v8689 = vsub.s32 0, %v8688
    %v8690 = vrot.slane %v8685, %v8689
    %v8691 = vmul.f32 %v8681, %v8690
    %v8692 = vmul.f32 %v8682, %v8690
    %v8693 = vmul.f32 %v8683, %v8690
    %v8694 = vmul.f32 %v8684, %v8690
    %v8695 = vlaneseq
    %v8696 = vshrl.u32 %v8695, 7
    %v8697 = vsub.s32 0, %v8696
    %v8698 = vrot.slane %v8686, %v8697
    %v8699 = vadd.f32 %v8691, %v8698
    %v8700 = vadd.f32 %v8692, %v8698
    %v8701 = vadd.f32 %v8693, %v8698
    %v8702 = vadd.f32 %v8694, %v8698
    %v8703 = vmax.f32 %v8699, 0.0
    %v8704 = vmax.f32 %v8700, 0.0
    %v8705 = vmax.f32 %v8701, 0.0
    %v8706 = vmax.f32 %v8702, 0.0
    %v8711 = vcombine.high %v8703, %v8703
    %v8713 = vunpack.c.l.s4 1983009808
    %v8714 = vunpack.c.0.s8 %v8713
    %v8715 = vlaneseq
    %v8716 = vshrl.u32 %v8715, 7
    %v8717 = vsub.s32 %v8714, %v8716
    %v8718 = vrot.slane %v8703, %v8717
    %v8720 = vunpack.c.l.s4 1983009808
    %v8721 = vunpack.c.0.s8 %v8720
    %v8722 = vlaneseq
    %v8723 = vshrl.u32 %v8722, 7
    %v8724 = vsub.s32 %v8721, %v8723
    %v8725 = vrot.slane %v8711, %v8724
    %v8726 = vcombine.high %v8718, %v8718
    %v8727 = vcombine.high %v8725, %v8725
    %v8728 = vcombine.high %v8704, %v8704
    %v8730 = vunpack.c.l.s4 1983009808
    %v8731 = vunpack.c.0.s8 %v8730
    %v8732 = vlaneseq
    %v8733 = vshrl.u32 %v8732, 7
    %v8734 = vsub.s32 %v8731, %v8733
    %v8735 = vrot.slane %v8704, %v8734
    %v8737 = vunpack.c.l.s4 1983009808
    %v8738 = vunpack.c.0.s8 %v8737
    %v8739 = vlaneseq
    %v8740 = vshrl.u32 %v8739, 7
    %v8741 = vsub.s32 %v8738, %v8740
    %v8742 = vrot.slane %v8728, %v8741
    %v8743 = vcombine.high %v8735, %v8735
    %v8744 = vcombine.high %v8742, %v8742
    %v8745 = vcombine.high %v8705, %v8705
    %v8747 = vunpack.c.l.s4 1983009808
    %v8748 = vunpack.c.0.s8 %v8747
    %v8749 = vlaneseq
    %v8750 = vshrl.u32 %v8749, 7
    %v8751 = vsub.s32 %v8748, %v8750
    %v8752 = vrot.slane %v8705, %v8751
    %v8754 = vunpack.c.l.s4 1983009808
    %v8755 = vunpack.c.0.s8 %v8754
    %v8756 = vlaneseq
    %v8757 = vshrl.u32 %v8756, 7
    %v8758 = vsub.s32 %v8755, %v8757
    %v8759 = vrot.slane %v8745, %v8758
    %v8760 = vcombine.high %v8752, %v8752
    %v8761 = vcombine.high %v8759, %v8759
    %v8762 = vcombine.high %v8706, %v8706
    %v8764 = vunpack.c.l.s4 1983009808
    %v8765 = vunpack.c.0.s8 %v8764
    %v8766 = vlaneseq
    %v8767 = vshrl.u32 %v8766, 7
    %v8768 = vsub.s32 %v8765, %v8767
    %v8769 = vrot.slane %v8706, %v8768
    %v8771 = vunpack.c.l.s4 1983009808
    %v8772 = vunpack.c.0.s8 %v8771
    %v8773 = vlaneseq
    %v8774 = vshrl.u32 %v8773, 7
    %v8775 = vsub.s32 %v8772, %v8774
    %v8776 = vrot.slane %v8762, %v8775
    %v8777 = vcombine.high %v8769, %v8769
    %v8778 = vcombine.high %v8776, %v8776
    %v8795 = vsel %vm2264, %v8718, -inf
    %v8796 = vrot.slane %v8795, 4
    %v8797 = vmax.f32 %v8795, %v8796
    %v8798 = vrot.slane %v8797, 2
    %v8799 = vmax.f32 %v8797, %v8798
    %v8800 = vrot.slane %v8799, 1
    %v8801 = vmax.f32 %v8799, %v8800
    %v8802 = vsel %vm2264, %v8726, -inf
    %v8803 = vrot.slane %v8802, 4
    %v8804 = vmax.f32 %v8802, %v8803
    %v8805 = vrot.slane %v8804, 2
    %v8806 = vmax.f32 %v8804, %v8805
    %v8807 = vrot.slane %v8806, 1
    %v8808 = vmax.f32 %v8806, %v8807
    %v8809 = vsel %vm2264, %v8725, -inf
    %v8810 = vrot.slane %v8809, 4
    %v8811 = vmax.f32 %v8809, %v8810
    %v8812 = vrot.slane %v8811, 2
    %v8813 = vmax.f32 %v8811, %v8812
    %v8814 = vrot.slane %v8813, 1
    %v8815 = vmax.f32 %v8813, %v8814
    %v8816 = vsel %vm2264, %v8727, -inf
    %v8817 = vrot.slane %v8816, 4
    %v8818 = vmax.f32 %v8816, %v8817
    %v8819 = vrot.slane %v8818, 2
    %v8820 = vmax.f32 %v8818, %v8819
    %v8821 = vrot.slane %v8820, 1
    %v8822 = vmax.f32 %v8820, %v8821
    %v8823 = vsel %vm2264, %v8735, -inf
    %v8824 = vrot.slane %v8823, 4
    %v8825 = vmax.f32 %v8823, %v8824
    %v8826 = vrot.slane %v8825, 2
    %v8827 = vmax.f32 %v8825, %v8826
    %v8828 = vrot.slane %v8827, 1
    %v8829 = vmax.f32 %v8827, %v8828
    %v8830 = vsel %vm2264, %v8743, -inf
    %v8831 = vrot.slane %v8830, 4
    %v8832 = vmax.f32 %v8830, %v8831
    %v8833 = vrot.slane %v8832, 2
    %v8834 = vmax.f32 %v8832, %v8833
    %v8835 = vrot.slane %v8834, 1
    %v8836 = vmax.f32 %v8834, %v8835
    %v8837 = vsel %vm2264, %v8742, -inf
    %v8838 = vrot.slane %v8837, 4
    %v8839 = vmax.f32 %v8837, %v8838
    %v8840 = vrot.slane %v8839, 2
    %v8841 = vmax.f32 %v8839, %v8840
    %v8842 = vrot.slane %v8841, 1
    %v8843 = vmax.f32 %v8841, %v8842
    %v8844 = vsel %vm2264, %v8744, -inf
    %v8845 = vrot.slane %v8844, 4
    %v8846 = vmax.f32 %v8844, %v8845
    %v8847 = vrot.slane %v8846, 2
    %v8848 = vmax.f32 %v8846, %v8847
    %v8849 = vrot.slane %v8848, 1
    %v8850 = vmax.f32 %v8848, %v8849
    %v8851 = vsel %vm2264, %v8752, -inf
    %v8852 = vrot.slane %v8851, 4
    %v8853 = vmax.f32 %v8851, %v8852
    %v8854 = vrot.slane %v8853, 2
    %v8855 = vmax.f32 %v8853, %v8854
    %v8856 = vrot.slane %v8855, 1
    %v8857 = vmax.f32 %v8855, %v8856
    %v8858 = vsel %vm2264, %v8760, -inf
    %v8859 = vrot.slane %v8858, 4
    %v8860 = vmax.f32 %v8858, %v8859
    %v8861 = vrot.slane %v8860, 2
    %v8862 = vmax.f32 %v8860, %v8861
    %v8863 = vrot.slane %v8862, 1
    %v8864 = vmax.f32 %v8862, %v8863
    %v8865 = vsel %vm2264, %v8759, -inf
    %v8866 = vrot.slane %v8865, 4
    %v8867 = vmax.f32 %v8865, %v8866
    %v8868 = vrot.slane %v8867, 2
    %v8869 = vmax.f32 %v8867, %v8868
    %v8870 = vrot.slane %v8869, 1
    %v8871 = vmax.f32 %v8869, %v8870
    %v8872 = vsel %vm2264, %v8761, -inf
    %v8873 = vrot.slane %v8872, 4
    %v8874 = vmax.f32 %v8872, %v8873
    %v8875 = vrot.slane %v8874, 2
    %v8876 = vmax.f32 %v8874, %v8875
    %v8877 = vrot.slane %v8876, 1
    %v8878 = vmax.f32 %v8876, %v8877
    %v8879 = vsel %vm2264, %v8769, -inf
    %v8880 = vrot.slane %v8879, 4
    %v8881 = vmax.f32 %v8879, %v8880
    %v8882 = vrot.slane %v8881, 2
    %v8883 = vmax.f32 %v8881, %v8882
    %v8884 = vrot.slane %v8883, 1
    %v8885 = vmax.f32 %v8883, %v8884
    %v8886 = vsel %vm2264, %v8777, -inf
    %v8887 = vrot.slane %v8886, 4
    %v8888 = vmax.f32 %v8886, %v8887
    %v8889 = vrot.slane %v8888, 2
    %v8890 = vmax.f32 %v8888, %v8889
    %v8891 = vrot.slane %v8890, 1
    %v8892 = vmax.f32 %v8890, %v8891
    %v8893 = vsel %vm2264, %v8776, -inf
    %v8894 = vrot.slane %v8893, 4
    %v8895 = vmax.f32 %v8893, %v8894
    %v8896 = vrot.slane %v8895, 2
    %v8897 = vmax.f32 %v8895, %v8896
    %v8898 = vrot.slane %v8897, 1
    %v8899 = vmax.f32 %v8897, %v8898
    %v8900 = vsel %vm2264, %v8778, -inf
    %v8901 = vrot.slane %v8900, 4
    %v8902 = vmax.f32 %v8900, %v8901
    %v8903 = vrot.slane %v8902, 2
    %v8904 = vmax.f32 %v8902, %v8903
    %v8905 = vrot.slane %v8904, 1
    %v8906 = vmax.f32 %v8904, %v8905
    %v8907 = vsel %vm4057, %v8801, -inf
    %v8908 = vsel %vm4057, %v8815, -inf
    %v8909 = vmax.f32 %v8907, %v8908
    %v8910 = vsel %vm4057, %v8808, -inf
    %v8911 = vsel %vm4057, %v8822, -inf
    %v8912 = vmax.f32 %v8910, %v8911
    %v8913 = vsel %vm4057, %v8829, -inf
    %v8914 = vsel %vm4057, %v8843, -inf
    %v8915 = vmax.f32 %v8913, %v8914
    %v8916 = vsel %vm4057, %v8836, -inf
    %v8917 = vsel %vm4057, %v8850, -inf
    %v8918 = vmax.f32 %v8916, %v8917
    %v8919 = vsel %vm4057, %v8857, -inf
    %v8920 = vsel %vm4057, %v8871, -inf
    %v8921 = vmax.f32 %v8919, %v8920
    %v8922 = vsel %vm4057, %v8864, -inf
    %v8923 = vsel %vm4057, %v8878, -inf
    %v8924 = vmax.f32 %v8922, %v8923
    %v8925 = vsel %vm4057, %v8885, -inf
    %v8926 = vsel %vm4057, %v8899, -inf
    %v8927 = vmax.f32 %v8925, %v8926
    %v8928 = vsel %vm4057, %v8892, -inf
    %v8929 = vsel %vm4057, %v8906, -inf
    %v8930 = vmax.f32 %v8928, %v8929
    %8931 = vst.msk [vmem:[#allocation4] sm:$0xff] %vm4057, 0.0
    %vm8932 = vcmask 518144
    %8933 = vst.msk [vmem:[#allocation4 + $0x8] sm:$0x7] %vm8932, 0.0
    %8934 = vst.msk [vmem:[#allocation4 + $0x10] sm:$0xff] %vm4057, 0.0
    %8935 = vst.msk [vmem:[#allocation4 + $0x18] sm:$0x7] %vm8932, 0.0
    %8936 = vst.msk [vmem:[#allocation4 + $0x20] sm:$0xff] %vm4057, 0.0
    %8937 = vst.msk [vmem:[#allocation4 + $0x28] sm:$0x7] %vm8932, 0.0
    %8938 = vst.msk [vmem:[#allocation4 + $0x30] sm:$0xff] %vm4057, 0.0
    %8939 = vst.msk [vmem:[#allocation4 + $0x38] sm:$0x7] %vm8932, 0.0
    %8940 = vst.msk [vmem:[#allocation4 + $0x40] sm:$0xff] %vm4057, 0.0
    %8941 = vst.msk [vmem:[#allocation4 + $0x48] sm:$0x7] %vm8932, 0.0
    %8942 = vst.msk [vmem:[#allocation4 + $0x50] sm:$0xff] %vm4057, 0.0
    %8943 = vst.msk [vmem:[#allocation4 + $0x58] sm:$0x7] %vm8932, 0.0
    %8944 = vst.msk [vmem:[#allocation4 + $0x60] sm:$0xff] %vm4057, 0.0
    %8945 = vst.msk [vmem:[#allocation4 + $0x68] sm:$0x7] %vm8932, 0.0
    %8946 = vst.msk [vmem:[#allocation4 + $0x70] sm:$0xff] %vm4057, 0.0
    %8947 = vst.msk [vmem:[#allocation4 + $0x78] sm:$0x7] %vm8932, 0.0
    %v8956 = vsel %vm4631, %v8912, %v8909
    %v8957 = vsel %vm4631, %v8918, %v8915
    %v8958 = vsel %vm4631, %v8924, %v8921
    %v8959 = vsel %vm4631, %v8930, %v8927
    %s8964 = scalar_lea.vmem [#allocation4], 16
    %8965 = vst.msk [vmem:[%s8964 + $0x8] sm:$0x3] %vm2264, %v8956
    %8966 = vst.msk [vmem:[%s8964 + $0x18] sm:$0x3] %vm2264, %v8957
    %8967 = vst.msk [vmem:[%s8964 + $0x48] sm:$0x3] %vm2264, %v8958
    %8968 = vst.msk [vmem:[%s8964 + $0x58] sm:$0x3] %vm2264, %v8959
    %v8969 = vld [vmem:[#allocation4] sm:$0xff]
    %v8970 = vld [vmem:[#allocation4 + $0x8] sm:$0x7]
    %v8971 = vld [vmem:[#allocation4 + $0x10] sm:$0xff]
    %v8972 = vld [vmem:[#allocation4 + $0x18] sm:$0x7]
    %v8973 = vld [vmem:[#allocation4 + $0x20] sm:$0xff]
    %v8974 = vld [vmem:[#allocation4 + $0x28] sm:$0x7]
    %v8975 = vld [vmem:[#allocation4 + $0x30] sm:$0xff]
    %v8976 = vld [vmem:[#allocation4 + $0x38] sm:$0x7]
    %v8977 = vld [vmem:[#allocation4 + $0x40] sm:$0xff]
    %v8978 = vld [vmem:[#allocation4 + $0x48] sm:$0x7]
    %v8979 = vld [vmem:[#allocation4 + $0x50] sm:$0xff]
    %v8980 = vld [vmem:[#allocation4 + $0x58] sm:$0x7]
    %v8981 = vld [vmem:[#allocation4 + $0x60] sm:$0xff]
    %v8982 = vld [vmem:[#allocation4 + $0x68] sm:$0x7]
    %v8983 = vld [vmem:[#allocation4 + $0x70] sm:$0xff]
    %v8984 = vld [vmem:[#allocation4 + $0x78] sm:$0x7]
    %v8993 = vcombine.high %v8969, %v8969
    %v8995 = vunpack.c.l.s4 1983009808
    %v8996 = vunpack.c.0.s8 %v8995
    %v8997 = vlaneseq
    %v8998 = vshrl.u32 %v8997, 7
    %v8999 = vsub.s32 %v8996, %v8998
    %v9000 = vrot.slane %v8993, %v8999
    %v9001 = vcombine.high %v9000, %v9000
    %v9003 = vunpack.c.l.s4 1983009808
    %v9004 = vunpack.c.0.s8 %v9003
    %v9005 = vlaneseq
    %v9006 = vshrl.u32 %v9005, 7
    %v9007 = vsub.s32 %v9004, %v9006
    %v9008 = vrot.slane %v8970, %v9007
    %v9009 = vcombine.high %v8971, %v8971
    %v9011 = vunpack.c.l.s4 1983009808
    %v9012 = vunpack.c.0.s8 %v9011
    %v9013 = vlaneseq
    %v9014 = vshrl.u32 %v9013, 7
    %v9015 = vsub.s32 %v9012, %v9014
    %v9016 = vrot.slane %v9009, %v9015
    %v9017 = vcombine.high %v9016, %v9016
    %v9019 = vunpack.c.l.s4 1983009808
    %v9020 = vunpack.c.0.s8 %v9019
    %v9021 = vlaneseq
    %v9022 = vshrl.u32 %v9021, 7
    %v9023 = vsub.s32 %v9020, %v9022
    %v9024 = vrot.slane %v8972, %v9023
    %v9025 = vcombine.high %v8977, %v8977
    %v9027 = vunpack.c.l.s4 1983009808
    %v9028 = vunpack.c.0.s8 %v9027
    %v9029 = vlaneseq
    %v9030 = vshrl.u32 %v9029, 7
    %v9031 = vsub.s32 %v9028, %v9030
    %v9032 = vrot.slane %v9025, %v9031
    %v9033 = vcombine.high %v9032, %v9032
    %v9035 = vunpack.c.l.s4 1983009808
    %v9036 = vunpack.c.0.s8 %v9035
    %v9037 = vlaneseq
    %v9038 = vshrl.u32 %v9037, 7
    %v9039 = vsub.s32 %v9036, %v9038
    %v9040 = vrot.slane %v8978, %v9039
    %v9041 = vcombine.high %v8979, %v8979
    %v9043 = vunpack.c.l.s4 1983009808
    %v9044 = vunpack.c.0.s8 %v9043
    %v9045 = vlaneseq
    %v9046 = vshrl.u32 %v9045, 7
    %v9047 = vsub.s32 %v9044, %v9046
    %v9048 = vrot.slane %v9041, %v9047
    %v9049 = vcombine.high %v9048, %v9048
    %v9051 = vunpack.c.l.s4 1983009808
    %v9052 = vunpack.c.0.s8 %v9051
    %v9053 = vlaneseq
    %v9054 = vshrl.u32 %v9053, 7
    %v9055 = vsub.s32 %v9052, %v9054
    %v9056 = vrot.slane %v8980, %v9055
    %vm9057 = vmor %vm4875, %vm4633
    %vm9058 = vmor %vm9057, %vm4637
    %vm9059 = vmor %vm9058, %vm4641
    %v9060 = vrot.slane %v9001, 7
    %v9061 = vrot.slane %v9060, 2
    %v9062 = vrot.slane %v9008, 7
    %v9063 = vsel %vm9059, %v9061, %v9062
    %v9064 = vrot.slane %v9017, 7
    %v9065 = vrot.slane %v9064, 2
    %v9066 = vrot.slane %v9024, 7
    %v9067 = vsel %vm9059, %v9065, %v9066
    %v9068 = vrot.slane %v9033, 7
    %v9069 = vrot.slane %v9068, 2
    %v9070 = vrot.slane %v9040, 7
    %v9071 = vsel %vm9059, %v9069, %v9070
    %v9072 = vrot.slane %v9049, 7
    %v9073 = vrot.slane %v9072, 2
    %v9074 = vrot.slane %v9056, 7
    %v9075 = vsel %vm9059, %v9073, %v9074
    %v9076 = vcombine.low %v9063, %v9067
    %v9077 = vcombine.low %v9071, %v9075
    %v9079 = vunpack.c.l.s4 1983009808
    %v9080 = vunpack.c.0.s8 %v9079
    %v9081 = vlaneseq
    %v9082 = vshrl.u32 %v9081, 7
    %v9083 = vsub.s32 %v9080, %v9082
    %v9084 = vrot.slane %v9076, %v9083
    %v9086 = vunpack.c.l.s4 1983009808
    %v9087 = vunpack.c.0.s8 %v9086
    %v9088 = vlaneseq
    %v9089 = vshrl.u32 %v9088, 7
    %v9090 = vsub.s32 %v9087, %v9089
    %v9091 = vrot.slane %v9077, %v9090
    %v9092 = vcombine.low %v9084, %v9091
    %v9094 = vpack.c.bf16 %v9092, %v9092
    %s9095 = scalar_lea.vmem %s2, 576
    %v9096 = vld [vmem:[%s9095] sm:$0xf]
    %v9097 = vld [vmem:[%s9095 + $0x4] sm:$0xf]
    %v9098 = vld [vmem:[%s9095 + $0x8] sm:$0xf]
    %v9099 = vld [vmem:[%s9095 + $0xc] sm:$0xf]
    %v9100 = vld [vmem:[%s9095 + $0x10] sm:$0xf]
    %v9101 = vld [vmem:[%s9095 + $0x14] sm:$0xf]
    %v9102 = vld [vmem:[%s9095 + $0x18] sm:$0xf]
    %v9103 = vld [vmem:[%s9095 + $0x1c] sm:$0xf]
    %v9104 = vcombine.low %v8970, %v8972
    %v9105 = vcombine.low %v8978, %v8980
    %v9107 = vunpack.c.l.s4 1983009808
    %v9108 = vunpack.c.0.s8 %v9107
    %v9109 = vlaneseq
    %v9110 = vshrl.u32 %v9109, 7
    %v9111 = vsub.s32 %v9108, %v9110
    %v9112 = vrot.slane %v9104, %v9111
    %v9114 = vunpack.c.l.s4 1983009808
    %v9115 = vunpack.c.0.s8 %v9114
    %v9116 = vlaneseq
    %v9117 = vshrl.u32 %v9116, 7
    %v9118 = vsub.s32 %v9115, %v9117
    %v9119 = vrot.slane %v9105, %v9118
    %v9120 = vcombine.low %v9112, %v9119
    %v9122 = vpack.c.bf16 %v9120, %v9120
    %s9123 = scalar_lea.vmem %s2, 608
    %v9124 = vld [vmem:[%s9123] sm:$0xf]
    %v9125 = vld [vmem:[%s9123 + $0x4] sm:$0xf]
    %v9126 = vld [vmem:[%s9123 + $0x8] sm:$0xf]
    %v9127 = vld [vmem:[%s9123 + $0xc] sm:$0xf]
    %v9128 = vld [vmem:[%s9123 + $0x10] sm:$0xf]
    %v9129 = vld [vmem:[%s9123 + $0x14] sm:$0xf]
    %v9130 = vld [vmem:[%s9123 + $0x18] sm:$0xf]
    %v9131 = vld [vmem:[%s9123 + $0x1c] sm:$0xf]
    %v9140 = vunpack.c.l.b16 %v9124
    %v9141 = vunpack.c.l.b16 %v9125
    %v9142 = vunpack.c.l.b16 %v9126
    %v9143 = vunpack.c.l.b16 %v9127
    %v9144 = vunpack.c.l.b16 %v9128
    %v9145 = vunpack.c.l.b16 %v9129
    %v9146 = vunpack.c.l.b16 %v9130
    %v9147 = vunpack.c.l.b16 %v9131
    %v9148 = vpack.c.b16 %v9141, %v9140
    %v9149 = vpack.c.b16 %v9143, %v9142
    %v9150 = vpack.c.b16 %v9145, %v9144
    %v9151 = vpack.c.b16 %v9147, %v9146
    %v9157 = vsel %vm4057, %v9122, 0
    %9159 = vmatprep.subr.bf16.mxu0 0
    %9160 = vmatpush1.bf16.msra.mxu0 0
    %9161 = vmatprep.subr.bf16.mxu0 0
    %9162 = vmatpush1.bf16.msra.mxu0 0
    %9163 = vmatprep.subr.bf16.mxu0 0
    %9164 = vmatpush1.bf16.msra.mxu0 0
    %9165 = vmatprep.subr.bf16.mxu0 0
    %9166 = vmatpush1.bf16.msra.mxu0 0
    %9167 = vmatprep.subr.bf16.mxu0 0
    %9168 = vmatpush1.bf16.msra.mxu0 %v9151
    %9169 = vmatprep.subr.bf16.mxu0 0
    %9170 = vmatpush1.bf16.msra.mxu0 %v9150
    %9171 = vmatprep.subr.bf16.mxu0 0
    %9172 = vmatpush1.bf16.msra.mxu0 %v9149
    %9173 = vmatprep.subr.bf16.mxu0 0
    %9174 = vmatpush1.bf16.msra.mxu0 %v9148
    %9175 = vmatprep.subr.bf16.mxu0 0
    %9176 = vmatpush2.bf16.msra.mxu0 0
    %9177 = vmatprep.subr.bf16.mxu0 0
    %9178 = vmatpush2.bf16.msra.mxu0 0
    %9179 = vmatprep.subr.bf16.mxu0 0
    %9180 = vmatpush2.bf16.msra.mxu0 0
    %9181 = vmatprep.subr.bf16.mxu0 0
    %9182 = vmatpush2.bf16.msra.mxu0 0
    %9183 = vmatprep.subr.bf16.mxu0 0
    %9184 = vmatpush2.bf16.msra.mxu0 0
    %9185 = vmatprep.subr.bf16.mxu0 0
    %9186 = vmatpush2.bf16.msra.mxu0 0
    %9187 = vmatprep.subr.bf16.mxu0 0
    %9188 = vmatpush2.bf16.msra.mxu0 0
    %9189 = vmatprep.subr.bf16.mxu0 0
    %9190 = vmatpush2.bf16.msra.mxu0 0
    %9191 = vmatprep.mubr.bf16.mxu0 0
    %9192 = vmatmul.mubr.bf16.gmra.mxu0 %v9157
    %v9193 = vpop.f32.mrf.mxu0
    %v9194 = vadd.f32 0.0, %v9193
    %v9195 = vpop.f32.mrf.mxu0
    %v9196 = vpop.f32.mrf.mxu0
    %v9197 = vpop.f32.mrf.mxu0
    %9198 = vdwg.mxu0
    %v9207 = vunpack.c.l.b16 %v9096
    %v9208 = vunpack.c.l.b16 %v9097
    %v9209 = vunpack.c.l.b16 %v9098
    %v9210 = vunpack.c.l.b16 %v9099
    %v9211 = vunpack.c.l.b16 %v9100
    %v9212 = vunpack.c.l.b16 %v9101
    %v9213 = vunpack.c.l.b16 %v9102
    %v9214 = vunpack.c.l.b16 %v9103
    %v9215 = vpack.c.b16 %v9208, %v9207
    %v9216 = vpack.c.b16 %v9210, %v9209
    %v9217 = vpack.c.b16 %v9212, %v9211
    %v9218 = vpack.c.b16 %v9214, %v9213
    %v9224 = vsel %vm4057, %v9094, 0
    %9226 = vmatprep.subr.bf16.mxu0 0
    %9227 = vmatpush1.bf16.msra.mxu0 0
    %9228 = vmatprep.subr.bf16.mxu0 0
    %9229 = vmatpush1.bf16.msra.mxu0 0
    %9230 = vmatprep.subr.bf16.mxu0 0
    %9231 = vmatpush1.bf16.msra.mxu0 0
    %9232 = vmatprep.subr.bf16.mxu0 0
    %9233 = vmatpush1.bf16.msra.mxu0 0
    %9234 = vmatprep.subr.bf16.mxu0 0
    %9235 = vmatpush1.bf16.msra.mxu0 %v9218
    %9236 = vmatprep.subr.bf16.mxu0 0
    %9237 = vmatpush1.bf16.msra.mxu0 %v9217
    %9238 = vmatprep.subr.bf16.mxu0 0
    %9239 = vmatpush1.bf16.msra.mxu0 %v9216
    %9240 = vmatprep.subr.bf16.mxu0 0
    %9241 = vmatpush1.bf16.msra.mxu0 %v9215
    %9242 = vmatprep.subr.bf16.mxu0 0
    %9243 = vmatpush2.bf16.msra.mxu0 0
    %9244 = vmatprep.subr.bf16.mxu0 0
    %9245 = vmatpush2.bf16.msra.mxu0 0
    %9246 = vmatprep.subr.bf16.mxu0 0
    %9247 = vmatpush2.bf16.msra.mxu0 0
    %9248 = vmatprep.subr.bf16.mxu0 0
    %9249 = vmatpush2.bf16.msra.mxu0 0
    %9250 = vmatprep.subr.bf16.mxu0 0
    %9251 = vmatpush2.bf16.msra.mxu0 0
    %9252 = vmatprep.subr.bf16.mxu0 0
    %9253 = vmatpush2.bf16.msra.mxu0 0
    %9254 = vmatprep.subr.bf16.mxu0 0
    %9255 = vmatpush2.bf16.msra.mxu0 0
    %9256 = vmatprep.subr.bf16.mxu0 0
    %9257 = vmatpush2.bf16.msra.mxu0 0
    %9258 = vmatprep.mubr.bf16.mxu0 0
    %9259 = vmatmul.mubr.bf16.gmra.mxu0 %v9224
    %v9260 = vpop.f32.mrf.mxu0
    %v9261 = vadd.f32 %v9194, %v9260
    %v9262 = vpop.f32.mrf.mxu0
    %v9263 = vpop.f32.mrf.mxu0
    %v9264 = vpop.f32.mrf.mxu0
    %9265 = vdwg.mxu0
    %v9266 = vcombine.high %v9008, %v9008
    %v9267 = vcombine.high %v9024, %v9024
    %v9268 = vcombine.high %v9040, %v9040
    %v9269 = vcombine.high %v9056, %v9056
    %v9270 = vrot.slane %v9062, 2
    %v9271 = vrot.slane %v9266, 7
    %v9272 = vsel %vm9059, %v9270, %v9271
    %v9273 = vrot.slane %v9066, 2
    %v9274 = vrot.slane %v9267, 7
    %v9275 = vsel %vm9059, %v9273, %v9274
    %v9276 = vrot.slane %v9070, 2
    %v9277 = vrot.slane %v9268, 7
    %v9278 = vsel %vm9059, %v9276, %v9277
    %v9279 = vrot.slane %v9074, 2
    %v9280 = vrot.slane %v9269, 7
    %v9281 = vsel %vm9059, %v9279, %v9280
    %v9282 = vcombine.low %v9272, %v9275
    %v9283 = vcombine.low %v9278, %v9281
    %v9285 = vunpack.c.l.s4 1983009808
    %v9286 = vunpack.c.0.s8 %v9285
    %v9287 = vlaneseq
    %v9288 = vshrl.u32 %v9287, 7
    %v9289 = vsub.s32 %v9286, %v9288
    %v9290 = vrot.slane %v9282, %v9289
    %v9292 = vunpack.c.l.s4 1983009808
    %v9293 = vunpack.c.0.s8 %v9292
    %v9294 = vlaneseq
    %v9295 = vshrl.u32 %v9294, 7
    %v9296 = vsub.s32 %v9293, %v9295
    %v9297 = vrot.slane %v9283, %v9296
    %v9298 = vcombine.low %v9290, %v9297
    %v9300 = vpack.c.bf16 %v9298, %v9298
    %s9301 = scalar_lea.vmem %s2, 640
    %v9302 = vld [vmem:[%s9301] sm:$0xf]
    %v9303 = vld [vmem:[%s9301 + $0x4] sm:$0xf]
    %v9304 = vld [vmem:[%s9301 + $0x8] sm:$0xf]
    %v9305 = vld [vmem:[%s9301 + $0xc] sm:$0xf]
    %v9306 = vld [vmem:[%s9301 + $0x10] sm:$0xf]
    %v9307 = vld [vmem:[%s9301 + $0x14] sm:$0xf]
    %v9308 = vld [vmem:[%s9301 + $0x18] sm:$0xf]
    %v9309 = vld [vmem:[%s9301 + $0x1c] sm:$0xf]
    %v9318 = vunpack.c.l.b16 %v9302
    %v9319 = vunpack.c.l.b16 %v9303
    %v9320 = vunpack.c.l.b16 %v9304
    %v9321 = vunpack.c.l.b16 %v9305
    %v9322 = vunpack.c.l.b16 %v9306
    %v9323 = vunpack.c.l.b16 %v9307
    %v9324 = vunpack.c.l.b16 %v9308
    %v9325 = vunpack.c.l.b16 %v9309
    %v9326 = vpack.c.b16 %v9319, %v9318
    %v9327 = vpack.c.b16 %v9321, %v9320
    %v9328 = vpack.c.b16 %v9323, %v9322
    %v9329 = vpack.c.b16 %v9325, %v9324
    %v9335 = vsel %vm4057, %v9300, 0
    %9337 = vmatprep.subr.bf16.mxu0 0
    %9338 = vmatpush1.bf16.msra.mxu0 0
    %9339 = vmatprep.subr.bf16.mxu0 0
    %9340 = vmatpush1.bf16.msra.mxu0 0
    %9341 = vmatprep.subr.bf16.mxu0 0
    %9342 = vmatpush1.bf16.msra.mxu0 0
    %9343 = vmatprep.subr.bf16.mxu0 0
    %9344 = vmatpush1.bf16.msra.mxu0 0
    %9345 = vmatprep.subr.bf16.mxu0 0
    %9346 = vmatpush1.bf16.msra.mxu0 %v9329
    %9347 = vmatprep.subr.bf16.mxu0 0
    %9348 = vmatpush1.bf16.msra.mxu0 %v9328
    %9349 = vmatprep.subr.bf16.mxu0 0
    %9350 = vmatpush1.bf16.msra.mxu0 %v9327
    %9351 = vmatprep.subr.bf16.mxu0 0
    %9352 = vmatpush1.bf16.msra.mxu0 %v9326
    %9353 = vmatprep.subr.bf16.mxu0 0
    %9354 = vmatpush2.bf16.msra.mxu0 0
    %9355 = vmatprep.subr.bf16.mxu0 0
    %9356 = vmatpush2.bf16.msra.mxu0 0
    %9357 = vmatprep.subr.bf16.mxu0 0
    %9358 = vmatpush2.bf16.msra.mxu0 0
    %9359 = vmatprep.subr.bf16.mxu0 0
    %9360 = vmatpush2.bf16.msra.mxu0 0
    %9361 = vmatprep.subr.bf16.mxu0 0
    %9362 = vmatpush2.bf16.msra.mxu0 0
    %9363 = vmatprep.subr.bf16.mxu0 0
    %9364 = vmatpush2.bf16.msra.mxu0 0
    %9365 = vmatprep.subr.bf16.mxu0 0
    %9366 = vmatpush2.bf16.msra.mxu0 0
    %9367 = vmatprep.subr.bf16.mxu0 0
    %9368 = vmatpush2.bf16.msra.mxu0 0
    %9369 = vmatprep.mubr.bf16.mxu0 0
    %9370 = vmatmul.mubr.bf16.gmra.mxu0 %v9335
    %v9371 = vpop.f32.mrf.mxu0
    %v9372 = vadd.f32 0.0, %v9371
    %v9373 = vpop.f32.mrf.mxu0
    %v9374 = vpop.f32.mrf.mxu0
    %v9375 = vpop.f32.mrf.mxu0
    %9376 = vdwg.mxu0
    %v9377 = vadd.f32 %v9261, %v9372
    %v9382 = vcombine.high %v8973, %v8973
    %v9384 = vunpack.c.l.s4 1983009808
    %v9385 = vunpack.c.0.s8 %v9384
    %v9386 = vlaneseq
    %v9387 = vshrl.u32 %v9386, 7
    %v9388 = vsub.s32 %v9385, %v9387
    %v9389 = vrot.slane %v9382, %v9388
    %v9390 = vcombine.high %v9389, %v9389
    %v9392 = vunpack.c.l.s4 1983009808
    %v9393 = vunpack.c.0.s8 %v9392
    %v9394 = vlaneseq
    %v9395 = vshrl.u32 %v9394, 7
    %v9396 = vsub.s32 %v9393, %v9395
    %v9397 = vrot.slane %v8974, %v9396
    %v9398 = vcombine.high %v8981, %v8981
    %v9400 = vunpack.c.l.s4 1983009808
    %v9401 = vunpack.c.0.s8 %v9400
    %v9402 = vlaneseq
    %v9403 = vshrl.u32 %v9402, 7
    %v9404 = vsub.s32 %v9401, %v9403
    %v9405 = vrot.slane %v9398, %v9404
    %v9406 = vcombine.high %v9405, %v9405
    %v9408 = vunpack.c.l.s4 1983009808
    %v9409 = vunpack.c.0.s8 %v9408
    %v9410 = vlaneseq
    %v9411 = vshrl.u32 %v9410, 7
    %v9412 = vsub.s32 %v9409, %v9411
    %v9413 = vrot.slane %v8982, %v9412
    %v9414 = vrot.slane %v9390, 7
    %v9415 = vrot.slane %v9414, 2
    %v9416 = vrot.slane %v9397, 7
    %v9417 = vsel %vm9059, %v9415, %v9416
    %v9418 = vrot.slane %v9406, 7
    %v9419 = vrot.slane %v9418, 2
    %v9420 = vrot.slane %v9413, 7
    %v9421 = vsel %vm9059, %v9419, %v9420
    %v9422 = vcombine.low %v9067, %v9417
    %v9423 = vcombine.low %v9075, %v9421
    %v9425 = vunpack.c.l.s4 1983009808
    %v9426 = vunpack.c.0.s8 %v9425
    %v9427 = vlaneseq
    %v9428 = vshrl.u32 %v9427, 7
    %v9429 = vsub.s32 %v9426, %v9428
    %v9430 = vrot.slane %v9422, %v9429
    %v9432 = vunpack.c.l.s4 1983009808
    %v9433 = vunpack.c.0.s8 %v9432
    %v9434 = vlaneseq
    %v9435 = vshrl.u32 %v9434, 7
    %v9436 = vsub.s32 %v9433, %v9435
    %v9437 = vrot.slane %v9423, %v9436
    %v9438 = vcombine.low %v9430, %v9437
    %v9440 = vpack.c.bf16 %v9438, %v9438
    %s9441 = scalar_lea.vmem %s2, 672
    %v9442 = vld [vmem:[%s9441] sm:$0xf]
    %v9443 = vld [vmem:[%s9441 + $0x4] sm:$0xf]
    %v9444 = vld [vmem:[%s9441 + $0x8] sm:$0xf]
    %v9445 = vld [vmem:[%s9441 + $0xc] sm:$0xf]
    %v9446 = vld [vmem:[%s9441 + $0x10] sm:$0xf]
    %v9447 = vld [vmem:[%s9441 + $0x14] sm:$0xf]
    %v9448 = vld [vmem:[%s9441 + $0x18] sm:$0xf]
    %v9449 = vld [vmem:[%s9441 + $0x1c] sm:$0xf]
    %v9458 = vunpack.c.l.b16 %v9442
    %v9459 = vunpack.c.l.b16 %v9443
    %v9460 = vunpack.c.l.b16 %v9444
    %v9461 = vunpack.c.l.b16 %v9445
    %v9462 = vunpack.c.l.b16 %v9446
    %v9463 = vunpack.c.l.b16 %v9447
    %v9464 = vunpack.c.l.b16 %v9448
    %v9465 = vunpack.c.l.b16 %v9449
    %v9466 = vpack.c.b16 %v9459, %v9458
    %v9467 = vpack.c.b16 %v9461, %v9460
    %v9468 = vpack.c.b16 %v9463, %v9462
    %v9469 = vpack.c.b16 %v9465, %v9464
    %v9475 = vsel %vm4057, %v9440, 0
    %9477 = vmatprep.subr.bf16.mxu0 0
    %9478 = vmatpush1.bf16.msra.mxu0 0
    %9479 = vmatprep.subr.bf16.mxu0 0
    %9480 = vmatpush1.bf16.msra.mxu0 0
    %9481 = vmatprep.subr.bf16.mxu0 0
    %9482 = vmatpush1.bf16.msra.mxu0 0
    %9483 = vmatprep.subr.bf16.mxu0 0
    %9484 = vmatpush1.bf16.msra.mxu0 0
    %9485 = vmatprep.subr.bf16.mxu0 0
    %9486 = vmatpush1.bf16.msra.mxu0 %v9469
    %9487 = vmatprep.subr.bf16.mxu0 0
    %9488 = vmatpush1.bf16.msra.mxu0 %v9468
    %9489 = vmatprep.subr.bf16.mxu0 0
    %9490 = vmatpush1.bf16.msra.mxu0 %v9467
    %9491 = vmatprep.subr.bf16.mxu0 0
    %9492 = vmatpush1.bf16.msra.mxu0 %v9466
    %9493 = vmatprep.subr.bf16.mxu0 0
    %9494 = vmatpush2.bf16.msra.mxu0 0
    %9495 = vmatprep.subr.bf16.mxu0 0
    %9496 = vmatpush2.bf16.msra.mxu0 0
    %9497 = vmatprep.subr.bf16.mxu0 0
    %9498 = vmatpush2.bf16.msra.mxu0 0
    %9499 = vmatprep.subr.bf16.mxu0 0
    %9500 = vmatpush2.bf16.msra.mxu0 0
    %9501 = vmatprep.subr.bf16.mxu0 0
    %9502 = vmatpush2.bf16.msra.mxu0 0
    %9503 = vmatprep.subr.bf16.mxu0 0
    %9504 = vmatpush2.bf16.msra.mxu0 0
    %9505 = vmatprep.subr.bf16.mxu0 0
    %9506 = vmatpush2.bf16.msra.mxu0 0
    %9507 = vmatprep.subr.bf16.mxu0 0
    %9508 = vmatpush2.bf16.msra.mxu0 0
    %9509 = vmatprep.mubr.bf16.mxu0 0
    %9510 = vmatmul.mubr.bf16.gmra.mxu0 %v9475
    %v9511 = vpop.f32.mrf.mxu0
    %v9512 = vadd.f32 0.0, %v9511
    %v9513 = vpop.f32.mrf.mxu0
    %v9514 = vpop.f32.mrf.mxu0
    %v9515 = vpop.f32.mrf.mxu0
    %9516 = vdwg.mxu0
    %v9517 = vadd.f32 %v9377, %v9512
    %v9518 = vcombine.low %v8972, %v8974
    %v9519 = vcombine.low %v8980, %v8982
    %v9521 = vunpack.c.l.s4 1983009808
    %v9522 = vunpack.c.0.s8 %v9521
    %v9523 = vlaneseq
    %v9524 = vshrl.u32 %v9523, 7
    %v9525 = vsub.s32 %v9522, %v9524
    %v9526 = vrot.slane %v9518, %v9525
    %v9528 = vunpack.c.l.s4 1983009808
    %v9529 = vunpack.c.0.s8 %v9528
    %v9530 = vlaneseq
    %v9531 = vshrl.u32 %v9530, 7
    %v9532 = vsub.s32 %v9529, %v9531
    %v9533 = vrot.slane %v9519, %v9532
    %v9534 = vcombine.low %v9526, %v9533
    %v9536 = vpack.c.bf16 %v9534, %v9534
    %s9537 = scalar_lea.vmem %s2, 704
    %v9538 = vld [vmem:[%s9537] sm:$0xf]
    %v9539 = vld [vmem:[%s9537 + $0x4] sm:$0xf]
    %v9540 = vld [vmem:[%s9537 + $0x8] sm:$0xf]
    %v9541 = vld [vmem:[%s9537 + $0xc] sm:$0xf]
    %v9542 = vld [vmem:[%s9537 + $0x10] sm:$0xf]
    %v9543 = vld [vmem:[%s9537 + $0x14] sm:$0xf]
    %v9544 = vld [vmem:[%s9537 + $0x18] sm:$0xf]
    %v9545 = vld [vmem:[%s9537 + $0x1c] sm:$0xf]
    %v9554 = vunpack.c.l.b16 %v9538
    %v9555 = vunpack.c.l.b16 %v9539
    %v9556 = vunpack.c.l.b16 %v9540
    %v9557 = vunpack.c.l.b16 %v9541
    %v9558 = vunpack.c.l.b16 %v9542
    %v9559 = vunpack.c.l.b16 %v9543
    %v9560 = vunpack.c.l.b16 %v9544
    %v9561 = vunpack.c.l.b16 %v9545
    %v9562 = vpack.c.b16 %v9555, %v9554
    %v9563 = vpack.c.b16 %v9557, %v9556
    %v9564 = vpack.c.b16 %v9559, %v9558
    %v9565 = vpack.c.b16 %v9561, %v9560
    %v9571 = vsel %vm4057, %v9536, 0
    %9573 = vmatprep.subr.bf16.mxu0 0
    %9574 = vmatpush1.bf16.msra.mxu0 0
    %9575 = vmatprep.subr.bf16.mxu0 0
    %9576 = vmatpush1.bf16.msra.mxu0 0
    %9577 = vmatprep.subr.bf16.mxu0 0
    %9578 = vmatpush1.bf16.msra.mxu0 0
    %9579 = vmatprep.subr.bf16.mxu0 0
    %9580 = vmatpush1.bf16.msra.mxu0 0
    %9581 = vmatprep.subr.bf16.mxu0 0
    %9582 = vmatpush1.bf16.msra.mxu0 %v9565
    %9583 = vmatprep.subr.bf16.mxu0 0
    %9584 = vmatpush1.bf16.msra.mxu0 %v9564
    %9585 = vmatprep.subr.bf16.mxu0 0
    %9586 = vmatpush1.bf16.msra.mxu0 %v9563
    %9587 = vmatprep.subr.bf16.mxu0 0
    %9588 = vmatpush1.bf16.msra.mxu0 %v9562
    %9589 = vmatprep.subr.bf16.mxu0 0
    %9590 = vmatpush2.bf16.msra.mxu0 0
    %9591 = vmatprep.subr.bf16.mxu0 0
    %9592 = vmatpush2.bf16.msra.mxu0 0
    %9593 = vmatprep.subr.bf16.mxu0 0
    %9594 = vmatpush2.bf16.msra.mxu0 0
    %9595 = vmatprep.subr.bf16.mxu0 0
    %9596 = vmatpush2.bf16.msra.mxu0 0
    %9597 = vmatprep.subr.bf16.mxu0 0
    %9598 = vmatpush2.bf16.msra.mxu0 0
    %9599 = vmatprep.subr.bf16.mxu0 0
    %9600 = vmatpush2.bf16.msra.mxu0 0
    %9601 = vmatprep.subr.bf16.mxu0 0
    %9602 = vmatpush2.bf16.msra.mxu0 0
    %9603 = vmatprep.subr.bf16.mxu0 0
    %9604 = vmatpush2.bf16.msra.mxu0 0
    %9605 = vmatprep.mubr.bf16.mxu0 0
    %9606 = vmatmul.mubr.bf16.gmra.mxu0 %v9571
    %v9607 = vpop.f32.mrf.mxu0
    %v9608 = vadd.f32 0.0, %v9607
    %v9609 = vpop.f32.mrf.mxu0
    %v9610 = vpop.f32.mrf.mxu0
    %v9611 = vpop.f32.mrf.mxu0
    %9612 = vdwg.mxu0
    %v9613 = vadd.f32 %v9517, %v9608
    %v9614 = vcombine.high %v9397, %v9397
    %v9615 = vcombine.high %v9413, %v9413
    %v9616 = vrot.slane %v9416, 2
    %v9617 = vrot.slane %v9614, 7
    %v9618 = vsel %vm9059, %v9616, %v9617
    %v9619 = vrot.slane %v9420, 2
    %v9620 = vrot.slane %v9615, 7
    %v9621 = vsel %vm9059, %v9619, %v9620
    %v9622 = vcombine.low %v9275, %v9618
    %v9623 = vcombine.low %v9281, %v9621
    %v9625 = vunpack.c.l.s4 1983009808
    %v9626 = vunpack.c.0.s8 %v9625
    %v9627 = vlaneseq
    %v9628 = vshrl.u32 %v9627, 7
    %v9629 = vsub.s32 %v9626, %v9628
    %v9630 = vrot.slane %v9622, %v9629
    %v9632 = vunpack.c.l.s4 1983009808
    %v9633 = vunpack.c.0.s8 %v9632
    %v9634 = vlaneseq
    %v9635 = vshrl.u32 %v9634, 7
    %v9636 = vsub.s32 %v9633, %v9635
    %v9637 = vrot.slane %v9623, %v9636
    %v9638 = vcombine.low %v9630, %v9637
    %v9640 = vpack.c.bf16 %v9638, %v9638
    %s9641 = scalar_lea.vmem %s2, 736
    %v9642 = vld [vmem:[%s9641] sm:$0xf]
    %v9643 = vld [vmem:[%s9641 + $0x4] sm:$0xf]
    %v9644 = vld [vmem:[%s9641 + $0x8] sm:$0xf]
    %v9645 = vld [vmem:[%s9641 + $0xc] sm:$0xf]
    %v9646 = vld [vmem:[%s9641 + $0x10] sm:$0xf]
    %v9647 = vld [vmem:[%s9641 + $0x14] sm:$0xf]
    %v9648 = vld [vmem:[%s9641 + $0x18] sm:$0xf]
    %v9649 = vld [vmem:[%s9641 + $0x1c] sm:$0xf]
    %v9658 = vunpack.c.l.b16 %v9642
    %v9659 = vunpack.c.l.b16 %v9643
    %v9660 = vunpack.c.l.b16 %v9644
    %v9661 = vunpack.c.l.b16 %v9645
    %v9662 = vunpack.c.l.b16 %v9646
    %v9663 = vunpack.c.l.b16 %v9647
    %v9664 = vunpack.c.l.b16 %v9648
    %v9665 = vunpack.c.l.b16 %v9649
    %v9666 = vpack.c.b16 %v9659, %v9658
    %v9667 = vpack.c.b16 %v9661, %v9660
    %v9668 = vpack.c.b16 %v9663, %v9662
    %v9669 = vpack.c.b16 %v9665, %v9664
    %v9675 = vsel %vm4057, %v9640, 0
    %9677 = vmatprep.subr.bf16.mxu0 0
    %9678 = vmatpush1.bf16.msra.mxu0 0
    %9679 = vmatprep.subr.bf16.mxu0 0
    %9680 = vmatpush1.bf16.msra.mxu0 0
    %9681 = vmatprep.subr.bf16.mxu0 0
    %9682 = vmatpush1.bf16.msra.mxu0 0
    %9683 = vmatprep.subr.bf16.mxu0 0
    %9684 = vmatpush1.bf16.msra.mxu0 0
    %9685 = vmatprep.subr.bf16.mxu0 0
    %9686 = vmatpush1.bf16.msra.mxu0 %v9669
    %9687 = vmatprep.subr.bf16.mxu0 0
    %9688 = vmatpush1.bf16.msra.mxu0 %v9668
    %9689 = vmatprep.subr.bf16.mxu0 0
    %9690 = vmatpush1.bf16.msra.mxu0 %v9667
    %9691 = vmatprep.subr.bf16.mxu0 0
    %9692 = vmatpush1.bf16.msra.mxu0 %v9666
    %9693 = vmatprep.subr.bf16.mxu0 0
    %9694 = vmatpush2.bf16.msra.mxu0 0
    %9695 = vmatprep.subr.bf16.mxu0 0
    %9696 = vmatpush2.bf16.msra.mxu0 0
    %9697 = vmatprep.subr.bf16.mxu0 0
    %9698 = vmatpush2.bf16.msra.mxu0 0
    %9699 = vmatprep.subr.bf16.mxu0 0
    %9700 = vmatpush2.bf16.msra.mxu0 0
    %9701 = vmatprep.subr.bf16.mxu0 0
    %9702 = vmatpush2.bf16.msra.mxu0 0
    %9703 = vmatprep.subr.bf16.mxu0 0
    %9704 = vmatpush2.bf16.msra.mxu0 0
    %9705 = vmatprep.subr.bf16.mxu0 0
    %9706 = vmatpush2.bf16.msra.mxu0 0
    %9707 = vmatprep.subr.bf16.mxu0 0
    %9708 = vmatpush2.bf16.msra.mxu0 0
    %9709 = vmatprep.mubr.bf16.mxu0 0
    %9710 = vmatmul.mubr.bf16.gmra.mxu0 %v9675
    %v9711 = vpop.f32.mrf.mxu0
    %v9712 = vadd.f32 0.0, %v9711
    %v9713 = vpop.f32.mrf.mxu0
    %v9714 = vpop.f32.mrf.mxu0
    %v9715 = vpop.f32.mrf.mxu0
    %9716 = vdwg.mxu0
    %v9717 = vadd.f32 %v9613, %v9712
    %v9722 = vcombine.high %v8975, %v8975
    %v9724 = vunpack.c.l.s4 1983009808
    %v9725 = vunpack.c.0.s8 %v9724
    %v9726 = vlaneseq
    %v9727 = vshrl.u32 %v9726, 7
    %v9728 = vsub.s32 %v9725, %v9727
    %v9729 = vrot.slane %v9722, %v9728
    %v9730 = vcombine.high %v9729, %v9729
    %v9732 = vunpack.c.l.s4 1983009808
    %v9733 = vunpack.c.0.s8 %v9732
    %v9734 = vlaneseq
    %v9735 = vshrl.u32 %v9734, 7
    %v9736 = vsub.s32 %v9733, %v9735
    %v9737 = vrot.slane %v8976, %v9736
    %v9738 = vcombine.high %v8983, %v8983
    %v9740 = vunpack.c.l.s4 1983009808
    %v9741 = vunpack.c.0.s8 %v9740
    %v9742 = vlaneseq
    %v9743 = vshrl.u32 %v9742, 7
    %v9744 = vsub.s32 %v9741, %v9743
    %v9745 = vrot.slane %v9738, %v9744
    %v9746 = vcombine.high %v9745, %v9745
    %v9748 = vunpack.c.l.s4 1983009808
    %v9749 = vunpack.c.0.s8 %v9748
    %v9750 = vlaneseq
    %v9751 = vshrl.u32 %v9750, 7
    %v9752 = vsub.s32 %v9749, %v9751
    %v9753 = vrot.slane %v8984, %v9752
    %v9754 = vrot.slane %v9730, 7
    %v9755 = vrot.slane %v9754, 2
    %v9756 = vrot.slane %v9737, 7
    %v9757 = vsel %vm9059, %v9755, %v9756
    %v9758 = vrot.slane %v9746, 7
    %v9759 = vrot.slane %v9758, 2
    %v9760 = vrot.slane %v9753, 7
    %v9761 = vsel %vm9059, %v9759, %v9760
    %v9762 = vcombine.low %v9417, %v9757
    %v9763 = vcombine.low %v9421, %v9761
    %v9765 = vunpack.c.l.s4 1983009808
    %v9766 = vunpack.c.0.s8 %v9765
    %v9767 = vlaneseq
    %v9768 = vshrl.u32 %v9767, 7
    %v9769 = vsub.s32 %v9766, %v9768
    %v9770 = vrot.slane %v9762, %v9769
    %v9772 = vunpack.c.l.s4 1983009808
    %v9773 = vunpack.c.0.s8 %v9772
    %v9774 = vlaneseq
    %v9775 = vshrl.u32 %v9774, 7
    %v9776 = vsub.s32 %v9773, %v9775
    %v9777 = vrot.slane %v9763, %v9776
    %v9778 = vcombine.low %v9770, %v9777
    %v9780 = vpack.c.bf16 %v9778, %v9778
    %s9781 = scalar_lea.vmem %s2, 768
    %v9782 = vld [vmem:[%s9781] sm:$0xf]
    %v9783 = vld [vmem:[%s9781 + $0x4] sm:$0xf]
    %v9784 = vld [vmem:[%s9781 + $0x8] sm:$0xf]
    %v9785 = vld [vmem:[%s9781 + $0xc] sm:$0xf]
    %v9786 = vld [vmem:[%s9781 + $0x10] sm:$0xf]
    %v9787 = vld [vmem:[%s9781 + $0x14] sm:$0xf]
    %v9788 = vld [vmem:[%s9781 + $0x18] sm:$0xf]
    %v9789 = vld [vmem:[%s9781 + $0x1c] sm:$0xf]
    %v9798 = vunpack.c.l.b16 %v9782
    %v9799 = vunpack.c.l.b16 %v9783
    %v9800 = vunpack.c.l.b16 %v9784
    %v9801 = vunpack.c.l.b16 %v9785
    %v9802 = vunpack.c.l.b16 %v9786
    %v9803 = vunpack.c.l.b16 %v9787
    %v9804 = vunpack.c.l.b16 %v9788
    %v9805 = vunpack.c.l.b16 %v9789
    %v9806 = vpack.c.b16 %v9799, %v9798
    %v9807 = vpack.c.b16 %v9801, %v9800
    %v9808 = vpack.c.b16 %v9803, %v9802
    %v9809 = vpack.c.b16 %v9805, %v9804
    %v9815 = vsel %vm4057, %v9780, 0
    %9817 = vmatprep.subr.bf16.mxu0 0
    %9818 = vmatpush1.bf16.msra.mxu0 0
    %9819 = vmatprep.subr.bf16.mxu0 0
    %9820 = vmatpush1.bf16.msra.mxu0 0
    %9821 = vmatprep.subr.bf16.mxu0 0
    %9822 = vmatpush1.bf16.msra.mxu0 0
    %9823 = vmatprep.subr.bf16.mxu0 0
    %9824 = vmatpush1.bf16.msra.mxu0 0
    %9825 = vmatprep.subr.bf16.mxu0 0
    %9826 = vmatpush1.bf16.msra.mxu0 %v9809
    %9827 = vmatprep.subr.bf16.mxu0 0
    %9828 = vmatpush1.bf16.msra.mxu0 %v9808
    %9829 = vmatprep.subr.bf16.mxu0 0
    %9830 = vmatpush1.bf16.msra.mxu0 %v9807
    %9831 = vmatprep.subr.bf16.mxu0 0
    %9832 = vmatpush1.bf16.msra.mxu0 %v9806
    %9833 = vmatprep.subr.bf16.mxu0 0
    %9834 = vmatpush2.bf16.msra.mxu0 0
    %9835 = vmatprep.subr.bf16.mxu0 0
    %9836 = vmatpush2.bf16.msra.mxu0 0
    %9837 = vmatprep.subr.bf16.mxu0 0
    %9838 = vmatpush2.bf16.msra.mxu0 0
    %9839 = vmatprep.subr.bf16.mxu0 0
    %9840 = vmatpush2.bf16.msra.mxu0 0
    %9841 = vmatprep.subr.bf16.mxu0 0
    %9842 = vmatpush2.bf16.msra.mxu0 0
    %9843 = vmatprep.subr.bf16.mxu0 0
    %9844 = vmatpush2.bf16.msra.mxu0 0
    %9845 = vmatprep.subr.bf16.mxu0 0
    %9846 = vmatpush2.bf16.msra.mxu0 0
    %9847 = vmatprep.subr.bf16.mxu0 0
    %9848 = vmatpush2.bf16.msra.mxu0 0
    %9849 = vmatprep.mubr.bf16.mxu0 0
    %9850 = vmatmul.mubr.bf16.gmra.mxu0 %v9815
    %v9851 = vpop.f32.mrf.mxu0
    %v9852 = vadd.f32 0.0, %v9851
    %v9853 = vpop.f32.mrf.mxu0
    %v9854 = vpop.f32.mrf.mxu0
    %v9855 = vpop.f32.mrf.mxu0
    %9856 = vdwg.mxu0
    %v9857 = vadd.f32 %v9717, %v9852
    %v9858 = vcombine.low %v8974, %v8976
    %v9859 = vcombine.low %v8982, %v8984
    %v9861 = vunpack.c.l.s4 1983009808
    %v9862 = vunpack.c.0.s8 %v9861
    %v9863 = vlaneseq
    %v9864 = vshrl.u32 %v9863, 7
    %v9865 = vsub.s32 %v9862, %v9864
    %v9866 = vrot.slane %v9858, %v9865
    %v9868 = vunpack.c.l.s4 1983009808
    %v9869 = vunpack.c.0.s8 %v9868
    %v9870 = vlaneseq
    %v9871 = vshrl.u32 %v9870, 7
    %v9872 = vsub.s32 %v9869, %v9871
    %v9873 = vrot.slane %v9859, %v9872
    %v9874 = vcombine.low %v9866, %v9873
    %v9876 = vpack.c.bf16 %v9874, %v9874
    %s9877 = scalar_lea.vmem %s2, 800
    %v9878 = vld [vmem:[%s9877] sm:$0xf]
    %v9879 = vld [vmem:[%s9877 + $0x4] sm:$0xf]
    %v9880 = vld [vmem:[%s9877 + $0x8] sm:$0xf]
    %v9881 = vld [vmem:[%s9877 + $0xc] sm:$0xf]
    %v9882 = vld [vmem:[%s9877 + $0x10] sm:$0xf]
    %v9883 = vld [vmem:[%s9877 + $0x14] sm:$0xf]
    %v9884 = vld [vmem:[%s9877 + $0x18] sm:$0xf]
    %v9885 = vld [vmem:[%s9877 + $0x1c] sm:$0xf]
    %v9894 = vunpack.c.l.b16 %v9878
    %v9895 = vunpack.c.l.b16 %v9879
    %v9896 = vunpack.c.l.b16 %v9880
    %v9897 = vunpack.c.l.b16 %v9881
    %v9898 = vunpack.c.l.b16 %v9882
    %v9899 = vunpack.c.l.b16 %v9883
    %v9900 = vunpack.c.l.b16 %v9884
    %v9901 = vunpack.c.l.b16 %v9885
    %v9902 = vpack.c.b16 %v9895, %v9894
    %v9903 = vpack.c.b16 %v9897, %v9896
    %v9904 = vpack.c.b16 %v9899, %v9898
    %v9905 = vpack.c.b16 %v9901, %v9900
    %v9911 = vsel %vm4057, %v9876, 0
    %9913 = vmatprep.subr.bf16.mxu0 0
    %9914 = vmatpush1.bf16.msra.mxu0 0
    %9915 = vmatprep.subr.bf16.mxu0 0
    %9916 = vmatpush1.bf16.msra.mxu0 0
    %9917 = vmatprep.subr.bf16.mxu0 0
    %9918 = vmatpush1.bf16.msra.mxu0 0
    %9919 = vmatprep.subr.bf16.mxu0 0
    %9920 = vmatpush1.bf16.msra.mxu0 0
    %9921 = vmatprep.subr.bf16.mxu0 0
    %9922 = vmatpush1.bf16.msra.mxu0 %v9905
    %9923 = vmatprep.subr.bf16.mxu0 0
    %9924 = vmatpush1.bf16.msra.mxu0 %v9904
    %9925 = vmatprep.subr.bf16.mxu0 0
    %9926 = vmatpush1.bf16.msra.mxu0 %v9903
    %9927 = vmatprep.subr.bf16.mxu0 0
    %9928 = vmatpush1.bf16.msra.mxu0 %v9902
    %9929 = vmatprep.subr.bf16.mxu0 0
    %9930 = vmatpush2.bf16.msra.mxu0 0
    %9931 = vmatprep.subr.bf16.mxu0 0
    %9932 = vmatpush2.bf16.msra.mxu0 0
    %9933 = vmatprep.subr.bf16.mxu0 0
    %9934 = vmatpush2.bf16.msra.mxu0 0
    %9935 = vmatprep.subr.bf16.mxu0 0
    %9936 = vmatpush2.bf16.msra.mxu0 0
    %9937 = vmatprep.subr.bf16.mxu0 0
    %9938 = vmatpush2.bf16.msra.mxu0 0
    %9939 = vmatprep.subr.bf16.mxu0 0
    %9940 = vmatpush2.bf16.msra.mxu0 0
    %9941 = vmatprep.subr.bf16.mxu0 0
    %9942 = vmatpush2.bf16.msra.mxu0 0
    %9943 = vmatprep.subr.bf16.mxu0 0
    %9944 = vmatpush2.bf16.msra.mxu0 0
    %9945 = vmatprep.mubr.bf16.mxu0 0
    %9946 = vmatmul.mubr.bf16.gmra.mxu0 %v9911
    %v9947 = vpop.f32.mrf.mxu0
    %v9948 = vadd.f32 0.0, %v9947
    %v9949 = vpop.f32.mrf.mxu0
    %v9950 = vpop.f32.mrf.mxu0
    %v9951 = vpop.f32.mrf.mxu0
    %9952 = vdwg.mxu0
    %v9953 = vadd.f32 %v9857, %v9948
    %v9954 = vcombine.high %v9737, %v9737
    %v9955 = vcombine.high %v9753, %v9753
    %v9956 = vrot.slane %v9756, 2
    %v9957 = vrot.slane %v9954, 7
    %v9958 = vsel %vm9059, %v9956, %v9957
    %v9959 = vrot.slane %v9760, 2
    %v9960 = vrot.slane %v9955, 7
    %v9961 = vsel %vm9059, %v9959, %v9960
    %v9962 = vcombine.low %v9618, %v9958
    %v9963 = vcombine.low %v9621, %v9961
    %v9965 = vunpack.c.l.s4 1983009808
    %v9966 = vunpack.c.0.s8 %v9965
    %v9967 = vlaneseq
    %v9968 = vshrl.u32 %v9967, 7
    %v9969 = vsub.s32 %v9966, %v9968
    %v9970 = vrot.slane %v9962, %v9969
    %v9972 = vunpack.c.l.s4 1983009808
    %v9973 = vunpack.c.0.s8 %v9972
    %v9974 = vlaneseq
    %v9975 = vshrl.u32 %v9974, 7
    %v9976 = vsub.s32 %v9973, %v9975
    %v9977 = vrot.slane %v9963, %v9976
    %v9978 = vcombine.low %v9970, %v9977
    %v9980 = vpack.c.bf16 %v9978, %v9978
    %s9981 = scalar_lea.vmem %s2, 832
    %v9982 = vld [vmem:[%s9981] sm:$0xf]
    %v9983 = vld [vmem:[%s9981 + $0x4] sm:$0xf]
    %v9984 = vld [vmem:[%s9981 + $0x8] sm:$0xf]
    %v9985 = vld [vmem:[%s9981 + $0xc] sm:$0xf]
    %v9986 = vld [vmem:[%s9981 + $0x10] sm:$0xf]
    %v9987 = vld [vmem:[%s9981 + $0x14] sm:$0xf]
    %v9988 = vld [vmem:[%s9981 + $0x18] sm:$0xf]
    %v9989 = vld [vmem:[%s9981 + $0x1c] sm:$0xf]
    %v9998 = vunpack.c.l.b16 %v9982
    %v9999 = vunpack.c.l.b16 %v9983
    %v10000 = vunpack.c.l.b16 %v9984
    %v10001 = vunpack.c.l.b16 %v9985
    %v10002 = vunpack.c.l.b16 %v9986
    %v10003 = vunpack.c.l.b16 %v9987
    %v10004 = vunpack.c.l.b16 %v9988
    %v10005 = vunpack.c.l.b16 %v9989
    %v10006 = vpack.c.b16 %v9999, %v9998
    %v10007 = vpack.c.b16 %v10001, %v10000
    %v10008 = vpack.c.b16 %v10003, %v10002
    %v10009 = vpack.c.b16 %v10005, %v10004
    %v10015 = vsel %vm4057, %v9980, 0
    %10017 = vmatprep.subr.bf16.mxu0 0
    %10018 = vmatpush1.bf16.msra.mxu0 0
    %10019 = vmatprep.subr.bf16.mxu0 0
    %10020 = vmatpush1.bf16.msra.mxu0 0
    %10021 = vmatprep.subr.bf16.mxu0 0
    %10022 = vmatpush1.bf16.msra.mxu0 0
    %10023 = vmatprep.subr.bf16.mxu0 0
    %10024 = vmatpush1.bf16.msra.mxu0 0
    %10025 = vmatprep.subr.bf16.mxu0 0
    %10026 = vmatpush1.bf16.msra.mxu0 %v10009
    %10027 = vmatprep.subr.bf16.mxu0 0
    %10028 = vmatpush1.bf16.msra.mxu0 %v10008
    %10029 = vmatprep.subr.bf16.mxu0 0
    %10030 = vmatpush1.bf16.msra.mxu0 %v10007
    %10031 = vmatprep.subr.bf16.mxu0 0
    %10032 = vmatpush1.bf16.msra.mxu0 %v10006
    %10033 = vmatprep.subr.bf16.mxu0 0
    %10034 = vmatpush2.bf16.msra.mxu0 0
    %10035 = vmatprep.subr.bf16.mxu0 0
    %10036 = vmatpush2.bf16.msra.mxu0 0
    %10037 = vmatprep.subr.bf16.mxu0 0
    %10038 = vmatpush2.bf16.msra.mxu0 0
    %10039 = vmatprep.subr.bf16.mxu0 0
    %10040 = vmatpush2.bf16.msra.mxu0 0
    %10041 = vmatprep.subr.bf16.mxu0 0
    %10042 = vmatpush2.bf16.msra.mxu0 0
    %10043 = vmatprep.subr.bf16.mxu0 0
    %10044 = vmatpush2.bf16.msra.mxu0 0
    %10045 = vmatprep.subr.bf16.mxu0 0
    %10046 = vmatpush2.bf16.msra.mxu0 0
    %10047 = vmatprep.subr.bf16.mxu0 0
    %10048 = vmatpush2.bf16.msra.mxu0 0
    %10049 = vmatprep.mubr.bf16.mxu0 0
    %10050 = vmatmul.mubr.bf16.gmra.mxu0 %v10015
    %v10051 = vpop.f32.mrf.mxu0
    %v10052 = vadd.f32 0.0, %v10051
    %v10053 = vpop.f32.mrf.mxu0
    %v10054 = vpop.f32.mrf.mxu0
    %v10055 = vpop.f32.mrf.mxu0
    %10056 = vdwg.mxu0
    %v10057 = vadd.f32 %v9953, %v10052
    %v10058 = vld [vmem:[%s3 + $0x3] sm:$0x1]
    %v10059 = vld [vmem:[%s4 + $0x3] sm:$0x1]
    %v10060 = vlaneseq
    %v10061 = vshrl.u32 %v10060, 7
    %v10062 = vsub.s32 0, %v10061
    %v10063 = vrot.slane %v10058, %v10062
    %v10064 = vmul.f32 %v10057, %v10063
    %v10065 = vlaneseq
    %v10066 = vshrl.u32 %v10065, 7
    %v10067 = vsub.s32 0, %v10066
    %v10068 = vrot.slane %v10059, %v10067
    %v10069 = vadd.f32 %v10064, %v10068
    %v10070 = vmax.f32 %v10069, 0.0
    %v10072 = vcombine.high %v10070, %v10070
    %v10074 = vunpack.c.l.s4 1983009808
    %v10075 = vunpack.c.0.s8 %v10074
    %v10076 = vlaneseq
    %v10077 = vshrl.u32 %v10076, 7
    %v10078 = vsub.s32 %v10075, %v10077
    %v10079 = vrot.slane %v10070, %v10078
    %v10081 = vunpack.c.l.s4 1983009808
    %v10082 = vunpack.c.0.s8 %v10081
    %v10083 = vlaneseq
    %v10084 = vshrl.u32 %v10083, 7
    %v10085 = vsub.s32 %v10082, %v10084
    %v10086 = vrot.slane %v10072, %v10085
    %v10087 = vcombine.high %v10079, %v10079
    %v10088 = vcombine.high %v10086, %v10086
    %v10093 = vsel %vm2264, %v10079, -inf
    %v10094 = vrot.slane %v10093, 4
    %v10095 = vmax.f32 %v10093, %v10094
    %v10096 = vrot.slane %v10095, 2
    %v10097 = vmax.f32 %v10095, %v10096
    %v10098 = vrot.slane %v10097, 1
    %v10099 = vmax.f32 %v10097, %v10098
    %v10100 = vsel %vm2264, %v10087, -inf
    %v10101 = vrot.slane %v10100, 4
    %v10102 = vmax.f32 %v10100, %v10101
    %v10103 = vrot.slane %v10102, 2
    %v10104 = vmax.f32 %v10102, %v10103
    %v10105 = vrot.slane %v10104, 1
    %v10106 = vmax.f32 %v10104, %v10105
    %v10107 = vsel %vm2264, %v10086, -inf
    %v10108 = vrot.slane %v10107, 4
    %v10109 = vmax.f32 %v10107, %v10108
    %v10110 = vrot.slane %v10109, 2
    %v10111 = vmax.f32 %v10109, %v10110
    %v10112 = vrot.slane %v10111, 1
    %v10113 = vmax.f32 %v10111, %v10112
    %v10114 = vsel %vm2264, %v10088, -inf
    %v10115 = vrot.slane %v10114, 4
    %v10116 = vmax.f32 %v10114, %v10115
    %v10117 = vrot.slane %v10116, 2
    %v10118 = vmax.f32 %v10116, %v10117
    %v10119 = vrot.slane %v10118, 1
    %v10120 = vmax.f32 %v10118, %v10119
    %v10121 = vsel %vm4057, %v10099, -inf
    %v10122 = vsel %vm4057, %v10106, -inf
    %v10123 = vmax.f32 %v10121, %v10122
    %v10124 = vsel %vm4057, %v10113, -inf
    %v10125 = vsel %vm4057, %v10120, -inf
    %v10126 = vmax.f32 %v10124, %v10125
    %v10129 = vsel %vm4631, %v10126, %v10123
    %10131 = vst.msk [vmem:[#allocation5] sm:$0x3] %vm2264, %v10129
    // Predicated region
    $region22: #{base_model_forward.1} parent=1 // pred_check
      _
    $region23: #{base_model_forward.1} parent=1 // pred_check_branch
      %10133 = sbr.rel (0) target = $region25
    $region24: #{base_model_forward.1} parent=1 // pred_region
      %s10135 = ssub.s32 32, 32
      %10136 = vsyncadd [#allocation6], %s10135
      %s10138 = sshll.u32 [#allocation5], 4
      %s10139 = int_to_ptr.vmem [resolvable:$true] %s10138
      %10141 = dma.vmem_to_hbm [thread:$0]  %s10139, 32, %s5, [#allocation6]
    $region25: #{base_model_forward.1} parent=1 // pred_fallthru
      _
    // Predicated region
    $region26: #{base_model_forward.1} parent=1 // pred_check
      _
    $region27: #{base_model_forward.1} parent=1 // pred_check_branch
      %10143 = sbr.rel (0) target = $region29
    $region28: #{base_model_forward.1} parent=1 // pred_region
      %10144 = dma.done [#allocation6], 32
    $region29: #{base_model_forward.1} parent=1 // pred_fallthru
      _
    %10145 = vsyncpa [#allocation6], 1

</llo_original>
